<compile_context>
chip_gen: v7x
topology: tpu7x:2x2x1
jax: 0.10.0
libtpu: 0.0.40
codegen_flags: <defaults>
</compile_context>

<pallas_src>
import jax
import jax.numpy as jnp
from jax.experimental import pallas as pl
from jax.experimental.pallas import tpu as pltpu

# ----------------------------- model hyper-params (small) -----------------------------
B = 2                        # batch
C_IN = 4                     # input channels
IMG = 16                     # input spatial size
STEM1 = 8                    # stem conv1 channels
STEM2 = 16                   # stem conv2 channels
D = 32                       # transformer hidden dim (real)
D_PAD = 128                  # transformer hidden dim (lane-padded)
NH = 4                       # attention heads
DH = D // NH                 # head dim
DEPTH = 2                    # transformer blocks
MLP = 4 * D                  # MLP hidden dim (=128, lane aligned)
OUT = 3                      # num classes (out_dim=3 in the module)
OUT_PAD = 128                # lane-padded logits
N_TOK = (IMG // 4) * (IMG // 4)      # 16 patch tokens
T_REAL = N_TOK + 1                   # 17 tokens incl. cls
TP = 32                              # tokens padded per batch (sublane multiple)
LOG2_TP = 5
BT = B * TP                          # 64 rows: batch folded onto the sublane axis
EPS = 1e-6                           # timm ViT LayerNorm eps

TAP = 9                              # 3x3 conv2 taps
P1_COLS = TAP * 3 * 3 * C_IN         # 324: conv1 patch per conv2 tap, concatenated
P1_PAD = 384                         # lane-padded patch width
W1_ROWS = P1_PAD                     # stem_w rows 0..383 : block-diag conv1
W2_OFF = W1_ROWS                     # stem_w rows 384..511: conv2
PW_OFF = W1_ROWS + 128               # stem_w rows 512..639: patch-embed proj
ENC_B_OFF = 8 + BT + 8               # misc row offset of per-layer bias slabs (=80)
HEAD_W_OFF = DEPTH * 128             # enc_w row offset of the head weight


# ----------------------------------- kernel helpers -----------------------------------
def _layer_norm_padded(x, g, b):
    # x: (rows, D_PAD) f32 with columns >= D equal to zero; stats over the D real features
    # (fixed 1/D; the zero-padded lanes contribute nothing). g/b are zero on padded lanes,
    # so the padded-lane-zero invariant is preserved by the output.
    inv_d = jnp.float32(1.0 / D)
    mu = jnp.sum(x, axis=-1, keepdims=True) * inv_d
    var = jnp.sum(x * x, axis=-1, keepdims=True) * inv_d - mu * mu
    return (x - mu) * jax.lax.rsqrt(var + EPS) * g + b


# ----------------------------------- fused model kernel -----------------------------------
def _model_kernel(p1g_ref, stem_w_ref, enc_w_ref, misc_ref, out_ref):
    f32, bf16 = jnp.float32, jnp.bfloat16

    # ---- masks, hoisted (computed once) ----
    row = jax.lax.broadcasted_iota(jnp.int32, (BT, BT), 0)
    col = jax.lax.broadcasted_iota(jnp.int32, (BT, BT), 1)
    same_batch = jax.lax.shift_right_logical(row, LOG2_TP) == \
        jax.lax.shift_right_logical(col, LOG2_TP)
    key_real = jnp.bitwise_and(col, TP - 1) < T_REAL
    attn_mask = jnp.logical_and(same_batch, key_real)          # block-diag batch + real keys
    t_idx = jnp.bitwise_and(jax.lax.broadcasted_iota(jnp.int32, (BT, 1), 0), TP - 1)
    row_is_patch = jnp.logical_and(t_idx >= 1, t_idx < 1 + N_TOK)

    # ---- fused conv stem + patch embed (all in VMEM/vregs, never written to HBM) ----
    # p1g rows are (b, token) with patch rows at t=1..16; cols are 9 conv2-taps x 36-dim
    # conv1 patch (block-diagonal conv1 weight evaluates conv1 once per tap).
    # TODO(synk): with a nonzero conv1 bias the out-of-bounds conv2 taps (zero patch rows)
    # would need explicit masking to reproduce conv2's zero-padding exactly.
    y1 = jnp.dot(p1g_ref[...].astype(bf16), stem_w_ref[0:W1_ROWS, :],
                 preferred_element_type=f32) + misc_ref[0:1, :]
    y1 = jnp.maximum(y1, 0.0)                                   # (BT, 128), 72 real cols
    y2 = jnp.dot(y1.astype(bf16), stem_w_ref[W2_OFF:W2_OFF + 128, :],
                 preferred_element_type=f32) + misc_ref[1:2, :]
    y2 = jnp.maximum(y2, 0.0)                                   # (BT, 128), 16 real cols
    tok = jnp.dot(y2.astype(bf16), stem_w_ref[PW_OFF:PW_OFF + 128, :],
                  preferred_element_type=f32) + misc_ref[2:3, :]
    tok = jnp.where(row_is_patch, tok, 0.0)                     # zero cls/pad token rows

    # ---- token assembly in-kernel: z = [cls | patches | pad] + pos ----
    z = misc_ref[8:8 + BT, :] + tok                             # (BT, 128) f32

    # ---- transformer encoder (statically unrolled; all intermediates stay on-chip) ----
    for l in range(DEPTH):
        eb = misc_ref[ENC_B_OFF + l * 8:ENC_B_OFF + (l + 1) * 8, :]   # (8,128) f32 bias slab
        wrow = l * 128

        # ----- MHSA: refolded per-head attention -----
        h = _layer_norm_padded(z, eb[0:1], eb[1:2])
        hb = h.astype(bf16)
        acc = z + eb[2:3]                                       # residual + folded out-proj bias
        for hh in range(NH):
            a_w = enc_w_ref[wrow:wrow + 128, hh * 128:(hh + 1) * 128]          # scale*Wq_h@Wk_h^T
            c_w = enc_w_ref[wrow:wrow + 128, (NH + hh) * 128:(NH + hh + 1) * 128]  # Wv_h@Wproj_h
            g = jnp.dot(hb, a_w, preferred_element_type=f32)                   # (BT,128), 128-deep
            s = jax.lax.dot_general(g.astype(bf16), hb, (((1,), (1,)), ((), ())),
                                    preferred_element_type=f32)                # (BT,BT), 128-deep
            s = jnp.where(attn_mask, s, -1e9)
            s = s - jnp.max(s, axis=-1, keepdims=True)
            p = jnp.exp(s)
            p = p * pl.reciprocal(jnp.sum(p, axis=-1, keepdims=True), approx=True)
            u = jnp.dot(hb, c_w, preferred_element_type=f32)                   # (BT,128), 128-deep
            acc = acc + jnp.dot(p.astype(bf16), u.astype(bf16),
                                preferred_element_type=f32)                    # (BT,128), 64-deep
        z = acc

        # ----- MLP -----
        h = _layer_norm_padded(z, eb[3:4], eb[4:5])
        m = jnp.dot(h.astype(bf16), enc_w_ref[wrow:wrow + 128, 2 * NH * 128:2 * NH * 128 + 128],
                    preferred_element_type=f32) + eb[5:6]
        # TODO(synk): timm ViT uses exact erf GELU; tanh approximation kept for safe lowering.
        m = jax.nn.gelu(m, approximate=True)
        z = z + jnp.dot(m.astype(bf16),
                        enc_w_ref[wrow:wrow + 128, 2 * NH * 128 + 128:2 * NH * 128 + 256],
                        preferred_element_type=f32) + eb[6:7]

    # ---- final LN on the cls rows + classification head ----
    zc = jnp.concatenate([z[b * TP:b * TP + 1, :] for b in range(B)], axis=0)   # (B, 128)
    zc = _layer_norm_padded(zc, misc_ref[8 + BT:8 + BT + 1, :], misc_ref[9 + BT:9 + BT + 1, :])
    out_ref[...] = jnp.dot(zc.astype(bf16), enc_w_ref[HEAD_W_OFF:HEAD_W_OFF + 128, 0:128],
                           preferred_element_type=f32) + misc_ref[10 + BT:10 + BT + 1, :]


def model_call(p1g, stem_w, enc_w, misc):
    # Single fused invocation (no grid): whole-array VMEM operands, one prologue DMA per slab.
    return pl.pallas_call(
        _model_kernel,
        out_shape=jax.ShapeDtypeStruct((B, OUT_PAD), jnp.float32),
        compiler_params=pltpu.CompilerParams(vmem_limit_bytes=32 * 1024 * 1024),
    )(p1g, stem_w, enc_w, misc)


# ----------------------------------- JAX glue (layout only) -----------------------------------
def _im2col(x_nhwc, k, stride, pad):
    """NHWC -> (B, Ho, Wo, k*k*C) patches, col order (ki, kj, c)."""
    x = jnp.pad(x_nhwc, ((0, 0), (pad, pad), (pad, pad), (0, 0)))
    Bn, Hp, Wp, C = x.shape
    Ho = (Hp - k) // stride + 1
    Wo = (Wp - k) // stride + 1
    cols = [x[:, i:i + stride * Ho:stride, j:j + stride * Wo:stride, :]
            for i in range(k) for j in range(k)]
    return jnp.concatenate(cols, axis=-1)


def forward(params, x_nchw):
    x = jnp.transpose(x_nchw, (0, 2, 3, 1)).astype(jnp.float32)       # NCHW -> NHWC

    # conv1 patches (3x3, stride 2, pad 1) then gather them per conv2 tap (3x3, stride 2,
    # pad 1 handled with zero rows) -> one (BT, P1_PAD) patch slab for the fused kernel.
    p1 = _im2col(x, 3, 2, 1)                                          # (B, 8, 8, 36)
    p1p = jnp.pad(p1, ((0, 0), (1, 1), (1, 1), (0, 0)))               # conv2 spatial zero-pad
    taps = [p1p[:, ki:ki + 2 * (IMG // 4):2, kj:kj + 2 * (IMG // 4):2, :]
            for ki in range(3) for kj in range(3)]
    p1g = jnp.concatenate(taps, axis=-1).reshape(B, N_TOK, P1_COLS)   # (B, 16, 324)
    p1g = jnp.pad(p1g, ((0, 0), (0, 0), (0, P1_PAD - P1_COLS)))
    p1g = jnp.zeros((B, TP, P1_PAD), jnp.float32).at[:, 1:1 + N_TOK, :].set(p1g)
    p1g = p1g.reshape(BT, P1_PAD)                                     # rows = b*TP + token

    logits = model_call(p1g, params["stem_w"], params["enc_w"], params["misc"])
    return logits[:, :OUT]


# ----------------------------------- parameters -----------------------------------
def init_params(key):
    keys = jax.random.split(key, 32)
    it = iter(keys)

    def nrm(shape, scale=0.02):
        return (scale * jax.random.normal(next(it), shape)).astype(jnp.float32)

    def pad_to(a, shape):
        return jnp.pad(a, [(0, t - s) for s, t in zip(a.shape, shape)])

    # ---- stem slab (bf16): block-diag conv1 (per conv2 tap), conv2, patch-embed proj ----
    w1 = nrm((3 * 3 * C_IN, STEM1))                                   # (36, 8)
    w1_bd = jnp.zeros((P1_PAD, 128), jnp.float32)
    for tap in range(TAP):
        w1_bd = w1_bd.at[tap * 3 * 3 * C_IN:(tap + 1) * 3 * 3 * C_IN,
                         tap * STEM1:(tap + 1) * STEM1].set(w1)
    b1_tiled = jnp.zeros((1, 128), jnp.float32)                       # conv1 bias (zero), tiled/tap
    w2 = pad_to(nrm((3, 3, STEM1, STEM2)).reshape(3 * 3 * STEM1, STEM2), (128, 128))
    b2 = jnp.zeros((1, 128), jnp.float32)
    pw = pad_to(nrm((STEM2, D)), (128, 128))
    pb = jnp.zeros((1, 128), jnp.float32)
    stem_w = jnp.concatenate([w1_bd, w2, pw], axis=0).astype(jnp.bfloat16)     # (640, 128)

    # ---- token assembly constants: pos (+ cls at row 0), tiled per batch ----
    cls = pad_to(nrm((1, D)), (1, D_PAD))
    pos = pad_to(nrm((T_REAL, D)), (TP, D_PAD))
    z_init = jnp.tile(pos.at[0].add(cls[0]), (B, 1))                  # (BT, 128)

    # ---- encoder slabs: refolded attention (A_h, C_h) + MLP weights, packed per layer ----
    scale = DH ** -0.5
    ln_gamma = pad_to(jnp.ones((1, D), jnp.float32), (1, D_PAD))
    zrow = jnp.zeros((1, D_PAD), jnp.float32)
    enc_w_layers, enc_b_layers = [], []
    for _ in range(DEPTH):
        wq, wk, wv, wp = nrm((D, D)), nrm((D, D)), nrm((D, D)), nrm((D, D))
        a_blocks, c_blocks = [], []
        for hh in range(NH):
            wq_h = wq[:, hh * DH:(hh + 1) * DH]
            wk_h = wk[:, hh * DH:(hh + 1) * DH]
            wv_h = wv[:, hh * DH:(hh + 1) * DH]
            wp_h = wp[hh * DH:(hh + 1) * DH, :]
            a_blocks.append(pad_to(scale * (wq_h @ wk_h.T), (D_PAD, D_PAD)))   # QK refold
            c_blocks.append(pad_to(wv_h @ wp_h, (D_PAD, D_PAD)))               # V-proj refold
        fc1 = pad_to(nrm((D, MLP)), (D_PAD, MLP))
        fc2 = pad_to(nrm((MLP, D)), (MLP, D_PAD))
        enc_w_layers.append(jnp.concatenate(a_blocks + c_blocks + [fc1, fc2], axis=1))
        # bias rows: ln1_g, ln1_b, attn_out_bias(=bv@Wp+proj_b=0), ln2_g, ln2_b, fc1_b, fc2_b, pad
        enc_b_layers.append(jnp.concatenate(
            [ln_gamma, zrow, zrow, ln_gamma, zrow, zrow, zrow, zrow], axis=0))

    head_w = pad_to(nrm((D, OUT)), (D_PAD, D_PAD))
    head_slab = pad_to(head_w, (D_PAD, (2 * NH + 2) * D_PAD))         # head in lanes 0..127
    enc_w = jnp.concatenate(enc_w_layers + [head_slab], axis=0).astype(jnp.bfloat16)  # (384,1280)

    # ---- f32 misc slab: stem biases, z_init (pos+cls), final LN / head bias, per-layer biases ----
    misc = jnp.concatenate(
        [b1_tiled, b2, pb,                              # rows 0..2
         jnp.zeros((5, D_PAD), jnp.float32),            # rows 3..7
         z_init,                                        # rows 8..8+BT-1
         ln_gamma, zrow, zrow,                          # rows 72..74: lnf_g, lnf_b, head_b
         jnp.zeros((5, D_PAD), jnp.float32)]            # rows 75..79
        + enc_b_layers, axis=0)                         # rows 80..(80+8*DEPTH-1)
    return {"stem_w": stem_w, "enc_w": enc_w, "misc": misc}


if __name__ == "__main__":
    key = jax.random.PRNGKey(0)
    pkey, xkey = jax.random.split(key)
    params = init_params(pkey)
    x = jax.random.normal(xkey, (B, C_IN, IMG, IMG), dtype=jnp.float32)   # NCHW like PyTorch

    logits = jax.jit(forward)(params, x)
    jax.block_until_ready(logits)
    assert logits.shape == (B, OUT) and logits.dtype == jnp.float32
    print("KERNEL_OK")
</pallas_src>

<mosaic_0001>
module attributes {stable_mosaic.version = 11 : i64} {
  func.func @_model_kernel(%arg0: memref<64x384xf32, #tpu.memory_space<vmem>>, %arg1: memref<640x128xbf16, #tpu.memory_space<vmem>>, %arg2: memref<384x1280xbf16, #tpu.memory_space<vmem>>, %arg3: memref<96x128xf32, #tpu.memory_space<vmem>>, %arg4: memref<2x128xf32, #tpu.memory_space<vmem>>) attributes {dimension_semantics = [], scalar_prefetch = 0 : i64, scratch_operands = 0 : i64, tpu.core_type = #tpu.core_type<tc>} {
    %0 = tpu.iota {dimensions = array<i32: 0>} : vector<64x64xi32>
    %1 = tpu.iota {dimensions = array<i32: 1>} : vector<64x64xi32>
    %c5_i32 = arith.constant 5 : i32
    %2 = vector.broadcast %c5_i32 : i32 to vector<64x64xi32>
    %3 = arith.shrui %0, %2 : vector<64x64xi32>
    %c5_i32_0 = arith.constant 5 : i32
    %4 = vector.broadcast %c5_i32_0 : i32 to vector<64x64xi32>
    %5 = arith.shrui %1, %4 : vector<64x64xi32>
    %6 = arith.cmpi eq, %3, %5 : vector<64x64xi32>
    %c31_i32 = arith.constant 31 : i32
    %7 = vector.broadcast %c31_i32 : i32 to vector<64x64xi32>
    %8 = arith.andi %1, %7 : vector<64x64xi32>
    %c17_i32 = arith.constant 17 : i32
    %9 = vector.broadcast %c17_i32 : i32 to vector<64x64xi32>
    %10 = arith.cmpi slt, %8, %9 : vector<64x64xi32>
    %11 = arith.andi %6, %10 : vector<64x64xi1>
    %12 = tpu.iota {dimensions = array<i32: 0>} : vector<64x1xi32>
    %c31_i32_1 = arith.constant 31 : i32
    %13 = vector.broadcast %c31_i32_1 : i32 to vector<64x1xi32>
    %14 = arith.andi %12, %13 : vector<64x1xi32>
    %c1_i32 = arith.constant 1 : i32
    %15 = vector.broadcast %c1_i32 : i32 to vector<64x1xi32>
    %16 = arith.cmpi sge, %14, %15 : vector<64x1xi32>
    %c17_i32_2 = arith.constant 17 : i32
    %17 = vector.broadcast %c17_i32_2 : i32 to vector<64x1xi32>
    %18 = arith.cmpi slt, %14, %17 : vector<64x1xi32>
    %19 = arith.andi %16, %18 : vector<64x1xi1>
    %c0 = arith.constant 0 : index
    %c0_3 = arith.constant 0 : index
    %20 = vector.load %arg0[%c0, %c0_3] : memref<64x384xf32, #tpu.memory_space<vmem>>, vector<64x384xf32>
    %21 = arith.truncf %20 : vector<64x384xf32> to vector<64x384xbf16>
    %c0_4 = arith.constant 0 : index
    %c0_5 = arith.constant 0 : index
    %22 = vector.load %arg1[%c0_4, %c0_5] : memref<640x128xbf16, #tpu.memory_space<vmem>>, vector<384x128xbf16>
    %cst = arith.constant dense<0.000000e+00> : vector<64x128xf32>
    %23 = tpu.matmul %21, %22, %cst {dimension_numbers = #tpu.dot_dimension_numbers<[1], [0], [0], [1], [0, 0, 1, 1], [], []>} : vector<64x384xbf16>, vector<384x128xbf16>, vector<64x128xf32> -> vector<64x128xf32>
    %c0_6 = arith.constant 0 : index
    %c0_7 = arith.constant 0 : index
    %24 = vector.load %arg3[%c0_6, %c0_7] : memref<96x128xf32, #tpu.memory_space<vmem>>, vector<1x128xf32>
    %25 = vector.broadcast %24 : vector<1x128xf32> to vector<64x128xf32>
    %26 = arith.addf %23, %25 : vector<64x128xf32>
    %cst_8 = arith.constant 0.000000e+00 : f32
    %27 = vector.broadcast %cst_8 : f32 to vector<64x128xf32>
    %28 = arith.maximumf %26, %27 : vector<64x128xf32>
    %29 = arith.truncf %28 : vector<64x128xf32> to vector<64x128xbf16>
    %c384 = arith.constant 384 : index
    %c0_9 = arith.constant 0 : index
    %30 = vector.load %arg1[%c384, %c0_9] : memref<640x128xbf16, #tpu.memory_space<vmem>>, vector<128x128xbf16>
    %cst_10 = arith.constant dense<0.000000e+00> : vector<64x128xf32>
    %31 = tpu.matmul %29, %30, %cst_10 {dimension_numbers = #tpu.dot_dimension_numbers<[1], [0], [0], [1], [0, 0, 1, 1], [], []>} : vector<64x128xbf16>, vector<128x128xbf16>, vector<64x128xf32> -> vector<64x128xf32>
    %c1 = arith.constant 1 : index
    %c0_11 = arith.constant 0 : index
    %32 = vector.load %arg3[%c1, %c0_11] : memref<96x128xf32, #tpu.memory_space<vmem>>, vector<1x128xf32>
    %33 = vector.broadcast %32 : vector<1x128xf32> to vector<64x128xf32>
    %34 = arith.addf %31, %33 : vector<64x128xf32>
    %cst_12 = arith.constant 0.000000e+00 : f32
    %35 = vector.broadcast %cst_12 : f32 to vector<64x128xf32>
    %36 = arith.maximumf %34, %35 : vector<64x128xf32>
    %37 = arith.truncf %36 : vector<64x128xf32> to vector<64x128xbf16>
    %c512 = arith.constant 512 : index
    %c0_13 = arith.constant 0 : index
    %38 = vector.load %arg1[%c512, %c0_13] : memref<640x128xbf16, #tpu.memory_space<vmem>>, vector<128x128xbf16>
    %cst_14 = arith.constant dense<0.000000e+00> : vector<64x128xf32>
    %39 = tpu.matmul %37, %38, %cst_14 {dimension_numbers = #tpu.dot_dimension_numbers<[1], [0], [0], [1], [0, 0, 1, 1], [], []>} : vector<64x128xbf16>, vector<128x128xbf16>, vector<64x128xf32> -> vector<64x128xf32>
    %c2 = arith.constant 2 : index
    %c0_15 = arith.constant 0 : index
    %40 = vector.load %arg3[%c2, %c0_15] : memref<96x128xf32, #tpu.memory_space<vmem>>, vector<1x128xf32>
    %41 = vector.broadcast %40 : vector<1x128xf32> to vector<64x128xf32>
    %42 = arith.addf %39, %41 : vector<64x128xf32>
    %cst_16 = arith.constant 0.000000e+00 : f32
    %43 = vector.shape_cast %19 : vector<64x1xi1> to vector<64x1xi1>
    %44 = vector.broadcast %43 : vector<64x1xi1> to vector<64x128xi1>
    %45 = vector.broadcast %cst_16 : f32 to vector<64x128xf32>
    %46 = arith.select %44, %42, %45 : vector<64x128xi1>, vector<64x128xf32>
    %c8 = arith.constant 8 : index
    %c0_17 = arith.constant 0 : index
    %47 = vector.load %arg3[%c8, %c0_17] : memref<96x128xf32, #tpu.memory_space<vmem>>, vector<64x128xf32>
    %48 = arith.addf %47, %46 : vector<64x128xf32>
    %c80 = arith.constant 80 : index
    %c0_18 = arith.constant 0 : index
    %49 = vector.load %arg3[%c80, %c0_18] : memref<96x128xf32, #tpu.memory_space<vmem>>, vector<8x128xf32>
    %50 = vector.extract_strided_slice %49 {offsets = [0, 0], sizes = [1, 128], strides = [1, 1]} : vector<8x128xf32> to vector<1x128xf32>
    %51 = vector.extract_strided_slice %49 {offsets = [1, 0], sizes = [1, 128], strides = [1, 1]} : vector<8x128xf32> to vector<1x128xf32>
    %cst_19 = arith.constant dense<0.000000e+00> : vector<64xf32>
    %52 = vector.multi_reduction <add>, %48, %cst_19 [1] : vector<64x128xf32> to vector<64xf32>
    %53 = vector.shape_cast %52 : vector<64xf32> to vector<64x1xf32>
    %cst_20 = arith.constant 3.125000e-02 : f32
    %54 = vector.broadcast %cst_20 : f32 to vector<64x1xf32>
    %55 = arith.mulf %53, %54 : vector<64x1xf32>
    %56 = arith.mulf %48, %48 : vector<64x128xf32>
    %cst_21 = arith.constant dense<0.000000e+00> : vector<64xf32>
    %57 = vector.multi_reduction <add>, %56, %cst_21 [1] : vector<64x128xf32> to vector<64xf32>
    %58 = vector.shape_cast %57 : vector<64xf32> to vector<64x1xf32>
    %cst_22 = arith.constant 3.125000e-02 : f32
    %59 = vector.broadcast %cst_22 : f32 to vector<64x1xf32>
    %60 = arith.mulf %58, %59 : vector<64x1xf32>
    %61 = arith.mulf %55, %55 : vector<64x1xf32>
    %62 = arith.subf %60, %61 : vector<64x1xf32>
    %63 = vector.broadcast %55 : vector<64x1xf32> to vector<64x128xf32>
    %64 = arith.subf %48, %63 : vector<64x128xf32>
    %cst_23 = arith.constant 9.99999997E-7 : f32
    %65 = vector.broadcast %cst_23 : f32 to vector<64x1xf32>
    %66 = arith.addf %62, %65 : vector<64x1xf32>
    %67 = math.rsqrt %66 : vector<64x1xf32>
    %68 = vector.broadcast %67 : vector<64x1xf32> to vector<64x128xf32>
    %69 = arith.mulf %64, %68 : vector<64x128xf32>
    %70 = vector.broadcast %50 : vector<1x128xf32> to vector<64x128xf32>
    %71 = arith.mulf %69, %70 : vector<64x128xf32>
    %72 = vector.broadcast %51 : vector<1x128xf32> to vector<64x128xf32>
    %73 = arith.addf %71, %72 : vector<64x128xf32>
    %74 = arith.truncf %73 : vector<64x128xf32> to vector<64x128xbf16>
    %75 = vector.extract_strided_slice %49 {offsets = [2, 0], sizes = [1, 128], strides = [1, 1]} : vector<8x128xf32> to vector<1x128xf32>
    %76 = vector.broadcast %75 : vector<1x128xf32> to vector<64x128xf32>
    %77 = arith.addf %48, %76 : vector<64x128xf32>
    %c0_24 = arith.constant 0 : index
    %c0_25 = arith.constant 0 : index
    %78 = vector.load %arg2[%c0_24, %c0_25] : memref<384x1280xbf16, #tpu.memory_space<vmem>>, vector<128x128xbf16>
    %c0_26 = arith.constant 0 : index
    %c512_27 = arith.constant 512 : index
    %79 = vector.load %arg2[%c0_26, %c512_27] : memref<384x1280xbf16, #tpu.memory_space<vmem>>, vector<128x128xbf16>
    %cst_28 = arith.constant dense<0.000000e+00> : vector<64x128xf32>
    %80 = tpu.matmul %74, %78, %cst_28 {dimension_numbers = #tpu.dot_dimension_numbers<[1], [0], [0], [1], [0, 0, 1, 1], [], []>} : vector<64x128xbf16>, vector<128x128xbf16>, vector<64x128xf32> -> vector<64x128xf32>
    %81 = arith.truncf %80 : vector<64x128xf32> to vector<64x128xbf16>
    %cst_29 = arith.constant dense<0.000000e+00> : vector<64x64xf32>
    %82 = tpu.matmul %81, %74, %cst_29 {dimension_numbers = #tpu.dot_dimension_numbers<[1], [1], [0], [0], [0, 0, 1, 0], [], []>} : vector<64x128xbf16>, vector<64x128xbf16>, vector<64x64xf32> -> vector<64x64xf32>
    %cst_30 = arith.constant -1.000000e+09 : f32
    %83 = vector.broadcast %cst_30 : f32 to vector<64x64xf32>
    %84 = arith.select %11, %82, %83 : vector<64x64xi1>, vector<64x64xf32>
    %cst_31 = arith.constant dense<0xFF800000> : vector<64xf32>
    %85 = vector.multi_reduction <maximumf>, %84, %cst_31 [1] : vector<64x64xf32> to vector<64xf32>
    %86 = vector.shape_cast %85 : vector<64xf32> to vector<64x1xf32>
    %87 = vector.broadcast %86 : vector<64x1xf32> to vector<64x64xf32>
    %88 = arith.subf %84, %87 : vector<64x64xf32>
    %89 = math.exp %88 : vector<64x64xf32>
    %cst_32 = arith.constant dense<0.000000e+00> : vector<64xf32>
    %90 = vector.multi_reduction <add>, %89, %cst_32 [1] : vector<64x64xf32> to vector<64xf32>
    %91 = vector.shape_cast %90 : vector<64xf32> to vector<64x1xf32>
    %92 = tpu.reciprocal %91 {approx = true} : vector<64x1xf32> -> vector<64x1xf32>
    %93 = vector.broadcast %92 : vector<64x1xf32> to vector<64x64xf32>
    %94 = arith.mulf %89, %93 : vector<64x64xf32>
    %cst_33 = arith.constant dense<0.000000e+00> : vector<64x128xf32>
    %95 = tpu.matmul %74, %79, %cst_33 {dimension_numbers = #tpu.dot_dimension_numbers<[1], [0], [0], [1], [0, 0, 1, 1], [], []>} : vector<64x128xbf16>, vector<128x128xbf16>, vector<64x128xf32> -> vector<64x128xf32>
    %96 = arith.truncf %94 : vector<64x64xf32> to vector<64x64xbf16>
    %97 = arith.truncf %95 : vector<64x128xf32> to vector<64x128xbf16>
    %cst_34 = arith.constant dense<0.000000e+00> : vector<64x128xf32>
    %98 = tpu.matmul %96, %97, %cst_34 {dimension_numbers = #tpu.dot_dimension_numbers<[1], [0], [0], [1], [0, 0, 1, 1], [], []>} : vector<64x64xbf16>, vector<64x128xbf16>, vector<64x128xf32> -> vector<64x128xf32>
    %99 = arith.addf %77, %98 : vector<64x128xf32>
    %c0_35 = arith.constant 0 : index
    %c128 = arith.constant 128 : index
    %100 = vector.load %arg2[%c0_35, %c128] : memref<384x1280xbf16, #tpu.memory_space<vmem>>, vector<128x128xbf16>
    %c0_36 = arith.constant 0 : index
    %c640 = arith.constant 640 : index
    %101 = vector.load %arg2[%c0_36, %c640] : memref<384x1280xbf16, #tpu.memory_space<vmem>>, vector<128x128xbf16>
    %cst_37 = arith.constant dense<0.000000e+00> : vector<64x128xf32>
    %102 = tpu.matmul %74, %100, %cst_37 {dimension_numbers = #tpu.dot_dimension_numbers<[1], [0], [0], [1], [0, 0, 1, 1], [], []>} : vector<64x128xbf16>, vector<128x128xbf16>, vector<64x128xf32> -> vector<64x128xf32>
    %103 = arith.truncf %102 : vector<64x128xf32> to vector<64x128xbf16>
    %cst_38 = arith.constant dense<0.000000e+00> : vector<64x64xf32>
    %104 = tpu.matmul %103, %74, %cst_38 {dimension_numbers = #tpu.dot_dimension_numbers<[1], [1], [0], [0], [0, 0, 1, 0], [], []>} : vector<64x128xbf16>, vector<64x128xbf16>, vector<64x64xf32> -> vector<64x64xf32>
    %cst_39 = arith.constant -1.000000e+09 : f32
    %105 = vector.broadcast %cst_39 : f32 to vector<64x64xf32>
    %106 = arith.select %11, %104, %105 : vector<64x64xi1>, vector<64x64xf32>
    %cst_40 = arith.constant dense<0xFF800000> : vector<64xf32>
    %107 = vector.multi_reduction <maximumf>, %106, %cst_40 [1] : vector<64x64xf32> to vector<64xf32>
    %108 = vector.shape_cast %107 : vector<64xf32> to vector<64x1xf32>
    %109 = vector.broadcast %108 : vector<64x1xf32> to vector<64x64xf32>
    %110 = arith.subf %106, %109 : vector<64x64xf32>
    %111 = math.exp %110 : vector<64x64xf32>
    %cst_41 = arith.constant dense<0.000000e+00> : vector<64xf32>
    %112 = vector.multi_reduction <add>, %111, %cst_41 [1] : vector<64x64xf32> to vector<64xf32>
    %113 = vector.shape_cast %112 : vector<64xf32> to vector<64x1xf32>
    %114 = tpu.reciprocal %113 {approx = true} : vector<64x1xf32> -> vector<64x1xf32>
    %115 = vector.broadcast %114 : vector<64x1xf32> to vector<64x64xf32>
    %116 = arith.mulf %111, %115 : vector<64x64xf32>
    %cst_42 = arith.constant dense<0.000000e+00> : vector<64x128xf32>
    %117 = tpu.matmul %74, %101, %cst_42 {dimension_numbers = #tpu.dot_dimension_numbers<[1], [0], [0], [1], [0, 0, 1, 1], [], []>} : vector<64x128xbf16>, vector<128x128xbf16>, vector<64x128xf32> -> vector<64x128xf32>
    %118 = arith.truncf %116 : vector<64x64xf32> to vector<64x64xbf16>
    %119 = arith.truncf %117 : vector<64x128xf32> to vector<64x128xbf16>
    %cst_43 = arith.constant dense<0.000000e+00> : vector<64x128xf32>
    %120 = tpu.matmul %118, %119, %cst_43 {dimension_numbers = #tpu.dot_dimension_numbers<[1], [0], [0], [1], [0, 0, 1, 1], [], []>} : vector<64x64xbf16>, vector<64x128xbf16>, vector<64x128xf32> -> vector<64x128xf32>
    %121 = arith.addf %99, %120 : vector<64x128xf32>
    %c0_44 = arith.constant 0 : index
    %c256 = arith.constant 256 : index
    %122 = vector.load %arg2[%c0_44, %c256] : memref<384x1280xbf16, #tpu.memory_space<vmem>>, vector<128x128xbf16>
    %c0_45 = arith.constant 0 : index
    %c768 = arith.constant 768 : index
    %123 = vector.load %arg2[%c0_45, %c768] : memref<384x1280xbf16, #tpu.memory_space<vmem>>, vector<128x128xbf16>
    %cst_46 = arith.constant dense<0.000000e+00> : vector<64x128xf32>
    %124 = tpu.matmul %74, %122, %cst_46 {dimension_numbers = #tpu.dot_dimension_numbers<[1], [0], [0], [1], [0, 0, 1, 1], [], []>} : vector<64x128xbf16>, vector<128x128xbf16>, vector<64x128xf32> -> vector<64x128xf32>
    %125 = arith.truncf %124 : vector<64x128xf32> to vector<64x128xbf16>
    %cst_47 = arith.constant dense<0.000000e+00> : vector<64x64xf32>
    %126 = tpu.matmul %125, %74, %cst_47 {dimension_numbers = #tpu.dot_dimension_numbers<[1], [1], [0], [0], [0, 0, 1, 0], [], []>} : vector<64x128xbf16>, vector<64x128xbf16>, vector<64x64xf32> -> vector<64x64xf32>
    %cst_48 = arith.constant -1.000000e+09 : f32
    %127 = vector.broadcast %cst_48 : f32 to vector<64x64xf32>
    %128 = arith.select %11, %126, %127 : vector<64x64xi1>, vector<64x64xf32>
    %cst_49 = arith.constant dense<0xFF800000> : vector<64xf32>
    %129 = vector.multi_reduction <maximumf>, %128, %cst_49 [1] : vector<64x64xf32> to vector<64xf32>
    %130 = vector.shape_cast %129 : vector<64xf32> to vector<64x1xf32>
    %131 = vector.broadcast %130 : vector<64x1xf32> to vector<64x64xf32>
    %132 = arith.subf %128, %131 : vector<64x64xf32>
    %133 = math.exp %132 : vector<64x64xf32>
    %cst_50 = arith.constant dense<0.000000e+00> : vector<64xf32>
    %134 = vector.multi_reduction <add>, %133, %cst_50 [1] : vector<64x64xf32> to vector<64xf32>
    %135 = vector.shape_cast %134 : vector<64xf32> to vector<64x1xf32>
    %136 = tpu.reciprocal %135 {approx = true} : vector<64x1xf32> -> vector<64x1xf32>
    %137 = vector.broadcast %136 : vector<64x1xf32> to vector<64x64xf32>
    %138 = arith.mulf %133, %137 : vector<64x64xf32>
    %cst_51 = arith.constant dense<0.000000e+00> : vector<64x128xf32>
    %139 = tpu.matmul %74, %123, %cst_51 {dimension_numbers = #tpu.dot_dimension_numbers<[1], [0], [0], [1], [0, 0, 1, 1], [], []>} : vector<64x128xbf16>, vector<128x128xbf16>, vector<64x128xf32> -> vector<64x128xf32>
    %140 = arith.truncf %138 : vector<64x64xf32> to vector<64x64xbf16>
    %141 = arith.truncf %139 : vector<64x128xf32> to vector<64x128xbf16>
    %cst_52 = arith.constant dense<0.000000e+00> : vector<64x128xf32>
    %142 = tpu.matmul %140, %141, %cst_52 {dimension_numbers = #tpu.dot_dimension_numbers<[1], [0], [0], [1], [0, 0, 1, 1], [], []>} : vector<64x64xbf16>, vector<64x128xbf16>, vector<64x128xf32> -> vector<64x128xf32>
    %143 = arith.addf %121, %142 : vector<64x128xf32>
    %c0_53 = arith.constant 0 : index
    %c384_54 = arith.constant 384 : index
    %144 = vector.load %arg2[%c0_53, %c384_54] : memref<384x1280xbf16, #tpu.memory_space<vmem>>, vector<128x128xbf16>
    %c0_55 = arith.constant 0 : index
    %c896 = arith.constant 896 : index
    %145 = vector.load %arg2[%c0_55, %c896] : memref<384x1280xbf16, #tpu.memory_space<vmem>>, vector<128x128xbf16>
    %cst_56 = arith.constant dense<0.000000e+00> : vector<64x128xf32>
    %146 = tpu.matmul %74, %144, %cst_56 {dimension_numbers = #tpu.dot_dimension_numbers<[1], [0], [0], [1], [0, 0, 1, 1], [], []>} : vector<64x128xbf16>, vector<128x128xbf16>, vector<64x128xf32> -> vector<64x128xf32>
    %147 = arith.truncf %146 : vector<64x128xf32> to vector<64x128xbf16>
    %cst_57 = arith.constant dense<0.000000e+00> : vector<64x64xf32>
    %148 = tpu.matmul %147, %74, %cst_57 {dimension_numbers = #tpu.dot_dimension_numbers<[1], [1], [0], [0], [0, 0, 1, 0], [], []>} : vector<64x128xbf16>, vector<64x128xbf16>, vector<64x64xf32> -> vector<64x64xf32>
    %cst_58 = arith.constant -1.000000e+09 : f32
    %149 = vector.broadcast %cst_58 : f32 to vector<64x64xf32>
    %150 = arith.select %11, %148, %149 : vector<64x64xi1>, vector<64x64xf32>
    %cst_59 = arith.constant dense<0xFF800000> : vector<64xf32>
    %151 = vector.multi_reduction <maximumf>, %150, %cst_59 [1] : vector<64x64xf32> to vector<64xf32>
    %152 = vector.shape_cast %151 : vector<64xf32> to vector<64x1xf32>
    %153 = vector.broadcast %152 : vector<64x1xf32> to vector<64x64xf32>
    %154 = arith.subf %150, %153 : vector<64x64xf32>
    %155 = math.exp %154 : vector<64x64xf32>
    %cst_60 = arith.constant dense<0.000000e+00> : vector<64xf32>
    %156 = vector.multi_reduction <add>, %155, %cst_60 [1] : vector<64x64xf32> to vector<64xf32>
    %157 = vector.shape_cast %156 : vector<64xf32> to vector<64x1xf32>
    %158 = tpu.reciprocal %157 {approx = true} : vector<64x1xf32> -> vector<64x1xf32>
    %159 = vector.broadcast %158 : vector<64x1xf32> to vector<64x64xf32>
    %160 = arith.mulf %155, %159 : vector<64x64xf32>
    %cst_61 = arith.constant dense<0.000000e+00> : vector<64x128xf32>
    %161 = tpu.matmul %74, %145, %cst_61 {dimension_numbers = #tpu.dot_dimension_numbers<[1], [0], [0], [1], [0, 0, 1, 1], [], []>} : vector<64x128xbf16>, vector<128x128xbf16>, vector<64x128xf32> -> vector<64x128xf32>
    %162 = arith.truncf %160 : vector<64x64xf32> to vector<64x64xbf16>
    %163 = arith.truncf %161 : vector<64x128xf32> to vector<64x128xbf16>
    %cst_62 = arith.constant dense<0.000000e+00> : vector<64x128xf32>
    %164 = tpu.matmul %162, %163, %cst_62 {dimension_numbers = #tpu.dot_dimension_numbers<[1], [0], [0], [1], [0, 0, 1, 1], [], []>} : vector<64x64xbf16>, vector<64x128xbf16>, vector<64x128xf32> -> vector<64x128xf32>
    %165 = arith.addf %143, %164 : vector<64x128xf32>
    %166 = vector.extract_strided_slice %49 {offsets = [3, 0], sizes = [1, 128], strides = [1, 1]} : vector<8x128xf32> to vector<1x128xf32>
    %167 = vector.extract_strided_slice %49 {offsets = [4, 0], sizes = [1, 128], strides = [1, 1]} : vector<8x128xf32> to vector<1x128xf32>
    %cst_63 = arith.constant dense<0.000000e+00> : vector<64xf32>
    %168 = vector.multi_reduction <add>, %165, %cst_63 [1] : vector<64x128xf32> to vector<64xf32>
    %169 = vector.shape_cast %168 : vector<64xf32> to vector<64x1xf32>
    %cst_64 = arith.constant 3.125000e-02 : f32
    %170 = vector.broadcast %cst_64 : f32 to vector<64x1xf32>
    %171 = arith.mulf %169, %170 : vector<64x1xf32>
    %172 = arith.mulf %165, %165 : vector<64x128xf32>
    %cst_65 = arith.constant dense<0.000000e+00> : vector<64xf32>
    %173 = vector.multi_reduction <add>, %172, %cst_65 [1] : vector<64x128xf32> to vector<64xf32>
    %174 = vector.shape_cast %173 : vector<64xf32> to vector<64x1xf32>
    %cst_66 = arith.constant 3.125000e-02 : f32
    %175 = vector.broadcast %cst_66 : f32 to vector<64x1xf32>
    %176 = arith.mulf %174, %175 : vector<64x1xf32>
    %177 = arith.mulf %171, %171 : vector<64x1xf32>
    %178 = arith.subf %176, %177 : vector<64x1xf32>
    %179 = vector.broadcast %171 : vector<64x1xf32> to vector<64x128xf32>
    %180 = arith.subf %165, %179 : vector<64x128xf32>
    %cst_67 = arith.constant 9.99999997E-7 : f32
    %181 = vector.broadcast %cst_67 : f32 to vector<64x1xf32>
    %182 = arith.addf %178, %181 : vector<64x1xf32>
    %183 = math.rsqrt %182 : vector<64x1xf32>
    %184 = vector.broadcast %183 : vector<64x1xf32> to vector<64x128xf32>
    %185 = arith.mulf %180, %184 : vector<64x128xf32>
    %186 = vector.broadcast %166 : vector<1x128xf32> to vector<64x128xf32>
    %187 = arith.mulf %185, %186 : vector<64x128xf32>
    %188 = vector.broadcast %167 : vector<1x128xf32> to vector<64x128xf32>
    %189 = arith.addf %187, %188 : vector<64x128xf32>
    %190 = arith.truncf %189 : vector<64x128xf32> to vector<64x128xbf16>
    %c0_68 = arith.constant 0 : index
    %c1024 = arith.constant 1024 : index
    %191 = vector.load %arg2[%c0_68, %c1024] : memref<384x1280xbf16, #tpu.memory_space<vmem>>, vector<128x128xbf16>
    %cst_69 = arith.constant dense<0.000000e+00> : vector<64x128xf32>
    %192 = tpu.matmul %190, %191, %cst_69 {dimension_numbers = #tpu.dot_dimension_numbers<[1], [0], [0], [1], [0, 0, 1, 1], [], []>} : vector<64x128xbf16>, vector<128x128xbf16>, vector<64x128xf32> -> vector<64x128xf32>
    %193 = vector.extract_strided_slice %49 {offsets = [5, 0], sizes = [1, 128], strides = [1, 1]} : vector<8x128xf32> to vector<1x128xf32>
    %194 = vector.broadcast %193 : vector<1x128xf32> to vector<64x128xf32>
    %195 = arith.addf %192, %194 : vector<64x128xf32>
    %196 = arith.mulf %195, %195 : vector<64x128xf32>
    %197 = arith.mulf %195, %196 : vector<64x128xf32>
    %cst_70 = arith.constant 4.471500e-02 : f32
    %198 = vector.broadcast %cst_70 : f32 to vector<64x128xf32>
    %199 = arith.mulf %198, %197 : vector<64x128xf32>
    %200 = arith.addf %195, %199 : vector<64x128xf32>
    %cst_71 = arith.constant 0.797884583 : f32
    %201 = vector.broadcast %cst_71 : f32 to vector<64x128xf32>
    %202 = arith.mulf %201, %200 : vector<64x128xf32>
    %203 = math.tanh %202 : vector<64x128xf32>
    %cst_72 = arith.constant 1.000000e+00 : f32
    %204 = vector.broadcast %cst_72 : f32 to vector<64x128xf32>
    %205 = arith.addf %204, %203 : vector<64x128xf32>
    %cst_73 = arith.constant 5.000000e-01 : f32
    %206 = vector.broadcast %cst_73 : f32 to vector<64x128xf32>
    %207 = arith.mulf %206, %205 : vector<64x128xf32>
    %208 = arith.mulf %195, %207 : vector<64x128xf32>
    %209 = arith.truncf %208 : vector<64x128xf32> to vector<64x128xbf16>
    %c0_74 = arith.constant 0 : index
    %c1152 = arith.constant 1152 : index
    %210 = vector.load %arg2[%c0_74, %c1152] : memref<384x1280xbf16, #tpu.memory_space<vmem>>, vector<128x128xbf16>
    %cst_75 = arith.constant dense<0.000000e+00> : vector<64x128xf32>
    %211 = tpu.matmul %209, %210, %cst_75 {dimension_numbers = #tpu.dot_dimension_numbers<[1], [0], [0], [1], [0, 0, 1, 1], [], []>} : vector<64x128xbf16>, vector<128x128xbf16>, vector<64x128xf32> -> vector<64x128xf32>
    %212 = arith.addf %165, %211 : vector<64x128xf32>
    %213 = vector.extract_strided_slice %49 {offsets = [6, 0], sizes = [1, 128], strides = [1, 1]} : vector<8x128xf32> to vector<1x128xf32>
    %214 = vector.broadcast %213 : vector<1x128xf32> to vector<64x128xf32>
    %215 = arith.addf %212, %214 : vector<64x128xf32>
    %c88 = arith.constant 88 : index
    %c0_76 = arith.constant 0 : index
    %216 = vector.load %arg3[%c88, %c0_76] : memref<96x128xf32, #tpu.memory_space<vmem>>, vector<8x128xf32>
    %217 = vector.extract_strided_slice %216 {offsets = [0, 0], sizes = [1, 128], strides = [1, 1]} : vector<8x128xf32> to vector<1x128xf32>
    %218 = vector.extract_strided_slice %216 {offsets = [1, 0], sizes = [1, 128], strides = [1, 1]} : vector<8x128xf32> to vector<1x128xf32>
    %cst_77 = arith.constant dense<0.000000e+00> : vector<64xf32>
    %219 = vector.multi_reduction <add>, %215, %cst_77 [1] : vector<64x128xf32> to vector<64xf32>
    %220 = vector.shape_cast %219 : vector<64xf32> to vector<64x1xf32>
    %cst_78 = arith.constant 3.125000e-02 : f32
    %221 = vector.broadcast %cst_78 : f32 to vector<64x1xf32>
    %222 = arith.mulf %220, %221 : vector<64x1xf32>
    %223 = arith.mulf %215, %215 : vector<64x128xf32>
    %cst_79 = arith.constant dense<0.000000e+00> : vector<64xf32>
    %224 = vector.multi_reduction <add>, %223, %cst_79 [1] : vector<64x128xf32> to vector<64xf32>
    %225 = vector.shape_cast %224 : vector<64xf32> to vector<64x1xf32>
    %cst_80 = arith.constant 3.125000e-02 : f32
    %226 = vector.broadcast %cst_80 : f32 to vector<64x1xf32>
    %227 = arith.mulf %225, %226 : vector<64x1xf32>
    %228 = arith.mulf %222, %222 : vector<64x1xf32>
    %229 = arith.subf %227, %228 : vector<64x1xf32>
    %230 = vector.broadcast %222 : vector<64x1xf32> to vector<64x128xf32>
    %231 = arith.subf %215, %230 : vector<64x128xf32>
    %cst_81 = arith.constant 9.99999997E-7 : f32
    %232 = vector.broadcast %cst_81 : f32 to vector<64x1xf32>
    %233 = arith.addf %229, %232 : vector<64x1xf32>
    %234 = math.rsqrt %233 : vector<64x1xf32>
    %235 = vector.broadcast %234 : vector<64x1xf32> to vector<64x128xf32>
    %236 = arith.mulf %231, %235 : vector<64x128xf32>
    %237 = vector.broadcast %217 : vector<1x128xf32> to vector<64x128xf32>
    %238 = arith.mulf %236, %237 : vector<64x128xf32>
    %239 = vector.broadcast %218 : vector<1x128xf32> to vector<64x128xf32>
    %240 = arith.addf %238, %239 : vector<64x128xf32>
    %241 = arith.truncf %240 : vector<64x128xf32> to vector<64x128xbf16>
    %242 = vector.extract_strided_slice %216 {offsets = [2, 0], sizes = [1, 128], strides = [1, 1]} : vector<8x128xf32> to vector<1x128xf32>
    %243 = vector.broadcast %242 : vector<1x128xf32> to vector<64x128xf32>
    %244 = arith.addf %215, %243 : vector<64x128xf32>
    %c128_82 = arith.constant 128 : index
    %c0_83 = arith.constant 0 : index
    %245 = vector.load %arg2[%c128_82, %c0_83] : memref<384x1280xbf16, #tpu.memory_space<vmem>>, vector<128x128xbf16>
    %c128_84 = arith.constant 128 : index
    %c512_85 = arith.constant 512 : index
    %246 = vector.load %arg2[%c128_84, %c512_85] : memref<384x1280xbf16, #tpu.memory_space<vmem>>, vector<128x128xbf16>
    %cst_86 = arith.constant dense<0.000000e+00> : vector<64x128xf32>
    %247 = tpu.matmul %241, %245, %cst_86 {dimension_numbers = #tpu.dot_dimension_numbers<[1], [0], [0], [1], [0, 0, 1, 1], [], []>} : vector<64x128xbf16>, vector<128x128xbf16>, vector<64x128xf32> -> vector<64x128xf32>
    %248 = arith.truncf %247 : vector<64x128xf32> to vector<64x128xbf16>
    %cst_87 = arith.constant dense<0.000000e+00> : vector<64x64xf32>
    %249 = tpu.matmul %248, %241, %cst_87 {dimension_numbers = #tpu.dot_dimension_numbers<[1], [1], [0], [0], [0, 0, 1, 0], [], []>} : vector<64x128xbf16>, vector<64x128xbf16>, vector<64x64xf32> -> vector<64x64xf32>
    %cst_88 = arith.constant -1.000000e+09 : f32
    %250 = vector.broadcast %cst_88 : f32 to vector<64x64xf32>
    %251 = arith.select %11, %249, %250 : vector<64x64xi1>, vector<64x64xf32>
    %cst_89 = arith.constant dense<0xFF800000> : vector<64xf32>
    %252 = vector.multi_reduction <maximumf>, %251, %cst_89 [1] : vector<64x64xf32> to vector<64xf32>
    %253 = vector.shape_cast %252 : vector<64xf32> to vector<64x1xf32>
    %254 = vector.broadcast %253 : vector<64x1xf32> to vector<64x64xf32>
    %255 = arith.subf %251, %254 : vector<64x64xf32>
    %256 = math.exp %255 : vector<64x64xf32>
    %cst_90 = arith.constant dense<0.000000e+00> : vector<64xf32>
    %257 = vector.multi_reduction <add>, %256, %cst_90 [1] : vector<64x64xf32> to vector<64xf32>
    %258 = vector.shape_cast %257 : vector<64xf32> to vector<64x1xf32>
    %259 = tpu.reciprocal %258 {approx = true} : vector<64x1xf32> -> vector<64x1xf32>
    %260 = vector.broadcast %259 : vector<64x1xf32> to vector<64x64xf32>
    %261 = arith.mulf %256, %260 : vector<64x64xf32>
    %cst_91 = arith.constant dense<0.000000e+00> : vector<64x128xf32>
    %262 = tpu.matmul %241, %246, %cst_91 {dimension_numbers = #tpu.dot_dimension_numbers<[1], [0], [0], [1], [0, 0, 1, 1], [], []>} : vector<64x128xbf16>, vector<128x128xbf16>, vector<64x128xf32> -> vector<64x128xf32>
    %263 = arith.truncf %261 : vector<64x64xf32> to vector<64x64xbf16>
    %264 = arith.truncf %262 : vector<64x128xf32> to vector<64x128xbf16>
    %cst_92 = arith.constant dense<0.000000e+00> : vector<64x128xf32>
    %265 = tpu.matmul %263, %264, %cst_92 {dimension_numbers = #tpu.dot_dimension_numbers<[1], [0], [0], [1], [0, 0, 1, 1], [], []>} : vector<64x64xbf16>, vector<64x128xbf16>, vector<64x128xf32> -> vector<64x128xf32>
    %266 = arith.addf %244, %265 : vector<64x128xf32>
    %c128_93 = arith.constant 128 : index
    %c128_94 = arith.constant 128 : index
    %267 = vector.load %arg2[%c128_93, %c128_94] : memref<384x1280xbf16, #tpu.memory_space<vmem>>, vector<128x128xbf16>
    %c128_95 = arith.constant 128 : index
    %c640_96 = arith.constant 640 : index
    %268 = vector.load %arg2[%c128_95, %c640_96] : memref<384x1280xbf16, #tpu.memory_space<vmem>>, vector<128x128xbf16>
    %cst_97 = arith.constant dense<0.000000e+00> : vector<64x128xf32>
    %269 = tpu.matmul %241, %267, %cst_97 {dimension_numbers = #tpu.dot_dimension_numbers<[1], [0], [0], [1], [0, 0, 1, 1], [], []>} : vector<64x128xbf16>, vector<128x128xbf16>, vector<64x128xf32> -> vector<64x128xf32>
    %270 = arith.truncf %269 : vector<64x128xf32> to vector<64x128xbf16>
    %cst_98 = arith.constant dense<0.000000e+00> : vector<64x64xf32>
    %271 = tpu.matmul %270, %241, %cst_98 {dimension_numbers = #tpu.dot_dimension_numbers<[1], [1], [0], [0], [0, 0, 1, 0], [], []>} : vector<64x128xbf16>, vector<64x128xbf16>, vector<64x64xf32> -> vector<64x64xf32>
    %cst_99 = arith.constant -1.000000e+09 : f32
    %272 = vector.broadcast %cst_99 : f32 to vector<64x64xf32>
    %273 = arith.select %11, %271, %272 : vector<64x64xi1>, vector<64x64xf32>
    %cst_100 = arith.constant dense<0xFF800000> : vector<64xf32>
    %274 = vector.multi_reduction <maximumf>, %273, %cst_100 [1] : vector<64x64xf32> to vector<64xf32>
    %275 = vector.shape_cast %274 : vector<64xf32> to vector<64x1xf32>
    %276 = vector.broadcast %275 : vector<64x1xf32> to vector<64x64xf32>
    %277 = arith.subf %273, %276 : vector<64x64xf32>
    %278 = math.exp %277 : vector<64x64xf32>
    %cst_101 = arith.constant dense<0.000000e+00> : vector<64xf32>
    %279 = vector.multi_reduction <add>, %278, %cst_101 [1] : vector<64x64xf32> to vector<64xf32>
    %280 = vector.shape_cast %279 : vector<64xf32> to vector<64x1xf32>
    %281 = tpu.reciprocal %280 {approx = true} : vector<64x1xf32> -> vector<64x1xf32>
    %282 = vector.broadcast %281 : vector<64x1xf32> to vector<64x64xf32>
    %283 = arith.mulf %278, %282 : vector<64x64xf32>
    %cst_102 = arith.constant dense<0.000000e+00> : vector<64x128xf32>
    %284 = tpu.matmul %241, %268, %cst_102 {dimension_numbers = #tpu.dot_dimension_numbers<[1], [0], [0], [1], [0, 0, 1, 1], [], []>} : vector<64x128xbf16>, vector<128x128xbf16>, vector<64x128xf32> -> vector<64x128xf32>
    %285 = arith.truncf %283 : vector<64x64xf32> to vector<64x64xbf16>
    %286 = arith.truncf %284 : vector<64x128xf32> to vector<64x128xbf16>
    %cst_103 = arith.constant dense<0.000000e+00> : vector<64x128xf32>
    %287 = tpu.matmul %285, %286, %cst_103 {dimension_numbers = #tpu.dot_dimension_numbers<[1], [0], [0], [1], [0, 0, 1, 1], [], []>} : vector<64x64xbf16>, vector<64x128xbf16>, vector<64x128xf32> -> vector<64x128xf32>
    %288 = arith.addf %266, %287 : vector<64x128xf32>
    %c128_104 = arith.constant 128 : index
    %c256_105 = arith.constant 256 : index
    %289 = vector.load %arg2[%c128_104, %c256_105] : memref<384x1280xbf16, #tpu.memory_space<vmem>>, vector<128x128xbf16>
    %c128_106 = arith.constant 128 : index
    %c768_107 = arith.constant 768 : index
    %290 = vector.load %arg2[%c128_106, %c768_107] : memref<384x1280xbf16, #tpu.memory_space<vmem>>, vector<128x128xbf16>
    %cst_108 = arith.constant dense<0.000000e+00> : vector<64x128xf32>
    %291 = tpu.matmul %241, %289, %cst_108 {dimension_numbers = #tpu.dot_dimension_numbers<[1], [0], [0], [1], [0, 0, 1, 1], [], []>} : vector<64x128xbf16>, vector<128x128xbf16>, vector<64x128xf32> -> vector<64x128xf32>
    %292 = arith.truncf %291 : vector<64x128xf32> to vector<64x128xbf16>
    %cst_109 = arith.constant dense<0.000000e+00> : vector<64x64xf32>
    %293 = tpu.matmul %292, %241, %cst_109 {dimension_numbers = #tpu.dot_dimension_numbers<[1], [1], [0], [0], [0, 0, 1, 0], [], []>} : vector<64x128xbf16>, vector<64x128xbf16>, vector<64x64xf32> -> vector<64x64xf32>
    %cst_110 = arith.constant -1.000000e+09 : f32
    %294 = vector.broadcast %cst_110 : f32 to vector<64x64xf32>
    %295 = arith.select %11, %293, %294 : vector<64x64xi1>, vector<64x64xf32>
    %cst_111 = arith.constant dense<0xFF800000> : vector<64xf32>
    %296 = vector.multi_reduction <maximumf>, %295, %cst_111 [1] : vector<64x64xf32> to vector<64xf32>
    %297 = vector.shape_cast %296 : vector<64xf32> to vector<64x1xf32>
    %298 = vector.broadcast %297 : vector<64x1xf32> to vector<64x64xf32>
    %299 = arith.subf %295, %298 : vector<64x64xf32>
    %300 = math.exp %299 : vector<64x64xf32>
    %cst_112 = arith.constant dense<0.000000e+00> : vector<64xf32>
    %301 = vector.multi_reduction <add>, %300, %cst_112 [1] : vector<64x64xf32> to vector<64xf32>
    %302 = vector.shape_cast %301 : vector<64xf32> to vector<64x1xf32>
    %303 = tpu.reciprocal %302 {approx = true} : vector<64x1xf32> -> vector<64x1xf32>
    %304 = vector.broadcast %303 : vector<64x1xf32> to vector<64x64xf32>
    %305 = arith.mulf %300, %304 : vector<64x64xf32>
    %cst_113 = arith.constant dense<0.000000e+00> : vector<64x128xf32>
    %306 = tpu.matmul %241, %290, %cst_113 {dimension_numbers = #tpu.dot_dimension_numbers<[1], [0], [0], [1], [0, 0, 1, 1], [], []>} : vector<64x128xbf16>, vector<128x128xbf16>, vector<64x128xf32> -> vector<64x128xf32>
    %307 = arith.truncf %305 : vector<64x64xf32> to vector<64x64xbf16>
    %308 = arith.truncf %306 : vector<64x128xf32> to vector<64x128xbf16>
    %cst_114 = arith.constant dense<0.000000e+00> : vector<64x128xf32>
    %309 = tpu.matmul %307, %308, %cst_114 {dimension_numbers = #tpu.dot_dimension_numbers<[1], [0], [0], [1], [0, 0, 1, 1], [], []>} : vector<64x64xbf16>, vector<64x128xbf16>, vector<64x128xf32> -> vector<64x128xf32>
    %310 = arith.addf %288, %309 : vector<64x128xf32>
    %c128_115 = arith.constant 128 : index
    %c384_116 = arith.constant 384 : index
    %311 = vector.load %arg2[%c128_115, %c384_116] : memref<384x1280xbf16, #tpu.memory_space<vmem>>, vector<128x128xbf16>
    %c128_117 = arith.constant 128 : index
    %c896_118 = arith.constant 896 : index
    %312 = vector.load %arg2[%c128_117, %c896_118] : memref<384x1280xbf16, #tpu.memory_space<vmem>>, vector<128x128xbf16>
    %cst_119 = arith.constant dense<0.000000e+00> : vector<64x128xf32>
    %313 = tpu.matmul %241, %311, %cst_119 {dimension_numbers = #tpu.dot_dimension_numbers<[1], [0], [0], [1], [0, 0, 1, 1], [], []>} : vector<64x128xbf16>, vector<128x128xbf16>, vector<64x128xf32> -> vector<64x128xf32>
    %314 = arith.truncf %313 : vector<64x128xf32> to vector<64x128xbf16>
    %cst_120 = arith.constant dense<0.000000e+00> : vector<64x64xf32>
    %315 = tpu.matmul %314, %241, %cst_120 {dimension_numbers = #tpu.dot_dimension_numbers<[1], [1], [0], [0], [0, 0, 1, 0], [], []>} : vector<64x128xbf16>, vector<64x128xbf16>, vector<64x64xf32> -> vector<64x64xf32>
    %cst_121 = arith.constant -1.000000e+09 : f32
    %316 = vector.broadcast %cst_121 : f32 to vector<64x64xf32>
    %317 = arith.select %11, %315, %316 : vector<64x64xi1>, vector<64x64xf32>
    %cst_122 = arith.constant dense<0xFF800000> : vector<64xf32>
    %318 = vector.multi_reduction <maximumf>, %317, %cst_122 [1] : vector<64x64xf32> to vector<64xf32>
    %319 = vector.shape_cast %318 : vector<64xf32> to vector<64x1xf32>
    %320 = vector.broadcast %319 : vector<64x1xf32> to vector<64x64xf32>
    %321 = arith.subf %317, %320 : vector<64x64xf32>
    %322 = math.exp %321 : vector<64x64xf32>
    %cst_123 = arith.constant dense<0.000000e+00> : vector<64xf32>
    %323 = vector.multi_reduction <add>, %322, %cst_123 [1] : vector<64x64xf32> to vector<64xf32>
    %324 = vector.shape_cast %323 : vector<64xf32> to vector<64x1xf32>
    %325 = tpu.reciprocal %324 {approx = true} : vector<64x1xf32> -> vector<64x1xf32>
    %326 = vector.broadcast %325 : vector<64x1xf32> to vector<64x64xf32>
    %327 = arith.mulf %322, %326 : vector<64x64xf32>
    %cst_124 = arith.constant dense<0.000000e+00> : vector<64x128xf32>
    %328 = tpu.matmul %241, %312, %cst_124 {dimension_numbers = #tpu.dot_dimension_numbers<[1], [0], [0], [1], [0, 0, 1, 1], [], []>} : vector<64x128xbf16>, vector<128x128xbf16>, vector<64x128xf32> -> vector<64x128xf32>
    %329 = arith.truncf %327 : vector<64x64xf32> to vector<64x64xbf16>
    %330 = arith.truncf %328 : vector<64x128xf32> to vector<64x128xbf16>
    %cst_125 = arith.constant dense<0.000000e+00> : vector<64x128xf32>
    %331 = tpu.matmul %329, %330, %cst_125 {dimension_numbers = #tpu.dot_dimension_numbers<[1], [0], [0], [1], [0, 0, 1, 1], [], []>} : vector<64x64xbf16>, vector<64x128xbf16>, vector<64x128xf32> -> vector<64x128xf32>
    %332 = arith.addf %310, %331 : vector<64x128xf32>
    %333 = vector.extract_strided_slice %216 {offsets = [3, 0], sizes = [1, 128], strides = [1, 1]} : vector<8x128xf32> to vector<1x128xf32>
    %334 = vector.extract_strided_slice %216 {offsets = [4, 0], sizes = [1, 128], strides = [1, 1]} : vector<8x128xf32> to vector<1x128xf32>
    %cst_126 = arith.constant dense<0.000000e+00> : vector<64xf32>
    %335 = vector.multi_reduction <add>, %332, %cst_126 [1] : vector<64x128xf32> to vector<64xf32>
    %336 = vector.shape_cast %335 : vector<64xf32> to vector<64x1xf32>
    %cst_127 = arith.constant 3.125000e-02 : f32
    %337 = vector.broadcast %cst_127 : f32 to vector<64x1xf32>
    %338 = arith.mulf %336, %337 : vector<64x1xf32>
    %339 = arith.mulf %332, %332 : vector<64x128xf32>
    %cst_128 = arith.constant dense<0.000000e+00> : vector<64xf32>
    %340 = vector.multi_reduction <add>, %339, %cst_128 [1] : vector<64x128xf32> to vector<64xf32>
    %341 = vector.shape_cast %340 : vector<64xf32> to vector<64x1xf32>
    %cst_129 = arith.constant 3.125000e-02 : f32
    %342 = vector.broadcast %cst_129 : f32 to vector<64x1xf32>
    %343 = arith.mulf %341, %342 : vector<64x1xf32>
    %344 = arith.mulf %338, %338 : vector<64x1xf32>
    %345 = arith.subf %343, %344 : vector<64x1xf32>
    %346 = vector.broadcast %338 : vector<64x1xf32> to vector<64x128xf32>
    %347 = arith.subf %332, %346 : vector<64x128xf32>
    %cst_130 = arith.constant 9.99999997E-7 : f32
    %348 = vector.broadcast %cst_130 : f32 to vector<64x1xf32>
    %349 = arith.addf %345, %348 : vector<64x1xf32>
    %350 = math.rsqrt %349 : vector<64x1xf32>
    %351 = vector.broadcast %350 : vector<64x1xf32> to vector<64x128xf32>
    %352 = arith.mulf %347, %351 : vector<64x128xf32>
    %353 = vector.broadcast %333 : vector<1x128xf32> to vector<64x128xf32>
    %354 = arith.mulf %352, %353 : vector<64x128xf32>
    %355 = vector.broadcast %334 : vector<1x128xf32> to vector<64x128xf32>
    %356 = arith.addf %354, %355 : vector<64x128xf32>
    %357 = arith.truncf %356 : vector<64x128xf32> to vector<64x128xbf16>
    %c128_131 = arith.constant 128 : index
    %c1024_132 = arith.constant 1024 : index
    %358 = vector.load %arg2[%c128_131, %c1024_132] : memref<384x1280xbf16, #tpu.memory_space<vmem>>, vector<128x128xbf16>
    %cst_133 = arith.constant dense<0.000000e+00> : vector<64x128xf32>
    %359 = tpu.matmul %357, %358, %cst_133 {dimension_numbers = #tpu.dot_dimension_numbers<[1], [0], [0], [1], [0, 0, 1, 1], [], []>} : vector<64x128xbf16>, vector<128x128xbf16>, vector<64x128xf32> -> vector<64x128xf32>
    %360 = vector.extract_strided_slice %216 {offsets = [5, 0], sizes = [1, 128], strides = [1, 1]} : vector<8x128xf32> to vector<1x128xf32>
    %361 = vector.broadcast %360 : vector<1x128xf32> to vector<64x128xf32>
    %362 = arith.addf %359, %361 : vector<64x128xf32>
    %363 = arith.mulf %362, %362 : vector<64x128xf32>
    %364 = arith.mulf %362, %363 : vector<64x128xf32>
    %cst_134 = arith.constant 4.471500e-02 : f32
    %365 = vector.broadcast %cst_134 : f32 to vector<64x128xf32>
    %366 = arith.mulf %365, %364 : vector<64x128xf32>
    %367 = arith.addf %362, %366 : vector<64x128xf32>
    %cst_135 = arith.constant 0.797884583 : f32
    %368 = vector.broadcast %cst_135 : f32 to vector<64x128xf32>
    %369 = arith.mulf %368, %367 : vector<64x128xf32>
    %370 = math.tanh %369 : vector<64x128xf32>
    %cst_136 = arith.constant 1.000000e+00 : f32
    %371 = vector.broadcast %cst_136 : f32 to vector<64x128xf32>
    %372 = arith.addf %371, %370 : vector<64x128xf32>
    %cst_137 = arith.constant 5.000000e-01 : f32
    %373 = vector.broadcast %cst_137 : f32 to vector<64x128xf32>
    %374 = arith.mulf %373, %372 : vector<64x128xf32>
    %375 = arith.mulf %362, %374 : vector<64x128xf32>
    %376 = arith.truncf %375 : vector<64x128xf32> to vector<64x128xbf16>
    %c128_138 = arith.constant 128 : index
    %c1152_139 = arith.constant 1152 : index
    %377 = vector.load %arg2[%c128_138, %c1152_139] : memref<384x1280xbf16, #tpu.memory_space<vmem>>, vector<128x128xbf16>
    %cst_140 = arith.constant dense<0.000000e+00> : vector<64x128xf32>
    %378 = tpu.matmul %376, %377, %cst_140 {dimension_numbers = #tpu.dot_dimension_numbers<[1], [0], [0], [1], [0, 0, 1, 1], [], []>} : vector<64x128xbf16>, vector<128x128xbf16>, vector<64x128xf32> -> vector<64x128xf32>
    %379 = arith.addf %332, %378 : vector<64x128xf32>
    %380 = vector.extract_strided_slice %216 {offsets = [6, 0], sizes = [1, 128], strides = [1, 1]} : vector<8x128xf32> to vector<1x128xf32>
    %381 = vector.broadcast %380 : vector<1x128xf32> to vector<64x128xf32>
    %382 = arith.addf %379, %381 : vector<64x128xf32>
    %383 = vector.extract_strided_slice %382 {offsets = [0, 0], sizes = [1, 128], strides = [1, 1]} : vector<64x128xf32> to vector<1x128xf32>
    %384 = vector.extract_strided_slice %382 {offsets = [32, 0], sizes = [1, 128], strides = [1, 1]} : vector<64x128xf32> to vector<1x128xf32>
    %385 = tpu.concatenate %383, %384 in 0 : vector<1x128xf32>, vector<1x128xf32> -> vector<2x128xf32>
    %c72 = arith.constant 72 : index
    %c0_141 = arith.constant 0 : index
    %386 = vector.load %arg3[%c72, %c0_141] : memref<96x128xf32, #tpu.memory_space<vmem>>, vector<1x128xf32>
    %c73 = arith.constant 73 : index
    %c0_142 = arith.constant 0 : index
    %387 = vector.load %arg3[%c73, %c0_142] : memref<96x128xf32, #tpu.memory_space<vmem>>, vector<1x128xf32>
    %cst_143 = arith.constant dense<0.000000e+00> : vector<2xf32>
    %388 = vector.multi_reduction <add>, %385, %cst_143 [1] : vector<2x128xf32> to vector<2xf32>
    %389 = vector.shape_cast %388 : vector<2xf32> to vector<2x1xf32>
    %cst_144 = arith.constant 3.125000e-02 : f32
    %390 = vector.broadcast %cst_144 : f32 to vector<2x1xf32>
    %391 = arith.mulf %389, %390 : vector<2x1xf32>
    %392 = arith.mulf %385, %385 : vector<2x128xf32>
    %cst_145 = arith.constant dense<0.000000e+00> : vector<2xf32>
    %393 = vector.multi_reduction <add>, %392, %cst_145 [1] : vector<2x128xf32> to vector<2xf32>
    %394 = vector.shape_cast %393 : vector<2xf32> to vector<2x1xf32>
    %cst_146 = arith.constant 3.125000e-02 : f32
    %395 = vector.broadcast %cst_146 : f32 to vector<2x1xf32>
    %396 = arith.mulf %394, %395 : vector<2x1xf32>
    %397 = arith.mulf %391, %391 : vector<2x1xf32>
    %398 = arith.subf %396, %397 : vector<2x1xf32>
    %399 = vector.broadcast %391 : vector<2x1xf32> to vector<2x128xf32>
    %400 = arith.subf %385, %399 : vector<2x128xf32>
    %cst_147 = arith.constant 9.99999997E-7 : f32
    %401 = vector.broadcast %cst_147 : f32 to vector<2x1xf32>
    %402 = arith.addf %398, %401 : vector<2x1xf32>
    %403 = math.rsqrt %402 : vector<2x1xf32>
    %404 = vector.broadcast %403 : vector<2x1xf32> to vector<2x128xf32>
    %405 = arith.mulf %400, %404 : vector<2x128xf32>
    %406 = vector.broadcast %386 : vector<1x128xf32> to vector<2x128xf32>
    %407 = arith.mulf %405, %406 : vector<2x128xf32>
    %408 = vector.broadcast %387 : vector<1x128xf32> to vector<2x128xf32>
    %409 = arith.addf %407, %408 : vector<2x128xf32>
    %410 = arith.truncf %409 : vector<2x128xf32> to vector<2x128xbf16>
    %c256_148 = arith.constant 256 : index
    %c0_149 = arith.constant 0 : index
    %411 = vector.load %arg2[%c256_148, %c0_149] : memref<384x1280xbf16, #tpu.memory_space<vmem>>, vector<128x128xbf16>
    %cst_150 = arith.constant dense<0.000000e+00> : vector<2x128xf32>
    %412 = tpu.matmul %410, %411, %cst_150 {dimension_numbers = #tpu.dot_dimension_numbers<[1], [0], [0], [1], [0, 0, 1, 1], [], []>} : vector<2x128xbf16>, vector<128x128xbf16>, vector<2x128xf32> -> vector<2x128xf32>
    %c74 = arith.constant 74 : index
    %c0_151 = arith.constant 0 : index
    %413 = vector.load %arg3[%c74, %c0_151] : memref<96x128xf32, #tpu.memory_space<vmem>>, vector<1x128xf32>
    %414 = vector.broadcast %413 : vector<1x128xf32> to vector<2x128xf32>
    %415 = arith.addf %412, %414 : vector<2x128xf32>
    %c0_152 = arith.constant 0 : index
    %c0_153 = arith.constant 0 : index
    %416 = vector.load %arg4[%c0_152, %c0_153] : memref<2x128xf32, #tpu.memory_space<vmem>>, vector<2x128xf32>
    tpu.vector_store %arg4[%c0_152, %c0_153], %415 {strides = array<i32>} : memref<2x128xf32, #tpu.memory_space<vmem>>, vector<2x128xf32>,
    return
  }
}

</mosaic_0001>

<llo_original>
// kernel: forward.1
$region0: #{forward.1}
  #allocation0 [shape = 'u32[]', space=smem, size = 0x4, offset = 0x4, fixed_abs, tag = 'smem constant byte address 0x4 - core index']
  #allocation1 [shape = 'u32[144,128]{1,0:T(1,128)}', space=vmem, size = 0x12000, scoped, tag = 'internal scratch']
  %s0 = inlined_call_operand.vmem [shape: f32[64,384], index: 0, kind: input, shape index: {}]
  %s1 = inlined_call_operand.vmem [shape: bf16[640,128], index: 1, kind: input, shape index: {}]
  %s2 = inlined_call_operand.vmem [shape: bf16[384,1280], index: 2, kind: input, shape index: {}]
  %s3 = inlined_call_operand.vmem [shape: f32[96,128], index: 3, kind: input, shape index: {}]
  %s4 = inlined_call_operand.hbm [shape: f32[2,128], index: 4, kind: output, shape index: {}]
  %s5 = sld [smem:[#allocation0]]
  $region26: #{forward.1} parent=0
    _
  %s7 = ssub.s32 1, %s5
  %s8 = scalar_select 0, %s7, %s5
  $region1: #{forward.1} parent=0
    #allocation2 [shape = 'u8[1024]{0}', space=vmem, size = 0x400, scoped, tag = 'output window, operand 0, single buffered']
    #allocation3 [shape = 's32[1]{0}', space=sflag, size = 0x4, scoped, tag = 'scoped memory for forward.1']
    %9 = vsyncpa [#allocation3], 0
    // Predicated region
    $region2: #{forward.1} parent=1 // pred_check
      _
    $region3: #{forward.1} parent=1 // pred_check_branch
      %11 = sbr.rel (0) target = $region5
    $region4: #{forward.1} parent=1 // pred_region
      _
    $region5: #{forward.1} parent=1 // pred_fallthru
      _
    // Predicated region
    $region6: #{forward.1} parent=1 // pred_check
      _
    $region7: #{forward.1} parent=1 // pred_check_branch
      %13 = sbr.rel (0) target = $region9
    $region8: #{forward.1} parent=1 // pred_region
      _
    $region9: #{forward.1} parent=1 // pred_fallthru
      _
    // Predicated region
    $region10: #{forward.1} parent=1 // pred_check
      _
    $region11: #{forward.1} parent=1 // pred_check_branch
      %15 = sbr.rel (0) target = $region13
    $region12: #{forward.1} parent=1 // pred_region
      _
    $region13: #{forward.1} parent=1 // pred_fallthru
      _
    // Predicated region
    $region14: #{forward.1} parent=1 // pred_check
      _
    $region15: #{forward.1} parent=1 // pred_check_branch
      %17 = sbr.rel (0) target = $region17
    $region16: #{forward.1} parent=1 // pred_region
      _
    $region17: #{forward.1} parent=1 // pred_fallthru
      _
    %v19 = vlaneseq
    %v20 = vshrl.u32 %v19, 7
    %v21 = vadd.s32 %v20, 8
    %v22 = vadd.s32 %v20, 16
    %v23 = vadd.s32 %v20, 24
    %v24 = vadd.s32 %v20, 32
    %v25 = vadd.s32 %v20, 40
    %v26 = vadd.s32 %v20, 48
    %v27 = vadd.s32 %v20, 56
    %v28 = vlaneseq
    %v29 = vand.u32 %v28, 127
    %v30 = vshrl.u32 %v20, 5
    %v31 = vshrl.u32 %v21, 5
    %v32 = vshrl.u32 %v22, 5
    %v33 = vshrl.u32 %v23, 5
    %v34 = vshrl.u32 %v24, 5
    %v35 = vshrl.u32 %v25, 5
    %v36 = vshrl.u32 %v26, 5
    %v37 = vshrl.u32 %v27, 5
    %v38 = vshrl.u32 %v29, 5
    %vm39 = vcmp.eq.s32.totalorder %v30, %v38
    %vm40 = vcmp.eq.s32.totalorder %v31, %v38
    %vm41 = vcmp.eq.s32.totalorder %v32, %v38
    %vm42 = vcmp.eq.s32.totalorder %v33, %v38
    %vm43 = vcmp.eq.s32.totalorder %v34, %v38
    %vm44 = vcmp.eq.s32.totalorder %v35, %v38
    %vm45 = vcmp.eq.s32.totalorder %v36, %v38
    %vm46 = vcmp.eq.s32.totalorder %v37, %v38
    %v47 = vand.u32 %v29, 31
    %vm48 = vcmp.lt.s32.totalorder %v47, 17
    %vm49 = vmand %vm39, %vm48
    %vm50 = vmand %vm40, %vm48
    %vm51 = vmand %vm41, %vm48
    %vm52 = vmand %vm42, %vm48
    %vm53 = vmand %vm43, %vm48
    %vm54 = vmand %vm44, %vm48
    %vm55 = vmand %vm45, %vm48
    %vm56 = vmand %vm46, %vm48
    %v57 = vand.u32 %v20, 31
    %v58 = vand.u32 %v21, 31
    %v59 = vand.u32 %v22, 31
    %v60 = vand.u32 %v23, 31
    %v61 = vand.u32 %v24, 31
    %v62 = vand.u32 %v25, 31
    %v63 = vand.u32 %v26, 31
    %v64 = vand.u32 %v27, 31
    %vm65 = vcmp.ge.s32.totalorder %v57, 1
    %vm66 = vcmp.ge.s32.totalorder %v58, 1
    %vm67 = vcmp.ge.s32.totalorder %v59, 1
    %vm68 = vcmp.ge.s32.totalorder %v60, 1
    %vm69 = vcmp.ge.s32.totalorder %v61, 1
    %vm70 = vcmp.ge.s32.totalorder %v62, 1
    %vm71 = vcmp.ge.s32.totalorder %v63, 1
    %vm72 = vcmp.ge.s32.totalorder %v64, 1
    %vm73 = vcmp.lt.s32.totalorder %v57, 17
    %vm74 = vcmp.lt.s32.totalorder %v58, 17
    %vm75 = vcmp.lt.s32.totalorder %v59, 17
    %vm76 = vcmp.lt.s32.totalorder %v60, 17
    %vm77 = vcmp.lt.s32.totalorder %v61, 17
    %vm78 = vcmp.lt.s32.totalorder %v62, 17
    %vm79 = vcmp.lt.s32.totalorder %v63, 17
    %vm80 = vcmp.lt.s32.totalorder %v64, 17
    %vm81 = vmand %vm65, %vm73
    %vm82 = vmand %vm66, %vm74
    %vm83 = vmand %vm67, %vm75
    %vm84 = vmand %vm68, %vm76
    %vm85 = vmand %vm69, %vm77
    %vm86 = vmand %vm70, %vm78
    %vm87 = vmand %vm71, %vm79
    %vm88 = vmand %vm72, %vm80
    %v89 = vld [vmem:[%s0] sm:$0xff]
    %v90 = vld [vmem:[%s0 + $0x8] sm:$0xff]
    %v91 = vld [vmem:[%s0 + $0x10] sm:$0xff]
    %v92 = vld [vmem:[%s0 + $0x18] sm:$0xff]
    %v93 = vld [vmem:[%s0 + $0x20] sm:$0xff]
    %v94 = vld [vmem:[%s0 + $0x28] sm:$0xff]
    %v95 = vld [vmem:[%s0 + $0x30] sm:$0xff]
    %v96 = vld [vmem:[%s0 + $0x38] sm:$0xff]
    %v97 = vld [vmem:[%s0 + $0x40] sm:$0xff]
    %v98 = vld [vmem:[%s0 + $0x48] sm:$0xff]
    %v99 = vld [vmem:[%s0 + $0x50] sm:$0xff]
    %v100 = vld [vmem:[%s0 + $0x58] sm:$0xff]
    %v101 = vld [vmem:[%s0 + $0x60] sm:$0xff]
    %v102 = vld [vmem:[%s0 + $0x68] sm:$0xff]
    %v103 = vld [vmem:[%s0 + $0x70] sm:$0xff]
    %v104 = vld [vmem:[%s0 + $0x78] sm:$0xff]
    %v105 = vld [vmem:[%s0 + $0x80] sm:$0xff]
    %v106 = vld [vmem:[%s0 + $0x88] sm:$0xff]
    %v107 = vld [vmem:[%s0 + $0x90] sm:$0xff]
    %v108 = vld [vmem:[%s0 + $0x98] sm:$0xff]
    %v109 = vld [vmem:[%s0 + $0xa0] sm:$0xff]
    %v110 = vld [vmem:[%s0 + $0xa8] sm:$0xff]
    %v111 = vld [vmem:[%s0 + $0xb0] sm:$0xff]
    %v112 = vld [vmem:[%s0 + $0xb8] sm:$0xff]
    %v113 = vpack.c.bf16 %v92, %v89
    %v114 = vpack.c.bf16 %v93, %v90
    %v115 = vpack.c.bf16 %v94, %v91
    %v116 = vpack.c.bf16 %v98, %v95
    %v117 = vpack.c.bf16 %v99, %v96
    %v118 = vpack.c.bf16 %v100, %v97
    %v119 = vpack.c.bf16 %v104, %v101
    %v120 = vpack.c.bf16 %v105, %v102
    %v121 = vpack.c.bf16 %v106, %v103
    %v122 = vpack.c.bf16 %v110, %v107
    %v123 = vpack.c.bf16 %v111, %v108
    %v124 = vpack.c.bf16 %v112, %v109
    %v125 = vld [vmem:[%s1] sm:$0xf]
    %v126 = vld [vmem:[%s1 + $0x4] sm:$0xf]
    %v127 = vld [vmem:[%s1 + $0x8] sm:$0xf]
    %v128 = vld [vmem:[%s1 + $0xc] sm:$0xf]
    %v129 = vld [vmem:[%s1 + $0x10] sm:$0xf]
    %v130 = vld [vmem:[%s1 + $0x14] sm:$0xf]
    %v131 = vld [vmem:[%s1 + $0x18] sm:$0xf]
    %v132 = vld [vmem:[%s1 + $0x1c] sm:$0xf]
    %v133 = vld [vmem:[%s1 + $0x20] sm:$0xf]
    %v134 = vld [vmem:[%s1 + $0x24] sm:$0xf]
    %v135 = vld [vmem:[%s1 + $0x28] sm:$0xf]
    %v136 = vld [vmem:[%s1 + $0x2c] sm:$0xf]
    %v137 = vld [vmem:[%s1 + $0x30] sm:$0xf]
    %v138 = vld [vmem:[%s1 + $0x34] sm:$0xf]
    %v139 = vld [vmem:[%s1 + $0x38] sm:$0xf]
    %v140 = vld [vmem:[%s1 + $0x3c] sm:$0xf]
    %v141 = vld [vmem:[%s1 + $0x40] sm:$0xf]
    %v142 = vld [vmem:[%s1 + $0x44] sm:$0xf]
    %v143 = vld [vmem:[%s1 + $0x48] sm:$0xf]
    %v144 = vld [vmem:[%s1 + $0x4c] sm:$0xf]
    %v145 = vld [vmem:[%s1 + $0x50] sm:$0xf]
    %v146 = vld [vmem:[%s1 + $0x54] sm:$0xf]
    %v147 = vld [vmem:[%s1 + $0x58] sm:$0xf]
    %v148 = vld [vmem:[%s1 + $0x5c] sm:$0xf]
    %v149 = vld [vmem:[%s1 + $0x60] sm:$0xf]
    %v150 = vld [vmem:[%s1 + $0x64] sm:$0xf]
    %v151 = vld [vmem:[%s1 + $0x68] sm:$0xf]
    %v152 = vld [vmem:[%s1 + $0x6c] sm:$0xf]
    %v153 = vld [vmem:[%s1 + $0x70] sm:$0xf]
    %v154 = vld [vmem:[%s1 + $0x74] sm:$0xf]
    %v155 = vld [vmem:[%s1 + $0x78] sm:$0xf]
    %v156 = vld [vmem:[%s1 + $0x7c] sm:$0xf]
    %v157 = vld [vmem:[%s1 + $0x80] sm:$0xf]
    %v158 = vld [vmem:[%s1 + $0x84] sm:$0xf]
    %v159 = vld [vmem:[%s1 + $0x88] sm:$0xf]
    %v160 = vld [vmem:[%s1 + $0x8c] sm:$0xf]
    %v161 = vld [vmem:[%s1 + $0x90] sm:$0xf]
    %v162 = vld [vmem:[%s1 + $0x94] sm:$0xf]
    %v163 = vld [vmem:[%s1 + $0x98] sm:$0xf]
    %v164 = vld [vmem:[%s1 + $0x9c] sm:$0xf]
    %v165 = vld [vmem:[%s1 + $0xa0] sm:$0xf]
    %v166 = vld [vmem:[%s1 + $0xa4] sm:$0xf]
    %v167 = vld [vmem:[%s1 + $0xa8] sm:$0xf]
    %v168 = vld [vmem:[%s1 + $0xac] sm:$0xf]
    %v169 = vld [vmem:[%s1 + $0xb0] sm:$0xf]
    %v170 = vld [vmem:[%s1 + $0xb4] sm:$0xf]
    %v171 = vld [vmem:[%s1 + $0xb8] sm:$0xf]
    %v172 = vld [vmem:[%s1 + $0xbc] sm:$0xf]
    %v173 = vld [vmem:[%s3] sm:$0x1]
    %v174 = vlaneseq
    %v175 = vshrl.u32 %v174, 7
    %v176 = vsub.s32 0, %v175
    %v177 = vrot.slane %v173, %v176
    %v226 = vunpack.c.l.b16 %v125
    %v227 = vunpack.c.l.b16 %v126
    %v228 = vunpack.c.l.b16 %v127
    %v229 = vunpack.c.l.b16 %v128
    %v230 = vunpack.c.l.b16 %v129
    %v231 = vunpack.c.l.b16 %v130
    %v232 = vunpack.c.l.b16 %v131
    %v233 = vunpack.c.l.b16 %v132
    %v234 = vunpack.c.l.b16 %v133
    %v235 = vunpack.c.l.b16 %v134
    %v236 = vunpack.c.l.b16 %v135
    %v237 = vunpack.c.l.b16 %v136
    %v238 = vunpack.c.l.b16 %v137
    %v239 = vunpack.c.l.b16 %v138
    %v240 = vunpack.c.l.b16 %v139
    %v241 = vunpack.c.l.b16 %v140
    %v242 = vunpack.c.l.b16 %v141
    %v243 = vunpack.c.l.b16 %v142
    %v244 = vunpack.c.l.b16 %v143
    %v245 = vunpack.c.l.b16 %v144
    %v246 = vunpack.c.l.b16 %v145
    %v247 = vunpack.c.l.b16 %v146
    %v248 = vunpack.c.l.b16 %v147
    %v249 = vunpack.c.l.b16 %v148
    %v250 = vunpack.c.l.b16 %v149
    %v251 = vunpack.c.l.b16 %v150
    %v252 = vunpack.c.l.b16 %v151
    %v253 = vunpack.c.l.b16 %v152
    %v254 = vunpack.c.l.b16 %v153
    %v255 = vunpack.c.l.b16 %v154
    %v256 = vunpack.c.l.b16 %v155
    %v257 = vunpack.c.l.b16 %v156
    %v258 = vunpack.c.l.b16 %v157
    %v259 = vunpack.c.l.b16 %v158
    %v260 = vunpack.c.l.b16 %v159
    %v261 = vunpack.c.l.b16 %v160
    %v262 = vunpack.c.l.b16 %v161
    %v263 = vunpack.c.l.b16 %v162
    %v264 = vunpack.c.l.b16 %v163
    %v265 = vunpack.c.l.b16 %v164
    %v266 = vunpack.c.l.b16 %v165
    %v267 = vunpack.c.l.b16 %v166
    %v268 = vunpack.c.l.b16 %v167
    %v269 = vunpack.c.l.b16 %v168
    %v270 = vunpack.c.l.b16 %v169
    %v271 = vunpack.c.l.b16 %v170
    %v272 = vunpack.c.l.b16 %v171
    %v273 = vunpack.c.l.b16 %v172
    %v274 = vpack.c.b16 %v227, %v226
    %v275 = vpack.c.b16 %v229, %v228
    %v276 = vpack.c.b16 %v231, %v230
    %v277 = vpack.c.b16 %v233, %v232
    %v278 = vpack.c.b16 %v235, %v234
    %v279 = vpack.c.b16 %v237, %v236
    %v280 = vpack.c.b16 %v239, %v238
    %v281 = vpack.c.b16 %v241, %v240
    %v282 = vpack.c.b16 %v243, %v242
    %v283 = vpack.c.b16 %v245, %v244
    %v284 = vpack.c.b16 %v247, %v246
    %v285 = vpack.c.b16 %v249, %v248
    %v286 = vpack.c.b16 %v251, %v250
    %v287 = vpack.c.b16 %v253, %v252
    %v288 = vpack.c.b16 %v255, %v254
    %v289 = vpack.c.b16 %v257, %v256
    %v290 = vpack.c.b16 %v259, %v258
    %v291 = vpack.c.b16 %v261, %v260
    %v292 = vpack.c.b16 %v263, %v262
    %v293 = vpack.c.b16 %v265, %v264
    %v294 = vpack.c.b16 %v267, %v266
    %v295 = vpack.c.b16 %v269, %v268
    %v296 = vpack.c.b16 %v271, %v270
    %v297 = vpack.c.b16 %v273, %v272
    %322 = vmatprep.subr.bf16.mxu0 0
    %323 = vmatpush1.bf16.msra.mxu0 %v274
    %324 = vmatprep.subr.bf16.mxu0 0
    %325 = vmatpush1.bf16.msra.mxu0 %v275
    %326 = vmatprep.subr.bf16.mxu0 0
    %327 = vmatpush1.bf16.msra.mxu0 %v276
    %328 = vmatprep.subr.bf16.mxu0 0
    %329 = vmatpush1.bf16.msra.mxu0 %v277
    %330 = vmatprep.subr.bf16.mxu0 0
    %331 = vmatpush1.bf16.msra.mxu0 %v278
    %332 = vmatprep.subr.bf16.mxu0 0
    %333 = vmatpush1.bf16.msra.mxu0 %v279
    %334 = vmatprep.subr.bf16.mxu0 0
    %335 = vmatpush1.bf16.msra.mxu0 %v280
    %336 = vmatprep.subr.bf16.mxu0 0
    %337 = vmatpush1.bf16.msra.mxu0 %v281
    %338 = vmatprep.subr.bf16.mxu0 0
    %339 = vmatpush1.bf16.msra.mxu0 %v282
    %340 = vmatprep.subr.bf16.mxu0 0
    %341 = vmatpush1.bf16.msra.mxu0 %v283
    %342 = vmatprep.subr.bf16.mxu0 0
    %343 = vmatpush1.bf16.msra.mxu0 %v284
    %344 = vmatprep.subr.bf16.mxu0 0
    %345 = vmatpush1.bf16.msra.mxu0 %v285
    %346 = vmatprep.subr.bf16.mxu0 0
    %347 = vmatpush1.bf16.msra.mxu0 %v286
    %348 = vmatprep.subr.bf16.mxu0 0
    %349 = vmatpush1.bf16.msra.mxu0 %v287
    %350 = vmatprep.subr.bf16.mxu0 0
    %351 = vmatpush1.bf16.msra.mxu0 %v288
    %352 = vmatprep.subr.bf16.mxu0 0
    %353 = vmatpush1.bf16.msra.mxu0 %v289
    %354 = vmatprep.mubr.bf16.mxu0 %v114
    %355 = vmatmul.mubr.bf16.gmra.mrb[0].mxu0 %v113
    %v356 = vpop.f32.mrb[0].mxu0
    %v357 = vadd.f32 %v177, %v356
    %v358 = vpop.f32.mrb[0].mxu0
    %v359 = vpop.f32.mrb[0].mxu0
    %v360 = vadd.f32 %v177, %v359
    %v361 = vpop.f32.mrb[0].mxu0
    %362 = vmatprep.mubr.bf16.mxu0 %v117
    %363 = vmatmul.mubr.bf16.gmra.mrb[0].mxu0 %v116
    %v364 = vpop.f32.mrb[0].mxu0
    %v365 = vadd.f32 %v177, %v364
    %v366 = vpop.f32.mrb[0].mxu0
    %v367 = vpop.f32.mrb[0].mxu0
    %v368 = vadd.f32 %v177, %v367
    %v369 = vpop.f32.mrb[0].mxu0
    %370 = vmatprep.mubr.bf16.mxu0 %v120
    %371 = vmatmul.mubr.bf16.gmra.mrb[0].mxu0 %v119
    %v372 = vpop.f32.mrb[0].mxu0
    %v373 = vadd.f32 %v177, %v372
    %v374 = vpop.f32.mrb[0].mxu0
    %v375 = vpop.f32.mrb[0].mxu0
    %v376 = vadd.f32 %v177, %v375
    %v377 = vpop.f32.mrb[0].mxu0
    %378 = vmatprep.mubr.bf16.mxu0 %v123
    %379 = vmatmul.mubr.bf16.gmra.mrb[0].mxu0 %v122
    %v380 = vpop.f32.mrb[0].mxu0
    %v381 = vadd.f32 %v177, %v380
    %v382 = vpop.f32.mrb[0].mxu0
    %v383 = vpop.f32.mrb[0].mxu0
    %v384 = vadd.f32 %v177, %v383
    %v385 = vpop.f32.mrb[0].mxu0
    %386 = vdwg.mxu0
    %387 = vmatprep.subr.bf16.mxu0 0
    %388 = vmatpush1.bf16.msra.mxu0 %v290
    %389 = vmatprep.subr.bf16.mxu0 0
    %390 = vmatpush1.bf16.msra.mxu0 %v291
    %391 = vmatprep.subr.bf16.mxu0 0
    %392 = vmatpush1.bf16.msra.mxu0 %v292
    %393 = vmatprep.subr.bf16.mxu0 0
    %394 = vmatpush1.bf16.msra.mxu0 %v293
    %395 = vmatprep.subr.bf16.mxu0 0
    %396 = vmatpush1.bf16.msra.mxu0 %v294
    %397 = vmatprep.subr.bf16.mxu0 0
    %398 = vmatpush1.bf16.msra.mxu0 %v295
    %399 = vmatprep.subr.bf16.mxu0 0
    %400 = vmatpush1.bf16.msra.mxu0 %v296
    %401 = vmatprep.subr.bf16.mxu0 0
    %402 = vmatpush1.bf16.msra.mxu0 %v297
    %403 = vmatprep.subr.bf16.mxu0 0
    %404 = vmatpush1.bf16.msra.mxu0 0
    %405 = vmatprep.subr.bf16.mxu0 0
    %406 = vmatpush1.bf16.msra.mxu0 0
    %407 = vmatprep.subr.bf16.mxu0 0
    %408 = vmatpush1.bf16.msra.mxu0 0
    %409 = vmatprep.subr.bf16.mxu0 0
    %410 = vmatpush1.bf16.msra.mxu0 0
    %411 = vmatprep.subr.bf16.mxu0 0
    %412 = vmatpush1.bf16.msra.mxu0 0
    %413 = vmatprep.subr.bf16.mxu0 0
    %414 = vmatpush1.bf16.msra.mxu0 0
    %415 = vmatprep.subr.bf16.mxu0 0
    %416 = vmatpush1.bf16.msra.mxu0 0
    %417 = vmatprep.subr.bf16.mxu0 0
    %418 = vmatpush1.bf16.msra.mxu0 0
    %419 = vmatprep.mubr.bf16.mxu0 0
    %420 = vmatmul.mubr.bf16.gmra.mrb[0].mxu0 %v115
    %v421 = vpop.f32.mrb[0].mxu0
    %v422 = vadd.f32 %v357, %v421
    %v423 = vpop.f32.mrb[0].mxu0
    %v424 = vpop.f32.mrb[0].mxu0
    %v425 = vadd.f32 %v360, %v424
    %v426 = vpop.f32.mrb[0].mxu0
    %427 = vmatprep.mubr.bf16.mxu0 0
    %428 = vmatmul.mubr.bf16.gmra.mrb[0].mxu0 %v118
    %v429 = vpop.f32.mrb[0].mxu0
    %v430 = vadd.f32 %v365, %v429
    %v431 = vpop.f32.mrb[0].mxu0
    %v432 = vpop.f32.mrb[0].mxu0
    %v433 = vadd.f32 %v368, %v432
    %v434 = vpop.f32.mrb[0].mxu0
    %435 = vmatprep.mubr.bf16.mxu0 0
    %436 = vmatmul.mubr.bf16.gmra.mrb[0].mxu0 %v121
    %v437 = vpop.f32.mrb[0].mxu0
    %v438 = vadd.f32 %v373, %v437
    %v439 = vpop.f32.mrb[0].mxu0
    %v440 = vpop.f32.mrb[0].mxu0
    %v441 = vadd.f32 %v376, %v440
    %v442 = vpop.f32.mrb[0].mxu0
    %443 = vmatprep.mubr.bf16.mxu0 0
    %444 = vmatmul.mubr.bf16.gmra.mrb[0].mxu0 %v124
    %v445 = vpop.f32.mrb[0].mxu0
    %v446 = vadd.f32 %v381, %v445
    %v447 = vpop.f32.mrb[0].mxu0
    %v448 = vpop.f32.mrb[0].mxu0
    %v449 = vadd.f32 %v384, %v448
    %v450 = vpop.f32.mrb[0].mxu0
    %451 = vdwg.mxu0
    %v452 = vmax.f32 %v422, 0.0
    %v453 = vmax.f32 %v425, 0.0
    %v454 = vmax.f32 %v430, 0.0
    %v455 = vmax.f32 %v433, 0.0
    %v456 = vmax.f32 %v438, 0.0
    %v457 = vmax.f32 %v441, 0.0
    %v458 = vmax.f32 %v446, 0.0
    %v459 = vmax.f32 %v449, 0.0
    %v460 = vpack.c.bf16 %v453, %v452
    %v461 = vpack.c.bf16 %v455, %v454
    %v462 = vpack.c.bf16 %v457, %v456
    %v463 = vpack.c.bf16 %v459, %v458
    %v464 = vld [vmem:[%s1 + $0xc0] sm:$0xf]
    %v465 = vld [vmem:[%s1 + $0xc4] sm:$0xf]
    %v466 = vld [vmem:[%s1 + $0xc8] sm:$0xf]
    %v467 = vld [vmem:[%s1 + $0xcc] sm:$0xf]
    %v468 = vld [vmem:[%s1 + $0xd0] sm:$0xf]
    %v469 = vld [vmem:[%s1 + $0xd4] sm:$0xf]
    %v470 = vld [vmem:[%s1 + $0xd8] sm:$0xf]
    %v471 = vld [vmem:[%s1 + $0xdc] sm:$0xf]
    %v472 = vld [vmem:[%s1 + $0xe0] sm:$0xf]
    %v473 = vld [vmem:[%s1 + $0xe4] sm:$0xf]
    %v474 = vld [vmem:[%s1 + $0xe8] sm:$0xf]
    %v475 = vld [vmem:[%s1 + $0xec] sm:$0xf]
    %v476 = vld [vmem:[%s1 + $0xf0] sm:$0xf]
    %v477 = vld [vmem:[%s1 + $0xf4] sm:$0xf]
    %v478 = vld [vmem:[%s1 + $0xf8] sm:$0xf]
    %v479 = vld [vmem:[%s1 + $0xfc] sm:$0xf]
    %v480 = vld [vmem:[%s3 + $0x1] sm:$0x1]
    %v481 = vlaneseq
    %v482 = vshrl.u32 %v481, 7
    %v483 = vsub.s32 0, %v482
    %v484 = vrot.slane %v480, %v483
    %v501 = vunpack.c.l.b16 %v464
    %v502 = vunpack.c.l.b16 %v465
    %v503 = vunpack.c.l.b16 %v466
    %v504 = vunpack.c.l.b16 %v467
    %v505 = vunpack.c.l.b16 %v468
    %v506 = vunpack.c.l.b16 %v469
    %v507 = vunpack.c.l.b16 %v470
    %v508 = vunpack.c.l.b16 %v471
    %v509 = vunpack.c.l.b16 %v472
    %v510 = vunpack.c.l.b16 %v473
    %v511 = vunpack.c.l.b16 %v474
    %v512 = vunpack.c.l.b16 %v475
    %v513 = vunpack.c.l.b16 %v476
    %v514 = vunpack.c.l.b16 %v477
    %v515 = vunpack.c.l.b16 %v478
    %v516 = vunpack.c.l.b16 %v479
    %v517 = vpack.c.b16 %v502, %v501
    %v518 = vpack.c.b16 %v504, %v503
    %v519 = vpack.c.b16 %v506, %v505
    %v520 = vpack.c.b16 %v508, %v507
    %v521 = vpack.c.b16 %v510, %v509
    %v522 = vpack.c.b16 %v512, %v511
    %v523 = vpack.c.b16 %v514, %v513
    %v524 = vpack.c.b16 %v516, %v515
    %533 = vmatprep.subr.bf16.mxu0 0
    %534 = vmatpush1.bf16.msra.mxu0 %v517
    %535 = vmatprep.subr.bf16.mxu0 0
    %536 = vmatpush1.bf16.msra.mxu0 %v518
    %537 = vmatprep.subr.bf16.mxu0 0
    %538 = vmatpush1.bf16.msra.mxu0 %v519
    %539 = vmatprep.subr.bf16.mxu0 0
    %540 = vmatpush1.bf16.msra.mxu0 %v520
    %541 = vmatprep.subr.bf16.mxu0 0
    %542 = vmatpush1.bf16.msra.mxu0 %v521
    %543 = vmatprep.subr.bf16.mxu0 0
    %544 = vmatpush1.bf16.msra.mxu0 %v522
    %545 = vmatprep.subr.bf16.mxu0 0
    %546 = vmatpush1.bf16.msra.mxu0 %v523
    %547 = vmatprep.subr.bf16.mxu0 0
    %548 = vmatpush1.bf16.msra.mxu0 %v524
    %549 = vmatprep.subr.bf16.mxu0 0
    %550 = vmatpush1.bf16.msra.mxu0 0
    %551 = vmatprep.subr.bf16.mxu0 0
    %552 = vmatpush1.bf16.msra.mxu0 0
    %553 = vmatprep.subr.bf16.mxu0 0
    %554 = vmatpush1.bf16.msra.mxu0 0
    %555 = vmatprep.subr.bf16.mxu0 0
    %556 = vmatpush1.bf16.msra.mxu0 0
    %557 = vmatprep.subr.bf16.mxu0 0
    %558 = vmatpush1.bf16.msra.mxu0 0
    %559 = vmatprep.subr.bf16.mxu0 0
    %560 = vmatpush1.bf16.msra.mxu0 0
    %561 = vmatprep.subr.bf16.mxu0 0
    %562 = vmatpush1.bf16.msra.mxu0 0
    %563 = vmatprep.subr.bf16.mxu0 0
    %564 = vmatpush1.bf16.msra.mxu0 0
    %565 = vmatprep.mubr.bf16.mxu0 0
    %566 = vmatmul.mubr.bf16.gmra.mrb[0].mxu0 %v460
    %v567 = vpop.f32.mrb[0].mxu0
    %v568 = vadd.f32 %v484, %v567
    %v569 = vpop.f32.mrb[0].mxu0
    %v570 = vpop.f32.mrb[0].mxu0
    %v571 = vadd.f32 %v484, %v570
    %v572 = vpop.f32.mrb[0].mxu0
    %573 = vmatprep.mubr.bf16.mxu0 0
    %574 = vmatmul.mubr.bf16.gmra.mrb[0].mxu0 %v461
    %v575 = vpop.f32.mrb[0].mxu0
    %v576 = vadd.f32 %v484, %v575
    %v577 = vpop.f32.mrb[0].mxu0
    %v578 = vpop.f32.mrb[0].mxu0
    %v579 = vadd.f32 %v484, %v578
    %v580 = vpop.f32.mrb[0].mxu0
    %581 = vmatprep.mubr.bf16.mxu0 0
    %582 = vmatmul.mubr.bf16.gmra.mrb[0].mxu0 %v462
    %v583 = vpop.f32.mrb[0].mxu0
    %v584 = vadd.f32 %v484, %v583
    %v585 = vpop.f32.mrb[0].mxu0
    %v586 = vpop.f32.mrb[0].mxu0
    %v587 = vadd.f32 %v484, %v586
    %v588 = vpop.f32.mrb[0].mxu0
    %589 = vmatprep.mubr.bf16.mxu0 0
    %590 = vmatmul.mubr.bf16.gmra.mrb[0].mxu0 %v463
    %v591 = vpop.f32.mrb[0].mxu0
    %v592 = vadd.f32 %v484, %v591
    %v593 = vpop.f32.mrb[0].mxu0
    %v594 = vpop.f32.mrb[0].mxu0
    %v595 = vadd.f32 %v484, %v594
    %v596 = vpop.f32.mrb[0].mxu0
    %597 = vdwg.mxu0
    %v598 = vmax.f32 %v568, 0.0
    %v599 = vmax.f32 %v571, 0.0
    %v600 = vmax.f32 %v576, 0.0
    %v601 = vmax.f32 %v579, 0.0
    %v602 = vmax.f32 %v584, 0.0
    %v603 = vmax.f32 %v587, 0.0
    %v604 = vmax.f32 %v592, 0.0
    %v605 = vmax.f32 %v595, 0.0
    %v606 = vpack.c.bf16 %v599, %v598
    %v607 = vpack.c.bf16 %v601, %v600
    %v608 = vpack.c.bf16 %v603, %v602
    %v609 = vpack.c.bf16 %v605, %v604
    %v610 = vld [vmem:[%s1 + $0x100] sm:$0xf]
    %v611 = vld [vmem:[%s1 + $0x104] sm:$0xf]
    %v612 = vld [vmem:[%s1 + $0x108] sm:$0xf]
    %v613 = vld [vmem:[%s1 + $0x10c] sm:$0xf]
    %v614 = vld [vmem:[%s1 + $0x110] sm:$0xf]
    %v615 = vld [vmem:[%s1 + $0x114] sm:$0xf]
    %v616 = vld [vmem:[%s1 + $0x118] sm:$0xf]
    %v617 = vld [vmem:[%s1 + $0x11c] sm:$0xf]
    %v618 = vld [vmem:[%s1 + $0x120] sm:$0xf]
    %v619 = vld [vmem:[%s1 + $0x124] sm:$0xf]
    %v620 = vld [vmem:[%s1 + $0x128] sm:$0xf]
    %v621 = vld [vmem:[%s1 + $0x12c] sm:$0xf]
    %v622 = vld [vmem:[%s1 + $0x130] sm:$0xf]
    %v623 = vld [vmem:[%s1 + $0x134] sm:$0xf]
    %v624 = vld [vmem:[%s1 + $0x138] sm:$0xf]
    %v625 = vld [vmem:[%s1 + $0x13c] sm:$0xf]
    %v626 = vld [vmem:[%s3 + $0x2] sm:$0x1]
    %v627 = vlaneseq
    %v628 = vshrl.u32 %v627, 7
    %v629 = vsub.s32 0, %v628
    %v630 = vrot.slane %v626, %v629
    %v647 = vunpack.c.l.b16 %v610
    %v648 = vunpack.c.l.b16 %v611
    %v649 = vunpack.c.l.b16 %v612
    %v650 = vunpack.c.l.b16 %v613
    %v651 = vunpack.c.l.b16 %v614
    %v652 = vunpack.c.l.b16 %v615
    %v653 = vunpack.c.l.b16 %v616
    %v654 = vunpack.c.l.b16 %v617
    %v655 = vunpack.c.l.b16 %v618
    %v656 = vunpack.c.l.b16 %v619
    %v657 = vunpack.c.l.b16 %v620
    %v658 = vunpack.c.l.b16 %v621
    %v659 = vunpack.c.l.b16 %v622
    %v660 = vunpack.c.l.b16 %v623
    %v661 = vunpack.c.l.b16 %v624
    %v662 = vunpack.c.l.b16 %v625
    %v663 = vpack.c.b16 %v648, %v647
    %v664 = vpack.c.b16 %v650, %v649
    %v665 = vpack.c.b16 %v652, %v651
    %v666 = vpack.c.b16 %v654, %v653
    %v667 = vpack.c.b16 %v656, %v655
    %v668 = vpack.c.b16 %v658, %v657
    %v669 = vpack.c.b16 %v660, %v659
    %v670 = vpack.c.b16 %v662, %v661
    %679 = vmatprep.subr.bf16.mxu0 0
    %680 = vmatpush1.bf16.msra.mxu0 %v663
    %681 = vmatprep.subr.bf16.mxu0 0
    %682 = vmatpush1.bf16.msra.mxu0 %v664
    %683 = vmatprep.subr.bf16.mxu0 0
    %684 = vmatpush1.bf16.msra.mxu0 %v665
    %685 = vmatprep.subr.bf16.mxu0 0
    %686 = vmatpush1.bf16.msra.mxu0 %v666
    %687 = vmatprep.subr.bf16.mxu0 0
    %688 = vmatpush1.bf16.msra.mxu0 %v667
    %689 = vmatprep.subr.bf16.mxu0 0
    %690 = vmatpush1.bf16.msra.mxu0 %v668
    %691 = vmatprep.subr.bf16.mxu0 0
    %692 = vmatpush1.bf16.msra.mxu0 %v669
    %693 = vmatprep.subr.bf16.mxu0 0
    %694 = vmatpush1.bf16.msra.mxu0 %v670
    %695 = vmatprep.subr.bf16.mxu0 0
    %696 = vmatpush1.bf16.msra.mxu0 0
    %697 = vmatprep.subr.bf16.mxu0 0
    %698 = vmatpush1.bf16.msra.mxu0 0
    %699 = vmatprep.subr.bf16.mxu0 0
    %700 = vmatpush1.bf16.msra.mxu0 0
    %701 = vmatprep.subr.bf16.mxu0 0
    %702 = vmatpush1.bf16.msra.mxu0 0
    %703 = vmatprep.subr.bf16.mxu0 0
    %704 = vmatpush1.bf16.msra.mxu0 0
    %705 = vmatprep.subr.bf16.mxu0 0
    %706 = vmatpush1.bf16.msra.mxu0 0
    %707 = vmatprep.subr.bf16.mxu0 0
    %708 = vmatpush1.bf16.msra.mxu0 0
    %709 = vmatprep.subr.bf16.mxu0 0
    %710 = vmatpush1.bf16.msra.mxu0 0
    %711 = vmatprep.mubr.bf16.mxu0 0
    %712 = vmatmul.mubr.bf16.gmra.mrb[0].mxu0 %v606
    %v713 = vpop.f32.mrb[0].mxu0
    %v714 = vadd.f32 %v630, %v713
    %v715 = vpop.f32.mrb[0].mxu0
    %v716 = vpop.f32.mrb[0].mxu0
    %v717 = vadd.f32 %v630, %v716
    %v718 = vpop.f32.mrb[0].mxu0
    %719 = vmatprep.mubr.bf16.mxu0 0
    %720 = vmatmul.mubr.bf16.gmra.mrb[0].mxu0 %v607
    %v721 = vpop.f32.mrb[0].mxu0
    %v722 = vadd.f32 %v630, %v721
    %v723 = vpop.f32.mrb[0].mxu0
    %v724 = vpop.f32.mrb[0].mxu0
    %v725 = vadd.f32 %v630, %v724
    %v726 = vpop.f32.mrb[0].mxu0
    %727 = vmatprep.mubr.bf16.mxu0 0
    %728 = vmatmul.mubr.bf16.gmra.mrb[0].mxu0 %v608
    %v729 = vpop.f32.mrb[0].mxu0
    %v730 = vadd.f32 %v630, %v729
    %v731 = vpop.f32.mrb[0].mxu0
    %v732 = vpop.f32.mrb[0].mxu0
    %v733 = vadd.f32 %v630, %v732
    %v734 = vpop.f32.mrb[0].mxu0
    %735 = vmatprep.mubr.bf16.mxu0 0
    %736 = vmatmul.mubr.bf16.gmra.mrb[0].mxu0 %v609
    %v737 = vpop.f32.mrb[0].mxu0
    %v738 = vadd.f32 %v630, %v737
    %v739 = vpop.f32.mrb[0].mxu0
    %v740 = vpop.f32.mrb[0].mxu0
    %v741 = vadd.f32 %v630, %v740
    %v742 = vpop.f32.mrb[0].mxu0
    %743 = vdwg.mxu0
    %v744 = vsel %vm81, 1, 0
    %v745 = vsel %vm82, 1, 0
    %v746 = vsel %vm83, 1, 0
    %v747 = vsel %vm84, 1, 0
    %v748 = vsel %vm85, 1, 0
    %v749 = vsel %vm86, 1, 0
    %v750 = vsel %vm87, 1, 0
    %v751 = vsel %vm88, 1, 0
    %vm752 = vcmp.eq.s32.totalorder %v744, 1
    %vm753 = vcmp.eq.s32.totalorder %v745, 1
    %vm754 = vcmp.eq.s32.totalorder %v746, 1
    %vm755 = vcmp.eq.s32.totalorder %v747, 1
    %vm756 = vcmp.eq.s32.totalorder %v748, 1
    %vm757 = vcmp.eq.s32.totalorder %v749, 1
    %vm758 = vcmp.eq.s32.totalorder %v750, 1
    %vm759 = vcmp.eq.s32.totalorder %v751, 1
    %v760 = vsel %vm752, %v714, 0.0
    %v761 = vsel %vm753, %v717, 0.0
    %v762 = vsel %vm754, %v722, 0.0
    %v763 = vsel %vm755, %v725, 0.0
    %v764 = vsel %vm756, %v730, 0.0
    %v765 = vsel %vm757, %v733, 0.0
    %v766 = vsel %vm758, %v738, 0.0
    %v767 = vsel %vm759, %v741, 0.0
    %v768 = vld [vmem:[%s3 + $0x8] sm:$0xff]
    %v769 = vld [vmem:[%s3 + $0x10] sm:$0xff]
    %v770 = vld [vmem:[%s3 + $0x18] sm:$0xff]
    %v771 = vld [vmem:[%s3 + $0x20] sm:$0xff]
    %v772 = vld [vmem:[%s3 + $0x28] sm:$0xff]
    %v773 = vld [vmem:[%s3 + $0x30] sm:$0xff]
    %v774 = vld [vmem:[%s3 + $0x38] sm:$0xff]
    %v775 = vld [vmem:[%s3 + $0x40] sm:$0xff]
    %v776 = vadd.f32 %v768, %v760
    %v777 = vadd.f32 %v769, %v761
    %v778 = vadd.f32 %v770, %v762
    %v779 = vadd.f32 %v771, %v763
    %v780 = vadd.f32 %v772, %v764
    %v781 = vadd.f32 %v773, %v765
    %v782 = vadd.f32 %v774, %v766
    %v783 = vadd.f32 %v775, %v767
    %v784 = vld [vmem:[%s3 + $0x50] sm:$0xff]
    %785 = vadd.xlane.f32.xlu0 %v776
    %v786 = vpop.xlane.xlu0 %785
    %787 = vadd.xlane.f32.xlu0 %v777
    %v788 = vpop.xlane.xlu0 %787
    %789 = vadd.xlane.f32.xlu0 %v778
    %v790 = vpop.xlane.xlu0 %789
    %791 = vadd.xlane.f32.xlu0 %v779
    %v792 = vpop.xlane.xlu0 %791
    %793 = vadd.xlane.f32.xlu0 %v780
    %v794 = vpop.xlane.xlu0 %793
    %795 = vadd.xlane.f32.xlu0 %v781
    %v796 = vpop.xlane.xlu0 %795
    %797 = vadd.xlane.f32.xlu0 %v782
    %v798 = vpop.xlane.xlu0 %797
    %799 = vadd.xlane.f32.xlu0 %v783
    %v800 = vpop.xlane.xlu0 %799
    %v801 = vmul.f32 %v786, 0.03125
    %v802 = vmul.f32 %v788, 0.03125
    %v803 = vmul.f32 %v790, 0.03125
    %v804 = vmul.f32 %v792, 0.03125
    %v805 = vmul.f32 %v794, 0.03125
    %v806 = vmul.f32 %v796, 0.03125
    %v807 = vmul.f32 %v798, 0.03125
    %v808 = vmul.f32 %v800, 0.03125
    %v809 = vmul.f32 %v776, %v776
    %v810 = vmul.f32 %v777, %v777
    %v811 = vmul.f32 %v778, %v778
    %v812 = vmul.f32 %v779, %v779
    %v813 = vmul.f32 %v780, %v780
    %v814 = vmul.f32 %v781, %v781
    %v815 = vmul.f32 %v782, %v782
    %v816 = vmul.f32 %v783, %v783
    %817 = vadd.xlane.f32.xlu0 %v809
    %v818 = vpop.xlane.xlu0 %817
    %819 = vadd.xlane.f32.xlu0 %v810
    %v820 = vpop.xlane.xlu0 %819
    %821 = vadd.xlane.f32.xlu0 %v811
    %v822 = vpop.xlane.xlu0 %821
    %823 = vadd.xlane.f32.xlu0 %v812
    %v824 = vpop.xlane.xlu0 %823
    %825 = vadd.xlane.f32.xlu0 %v813
    %v826 = vpop.xlane.xlu0 %825
    %827 = vadd.xlane.f32.xlu0 %v814
    %v828 = vpop.xlane.xlu0 %827
    %829 = vadd.xlane.f32.xlu0 %v815
    %v830 = vpop.xlane.xlu0 %829
    %831 = vadd.xlane.f32.xlu0 %v816
    %v832 = vpop.xlane.xlu0 %831
    %v833 = vmul.f32 %v818, 0.03125
    %v834 = vmul.f32 %v820, 0.03125
    %v835 = vmul.f32 %v822, 0.03125
    %v836 = vmul.f32 %v824, 0.03125
    %v837 = vmul.f32 %v826, 0.03125
    %v838 = vmul.f32 %v828, 0.03125
    %v839 = vmul.f32 %v830, 0.03125
    %v840 = vmul.f32 %v832, 0.03125
    %v841 = vmul.f32 %v801, %v801
    %v842 = vmul.f32 %v802, %v802
    %v843 = vmul.f32 %v803, %v803
    %v844 = vmul.f32 %v804, %v804
    %v845 = vmul.f32 %v805, %v805
    %v846 = vmul.f32 %v806, %v806
    %v847 = vmul.f32 %v807, %v807
    %v848 = vmul.f32 %v808, %v808
    %v849 = vsub.f32 %v833, %v841
    %v850 = vsub.f32 %v834, %v842
    %v851 = vsub.f32 %v835, %v843
    %v852 = vsub.f32 %v836, %v844
    %v853 = vsub.f32 %v837, %v845
    %v854 = vsub.f32 %v838, %v846
    %v855 = vsub.f32 %v839, %v847
    %v856 = vsub.f32 %v840, %v848
    %v857 = vsub.f32 %v776, %v801
    %v858 = vsub.f32 %v777, %v802
    %v859 = vsub.f32 %v778, %v803
    %v860 = vsub.f32 %v779, %v804
    %v861 = vsub.f32 %v780, %v805
    %v862 = vsub.f32 %v781, %v806
    %v863 = vsub.f32 %v782, %v807
    %v864 = vsub.f32 %v783, %v808
    %v865 = vadd.f32 %v849, 1e-06
    %v866 = vadd.f32 %v850, 1e-06
    %v867 = vadd.f32 %v851, 1e-06
    %v868 = vadd.f32 %v852, 1e-06
    %v869 = vadd.f32 %v853, 1e-06
    %v870 = vadd.f32 %v854, 1e-06
    %v871 = vadd.f32 %v855, 1e-06
    %v872 = vadd.f32 %v856, 1e-06
    %v873 = vrsqrt.pop %v865
    %v874 = vrsqrt.pop %v866
    %v875 = vrsqrt.pop %v867
    %v876 = vrsqrt.pop %v868
    %v877 = vrsqrt.pop %v869
    %v878 = vrsqrt.pop %v870
    %v879 = vrsqrt.pop %v871
    %v880 = vrsqrt.pop %v872
    %v881 = vmul.f32 %v857, %v873
    %v882 = vmul.f32 %v858, %v874
    %v883 = vmul.f32 %v859, %v875
    %v884 = vmul.f32 %v860, %v876
    %v885 = vmul.f32 %v861, %v877
    %v886 = vmul.f32 %v862, %v878
    %v887 = vmul.f32 %v863, %v879
    %v888 = vmul.f32 %v864, %v880
    %v889 = vlaneseq
    %v890 = vshrl.u32 %v889, 7
    %v891 = vsub.s32 0, %v890
    %v892 = vrot.slane %v784, %v891
    %v893 = vmul.f32 %v881, %v892
    %v894 = vmul.f32 %v882, %v892
    %v895 = vmul.f32 %v883, %v892
    %v896 = vmul.f32 %v884, %v892
    %v897 = vmul.f32 %v885, %v892
    %v898 = vmul.f32 %v886, %v892
    %v899 = vmul.f32 %v887, %v892
    %v900 = vmul.f32 %v888, %v892
    %v901 = vlaneseq
    %v902 = vshrl.u32 %v901, 7
    %v903 = vsub.s32 1, %v902
    %v904 = vrot.slane %v784, %v903
    %v905 = vadd.f32 %v893, %v904
    %v906 = vadd.f32 %v894, %v904
    %v907 = vadd.f32 %v895, %v904
    %v908 = vadd.f32 %v896, %v904
    %v909 = vadd.f32 %v897, %v904
    %v910 = vadd.f32 %v898, %v904
    %v911 = vadd.f32 %v899, %v904
    %v912 = vadd.f32 %v900, %v904
    %v913 = vpack.c.bf16 %v906, %v905
    %v914 = vpack.c.bf16 %v908, %v907
    %v915 = vpack.c.bf16 %v910, %v909
    %v916 = vpack.c.bf16 %v912, %v911
    %v917 = vlaneseq
    %v918 = vshrl.u32 %v917, 7
    %v919 = vsub.s32 2, %v918
    %v920 = vrot.slane %v784, %v919
    %v921 = vadd.f32 %v776, %v920
    %v922 = vadd.f32 %v777, %v920
    %v923 = vadd.f32 %v778, %v920
    %v924 = vadd.f32 %v779, %v920
    %v925 = vadd.f32 %v780, %v920
    %v926 = vadd.f32 %v781, %v920
    %v927 = vadd.f32 %v782, %v920
    %v928 = vadd.f32 %v783, %v920
    %v929 = vld [vmem:[%s2] sm:$0xf]
    %v930 = vld [vmem:[%s2 + $0x28] sm:$0xf]
    %v931 = vld [vmem:[%s2 + $0x50] sm:$0xf]
    %v932 = vld [vmem:[%s2 + $0x78] sm:$0xf]
    %v933 = vld [vmem:[%s2 + $0xa0] sm:$0xf]
    %v934 = vld [vmem:[%s2 + $0xc8] sm:$0xf]
    %v935 = vld [vmem:[%s2 + $0xf0] sm:$0xf]
    %v936 = vld [vmem:[%s2 + $0x118] sm:$0xf]
    %v937 = vld [vmem:[%s2 + $0x140] sm:$0xf]
    %v938 = vld [vmem:[%s2 + $0x168] sm:$0xf]
    %v939 = vld [vmem:[%s2 + $0x190] sm:$0xf]
    %v940 = vld [vmem:[%s2 + $0x1b8] sm:$0xf]
    %v941 = vld [vmem:[%s2 + $0x1e0] sm:$0xf]
    %v942 = vld [vmem:[%s2 + $0x208] sm:$0xf]
    %v943 = vld [vmem:[%s2 + $0x230] sm:$0xf]
    %v944 = vld [vmem:[%s2 + $0x258] sm:$0xf]
    %v945 = vld [vmem:[%s2 + $0x10] sm:$0xf]
    %v946 = vld [vmem:[%s2 + $0x38] sm:$0xf]
    %v947 = vld [vmem:[%s2 + $0x60] sm:$0xf]
    %v948 = vld [vmem:[%s2 + $0x88] sm:$0xf]
    %v949 = vld [vmem:[%s2 + $0xb0] sm:$0xf]
    %v950 = vld [vmem:[%s2 + $0xd8] sm:$0xf]
    %v951 = vld [vmem:[%s2 + $0x100] sm:$0xf]
    %v952 = vld [vmem:[%s2 + $0x128] sm:$0xf]
    %v953 = vld [vmem:[%s2 + $0x150] sm:$0xf]
    %v954 = vld [vmem:[%s2 + $0x178] sm:$0xf]
    %v955 = vld [vmem:[%s2 + $0x1a0] sm:$0xf]
    %v956 = vld [vmem:[%s2 + $0x1c8] sm:$0xf]
    %v957 = vld [vmem:[%s2 + $0x1f0] sm:$0xf]
    %v958 = vld [vmem:[%s2 + $0x218] sm:$0xf]
    %v959 = vld [vmem:[%s2 + $0x240] sm:$0xf]
    %v960 = vld [vmem:[%s2 + $0x268] sm:$0xf]
    %v977 = vunpack.c.l.b16 %v929
    %v978 = vunpack.c.l.b16 %v930
    %v979 = vunpack.c.l.b16 %v931
    %v980 = vunpack.c.l.b16 %v932
    %v981 = vunpack.c.l.b16 %v933
    %v982 = vunpack.c.l.b16 %v934
    %v983 = vunpack.c.l.b16 %v935
    %v984 = vunpack.c.l.b16 %v936
    %v985 = vunpack.c.l.b16 %v937
    %v986 = vunpack.c.l.b16 %v938
    %v987 = vunpack.c.l.b16 %v939
    %v988 = vunpack.c.l.b16 %v940
    %v989 = vunpack.c.l.b16 %v941
    %v990 = vunpack.c.l.b16 %v942
    %v991 = vunpack.c.l.b16 %v943
    %v992 = vunpack.c.l.b16 %v944
    %v993 = vpack.c.b16 %v978, %v977
    %v994 = vpack.c.b16 %v980, %v979
    %v995 = vpack.c.b16 %v982, %v981
    %v996 = vpack.c.b16 %v984, %v983
    %v997 = vpack.c.b16 %v986, %v985
    %v998 = vpack.c.b16 %v988, %v987
    %v999 = vpack.c.b16 %v990, %v989
    %v1000 = vpack.c.b16 %v992, %v991
    %1009 = vmatprep.subr.bf16.mxu0 0
    %1010 = vmatpush1.bf16.msra.mxu0 %v993
    %1011 = vmatprep.subr.bf16.mxu0 0
    %1012 = vmatpush1.bf16.msra.mxu0 %v994
    %1013 = vmatprep.subr.bf16.mxu0 0
    %1014 = vmatpush1.bf16.msra.mxu0 %v995
    %1015 = vmatprep.subr.bf16.mxu0 0
    %1016 = vmatpush1.bf16.msra.mxu0 %v996
    %1017 = vmatprep.subr.bf16.mxu0 0
    %1018 = vmatpush1.bf16.msra.mxu0 %v997
    %1019 = vmatprep.subr.bf16.mxu0 0
    %1020 = vmatpush1.bf16.msra.mxu0 %v998
    %1021 = vmatprep.subr.bf16.mxu0 0
    %1022 = vmatpush1.bf16.msra.mxu0 %v999
    %1023 = vmatprep.subr.bf16.mxu0 0
    %1024 = vmatpush1.bf16.msra.mxu0 %v1000
    %1025 = vmatprep.subr.bf16.mxu0 0
    %1026 = vmatpush1.bf16.msra.mxu0 0
    %1027 = vmatprep.subr.bf16.mxu0 0
    %1028 = vmatpush1.bf16.msra.mxu0 0
    %1029 = vmatprep.subr.bf16.mxu0 0
    %1030 = vmatpush1.bf16.msra.mxu0 0
    %1031 = vmatprep.subr.bf16.mxu0 0
    %1032 = vmatpush1.bf16.msra.mxu0 0
    %1033 = vmatprep.subr.bf16.mxu0 0
    %1034 = vmatpush1.bf16.msra.mxu0 0
    %1035 = vmatprep.subr.bf16.mxu0 0
    %1036 = vmatpush1.bf16.msra.mxu0 0
    %1037 = vmatprep.subr.bf16.mxu0 0
    %1038 = vmatpush1.bf16.msra.mxu0 0
    %1039 = vmatprep.subr.bf16.mxu0 0
    %1040 = vmatpush1.bf16.msra.mxu0 0
    %1041 = vmatprep.mubr.bf16.mxu0 0
    %1042 = vmatmul.mubr.bf16.gmra.mrb[0].mxu0 %v913
    %v1043 = vpop.f32.mrb[0].mxu0
    %v1044 = vadd.f32 0.0, %v1043
    %v1045 = vpop.f32.mrb[0].mxu0
    %v1046 = vpop.f32.mrb[0].mxu0
    %v1047 = vadd.f32 0.0, %v1046
    %v1048 = vpop.f32.mrb[0].mxu0
    %1049 = vmatprep.mubr.bf16.mxu0 0
    %1050 = vmatmul.mubr.bf16.gmra.mrb[0].mxu0 %v914
    %v1051 = vpop.f32.mrb[0].mxu0
    %v1052 = vadd.f32 0.0, %v1051
    %v1053 = vpop.f32.mrb[0].mxu0
    %v1054 = vpop.f32.mrb[0].mxu0
    %v1055 = vadd.f32 0.0, %v1054
    %v1056 = vpop.f32.mrb[0].mxu0
    %1057 = vmatprep.mubr.bf16.mxu0 0
    %1058 = vmatmul.mubr.bf16.gmra.mrb[0].mxu0 %v915
    %v1059 = vpop.f32.mrb[0].mxu0
    %v1060 = vadd.f32 0.0, %v1059
    %v1061 = vpop.f32.mrb[0].mxu0
    %v1062 = vpop.f32.mrb[0].mxu0
    %v1063 = vadd.f32 0.0, %v1062
    %v1064 = vpop.f32.mrb[0].mxu0
    %1065 = vmatprep.mubr.bf16.mxu0 0
    %1066 = vmatmul.mubr.bf16.gmra.mrb[0].mxu0 %v916
    %v1067 = vpop.f32.mrb[0].mxu0
    %v1068 = vadd.f32 0.0, %v1067
    %v1069 = vpop.f32.mrb[0].mxu0
    %v1070 = vpop.f32.mrb[0].mxu0
    %v1071 = vadd.f32 0.0, %v1070
    %v1072 = vpop.f32.mrb[0].mxu0
    %1073 = vdwg.mxu0
    %v1074 = vpack.c.bf16 %v1047, %v1044
    %v1075 = vpack.c.bf16 %v1055, %v1052
    %v1076 = vpack.c.bf16 %v1063, %v1060
    %v1077 = vpack.c.bf16 %v1071, %v1068
    %1078 = vmatprep.subr.bf16.mxu0 0
    %1079 = vmatpush1.bf16.xpose.msra.mxu0 %v913
    %1080 = vmatprep.subr.bf16.mxu0 0
    %1081 = vmatpush1.bf16.xpose.msra.mxu0 %v914
    %1082 = vmatprep.subr.bf16.mxu0 0
    %1083 = vmatpush1.bf16.xpose.msra.mxu0 %v915
    %1084 = vmatprep.subr.bf16.mxu0 0
    %1085 = vmatpush1.bf16.xpose.msra.mxu0 %v916
    %1086 = vmatprep.subr.bf16.mxu0 0
    %1087 = vmatpush1.bf16.xpose.msra.mxu0 0
    %1088 = vmatprep.subr.bf16.mxu0 0
    %1089 = vmatpush1.bf16.xpose.msra.mxu0 0
    %1090 = vmatprep.subr.bf16.mxu0 0
    %1091 = vmatpush1.bf16.xpose.msra.mxu0 0
    %1092 = vmatprep.subr.bf16.mxu0 0
    %1093 = vmatpush1.bf16.xpose.msra.mxu0 0
    %1094 = vmatprep.subr.bf16.mxu0 0
    %1095 = vmatpush1.bf16.xpose.msra.mxu0 0
    %1096 = vmatprep.subr.bf16.mxu0 0
    %1097 = vmatpush1.bf16.xpose.msra.mxu0 0
    %1098 = vmatprep.subr.bf16.mxu0 0
    %1099 = vmatpush1.bf16.xpose.msra.mxu0 0
    %1100 = vmatprep.subr.bf16.mxu0 0
    %1101 = vmatpush1.bf16.xpose.msra.mxu0 0
    %1102 = vmatprep.subr.bf16.mxu0 0
    %1103 = vmatpush1.bf16.xpose.msra.mxu0 0
    %1104 = vmatprep.subr.bf16.mxu0 0
    %1105 = vmatpush1.bf16.xpose.msra.mxu0 0
    %1106 = vmatprep.subr.bf16.mxu0 0
    %1107 = vmatpush1.bf16.xpose.msra.mxu0 0
    %1108 = vmatprep.subr.bf16.mxu0 0
    %1109 = vmatpush1.bf16.xpose.msra.mxu0 0
    %1110 = vmatprep.mubr.bf16.mxu0 0
    %1111 = vmatmul.mubr.bf16.gmra.mrb[0].mxu0 %v1074
    %v1112 = vpop.f32.mrb[0].mxu0
    %v1113 = vadd.f32 0.0, %v1112
    %v1114 = vpop.f32.mrb[0].mxu0
    %v1115 = vpop.f32.mrb[0].mxu0
    %v1116 = vadd.f32 0.0, %v1115
    %v1117 = vpop.f32.mrb[0].mxu0
    %1118 = vmatprep.mubr.bf16.mxu0 0
    %1119 = vmatmul.mubr.bf16.gmra.mrb[0].mxu0 %v1075
    %v1120 = vpop.f32.mrb[0].mxu0
    %v1121 = vadd.f32 0.0, %v1120
    %v1122 = vpop.f32.mrb[0].mxu0
    %v1123 = vpop.f32.mrb[0].mxu0
    %v1124 = vadd.f32 0.0, %v1123
    %v1125 = vpop.f32.mrb[0].mxu0
    %1126 = vmatprep.mubr.bf16.mxu0 0
    %1127 = vmatmul.mubr.bf16.gmra.mrb[0].mxu0 %v1076
    %v1128 = vpop.f32.mrb[0].mxu0
    %v1129 = vadd.f32 0.0, %v1128
    %v1130 = vpop.f32.mrb[0].mxu0
    %v1131 = vpop.f32.mrb[0].mxu0
    %v1132 = vadd.f32 0.0, %v1131
    %v1133 = vpop.f32.mrb[0].mxu0
    %1134 = vmatprep.mubr.bf16.mxu0 0
    %1135 = vmatmul.mubr.bf16.gmra.mrb[0].mxu0 %v1077
    %v1136 = vpop.f32.mrb[0].mxu0
    %v1137 = vadd.f32 0.0, %v1136
    %v1138 = vpop.f32.mrb[0].mxu0
    %v1139 = vpop.f32.mrb[0].mxu0
    %v1140 = vadd.f32 0.0, %v1139
    %v1141 = vpop.f32.mrb[0].mxu0
    %1142 = vdwg.mxu0
    %v1143 = vsel %vm49, %v1113, -1e+09
    %v1144 = vsel %vm50, %v1116, -1e+09
    %v1145 = vsel %vm51, %v1121, -1e+09
    %v1146 = vsel %vm52, %v1124, -1e+09
    %v1147 = vsel %vm53, %v1129, -1e+09
    %v1148 = vsel %vm54, %v1132, -1e+09
    %v1149 = vsel %vm55, %v1137, -1e+09
    %v1150 = vsel %vm56, %v1140, -1e+09
    %vm1151 = vcmask 523264
    %v1152 = vsel %vm1151, %v1143, -inf
    %1153 = vmax.xlane.f32.xlu0 %v1152
    %v1154 = vpop.xlane.xlu0 %1153
    %v1155 = vsel %vm1151, %v1144, -inf
    %1156 = vmax.xlane.f32.xlu0 %v1155
    %v1157 = vpop.xlane.xlu0 %1156
    %v1158 = vsel %vm1151, %v1145, -inf
    %1159 = vmax.xlane.f32.xlu0 %v1158
    %v1160 = vpop.xlane.xlu0 %1159
    %v1161 = vsel %vm1151, %v1146, -inf
    %1162 = vmax.xlane.f32.xlu0 %v1161
    %v1163 = vpop.xlane.xlu0 %1162
    %v1164 = vsel %vm1151, %v1147, -inf
    %1165 = vmax.xlane.f32.xlu0 %v1164
    %v1166 = vpop.xlane.xlu0 %1165
    %v1167 = vsel %vm1151, %v1148, -inf
    %1168 = vmax.xlane.f32.xlu0 %v1167
    %v1169 = vpop.xlane.xlu0 %1168
    %v1170 = vsel %vm1151, %v1149, -inf
    %1171 = vmax.xlane.f32.xlu0 %v1170
    %v1172 = vpop.xlane.xlu0 %1171
    %v1173 = vsel %vm1151, %v1150, -inf
    %1174 = vmax.xlane.f32.xlu0 %v1173
    %v1175 = vpop.xlane.xlu0 %1174
    %v1176 = vsub.f32 %v1143, %v1154
    %v1177 = vsub.f32 %v1144, %v1157
    %v1178 = vsub.f32 %v1145, %v1160
    %v1179 = vsub.f32 %v1146, %v1163
    %v1180 = vsub.f32 %v1147, %v1166
    %v1181 = vsub.f32 %v1148, %v1169
    %v1182 = vsub.f32 %v1149, %v1172
    %v1183 = vsub.f32 %v1150, %v1175
    %v1184 = vmul.f32 %v1176, 1.442695
    %v1185 = vpow.pop %v1184
    %v1186 = vmul.f32 %v1177, 1.442695
    %v1187 = vpow.pop %v1186
    %v1188 = vmul.f32 %v1178, 1.442695
    %v1189 = vpow.pop %v1188
    %v1190 = vmul.f32 %v1179, 1.442695
    %v1191 = vpow.pop %v1190
    %v1192 = vmul.f32 %v1180, 1.442695
    %v1193 = vpow.pop %v1192
    %v1194 = vmul.f32 %v1181, 1.442695
    %v1195 = vpow.pop %v1194
    %v1196 = vmul.f32 %v1182, 1.442695
    %v1197 = vpow.pop %v1196
    %v1198 = vmul.f32 %v1183, 1.442695
    %v1199 = vpow.pop %v1198
    %v1200 = vsel %vm1151, %v1185, 0.0
    %1201 = vadd.xlane.f32.xlu0 %v1200
    %v1202 = vpop.xlane.xlu0 %1201
    %v1203 = vsel %vm1151, %v1187, 0.0
    %1204 = vadd.xlane.f32.xlu0 %v1203
    %v1205 = vpop.xlane.xlu0 %1204
    %v1206 = vsel %vm1151, %v1189, 0.0
    %1207 = vadd.xlane.f32.xlu0 %v1206
    %v1208 = vpop.xlane.xlu0 %1207
    %v1209 = vsel %vm1151, %v1191, 0.0
    %1210 = vadd.xlane.f32.xlu0 %v1209
    %v1211 = vpop.xlane.xlu0 %1210
    %v1212 = vsel %vm1151, %v1193, 0.0
    %1213 = vadd.xlane.f32.xlu0 %v1212
    %v1214 = vpop.xlane.xlu0 %1213
    %v1215 = vsel %vm1151, %v1195, 0.0
    %1216 = vadd.xlane.f32.xlu0 %v1215
    %v1217 = vpop.xlane.xlu0 %1216
    %v1218 = vsel %vm1151, %v1197, 0.0
    %1219 = vadd.xlane.f32.xlu0 %v1218
    %v1220 = vpop.xlane.xlu0 %1219
    %v1221 = vsel %vm1151, %v1199, 0.0
    %1222 = vadd.xlane.f32.xlu0 %v1221
    %v1223 = vpop.xlane.xlu0 %1222
    %v1224 = vrcp.pop %v1202
    %v1225 = vrcp.pop %v1205
    %v1226 = vrcp.pop %v1208
    %v1227 = vrcp.pop %v1211
    %v1228 = vrcp.pop %v1214
    %v1229 = vrcp.pop %v1217
    %v1230 = vrcp.pop %v1220
    %v1231 = vrcp.pop %v1223
    %v1232 = vmul.f32 %v1185, %v1224
    %v1233 = vmul.f32 %v1187, %v1225
    %v1234 = vmul.f32 %v1189, %v1226
    %v1235 = vmul.f32 %v1191, %v1227
    %v1236 = vmul.f32 %v1193, %v1228
    %v1237 = vmul.f32 %v1195, %v1229
    %v1238 = vmul.f32 %v1197, %v1230
    %v1239 = vmul.f32 %v1199, %v1231
    %v1256 = vunpack.c.l.b16 %v945
    %v1257 = vunpack.c.l.b16 %v946
    %v1258 = vunpack.c.l.b16 %v947
    %v1259 = vunpack.c.l.b16 %v948
    %v1260 = vunpack.c.l.b16 %v949
    %v1261 = vunpack.c.l.b16 %v950
    %v1262 = vunpack.c.l.b16 %v951
    %v1263 = vunpack.c.l.b16 %v952
    %v1264 = vunpack.c.l.b16 %v953
    %v1265 = vunpack.c.l.b16 %v954
    %v1266 = vunpack.c.l.b16 %v955
    %v1267 = vunpack.c.l.b16 %v956
    %v1268 = vunpack.c.l.b16 %v957
    %v1269 = vunpack.c.l.b16 %v958
    %v1270 = vunpack.c.l.b16 %v959
    %v1271 = vunpack.c.l.b16 %v960
    %v1272 = vpack.c.b16 %v1257, %v1256
    %v1273 = vpack.c.b16 %v1259, %v1258
    %v1274 = vpack.c.b16 %v1261, %v1260
    %v1275 = vpack.c.b16 %v1263, %v1262
    %v1276 = vpack.c.b16 %v1265, %v1264
    %v1277 = vpack.c.b16 %v1267, %v1266
    %v1278 = vpack.c.b16 %v1269, %v1268
    %v1279 = vpack.c.b16 %v1271, %v1270
    %1288 = vmatprep.subr.bf16.mxu0 0
    %1289 = vmatpush1.bf16.msra.mxu0 %v1272
    %1290 = vmatprep.subr.bf16.mxu0 0
    %1291 = vmatpush1.bf16.msra.mxu0 %v1273
    %1292 = vmatprep.subr.bf16.mxu0 0
    %1293 = vmatpush1.bf16.msra.mxu0 %v1274
    %1294 = vmatprep.subr.bf16.mxu0 0
    %1295 = vmatpush1.bf16.msra.mxu0 %v1275
    %1296 = vmatprep.subr.bf16.mxu0 0
    %1297 = vmatpush1.bf16.msra.mxu0 %v1276
    %1298 = vmatprep.subr.bf16.mxu0 0
    %1299 = vmatpush1.bf16.msra.mxu0 %v1277
    %1300 = vmatprep.subr.bf16.mxu0 0
    %1301 = vmatpush1.bf16.msra.mxu0 %v1278
    %1302 = vmatprep.subr.bf16.mxu0 0
    %1303 = vmatpush1.bf16.msra.mxu0 %v1279
    %1304 = vmatprep.subr.bf16.mxu0 0
    %1305 = vmatpush1.bf16.msra.mxu0 0
    %1306 = vmatprep.subr.bf16.mxu0 0
    %1307 = vmatpush1.bf16.msra.mxu0 0
    %1308 = vmatprep.subr.bf16.mxu0 0
    %1309 = vmatpush1.bf16.msra.mxu0 0
    %1310 = vmatprep.subr.bf16.mxu0 0
    %1311 = vmatpush1.bf16.msra.mxu0 0
    %1312 = vmatprep.subr.bf16.mxu0 0
    %1313 = vmatpush1.bf16.msra.mxu0 0
    %1314 = vmatprep.subr.bf16.mxu0 0
    %1315 = vmatpush1.bf16.msra.mxu0 0
    %1316 = vmatprep.subr.bf16.mxu0 0
    %1317 = vmatpush1.bf16.msra.mxu0 0
    %1318 = vmatprep.subr.bf16.mxu0 0
    %1319 = vmatpush1.bf16.msra.mxu0 0
    %1320 = vmatprep.mubr.bf16.mxu0 0
    %1321 = vmatmul.mubr.bf16.gmra.mrb[0].mxu0 %v913
    %v1322 = vpop.f32.mrb[0].mxu0
    %v1323 = vadd.f32 0.0, %v1322
    %v1324 = vpop.f32.mrb[0].mxu0
    %v1325 = vpop.f32.mrb[0].mxu0
    %v1326 = vadd.f32 0.0, %v1325
    %v1327 = vpop.f32.mrb[0].mxu0
    %1328 = vmatprep.mubr.bf16.mxu0 0
    %1329 = vmatmul.mubr.bf16.gmra.mrb[0].mxu0 %v914
    %v1330 = vpop.f32.mrb[0].mxu0
    %v1331 = vadd.f32 0.0, %v1330
    %v1332 = vpop.f32.mrb[0].mxu0
    %v1333 = vpop.f32.mrb[0].mxu0
    %v1334 = vadd.f32 0.0, %v1333
    %v1335 = vpop.f32.mrb[0].mxu0
    %1336 = vmatprep.mubr.bf16.mxu0 0
    %1337 = vmatmul.mubr.bf16.gmra.mrb[0].mxu0 %v915
    %v1338 = vpop.f32.mrb[0].mxu0
    %v1339 = vadd.f32 0.0, %v1338
    %v1340 = vpop.f32.mrb[0].mxu0
    %v1341 = vpop.f32.mrb[0].mxu0
    %v1342 = vadd.f32 0.0, %v1341
    %v1343 = vpop.f32.mrb[0].mxu0
    %1344 = vmatprep.mubr.bf16.mxu0 0
    %1345 = vmatmul.mubr.bf16.gmra.mrb[0].mxu0 %v916
    %v1346 = vpop.f32.mrb[0].mxu0
    %v1347 = vadd.f32 0.0, %v1346
    %v1348 = vpop.f32.mrb[0].mxu0
    %v1349 = vpop.f32.mrb[0].mxu0
    %v1350 = vadd.f32 0.0, %v1349
    %v1351 = vpop.f32.mrb[0].mxu0
    %1352 = vdwg.mxu0
    %v1353 = vpack.c.bf16 %v1233, %v1232
    %v1354 = vpack.c.bf16 %v1235, %v1234
    %v1355 = vpack.c.bf16 %v1237, %v1236
    %v1356 = vpack.c.bf16 %v1239, %v1238
    %v1357 = vpack.c.bf16 %v1326, %v1323
    %v1358 = vpack.c.bf16 %v1334, %v1331
    %v1359 = vpack.c.bf16 %v1342, %v1339
    %v1360 = vpack.c.bf16 %v1350, %v1347
    %v1362 = vsel %vm1151, %v1353, 0
    %v1365 = vsel %vm1151, %v1354, 0
    %v1368 = vsel %vm1151, %v1355, 0
    %v1371 = vsel %vm1151, %v1356, 0
    %1373 = vmatprep.subr.bf16.mxu0 0
    %1374 = vmatpush1.bf16.msra.mxu0 %v1357
    %1375 = vmatprep.subr.bf16.mxu0 0
    %1376 = vmatpush1.bf16.msra.mxu0 %v1358
    %1377 = vmatprep.subr.bf16.mxu0 0
    %1378 = vmatpush1.bf16.msra.mxu0 %v1359
    %1379 = vmatprep.subr.bf16.mxu0 0
    %1380 = vmatpush1.bf16.msra.mxu0 %v1360
    %1381 = vmatprep.subr.bf16.mxu0 0
    %1382 = vmatpush1.bf16.msra.mxu0 0
    %1383 = vmatprep.subr.bf16.mxu0 0
    %1384 = vmatpush1.bf16.msra.mxu0 0
    %1385 = vmatprep.subr.bf16.mxu0 0
    %1386 = vmatpush1.bf16.msra.mxu0 0
    %1387 = vmatprep.subr.bf16.mxu0 0
    %1388 = vmatpush1.bf16.msra.mxu0 0
    %1389 = vmatprep.subr.bf16.mxu0 0
    %1390 = vmatpush1.bf16.msra.mxu0 0
    %1391 = vmatprep.subr.bf16.mxu0 0
    %1392 = vmatpush1.bf16.msra.mxu0 0
    %1393 = vmatprep.subr.bf16.mxu0 0
    %1394 = vmatpush1.bf16.msra.mxu0 0
    %1395 = vmatprep.subr.bf16.mxu0 0
    %1396 = vmatpush1.bf16.msra.mxu0 0
    %1397 = vmatprep.subr.bf16.mxu0 0
    %1398 = vmatpush1.bf16.msra.mxu0 0
    %1399 = vmatprep.subr.bf16.mxu0 0
    %1400 = vmatpush1.bf16.msra.mxu0 0
    %1401 = vmatprep.subr.bf16.mxu0 0
    %1402 = vmatpush1.bf16.msra.mxu0 0
    %1403 = vmatprep.subr.bf16.mxu0 0
    %1404 = vmatpush1.bf16.msra.mxu0 0
    %1405 = vmatprep.mubr.bf16.mxu0 0
    %1406 = vmatmul.mubr.bf16.gmra.mrb[0].mxu0 %v1362
    %v1407 = vpop.f32.mrb[0].mxu0
    %v1408 = vadd.f32 0.0, %v1407
    %v1409 = vpop.f32.mrb[0].mxu0
    %v1410 = vpop.f32.mrb[0].mxu0
    %v1411 = vadd.f32 0.0, %v1410
    %v1412 = vpop.f32.mrb[0].mxu0
    %1413 = vmatprep.mubr.bf16.mxu0 0
    %1414 = vmatmul.mubr.bf16.gmra.mrb[0].mxu0 %v1365
    %v1415 = vpop.f32.mrb[0].mxu0
    %v1416 = vadd.f32 0.0, %v1415
    %v1417 = vpop.f32.mrb[0].mxu0
    %v1418 = vpop.f32.mrb[0].mxu0
    %v1419 = vadd.f32 0.0, %v1418
    %v1420 = vpop.f32.mrb[0].mxu0
    %1421 = vmatprep.mubr.bf16.mxu0 0
    %1422 = vmatmul.mubr.bf16.gmra.mrb[0].mxu0 %v1368
    %v1423 = vpop.f32.mrb[0].mxu0
    %v1424 = vadd.f32 0.0, %v1423
    %v1425 = vpop.f32.mrb[0].mxu0
    %v1426 = vpop.f32.mrb[0].mxu0
    %v1427 = vadd.f32 0.0, %v1426
    %v1428 = vpop.f32.mrb[0].mxu0
    %1429 = vmatprep.mubr.bf16.mxu0 0
    %1430 = vmatmul.mubr.bf16.gmra.mrb[0].mxu0 %v1371
    %v1431 = vpop.f32.mrb[0].mxu0
    %v1432 = vadd.f32 0.0, %v1431
    %v1433 = vpop.f32.mrb[0].mxu0
    %v1434 = vpop.f32.mrb[0].mxu0
    %v1435 = vadd.f32 0.0, %v1434
    %v1436 = vpop.f32.mrb[0].mxu0
    %1437 = vdwg.mxu0
    %v1438 = vadd.f32 %v921, %v1408
    %v1439 = vadd.f32 %v922, %v1411
    %v1440 = vadd.f32 %v923, %v1416
    %v1441 = vadd.f32 %v924, %v1419
    %v1442 = vadd.f32 %v925, %v1424
    %v1443 = vadd.f32 %v926, %v1427
    %v1444 = vadd.f32 %v927, %v1432
    %v1445 = vadd.f32 %v928, %v1435
    %v1446 = vld [vmem:[%s2 + $0x4] sm:$0xf]
    %v1447 = vld [vmem:[%s2 + $0x2c] sm:$0xf]
    %v1448 = vld [vmem:[%s2 + $0x54] sm:$0xf]
    %v1449 = vld [vmem:[%s2 + $0x7c] sm:$0xf]
    %v1450 = vld [vmem:[%s2 + $0xa4] sm:$0xf]
    %v1451 = vld [vmem:[%s2 + $0xcc] sm:$0xf]
    %v1452 = vld [vmem:[%s2 + $0xf4] sm:$0xf]
    %v1453 = vld [vmem:[%s2 + $0x11c] sm:$0xf]
    %v1454 = vld [vmem:[%s2 + $0x144] sm:$0xf]
    %v1455 = vld [vmem:[%s2 + $0x16c] sm:$0xf]
    %v1456 = vld [vmem:[%s2 + $0x194] sm:$0xf]
    %v1457 = vld [vmem:[%s2 + $0x1bc] sm:$0xf]
    %v1458 = vld [vmem:[%s2 + $0x1e4] sm:$0xf]
    %v1459 = vld [vmem:[%s2 + $0x20c] sm:$0xf]
    %v1460 = vld [vmem:[%s2 + $0x234] sm:$0xf]
    %v1461 = vld [vmem:[%s2 + $0x25c] sm:$0xf]
    %v1462 = vld [vmem:[%s2 + $0x14] sm:$0xf]
    %v1463 = vld [vmem:[%s2 + $0x3c] sm:$0xf]
    %v1464 = vld [vmem:[%s2 + $0x64] sm:$0xf]
    %v1465 = vld [vmem:[%s2 + $0x8c] sm:$0xf]
    %v1466 = vld [vmem:[%s2 + $0xb4] sm:$0xf]
    %v1467 = vld [vmem:[%s2 + $0xdc] sm:$0xf]
    %v1468 = vld [vmem:[%s2 + $0x104] sm:$0xf]
    %v1469 = vld [vmem:[%s2 + $0x12c] sm:$0xf]
    %v1470 = vld [vmem:[%s2 + $0x154] sm:$0xf]
    %v1471 = vld [vmem:[%s2 + $0x17c] sm:$0xf]
    %v1472 = vld [vmem:[%s2 + $0x1a4] sm:$0xf]
    %v1473 = vld [vmem:[%s2 + $0x1cc] sm:$0xf]
    %v1474 = vld [vmem:[%s2 + $0x1f4] sm:$0xf]
    %v1475 = vld [vmem:[%s2 + $0x21c] sm:$0xf]
    %v1476 = vld [vmem:[%s2 + $0x244] sm:$0xf]
    %v1477 = vld [vmem:[%s2 + $0x26c] sm:$0xf]
    %v1494 = vunpack.c.l.b16 %v1446
    %v1495 = vunpack.c.l.b16 %v1447
    %v1496 = vunpack.c.l.b16 %v1448
    %v1497 = vunpack.c.l.b16 %v1449
    %v1498 = vunpack.c.l.b16 %v1450
    %v1499 = vunpack.c.l.b16 %v1451
    %v1500 = vunpack.c.l.b16 %v1452
    %v1501 = vunpack.c.l.b16 %v1453
    %v1502 = vunpack.c.l.b16 %v1454
    %v1503 = vunpack.c.l.b16 %v1455
    %v1504 = vunpack.c.l.b16 %v1456
    %v1505 = vunpack.c.l.b16 %v1457
    %v1506 = vunpack.c.l.b16 %v1458
    %v1507 = vunpack.c.l.b16 %v1459
    %v1508 = vunpack.c.l.b16 %v1460
    %v1509 = vunpack.c.l.b16 %v1461
    %v1510 = vpack.c.b16 %v1495, %v1494
    %v1511 = vpack.c.b16 %v1497, %v1496
    %v1512 = vpack.c.b16 %v1499, %v1498
    %v1513 = vpack.c.b16 %v1501, %v1500
    %v1514 = vpack.c.b16 %v1503, %v1502
    %v1515 = vpack.c.b16 %v1505, %v1504
    %v1516 = vpack.c.b16 %v1507, %v1506
    %v1517 = vpack.c.b16 %v1509, %v1508
    %1526 = vmatprep.subr.bf16.mxu0 0
    %1527 = vmatpush1.bf16.msra.mxu0 %v1510
    %1528 = vmatprep.subr.bf16.mxu0 0
    %1529 = vmatpush1.bf16.msra.mxu0 %v1511
    %1530 = vmatprep.subr.bf16.mxu0 0
    %1531 = vmatpush1.bf16.msra.mxu0 %v1512
    %1532 = vmatprep.subr.bf16.mxu0 0
    %1533 = vmatpush1.bf16.msra.mxu0 %v1513
    %1534 = vmatprep.subr.bf16.mxu0 0
    %1535 = vmatpush1.bf16.msra.mxu0 %v1514
    %1536 = vmatprep.subr.bf16.mxu0 0
    %1537 = vmatpush1.bf16.msra.mxu0 %v1515
    %1538 = vmatprep.subr.bf16.mxu0 0
    %1539 = vmatpush1.bf16.msra.mxu0 %v1516
    %1540 = vmatprep.subr.bf16.mxu0 0
    %1541 = vmatpush1.bf16.msra.mxu0 %v1517
    %1542 = vmatprep.subr.bf16.mxu0 0
    %1543 = vmatpush1.bf16.msra.mxu0 0
    %1544 = vmatprep.subr.bf16.mxu0 0
    %1545 = vmatpush1.bf16.msra.mxu0 0
    %1546 = vmatprep.subr.bf16.mxu0 0
    %1547 = vmatpush1.bf16.msra.mxu0 0
    %1548 = vmatprep.subr.bf16.mxu0 0
    %1549 = vmatpush1.bf16.msra.mxu0 0
    %1550 = vmatprep.subr.bf16.mxu0 0
    %1551 = vmatpush1.bf16.msra.mxu0 0
    %1552 = vmatprep.subr.bf16.mxu0 0
    %1553 = vmatpush1.bf16.msra.mxu0 0
    %1554 = vmatprep.subr.bf16.mxu0 0
    %1555 = vmatpush1.bf16.msra.mxu0 0
    %1556 = vmatprep.subr.bf16.mxu0 0
    %1557 = vmatpush1.bf16.msra.mxu0 0
    %1558 = vmatprep.mubr.bf16.mxu0 0
    %1559 = vmatmul.mubr.bf16.gmra.mrb[0].mxu0 %v913
    %v1560 = vpop.f32.mrb[0].mxu0
    %v1561 = vadd.f32 0.0, %v1560
    %v1562 = vpop.f32.mrb[0].mxu0
    %v1563 = vpop.f32.mrb[0].mxu0
    %v1564 = vadd.f32 0.0, %v1563
    %v1565 = vpop.f32.mrb[0].mxu0
    %1566 = vmatprep.mubr.bf16.mxu0 0
    %1567 = vmatmul.mubr.bf16.gmra.mrb[0].mxu0 %v914
    %v1568 = vpop.f32.mrb[0].mxu0
    %v1569 = vadd.f32 0.0, %v1568
    %v1570 = vpop.f32.mrb[0].mxu0
    %v1571 = vpop.f32.mrb[0].mxu0
    %v1572 = vadd.f32 0.0, %v1571
    %v1573 = vpop.f32.mrb[0].mxu0
    %1574 = vmatprep.mubr.bf16.mxu0 0
    %1575 = vmatmul.mubr.bf16.gmra.mrb[0].mxu0 %v915
    %v1576 = vpop.f32.mrb[0].mxu0
    %v1577 = vadd.f32 0.0, %v1576
    %v1578 = vpop.f32.mrb[0].mxu0
    %v1579 = vpop.f32.mrb[0].mxu0
    %v1580 = vadd.f32 0.0, %v1579
    %v1581 = vpop.f32.mrb[0].mxu0
    %1582 = vmatprep.mubr.bf16.mxu0 0
    %1583 = vmatmul.mubr.bf16.gmra.mrb[0].mxu0 %v916
    %v1584 = vpop.f32.mrb[0].mxu0
    %v1585 = vadd.f32 0.0, %v1584
    %v1586 = vpop.f32.mrb[0].mxu0
    %v1587 = vpop.f32.mrb[0].mxu0
    %v1588 = vadd.f32 0.0, %v1587
    %v1589 = vpop.f32.mrb[0].mxu0
    %1590 = vdwg.mxu0
    %v1591 = vpack.c.bf16 %v1564, %v1561
    %v1592 = vpack.c.bf16 %v1572, %v1569
    %v1593 = vpack.c.bf16 %v1580, %v1577
    %v1594 = vpack.c.bf16 %v1588, %v1585
    %1595 = vmatprep.subr.bf16.mxu0 0
    %1596 = vmatpush1.bf16.xpose.msra.mxu0 %v913
    %1597 = vmatprep.subr.bf16.mxu0 0
    %1598 = vmatpush1.bf16.xpose.msra.mxu0 %v914
    %1599 = vmatprep.subr.bf16.mxu0 0
    %1600 = vmatpush1.bf16.xpose.msra.mxu0 %v915
    %1601 = vmatprep.subr.bf16.mxu0 0
    %1602 = vmatpush1.bf16.xpose.msra.mxu0 %v916
    %1603 = vmatprep.subr.bf16.mxu0 0
    %1604 = vmatpush1.bf16.xpose.msra.mxu0 0
    %1605 = vmatprep.subr.bf16.mxu0 0
    %1606 = vmatpush1.bf16.xpose.msra.mxu0 0
    %1607 = vmatprep.subr.bf16.mxu0 0
    %1608 = vmatpush1.bf16.xpose.msra.mxu0 0
    %1609 = vmatprep.subr.bf16.mxu0 0
    %1610 = vmatpush1.bf16.xpose.msra.mxu0 0
    %1611 = vmatprep.subr.bf16.mxu0 0
    %1612 = vmatpush1.bf16.xpose.msra.mxu0 0
    %1613 = vmatprep.subr.bf16.mxu0 0
    %1614 = vmatpush1.bf16.xpose.msra.mxu0 0
    %1615 = vmatprep.subr.bf16.mxu0 0
    %1616 = vmatpush1.bf16.xpose.msra.mxu0 0
    %1617 = vmatprep.subr.bf16.mxu0 0
    %1618 = vmatpush1.bf16.xpose.msra.mxu0 0
    %1619 = vmatprep.subr.bf16.mxu0 0
    %1620 = vmatpush1.bf16.xpose.msra.mxu0 0
    %1621 = vmatprep.subr.bf16.mxu0 0
    %1622 = vmatpush1.bf16.xpose.msra.mxu0 0
    %1623 = vmatprep.subr.bf16.mxu0 0
    %1624 = vmatpush1.bf16.xpose.msra.mxu0 0
    %1625 = vmatprep.subr.bf16.mxu0 0
    %1626 = vmatpush1.bf16.xpose.msra.mxu0 0
    %1627 = vmatprep.mubr.bf16.mxu0 0
    %1628 = vmatmul.mubr.bf16.gmra.mrb[0].mxu0 %v1591
    %v1629 = vpop.f32.mrb[0].mxu0
    %v1630 = vadd.f32 0.0, %v1629
    %v1631 = vpop.f32.mrb[0].mxu0
    %v1632 = vpop.f32.mrb[0].mxu0
    %v1633 = vadd.f32 0.0, %v1632
    %v1634 = vpop.f32.mrb[0].mxu0
    %1635 = vmatprep.mubr.bf16.mxu0 0
    %1636 = vmatmul.mubr.bf16.gmra.mrb[0].mxu0 %v1592
    %v1637 = vpop.f32.mrb[0].mxu0
    %v1638 = vadd.f32 0.0, %v1637
    %v1639 = vpop.f32.mrb[0].mxu0
    %v1640 = vpop.f32.mrb[0].mxu0
    %v1641 = vadd.f32 0.0, %v1640
    %v1642 = vpop.f32.mrb[0].mxu0
    %1643 = vmatprep.mubr.bf16.mxu0 0
    %1644 = vmatmul.mubr.bf16.gmra.mrb[0].mxu0 %v1593
    %v1645 = vpop.f32.mrb[0].mxu0
    %v1646 = vadd.f32 0.0, %v1645
    %v1647 = vpop.f32.mrb[0].mxu0
    %v1648 = vpop.f32.mrb[0].mxu0
    %v1649 = vadd.f32 0.0, %v1648
    %v1650 = vpop.f32.mrb[0].mxu0
    %1651 = vmatprep.mubr.bf16.mxu0 0
    %1652 = vmatmul.mubr.bf16.gmra.mrb[0].mxu0 %v1594
    %v1653 = vpop.f32.mrb[0].mxu0
    %v1654 = vadd.f32 0.0, %v1653
    %v1655 = vpop.f32.mrb[0].mxu0
    %v1656 = vpop.f32.mrb[0].mxu0
    %v1657 = vadd.f32 0.0, %v1656
    %v1658 = vpop.f32.mrb[0].mxu0
    %1659 = vdwg.mxu0
    %v1660 = vsel %vm49, %v1630, -1e+09
    %v1661 = vsel %vm50, %v1633, -1e+09
    %v1662 = vsel %vm51, %v1638, -1e+09
    %v1663 = vsel %vm52, %v1641, -1e+09
    %v1664 = vsel %vm53, %v1646, -1e+09
    %v1665 = vsel %vm54, %v1649, -1e+09
    %v1666 = vsel %vm55, %v1654, -1e+09
    %v1667 = vsel %vm56, %v1657, -1e+09
    %v1668 = vsel %vm1151, %v1660, -inf
    %1669 = vmax.xlane.f32.xlu0 %v1668
    %v1670 = vpop.xlane.xlu0 %1669
    %v1671 = vsel %vm1151, %v1661, -inf
    %1672 = vmax.xlane.f32.xlu0 %v1671
    %v1673 = vpop.xlane.xlu0 %1672
    %v1674 = vsel %vm1151, %v1662, -inf
    %1675 = vmax.xlane.f32.xlu0 %v1674
    %v1676 = vpop.xlane.xlu0 %1675
    %v1677 = vsel %vm1151, %v1663, -inf
    %1678 = vmax.xlane.f32.xlu0 %v1677
    %v1679 = vpop.xlane.xlu0 %1678
    %v1680 = vsel %vm1151, %v1664, -inf
    %1681 = vmax.xlane.f32.xlu0 %v1680
    %v1682 = vpop.xlane.xlu0 %1681
    %v1683 = vsel %vm1151, %v1665, -inf
    %1684 = vmax.xlane.f32.xlu0 %v1683
    %v1685 = vpop.xlane.xlu0 %1684
    %v1686 = vsel %vm1151, %v1666, -inf
    %1687 = vmax.xlane.f32.xlu0 %v1686
    %v1688 = vpop.xlane.xlu0 %1687
    %v1689 = vsel %vm1151, %v1667, -inf
    %1690 = vmax.xlane.f32.xlu0 %v1689
    %v1691 = vpop.xlane.xlu0 %1690
    %v1692 = vsub.f32 %v1660, %v1670
    %v1693 = vsub.f32 %v1661, %v1673
    %v1694 = vsub.f32 %v1662, %v1676
    %v1695 = vsub.f32 %v1663, %v1679
    %v1696 = vsub.f32 %v1664, %v1682
    %v1697 = vsub.f32 %v1665, %v1685
    %v1698 = vsub.f32 %v1666, %v1688
    %v1699 = vsub.f32 %v1667, %v1691
    %v1700 = vmul.f32 %v1692, 1.442695
    %v1701 = vpow.pop %v1700
    %v1702 = vmul.f32 %v1693, 1.442695
    %v1703 = vpow.pop %v1702
    %v1704 = vmul.f32 %v1694, 1.442695
    %v1705 = vpow.pop %v1704
    %v1706 = vmul.f32 %v1695, 1.442695
    %v1707 = vpow.pop %v1706
    %v1708 = vmul.f32 %v1696, 1.442695
    %v1709 = vpow.pop %v1708
    %v1710 = vmul.f32 %v1697, 1.442695
    %v1711 = vpow.pop %v1710
    %v1712 = vmul.f32 %v1698, 1.442695
    %v1713 = vpow.pop %v1712
    %v1714 = vmul.f32 %v1699, 1.442695
    %v1715 = vpow.pop %v1714
    %v1716 = vsel %vm1151, %v1701, 0.0
    %1717 = vadd.xlane.f32.xlu0 %v1716
    %v1718 = vpop.xlane.xlu0 %1717
    %v1719 = vsel %vm1151, %v1703, 0.0
    %1720 = vadd.xlane.f32.xlu0 %v1719
    %v1721 = vpop.xlane.xlu0 %1720
    %v1722 = vsel %vm1151, %v1705, 0.0
    %1723 = vadd.xlane.f32.xlu0 %v1722
    %v1724 = vpop.xlane.xlu0 %1723
    %v1725 = vsel %vm1151, %v1707, 0.0
    %1726 = vadd.xlane.f32.xlu0 %v1725
    %v1727 = vpop.xlane.xlu0 %1726
    %v1728 = vsel %vm1151, %v1709, 0.0
    %1729 = vadd.xlane.f32.xlu0 %v1728
    %v1730 = vpop.xlane.xlu0 %1729
    %v1731 = vsel %vm1151, %v1711, 0.0
    %1732 = vadd.xlane.f32.xlu0 %v1731
    %v1733 = vpop.xlane.xlu0 %1732
    %v1734 = vsel %vm1151, %v1713, 0.0
    %1735 = vadd.xlane.f32.xlu0 %v1734
    %v1736 = vpop.xlane.xlu0 %1735
    %v1737 = vsel %vm1151, %v1715, 0.0
    %1738 = vadd.xlane.f32.xlu0 %v1737
    %v1739 = vpop.xlane.xlu0 %1738
    %v1740 = vrcp.pop %v1718
    %v1741 = vrcp.pop %v1721
    %v1742 = vrcp.pop %v1724
    %v1743 = vrcp.pop %v1727
    %v1744 = vrcp.pop %v1730
    %v1745 = vrcp.pop %v1733
    %v1746 = vrcp.pop %v1736
    %v1747 = vrcp.pop %v1739
    %v1748 = vmul.f32 %v1701, %v1740
    %v1749 = vmul.f32 %v1703, %v1741
    %v1750 = vmul.f32 %v1705, %v1742
    %v1751 = vmul.f32 %v1707, %v1743
    %v1752 = vmul.f32 %v1709, %v1744
    %v1753 = vmul.f32 %v1711, %v1745
    %v1754 = vmul.f32 %v1713, %v1746
    %v1755 = vmul.f32 %v1715, %v1747
    %v1772 = vunpack.c.l.b16 %v1462
    %v1773 = vunpack.c.l.b16 %v1463
    %v1774 = vunpack.c.l.b16 %v1464
    %v1775 = vunpack.c.l.b16 %v1465
    %v1776 = vunpack.c.l.b16 %v1466
    %v1777 = vunpack.c.l.b16 %v1467
    %v1778 = vunpack.c.l.b16 %v1468
    %v1779 = vunpack.c.l.b16 %v1469
    %v1780 = vunpack.c.l.b16 %v1470
    %v1781 = vunpack.c.l.b16 %v1471
    %v1782 = vunpack.c.l.b16 %v1472
    %v1783 = vunpack.c.l.b16 %v1473
    %v1784 = vunpack.c.l.b16 %v1474
    %v1785 = vunpack.c.l.b16 %v1475
    %v1786 = vunpack.c.l.b16 %v1476
    %v1787 = vunpack.c.l.b16 %v1477
    %v1788 = vpack.c.b16 %v1773, %v1772
    %v1789 = vpack.c.b16 %v1775, %v1774
    %v1790 = vpack.c.b16 %v1777, %v1776
    %v1791 = vpack.c.b16 %v1779, %v1778
    %v1792 = vpack.c.b16 %v1781, %v1780
    %v1793 = vpack.c.b16 %v1783, %v1782
    %v1794 = vpack.c.b16 %v1785, %v1784
    %v1795 = vpack.c.b16 %v1787, %v1786
    %1804 = vmatprep.subr.bf16.mxu0 0
    %1805 = vmatpush1.bf16.msra.mxu0 %v1788
    %1806 = vmatprep.subr.bf16.mxu0 0
    %1807 = vmatpush1.bf16.msra.mxu0 %v1789
    %1808 = vmatprep.subr.bf16.mxu0 0
    %1809 = vmatpush1.bf16.msra.mxu0 %v1790
    %1810 = vmatprep.subr.bf16.mxu0 0
    %1811 = vmatpush1.bf16.msra.mxu0 %v1791
    %1812 = vmatprep.subr.bf16.mxu0 0
    %1813 = vmatpush1.bf16.msra.mxu0 %v1792
    %1814 = vmatprep.subr.bf16.mxu0 0
    %1815 = vmatpush1.bf16.msra.mxu0 %v1793
    %1816 = vmatprep.subr.bf16.mxu0 0
    %1817 = vmatpush1.bf16.msra.mxu0 %v1794
    %1818 = vmatprep.subr.bf16.mxu0 0
    %1819 = vmatpush1.bf16.msra.mxu0 %v1795
    %1820 = vmatprep.subr.bf16.mxu0 0
    %1821 = vmatpush1.bf16.msra.mxu0 0
    %1822 = vmatprep.subr.bf16.mxu0 0
    %1823 = vmatpush1.bf16.msra.mxu0 0
    %1824 = vmatprep.subr.bf16.mxu0 0
    %1825 = vmatpush1.bf16.msra.mxu0 0
    %1826 = vmatprep.subr.bf16.mxu0 0
    %1827 = vmatpush1.bf16.msra.mxu0 0
    %1828 = vmatprep.subr.bf16.mxu0 0
    %1829 = vmatpush1.bf16.msra.mxu0 0
    %1830 = vmatprep.subr.bf16.mxu0 0
    %1831 = vmatpush1.bf16.msra.mxu0 0
    %1832 = vmatprep.subr.bf16.mxu0 0
    %1833 = vmatpush1.bf16.msra.mxu0 0
    %1834 = vmatprep.subr.bf16.mxu0 0
    %1835 = vmatpush1.bf16.msra.mxu0 0
    %1836 = vmatprep.mubr.bf16.mxu0 0
    %1837 = vmatmul.mubr.bf16.gmra.mrb[0].mxu0 %v913
    %v1838 = vpop.f32.mrb[0].mxu0
    %v1839 = vadd.f32 0.0, %v1838
    %v1840 = vpop.f32.mrb[0].mxu0
    %v1841 = vpop.f32.mrb[0].mxu0
    %v1842 = vadd.f32 0.0, %v1841
    %v1843 = vpop.f32.mrb[0].mxu0
    %1844 = vmatprep.mubr.bf16.mxu0 0
    %1845 = vmatmul.mubr.bf16.gmra.mrb[0].mxu0 %v914
    %v1846 = vpop.f32.mrb[0].mxu0
    %v1847 = vadd.f32 0.0, %v1846
    %v1848 = vpop.f32.mrb[0].mxu0
    %v1849 = vpop.f32.mrb[0].mxu0
    %v1850 = vadd.f32 0.0, %v1849
    %v1851 = vpop.f32.mrb[0].mxu0
    %1852 = vmatprep.mubr.bf16.mxu0 0
    %1853 = vmatmul.mubr.bf16.gmra.mrb[0].mxu0 %v915
    %v1854 = vpop.f32.mrb[0].mxu0
    %v1855 = vadd.f32 0.0, %v1854
    %v1856 = vpop.f32.mrb[0].mxu0
    %v1857 = vpop.f32.mrb[0].mxu0
    %v1858 = vadd.f32 0.0, %v1857
    %v1859 = vpop.f32.mrb[0].mxu0
    %1860 = vmatprep.mubr.bf16.mxu0 0
    %1861 = vmatmul.mubr.bf16.gmra.mrb[0].mxu0 %v916
    %v1862 = vpop.f32.mrb[0].mxu0
    %v1863 = vadd.f32 0.0, %v1862
    %v1864 = vpop.f32.mrb[0].mxu0
    %v1865 = vpop.f32.mrb[0].mxu0
    %v1866 = vadd.f32 0.0, %v1865
    %v1867 = vpop.f32.mrb[0].mxu0
    %1868 = vdwg.mxu0
    %v1869 = vpack.c.bf16 %v1749, %v1748
    %v1870 = vpack.c.bf16 %v1751, %v1750
    %v1871 = vpack.c.bf16 %v1753, %v1752
    %v1872 = vpack.c.bf16 %v1755, %v1754
    %v1873 = vpack.c.bf16 %v1842, %v1839
    %v1874 = vpack.c.bf16 %v1850, %v1847
    %v1875 = vpack.c.bf16 %v1858, %v1855
    %v1876 = vpack.c.bf16 %v1866, %v1863
    %v1878 = vsel %vm1151, %v1869, 0
    %v1881 = vsel %vm1151, %v1870, 0
    %v1884 = vsel %vm1151, %v1871, 0
    %v1887 = vsel %vm1151, %v1872, 0
    %1889 = vmatprep.subr.bf16.mxu0 0
    %1890 = vmatpush1.bf16.msra.mxu0 %v1873
    %1891 = vmatprep.subr.bf16.mxu0 0
    %1892 = vmatpush1.bf16.msra.mxu0 %v1874
    %1893 = vmatprep.subr.bf16.mxu0 0
    %1894 = vmatpush1.bf16.msra.mxu0 %v1875
    %1895 = vmatprep.subr.bf16.mxu0 0
    %1896 = vmatpush1.bf16.msra.mxu0 %v1876
    %1897 = vmatprep.subr.bf16.mxu0 0
    %1898 = vmatpush1.bf16.msra.mxu0 0
    %1899 = vmatprep.subr.bf16.mxu0 0
    %1900 = vmatpush1.bf16.msra.mxu0 0
    %1901 = vmatprep.subr.bf16.mxu0 0
    %1902 = vmatpush1.bf16.msra.mxu0 0
    %1903 = vmatprep.subr.bf16.mxu0 0
    %1904 = vmatpush1.bf16.msra.mxu0 0
    %1905 = vmatprep.subr.bf16.mxu0 0
    %1906 = vmatpush1.bf16.msra.mxu0 0
    %1907 = vmatprep.subr.bf16.mxu0 0
    %1908 = vmatpush1.bf16.msra.mxu0 0
    %1909 = vmatprep.subr.bf16.mxu0 0
    %1910 = vmatpush1.bf16.msra.mxu0 0
    %1911 = vmatprep.subr.bf16.mxu0 0
    %1912 = vmatpush1.bf16.msra.mxu0 0
    %1913 = vmatprep.subr.bf16.mxu0 0
    %1914 = vmatpush1.bf16.msra.mxu0 0
    %1915 = vmatprep.subr.bf16.mxu0 0
    %1916 = vmatpush1.bf16.msra.mxu0 0
    %1917 = vmatprep.subr.bf16.mxu0 0
    %1918 = vmatpush1.bf16.msra.mxu0 0
    %1919 = vmatprep.subr.bf16.mxu0 0
    %1920 = vmatpush1.bf16.msra.mxu0 0
    %1921 = vmatprep.mubr.bf16.mxu0 0
    %1922 = vmatmul.mubr.bf16.gmra.mrb[0].mxu0 %v1878
    %v1923 = vpop.f32.mrb[0].mxu0
    %v1924 = vadd.f32 0.0, %v1923
    %v1925 = vpop.f32.mrb[0].mxu0
    %v1926 = vpop.f32.mrb[0].mxu0
    %v1927 = vadd.f32 0.0, %v1926
    %v1928 = vpop.f32.mrb[0].mxu0
    %1929 = vmatprep.mubr.bf16.mxu0 0
    %1930 = vmatmul.mubr.bf16.gmra.mrb[0].mxu0 %v1881
    %v1931 = vpop.f32.mrb[0].mxu0
    %v1932 = vadd.f32 0.0, %v1931
    %v1933 = vpop.f32.mrb[0].mxu0
    %v1934 = vpop.f32.mrb[0].mxu0
    %v1935 = vadd.f32 0.0, %v1934
    %v1936 = vpop.f32.mrb[0].mxu0
    %1937 = vmatprep.mubr.bf16.mxu0 0
    %1938 = vmatmul.mubr.bf16.gmra.mrb[0].mxu0 %v1884
    %v1939 = vpop.f32.mrb[0].mxu0
    %v1940 = vadd.f32 0.0, %v1939
    %v1941 = vpop.f32.mrb[0].mxu0
    %v1942 = vpop.f32.mrb[0].mxu0
    %v1943 = vadd.f32 0.0, %v1942
    %v1944 = vpop.f32.mrb[0].mxu0
    %1945 = vmatprep.mubr.bf16.mxu0 0
    %1946 = vmatmul.mubr.bf16.gmra.mrb[0].mxu0 %v1887
    %v1947 = vpop.f32.mrb[0].mxu0
    %v1948 = vadd.f32 0.0, %v1947
    %v1949 = vpop.f32.mrb[0].mxu0
    %v1950 = vpop.f32.mrb[0].mxu0
    %v1951 = vadd.f32 0.0, %v1950
    %v1952 = vpop.f32.mrb[0].mxu0
    %1953 = vdwg.mxu0
    %v1954 = vadd.f32 %v1438, %v1924
    %v1955 = vadd.f32 %v1439, %v1927
    %v1956 = vadd.f32 %v1440, %v1932
    %v1957 = vadd.f32 %v1441, %v1935
    %v1958 = vadd.f32 %v1442, %v1940
    %v1959 = vadd.f32 %v1443, %v1943
    %v1960 = vadd.f32 %v1444, %v1948
    %v1961 = vadd.f32 %v1445, %v1951
    %v1962 = vld [vmem:[%s2 + $0x8] sm:$0xf]
    %v1963 = vld [vmem:[%s2 + $0x30] sm:$0xf]
    %v1964 = vld [vmem:[%s2 + $0x58] sm:$0xf]
    %v1965 = vld [vmem:[%s2 + $0x80] sm:$0xf]
    %v1966 = vld [vmem:[%s2 + $0xa8] sm:$0xf]
    %v1967 = vld [vmem:[%s2 + $0xd0] sm:$0xf]
    %v1968 = vld [vmem:[%s2 + $0xf8] sm:$0xf]
    %v1969 = vld [vmem:[%s2 + $0x120] sm:$0xf]
    %v1970 = vld [vmem:[%s2 + $0x148] sm:$0xf]
    %v1971 = vld [vmem:[%s2 + $0x170] sm:$0xf]
    %v1972 = vld [vmem:[%s2 + $0x198] sm:$0xf]
    %v1973 = vld [vmem:[%s2 + $0x1c0] sm:$0xf]
    %v1974 = vld [vmem:[%s2 + $0x1e8] sm:$0xf]
    %v1975 = vld [vmem:[%s2 + $0x210] sm:$0xf]
    %v1976 = vld [vmem:[%s2 + $0x238] sm:$0xf]
    %v1977 = vld [vmem:[%s2 + $0x260] sm:$0xf]
    %v1978 = vld [vmem:[%s2 + $0x18] sm:$0xf]
    %v1979 = vld [vmem:[%s2 + $0x40] sm:$0xf]
    %v1980 = vld [vmem:[%s2 + $0x68] sm:$0xf]
    %v1981 = vld [vmem:[%s2 + $0x90] sm:$0xf]
    %v1982 = vld [vmem:[%s2 + $0xb8] sm:$0xf]
    %v1983 = vld [vmem:[%s2 + $0xe0] sm:$0xf]
    %v1984 = vld [vmem:[%s2 + $0x108] sm:$0xf]
    %v1985 = vld [vmem:[%s2 + $0x130] sm:$0xf]
    %v1986 = vld [vmem:[%s2 + $0x158] sm:$0xf]
    %v1987 = vld [vmem:[%s2 + $0x180] sm:$0xf]
    %v1988 = vld [vmem:[%s2 + $0x1a8] sm:$0xf]
    %v1989 = vld [vmem:[%s2 + $0x1d0] sm:$0xf]
    %v1990 = vld [vmem:[%s2 + $0x1f8] sm:$0xf]
    %v1991 = vld [vmem:[%s2 + $0x220] sm:$0xf]
    %v1992 = vld [vmem:[%s2 + $0x248] sm:$0xf]
    %v1993 = vld [vmem:[%s2 + $0x270] sm:$0xf]
    %v2010 = vunpack.c.l.b16 %v1962
    %v2011 = vunpack.c.l.b16 %v1963
    %v2012 = vunpack.c.l.b16 %v1964
    %v2013 = vunpack.c.l.b16 %v1965
    %v2014 = vunpack.c.l.b16 %v1966
    %v2015 = vunpack.c.l.b16 %v1967
    %v2016 = vunpack.c.l.b16 %v1968
    %v2017 = vunpack.c.l.b16 %v1969
    %v2018 = vunpack.c.l.b16 %v1970
    %v2019 = vunpack.c.l.b16 %v1971
    %v2020 = vunpack.c.l.b16 %v1972
    %v2021 = vunpack.c.l.b16 %v1973
    %v2022 = vunpack.c.l.b16 %v1974
    %v2023 = vunpack.c.l.b16 %v1975
    %v2024 = vunpack.c.l.b16 %v1976
    %v2025 = vunpack.c.l.b16 %v1977
    %v2026 = vpack.c.b16 %v2011, %v2010
    %v2027 = vpack.c.b16 %v2013, %v2012
    %v2028 = vpack.c.b16 %v2015, %v2014
    %v2029 = vpack.c.b16 %v2017, %v2016
    %v2030 = vpack.c.b16 %v2019, %v2018
    %v2031 = vpack.c.b16 %v2021, %v2020
    %v2032 = vpack.c.b16 %v2023, %v2022
    %v2033 = vpack.c.b16 %v2025, %v2024
    %2042 = vmatprep.subr.bf16.mxu0 0
    %2043 = vmatpush1.bf16.msra.mxu0 %v2026
    %2044 = vmatprep.subr.bf16.mxu0 0
    %2045 = vmatpush1.bf16.msra.mxu0 %v2027
    %2046 = vmatprep.subr.bf16.mxu0 0
    %2047 = vmatpush1.bf16.msra.mxu0 %v2028
    %2048 = vmatprep.subr.bf16.mxu0 0
    %2049 = vmatpush1.bf16.msra.mxu0 %v2029
    %2050 = vmatprep.subr.bf16.mxu0 0
    %2051 = vmatpush1.bf16.msra.mxu0 %v2030
    %2052 = vmatprep.subr.bf16.mxu0 0
    %2053 = vmatpush1.bf16.msra.mxu0 %v2031
    %2054 = vmatprep.subr.bf16.mxu0 0
    %2055 = vmatpush1.bf16.msra.mxu0 %v2032
    %2056 = vmatprep.subr.bf16.mxu0 0
    %2057 = vmatpush1.bf16.msra.mxu0 %v2033
    %2058 = vmatprep.subr.bf16.mxu0 0
    %2059 = vmatpush1.bf16.msra.mxu0 0
    %2060 = vmatprep.subr.bf16.mxu0 0
    %2061 = vmatpush1.bf16.msra.mxu0 0
    %2062 = vmatprep.subr.bf16.mxu0 0
    %2063 = vmatpush1.bf16.msra.mxu0 0
    %2064 = vmatprep.subr.bf16.mxu0 0
    %2065 = vmatpush1.bf16.msra.mxu0 0
    %2066 = vmatprep.subr.bf16.mxu0 0
    %2067 = vmatpush1.bf16.msra.mxu0 0
    %2068 = vmatprep.subr.bf16.mxu0 0
    %2069 = vmatpush1.bf16.msra.mxu0 0
    %2070 = vmatprep.subr.bf16.mxu0 0
    %2071 = vmatpush1.bf16.msra.mxu0 0
    %2072 = vmatprep.subr.bf16.mxu0 0
    %2073 = vmatpush1.bf16.msra.mxu0 0
    %2074 = vmatprep.mubr.bf16.mxu0 0
    %2075 = vmatmul.mubr.bf16.gmra.mrb[0].mxu0 %v913
    %v2076 = vpop.f32.mrb[0].mxu0
    %v2077 = vadd.f32 0.0, %v2076
    %v2078 = vpop.f32.mrb[0].mxu0
    %v2079 = vpop.f32.mrb[0].mxu0
    %v2080 = vadd.f32 0.0, %v2079
    %v2081 = vpop.f32.mrb[0].mxu0
    %2082 = vmatprep.mubr.bf16.mxu0 0
    %2083 = vmatmul.mubr.bf16.gmra.mrb[0].mxu0 %v914
    %v2084 = vpop.f32.mrb[0].mxu0
    %v2085 = vadd.f32 0.0, %v2084
    %v2086 = vpop.f32.mrb[0].mxu0
    %v2087 = vpop.f32.mrb[0].mxu0
    %v2088 = vadd.f32 0.0, %v2087
    %v2089 = vpop.f32.mrb[0].mxu0
    %2090 = vmatprep.mubr.bf16.mxu0 0
    %2091 = vmatmul.mubr.bf16.gmra.mrb[0].mxu0 %v915
    %v2092 = vpop.f32.mrb[0].mxu0
    %v2093 = vadd.f32 0.0, %v2092
    %v2094 = vpop.f32.mrb[0].mxu0
    %v2095 = vpop.f32.mrb[0].mxu0
    %v2096 = vadd.f32 0.0, %v2095
    %v2097 = vpop.f32.mrb[0].mxu0
    %2098 = vmatprep.mubr.bf16.mxu0 0
    %2099 = vmatmul.mubr.bf16.gmra.mrb[0].mxu0 %v916
    %v2100 = vpop.f32.mrb[0].mxu0
    %v2101 = vadd.f32 0.0, %v2100
    %v2102 = vpop.f32.mrb[0].mxu0
    %v2103 = vpop.f32.mrb[0].mxu0
    %v2104 = vadd.f32 0.0, %v2103
    %v2105 = vpop.f32.mrb[0].mxu0
    %2106 = vdwg.mxu0
    %v2107 = vpack.c.bf16 %v2080, %v2077
    %v2108 = vpack.c.bf16 %v2088, %v2085
    %v2109 = vpack.c.bf16 %v2096, %v2093
    %v2110 = vpack.c.bf16 %v2104, %v2101
    %2111 = vmatprep.subr.bf16.mxu0 0
    %2112 = vmatpush1.bf16.xpose.msra.mxu0 %v913
    %2113 = vmatprep.subr.bf16.mxu0 0
    %2114 = vmatpush1.bf16.xpose.msra.mxu0 %v914
    %2115 = vmatprep.subr.bf16.mxu0 0
    %2116 = vmatpush1.bf16.xpose.msra.mxu0 %v915
    %2117 = vmatprep.subr.bf16.mxu0 0
    %2118 = vmatpush1.bf16.xpose.msra.mxu0 %v916
    %2119 = vmatprep.subr.bf16.mxu0 0
    %2120 = vmatpush1.bf16.xpose.msra.mxu0 0
    %2121 = vmatprep.subr.bf16.mxu0 0
    %2122 = vmatpush1.bf16.xpose.msra.mxu0 0
    %2123 = vmatprep.subr.bf16.mxu0 0
    %2124 = vmatpush1.bf16.xpose.msra.mxu0 0
    %2125 = vmatprep.subr.bf16.mxu0 0
    %2126 = vmatpush1.bf16.xpose.msra.mxu0 0
    %2127 = vmatprep.subr.bf16.mxu0 0
    %2128 = vmatpush1.bf16.xpose.msra.mxu0 0
    %2129 = vmatprep.subr.bf16.mxu0 0
    %2130 = vmatpush1.bf16.xpose.msra.mxu0 0
    %2131 = vmatprep.subr.bf16.mxu0 0
    %2132 = vmatpush1.bf16.xpose.msra.mxu0 0
    %2133 = vmatprep.subr.bf16.mxu0 0
    %2134 = vmatpush1.bf16.xpose.msra.mxu0 0
    %2135 = vmatprep.subr.bf16.mxu0 0
    %2136 = vmatpush1.bf16.xpose.msra.mxu0 0
    %2137 = vmatprep.subr.bf16.mxu0 0
    %2138 = vmatpush1.bf16.xpose.msra.mxu0 0
    %2139 = vmatprep.subr.bf16.mxu0 0
    %2140 = vmatpush1.bf16.xpose.msra.mxu0 0
    %2141 = vmatprep.subr.bf16.mxu0 0
    %2142 = vmatpush1.bf16.xpose.msra.mxu0 0
    %2143 = vmatprep.mubr.bf16.mxu0 0
    %2144 = vmatmul.mubr.bf16.gmra.mrb[0].mxu0 %v2107
    %v2145 = vpop.f32.mrb[0].mxu0
    %v2146 = vadd.f32 0.0, %v2145
    %v2147 = vpop.f32.mrb[0].mxu0
    %v2148 = vpop.f32.mrb[0].mxu0
    %v2149 = vadd.f32 0.0, %v2148
    %v2150 = vpop.f32.mrb[0].mxu0
    %2151 = vmatprep.mubr.bf16.mxu0 0
    %2152 = vmatmul.mubr.bf16.gmra.mrb[0].mxu0 %v2108
    %v2153 = vpop.f32.mrb[0].mxu0
    %v2154 = vadd.f32 0.0, %v2153
    %v2155 = vpop.f32.mrb[0].mxu0
    %v2156 = vpop.f32.mrb[0].mxu0
    %v2157 = vadd.f32 0.0, %v2156
    %v2158 = vpop.f32.mrb[0].mxu0
    %2159 = vmatprep.mubr.bf16.mxu0 0
    %2160 = vmatmul.mubr.bf16.gmra.mrb[0].mxu0 %v2109
    %v2161 = vpop.f32.mrb[0].mxu0
    %v2162 = vadd.f32 0.0, %v2161
    %v2163 = vpop.f32.mrb[0].mxu0
    %v2164 = vpop.f32.mrb[0].mxu0
    %v2165 = vadd.f32 0.0, %v2164
    %v2166 = vpop.f32.mrb[0].mxu0
    %2167 = vmatprep.mubr.bf16.mxu0 0
    %2168 = vmatmul.mubr.bf16.gmra.mrb[0].mxu0 %v2110
    %v2169 = vpop.f32.mrb[0].mxu0
    %v2170 = vadd.f32 0.0, %v2169
    %v2171 = vpop.f32.mrb[0].mxu0
    %v2172 = vpop.f32.mrb[0].mxu0
    %v2173 = vadd.f32 0.0, %v2172
    %v2174 = vpop.f32.mrb[0].mxu0
    %2175 = vdwg.mxu0
    %v2176 = vsel %vm49, %v2146, -1e+09
    %v2177 = vsel %vm50, %v2149, -1e+09
    %v2178 = vsel %vm51, %v2154, -1e+09
    %v2179 = vsel %vm52, %v2157, -1e+09
    %v2180 = vsel %vm53, %v2162, -1e+09
    %v2181 = vsel %vm54, %v2165, -1e+09
    %v2182 = vsel %vm55, %v2170, -1e+09
    %v2183 = vsel %vm56, %v2173, -1e+09
    %v2184 = vsel %vm1151, %v2176, -inf
    %2185 = vmax.xlane.f32.xlu0 %v2184
    %v2186 = vpop.xlane.xlu0 %2185
    %v2187 = vsel %vm1151, %v2177, -inf
    %2188 = vmax.xlane.f32.xlu0 %v2187
    %v2189 = vpop.xlane.xlu0 %2188
    %v2190 = vsel %vm1151, %v2178, -inf
    %2191 = vmax.xlane.f32.xlu0 %v2190
    %v2192 = vpop.xlane.xlu0 %2191
    %v2193 = vsel %vm1151, %v2179, -inf
    %2194 = vmax.xlane.f32.xlu0 %v2193
    %v2195 = vpop.xlane.xlu0 %2194
    %v2196 = vsel %vm1151, %v2180, -inf
    %2197 = vmax.xlane.f32.xlu0 %v2196
    %v2198 = vpop.xlane.xlu0 %2197
    %v2199 = vsel %vm1151, %v2181, -inf
    %2200 = vmax.xlane.f32.xlu0 %v2199
    %v2201 = vpop.xlane.xlu0 %2200
    %v2202 = vsel %vm1151, %v2182, -inf
    %2203 = vmax.xlane.f32.xlu0 %v2202
    %v2204 = vpop.xlane.xlu0 %2203
    %v2205 = vsel %vm1151, %v2183, -inf
    %2206 = vmax.xlane.f32.xlu0 %v2205
    %v2207 = vpop.xlane.xlu0 %2206
    %v2208 = vsub.f32 %v2176, %v2186
    %v2209 = vsub.f32 %v2177, %v2189
    %v2210 = vsub.f32 %v2178, %v2192
    %v2211 = vsub.f32 %v2179, %v2195
    %v2212 = vsub.f32 %v2180, %v2198
    %v2213 = vsub.f32 %v2181, %v2201
    %v2214 = vsub.f32 %v2182, %v2204
    %v2215 = vsub.f32 %v2183, %v2207
    %v2216 = vmul.f32 %v2208, 1.442695
    %v2217 = vpow.pop %v2216
    %v2218 = vmul.f32 %v2209, 1.442695
    %v2219 = vpow.pop %v2218
    %v2220 = vmul.f32 %v2210, 1.442695
    %v2221 = vpow.pop %v2220
    %v2222 = vmul.f32 %v2211, 1.442695
    %v2223 = vpow.pop %v2222
    %v2224 = vmul.f32 %v2212, 1.442695
    %v2225 = vpow.pop %v2224
    %v2226 = vmul.f32 %v2213, 1.442695
    %v2227 = vpow.pop %v2226
    %v2228 = vmul.f32 %v2214, 1.442695
    %v2229 = vpow.pop %v2228
    %v2230 = vmul.f32 %v2215, 1.442695
    %v2231 = vpow.pop %v2230
    %v2232 = vsel %vm1151, %v2217, 0.0
    %2233 = vadd.xlane.f32.xlu0 %v2232
    %v2234 = vpop.xlane.xlu0 %2233
    %v2235 = vsel %vm1151, %v2219, 0.0
    %2236 = vadd.xlane.f32.xlu0 %v2235
    %v2237 = vpop.xlane.xlu0 %2236
    %v2238 = vsel %vm1151, %v2221, 0.0
    %2239 = vadd.xlane.f32.xlu0 %v2238
    %v2240 = vpop.xlane.xlu0 %2239
    %v2241 = vsel %vm1151, %v2223, 0.0
    %2242 = vadd.xlane.f32.xlu0 %v2241
    %v2243 = vpop.xlane.xlu0 %2242
    %v2244 = vsel %vm1151, %v2225, 0.0
    %2245 = vadd.xlane.f32.xlu0 %v2244
    %v2246 = vpop.xlane.xlu0 %2245
    %v2247 = vsel %vm1151, %v2227, 0.0
    %2248 = vadd.xlane.f32.xlu0 %v2247
    %v2249 = vpop.xlane.xlu0 %2248
    %v2250 = vsel %vm1151, %v2229, 0.0
    %2251 = vadd.xlane.f32.xlu0 %v2250
    %v2252 = vpop.xlane.xlu0 %2251
    %v2253 = vsel %vm1151, %v2231, 0.0
    %2254 = vadd.xlane.f32.xlu0 %v2253
    %v2255 = vpop.xlane.xlu0 %2254
    %v2256 = vrcp.pop %v2234
    %v2257 = vrcp.pop %v2237
    %v2258 = vrcp.pop %v2240
    %v2259 = vrcp.pop %v2243
    %v2260 = vrcp.pop %v2246
    %v2261 = vrcp.pop %v2249
    %v2262 = vrcp.pop %v2252
    %v2263 = vrcp.pop %v2255
    %v2264 = vmul.f32 %v2217, %v2256
    %v2265 = vmul.f32 %v2219, %v2257
    %v2266 = vmul.f32 %v2221, %v2258
    %v2267 = vmul.f32 %v2223, %v2259
    %v2268 = vmul.f32 %v2225, %v2260
    %v2269 = vmul.f32 %v2227, %v2261
    %v2270 = vmul.f32 %v2229, %v2262
    %v2271 = vmul.f32 %v2231, %v2263
    %v2288 = vunpack.c.l.b16 %v1978
    %v2289 = vunpack.c.l.b16 %v1979
    %v2290 = vunpack.c.l.b16 %v1980
    %v2291 = vunpack.c.l.b16 %v1981
    %v2292 = vunpack.c.l.b16 %v1982
    %v2293 = vunpack.c.l.b16 %v1983
    %v2294 = vunpack.c.l.b16 %v1984
    %v2295 = vunpack.c.l.b16 %v1985
    %v2296 = vunpack.c.l.b16 %v1986
    %v2297 = vunpack.c.l.b16 %v1987
    %v2298 = vunpack.c.l.b16 %v1988
    %v2299 = vunpack.c.l.b16 %v1989
    %v2300 = vunpack.c.l.b16 %v1990
    %v2301 = vunpack.c.l.b16 %v1991
    %v2302 = vunpack.c.l.b16 %v1992
    %v2303 = vunpack.c.l.b16 %v1993
    %v2304 = vpack.c.b16 %v2289, %v2288
    %v2305 = vpack.c.b16 %v2291, %v2290
    %v2306 = vpack.c.b16 %v2293, %v2292
    %v2307 = vpack.c.b16 %v2295, %v2294
    %v2308 = vpack.c.b16 %v2297, %v2296
    %v2309 = vpack.c.b16 %v2299, %v2298
    %v2310 = vpack.c.b16 %v2301, %v2300
    %v2311 = vpack.c.b16 %v2303, %v2302
    %2320 = vmatprep.subr.bf16.mxu0 0
    %2321 = vmatpush1.bf16.msra.mxu0 %v2304
    %2322 = vmatprep.subr.bf16.mxu0 0
    %2323 = vmatpush1.bf16.msra.mxu0 %v2305
    %2324 = vmatprep.subr.bf16.mxu0 0
    %2325 = vmatpush1.bf16.msra.mxu0 %v2306
    %2326 = vmatprep.subr.bf16.mxu0 0
    %2327 = vmatpush1.bf16.msra.mxu0 %v2307
    %2328 = vmatprep.subr.bf16.mxu0 0
    %2329 = vmatpush1.bf16.msra.mxu0 %v2308
    %2330 = vmatprep.subr.bf16.mxu0 0
    %2331 = vmatpush1.bf16.msra.mxu0 %v2309
    %2332 = vmatprep.subr.bf16.mxu0 0
    %2333 = vmatpush1.bf16.msra.mxu0 %v2310
    %2334 = vmatprep.subr.bf16.mxu0 0
    %2335 = vmatpush1.bf16.msra.mxu0 %v2311
    %2336 = vmatprep.subr.bf16.mxu0 0
    %2337 = vmatpush1.bf16.msra.mxu0 0
    %2338 = vmatprep.subr.bf16.mxu0 0
    %2339 = vmatpush1.bf16.msra.mxu0 0
    %2340 = vmatprep.subr.bf16.mxu0 0
    %2341 = vmatpush1.bf16.msra.mxu0 0
    %2342 = vmatprep.subr.bf16.mxu0 0
    %2343 = vmatpush1.bf16.msra.mxu0 0
    %2344 = vmatprep.subr.bf16.mxu0 0
    %2345 = vmatpush1.bf16.msra.mxu0 0
    %2346 = vmatprep.subr.bf16.mxu0 0
    %2347 = vmatpush1.bf16.msra.mxu0 0
    %2348 = vmatprep.subr.bf16.mxu0 0
    %2349 = vmatpush1.bf16.msra.mxu0 0
    %2350 = vmatprep.subr.bf16.mxu0 0
    %2351 = vmatpush1.bf16.msra.mxu0 0
    %2352 = vmatprep.mubr.bf16.mxu0 0
    %2353 = vmatmul.mubr.bf16.gmra.mrb[0].mxu0 %v913
    %v2354 = vpop.f32.mrb[0].mxu0
    %v2355 = vadd.f32 0.0, %v2354
    %v2356 = vpop.f32.mrb[0].mxu0
    %v2357 = vpop.f32.mrb[0].mxu0
    %v2358 = vadd.f32 0.0, %v2357
    %v2359 = vpop.f32.mrb[0].mxu0
    %2360 = vmatprep.mubr.bf16.mxu0 0
    %2361 = vmatmul.mubr.bf16.gmra.mrb[0].mxu0 %v914
    %v2362 = vpop.f32.mrb[0].mxu0
    %v2363 = vadd.f32 0.0, %v2362
    %v2364 = vpop.f32.mrb[0].mxu0
    %v2365 = vpop.f32.mrb[0].mxu0
    %v2366 = vadd.f32 0.0, %v2365
    %v2367 = vpop.f32.mrb[0].mxu0
    %2368 = vmatprep.mubr.bf16.mxu0 0
    %2369 = vmatmul.mubr.bf16.gmra.mrb[0].mxu0 %v915
    %v2370 = vpop.f32.mrb[0].mxu0
    %v2371 = vadd.f32 0.0, %v2370
    %v2372 = vpop.f32.mrb[0].mxu0
    %v2373 = vpop.f32.mrb[0].mxu0
    %v2374 = vadd.f32 0.0, %v2373
    %v2375 = vpop.f32.mrb[0].mxu0
    %2376 = vmatprep.mubr.bf16.mxu0 0
    %2377 = vmatmul.mubr.bf16.gmra.mrb[0].mxu0 %v916
    %v2378 = vpop.f32.mrb[0].mxu0
    %v2379 = vadd.f32 0.0, %v2378
    %v2380 = vpop.f32.mrb[0].mxu0
    %v2381 = vpop.f32.mrb[0].mxu0
    %v2382 = vadd.f32 0.0, %v2381
    %v2383 = vpop.f32.mrb[0].mxu0
    %2384 = vdwg.mxu0
    %v2385 = vpack.c.bf16 %v2265, %v2264
    %v2386 = vpack.c.bf16 %v2267, %v2266
    %v2387 = vpack.c.bf16 %v2269, %v2268
    %v2388 = vpack.c.bf16 %v2271, %v2270
    %v2389 = vpack.c.bf16 %v2358, %v2355
    %v2390 = vpack.c.bf16 %v2366, %v2363
    %v2391 = vpack.c.bf16 %v2374, %v2371
    %v2392 = vpack.c.bf16 %v2382, %v2379
    %v2394 = vsel %vm1151, %v2385, 0
    %v2397 = vsel %vm1151, %v2386, 0
    %v2400 = vsel %vm1151, %v2387, 0
    %v2403 = vsel %vm1151, %v2388, 0
    %2405 = vmatprep.subr.bf16.mxu0 0
    %2406 = vmatpush1.bf16.msra.mxu0 %v2389
    %2407 = vmatprep.subr.bf16.mxu0 0
    %2408 = vmatpush1.bf16.msra.mxu0 %v2390
    %2409 = vmatprep.subr.bf16.mxu0 0
    %2410 = vmatpush1.bf16.msra.mxu0 %v2391
    %2411 = vmatprep.subr.bf16.mxu0 0
    %2412 = vmatpush1.bf16.msra.mxu0 %v2392
    %2413 = vmatprep.subr.bf16.mxu0 0
    %2414 = vmatpush1.bf16.msra.mxu0 0
    %2415 = vmatprep.subr.bf16.mxu0 0
    %2416 = vmatpush1.bf16.msra.mxu0 0
    %2417 = vmatprep.subr.bf16.mxu0 0
    %2418 = vmatpush1.bf16.msra.mxu0 0
    %2419 = vmatprep.subr.bf16.mxu0 0
    %2420 = vmatpush1.bf16.msra.mxu0 0
    %2421 = vmatprep.subr.bf16.mxu0 0
    %2422 = vmatpush1.bf16.msra.mxu0 0
    %2423 = vmatprep.subr.bf16.mxu0 0
    %2424 = vmatpush1.bf16.msra.mxu0 0
    %2425 = vmatprep.subr.bf16.mxu0 0
    %2426 = vmatpush1.bf16.msra.mxu0 0
    %2427 = vmatprep.subr.bf16.mxu0 0
    %2428 = vmatpush1.bf16.msra.mxu0 0
    %2429 = vmatprep.subr.bf16.mxu0 0
    %2430 = vmatpush1.bf16.msra.mxu0 0
    %2431 = vmatprep.subr.bf16.mxu0 0
    %2432 = vmatpush1.bf16.msra.mxu0 0
    %2433 = vmatprep.subr.bf16.mxu0 0
    %2434 = vmatpush1.bf16.msra.mxu0 0
    %2435 = vmatprep.subr.bf16.mxu0 0
    %2436 = vmatpush1.bf16.msra.mxu0 0
    %2437 = vmatprep.mubr.bf16.mxu0 0
    %2438 = vmatmul.mubr.bf16.gmra.mrb[0].mxu0 %v2394
    %v2439 = vpop.f32.mrb[0].mxu0
    %v2440 = vadd.f32 0.0, %v2439
    %v2441 = vpop.f32.mrb[0].mxu0
    %v2442 = vpop.f32.mrb[0].mxu0
    %v2443 = vadd.f32 0.0, %v2442
    %v2444 = vpop.f32.mrb[0].mxu0
    %2445 = vmatprep.mubr.bf16.mxu0 0
    %2446 = vmatmul.mubr.bf16.gmra.mrb[0].mxu0 %v2397
    %v2447 = vpop.f32.mrb[0].mxu0
    %v2448 = vadd.f32 0.0, %v2447
    %v2449 = vpop.f32.mrb[0].mxu0
    %v2450 = vpop.f32.mrb[0].mxu0
    %v2451 = vadd.f32 0.0, %v2450
    %v2452 = vpop.f32.mrb[0].mxu0
    %2453 = vmatprep.mubr.bf16.mxu0 0
    %2454 = vmatmul.mubr.bf16.gmra.mrb[0].mxu0 %v2400
    %v2455 = vpop.f32.mrb[0].mxu0
    %v2456 = vadd.f32 0.0, %v2455
    %v2457 = vpop.f32.mrb[0].mxu0
    %v2458 = vpop.f32.mrb[0].mxu0
    %v2459 = vadd.f32 0.0, %v2458
    %v2460 = vpop.f32.mrb[0].mxu0
    %2461 = vmatprep.mubr.bf16.mxu0 0
    %2462 = vmatmul.mubr.bf16.gmra.mrb[0].mxu0 %v2403
    %v2463 = vpop.f32.mrb[0].mxu0
    %v2464 = vadd.f32 0.0, %v2463
    %v2465 = vpop.f32.mrb[0].mxu0
    %v2466 = vpop.f32.mrb[0].mxu0
    %v2467 = vadd.f32 0.0, %v2466
    %v2468 = vpop.f32.mrb[0].mxu0
    %2469 = vdwg.mxu0
    %v2470 = vadd.f32 %v1954, %v2440
    %v2471 = vadd.f32 %v1955, %v2443
    %v2472 = vadd.f32 %v1956, %v2448
    %v2473 = vadd.f32 %v1957, %v2451
    %v2474 = vadd.f32 %v1958, %v2456
    %v2475 = vadd.f32 %v1959, %v2459
    %v2476 = vadd.f32 %v1960, %v2464
    %v2477 = vadd.f32 %v1961, %v2467
    %v2478 = vld [vmem:[%s2 + $0xc] sm:$0xf]
    %v2479 = vld [vmem:[%s2 + $0x34] sm:$0xf]
    %v2480 = vld [vmem:[%s2 + $0x5c] sm:$0xf]
    %v2481 = vld [vmem:[%s2 + $0x84] sm:$0xf]
    %v2482 = vld [vmem:[%s2 + $0xac] sm:$0xf]
    %v2483 = vld [vmem:[%s2 + $0xd4] sm:$0xf]
    %v2484 = vld [vmem:[%s2 + $0xfc] sm:$0xf]
    %v2485 = vld [vmem:[%s2 + $0x124] sm:$0xf]
    %v2486 = vld [vmem:[%s2 + $0x14c] sm:$0xf]
    %v2487 = vld [vmem:[%s2 + $0x174] sm:$0xf]
    %v2488 = vld [vmem:[%s2 + $0x19c] sm:$0xf]
    %v2489 = vld [vmem:[%s2 + $0x1c4] sm:$0xf]
    %v2490 = vld [vmem:[%s2 + $0x1ec] sm:$0xf]
    %v2491 = vld [vmem:[%s2 + $0x214] sm:$0xf]
    %v2492 = vld [vmem:[%s2 + $0x23c] sm:$0xf]
    %v2493 = vld [vmem:[%s2 + $0x264] sm:$0xf]
    %v2494 = vld [vmem:[%s2 + $0x1c] sm:$0xf]
    %v2495 = vld [vmem:[%s2 + $0x44] sm:$0xf]
    %v2496 = vld [vmem:[%s2 + $0x6c] sm:$0xf]
    %v2497 = vld [vmem:[%s2 + $0x94] sm:$0xf]
    %v2498 = vld [vmem:[%s2 + $0xbc] sm:$0xf]
    %v2499 = vld [vmem:[%s2 + $0xe4] sm:$0xf]
    %v2500 = vld [vmem:[%s2 + $0x10c] sm:$0xf]
    %v2501 = vld [vmem:[%s2 + $0x134] sm:$0xf]
    %v2502 = vld [vmem:[%s2 + $0x15c] sm:$0xf]
    %v2503 = vld [vmem:[%s2 + $0x184] sm:$0xf]
    %v2504 = vld [vmem:[%s2 + $0x1ac] sm:$0xf]
    %v2505 = vld [vmem:[%s2 + $0x1d4] sm:$0xf]
    %v2506 = vld [vmem:[%s2 + $0x1fc] sm:$0xf]
    %v2507 = vld [vmem:[%s2 + $0x224] sm:$0xf]
    %v2508 = vld [vmem:[%s2 + $0x24c] sm:$0xf]
    %v2509 = vld [vmem:[%s2 + $0x274] sm:$0xf]
    %v2526 = vunpack.c.l.b16 %v2478
    %v2527 = vunpack.c.l.b16 %v2479
    %v2528 = vunpack.c.l.b16 %v2480
    %v2529 = vunpack.c.l.b16 %v2481
    %v2530 = vunpack.c.l.b16 %v2482
    %v2531 = vunpack.c.l.b16 %v2483
    %v2532 = vunpack.c.l.b16 %v2484
    %v2533 = vunpack.c.l.b16 %v2485
    %v2534 = vunpack.c.l.b16 %v2486
    %v2535 = vunpack.c.l.b16 %v2487
    %v2536 = vunpack.c.l.b16 %v2488
    %v2537 = vunpack.c.l.b16 %v2489
    %v2538 = vunpack.c.l.b16 %v2490
    %v2539 = vunpack.c.l.b16 %v2491
    %v2540 = vunpack.c.l.b16 %v2492
    %v2541 = vunpack.c.l.b16 %v2493
    %v2542 = vpack.c.b16 %v2527, %v2526
    %v2543 = vpack.c.b16 %v2529, %v2528
    %v2544 = vpack.c.b16 %v2531, %v2530
    %v2545 = vpack.c.b16 %v2533, %v2532
    %v2546 = vpack.c.b16 %v2535, %v2534
    %v2547 = vpack.c.b16 %v2537, %v2536
    %v2548 = vpack.c.b16 %v2539, %v2538
    %v2549 = vpack.c.b16 %v2541, %v2540
    %2558 = vmatprep.subr.bf16.mxu0 0
    %2559 = vmatpush1.bf16.msra.mxu0 %v2542
    %2560 = vmatprep.subr.bf16.mxu0 0
    %2561 = vmatpush1.bf16.msra.mxu0 %v2543
    %2562 = vmatprep.subr.bf16.mxu0 0
    %2563 = vmatpush1.bf16.msra.mxu0 %v2544
    %2564 = vmatprep.subr.bf16.mxu0 0
    %2565 = vmatpush1.bf16.msra.mxu0 %v2545
    %2566 = vmatprep.subr.bf16.mxu0 0
    %2567 = vmatpush1.bf16.msra.mxu0 %v2546
    %2568 = vmatprep.subr.bf16.mxu0 0
    %2569 = vmatpush1.bf16.msra.mxu0 %v2547
    %2570 = vmatprep.subr.bf16.mxu0 0
    %2571 = vmatpush1.bf16.msra.mxu0 %v2548
    %2572 = vmatprep.subr.bf16.mxu0 0
    %2573 = vmatpush1.bf16.msra.mxu0 %v2549
    %2574 = vmatprep.subr.bf16.mxu0 0
    %2575 = vmatpush1.bf16.msra.mxu0 0
    %2576 = vmatprep.subr.bf16.mxu0 0
    %2577 = vmatpush1.bf16.msra.mxu0 0
    %2578 = vmatprep.subr.bf16.mxu0 0
    %2579 = vmatpush1.bf16.msra.mxu0 0
    %2580 = vmatprep.subr.bf16.mxu0 0
    %2581 = vmatpush1.bf16.msra.mxu0 0
    %2582 = vmatprep.subr.bf16.mxu0 0
    %2583 = vmatpush1.bf16.msra.mxu0 0
    %2584 = vmatprep.subr.bf16.mxu0 0
    %2585 = vmatpush1.bf16.msra.mxu0 0
    %2586 = vmatprep.subr.bf16.mxu0 0
    %2587 = vmatpush1.bf16.msra.mxu0 0
    %2588 = vmatprep.subr.bf16.mxu0 0
    %2589 = vmatpush1.bf16.msra.mxu0 0
    %2590 = vmatprep.mubr.bf16.mxu0 0
    %2591 = vmatmul.mubr.bf16.gmra.mrb[0].mxu0 %v913
    %v2592 = vpop.f32.mrb[0].mxu0
    %v2593 = vadd.f32 0.0, %v2592
    %v2594 = vpop.f32.mrb[0].mxu0
    %v2595 = vpop.f32.mrb[0].mxu0
    %v2596 = vadd.f32 0.0, %v2595
    %v2597 = vpop.f32.mrb[0].mxu0
    %2598 = vmatprep.mubr.bf16.mxu0 0
    %2599 = vmatmul.mubr.bf16.gmra.mrb[0].mxu0 %v914
    %v2600 = vpop.f32.mrb[0].mxu0
    %v2601 = vadd.f32 0.0, %v2600
    %v2602 = vpop.f32.mrb[0].mxu0
    %v2603 = vpop.f32.mrb[0].mxu0
    %v2604 = vadd.f32 0.0, %v2603
    %v2605 = vpop.f32.mrb[0].mxu0
    %2606 = vmatprep.mubr.bf16.mxu0 0
    %2607 = vmatmul.mubr.bf16.gmra.mrb[0].mxu0 %v915
    %v2608 = vpop.f32.mrb[0].mxu0
    %v2609 = vadd.f32 0.0, %v2608
    %v2610 = vpop.f32.mrb[0].mxu0
    %v2611 = vpop.f32.mrb[0].mxu0
    %v2612 = vadd.f32 0.0, %v2611
    %v2613 = vpop.f32.mrb[0].mxu0
    %2614 = vmatprep.mubr.bf16.mxu0 0
    %2615 = vmatmul.mubr.bf16.gmra.mrb[0].mxu0 %v916
    %v2616 = vpop.f32.mrb[0].mxu0
    %v2617 = vadd.f32 0.0, %v2616
    %v2618 = vpop.f32.mrb[0].mxu0
    %v2619 = vpop.f32.mrb[0].mxu0
    %v2620 = vadd.f32 0.0, %v2619
    %v2621 = vpop.f32.mrb[0].mxu0
    %2622 = vdwg.mxu0
    %v2623 = vpack.c.bf16 %v2596, %v2593
    %v2624 = vpack.c.bf16 %v2604, %v2601
    %v2625 = vpack.c.bf16 %v2612, %v2609
    %v2626 = vpack.c.bf16 %v2620, %v2617
    %2627 = vmatprep.subr.bf16.mxu0 0
    %2628 = vmatpush1.bf16.xpose.msra.mxu0 %v913
    %2629 = vmatprep.subr.bf16.mxu0 0
    %2630 = vmatpush1.bf16.xpose.msra.mxu0 %v914
    %2631 = vmatprep.subr.bf16.mxu0 0
    %2632 = vmatpush1.bf16.xpose.msra.mxu0 %v915
    %2633 = vmatprep.subr.bf16.mxu0 0
    %2634 = vmatpush1.bf16.xpose.msra.mxu0 %v916
    %2635 = vmatprep.subr.bf16.mxu0 0
    %2636 = vmatpush1.bf16.xpose.msra.mxu0 0
    %2637 = vmatprep.subr.bf16.mxu0 0
    %2638 = vmatpush1.bf16.xpose.msra.mxu0 0
    %2639 = vmatprep.subr.bf16.mxu0 0
    %2640 = vmatpush1.bf16.xpose.msra.mxu0 0
    %2641 = vmatprep.subr.bf16.mxu0 0
    %2642 = vmatpush1.bf16.xpose.msra.mxu0 0
    %2643 = vmatprep.subr.bf16.mxu0 0
    %2644 = vmatpush1.bf16.xpose.msra.mxu0 0
    %2645 = vmatprep.subr.bf16.mxu0 0
    %2646 = vmatpush1.bf16.xpose.msra.mxu0 0
    %2647 = vmatprep.subr.bf16.mxu0 0
    %2648 = vmatpush1.bf16.xpose.msra.mxu0 0
    %2649 = vmatprep.subr.bf16.mxu0 0
    %2650 = vmatpush1.bf16.xpose.msra.mxu0 0
    %2651 = vmatprep.subr.bf16.mxu0 0
    %2652 = vmatpush1.bf16.xpose.msra.mxu0 0
    %2653 = vmatprep.subr.bf16.mxu0 0
    %2654 = vmatpush1.bf16.xpose.msra.mxu0 0
    %2655 = vmatprep.subr.bf16.mxu0 0
    %2656 = vmatpush1.bf16.xpose.msra.mxu0 0
    %2657 = vmatprep.subr.bf16.mxu0 0
    %2658 = vmatpush1.bf16.xpose.msra.mxu0 0
    %2659 = vmatprep.mubr.bf16.mxu0 0
    %2660 = vmatmul.mubr.bf16.gmra.mrb[0].mxu0 %v2623
    %v2661 = vpop.f32.mrb[0].mxu0
    %v2662 = vadd.f32 0.0, %v2661
    %v2663 = vpop.f32.mrb[0].mxu0
    %v2664 = vpop.f32.mrb[0].mxu0
    %v2665 = vadd.f32 0.0, %v2664
    %v2666 = vpop.f32.mrb[0].mxu0
    %2667 = vmatprep.mubr.bf16.mxu0 0
    %2668 = vmatmul.mubr.bf16.gmra.mrb[0].mxu0 %v2624
    %v2669 = vpop.f32.mrb[0].mxu0
    %v2670 = vadd.f32 0.0, %v2669
    %v2671 = vpop.f32.mrb[0].mxu0
    %v2672 = vpop.f32.mrb[0].mxu0
    %v2673 = vadd.f32 0.0, %v2672
    %v2674 = vpop.f32.mrb[0].mxu0
    %2675 = vmatprep.mubr.bf16.mxu0 0
    %2676 = vmatmul.mubr.bf16.gmra.mrb[0].mxu0 %v2625
    %v2677 = vpop.f32.mrb[0].mxu0
    %v2678 = vadd.f32 0.0, %v2677
    %v2679 = vpop.f32.mrb[0].mxu0
    %v2680 = vpop.f32.mrb[0].mxu0
    %v2681 = vadd.f32 0.0, %v2680
    %v2682 = vpop.f32.mrb[0].mxu0
    %2683 = vmatprep.mubr.bf16.mxu0 0
    %2684 = vmatmul.mubr.bf16.gmra.mrb[0].mxu0 %v2626
    %v2685 = vpop.f32.mrb[0].mxu0
    %v2686 = vadd.f32 0.0, %v2685
    %v2687 = vpop.f32.mrb[0].mxu0
    %v2688 = vpop.f32.mrb[0].mxu0
    %v2689 = vadd.f32 0.0, %v2688
    %v2690 = vpop.f32.mrb[0].mxu0
    %2691 = vdwg.mxu0
    %v2692 = vsel %vm49, %v2662, -1e+09
    %v2693 = vsel %vm50, %v2665, -1e+09
    %v2694 = vsel %vm51, %v2670, -1e+09
    %v2695 = vsel %vm52, %v2673, -1e+09
    %v2696 = vsel %vm53, %v2678, -1e+09
    %v2697 = vsel %vm54, %v2681, -1e+09
    %v2698 = vsel %vm55, %v2686, -1e+09
    %v2699 = vsel %vm56, %v2689, -1e+09
    %v2700 = vsel %vm1151, %v2692, -inf
    %2701 = vmax.xlane.f32.xlu0 %v2700
    %v2702 = vpop.xlane.xlu0 %2701
    %v2703 = vsel %vm1151, %v2693, -inf
    %2704 = vmax.xlane.f32.xlu0 %v2703
    %v2705 = vpop.xlane.xlu0 %2704
    %v2706 = vsel %vm1151, %v2694, -inf
    %2707 = vmax.xlane.f32.xlu0 %v2706
    %v2708 = vpop.xlane.xlu0 %2707
    %v2709 = vsel %vm1151, %v2695, -inf
    %2710 = vmax.xlane.f32.xlu0 %v2709
    %v2711 = vpop.xlane.xlu0 %2710
    %v2712 = vsel %vm1151, %v2696, -inf
    %2713 = vmax.xlane.f32.xlu0 %v2712
    %v2714 = vpop.xlane.xlu0 %2713
    %v2715 = vsel %vm1151, %v2697, -inf
    %2716 = vmax.xlane.f32.xlu0 %v2715
    %v2717 = vpop.xlane.xlu0 %2716
    %v2718 = vsel %vm1151, %v2698, -inf
    %2719 = vmax.xlane.f32.xlu0 %v2718
    %v2720 = vpop.xlane.xlu0 %2719
    %v2721 = vsel %vm1151, %v2699, -inf
    %2722 = vmax.xlane.f32.xlu0 %v2721
    %v2723 = vpop.xlane.xlu0 %2722
    %v2724 = vsub.f32 %v2692, %v2702
    %v2725 = vsub.f32 %v2693, %v2705
    %v2726 = vsub.f32 %v2694, %v2708
    %v2727 = vsub.f32 %v2695, %v2711
    %v2728 = vsub.f32 %v2696, %v2714
    %v2729 = vsub.f32 %v2697, %v2717
    %v2730 = vsub.f32 %v2698, %v2720
    %v2731 = vsub.f32 %v2699, %v2723
    %v2732 = vmul.f32 %v2724, 1.442695
    %v2733 = vpow.pop %v2732
    %v2734 = vmul.f32 %v2725, 1.442695
    %v2735 = vpow.pop %v2734
    %v2736 = vmul.f32 %v2726, 1.442695
    %v2737 = vpow.pop %v2736
    %v2738 = vmul.f32 %v2727, 1.442695
    %v2739 = vpow.pop %v2738
    %v2740 = vmul.f32 %v2728, 1.442695
    %v2741 = vpow.pop %v2740
    %v2742 = vmul.f32 %v2729, 1.442695
    %v2743 = vpow.pop %v2742
    %v2744 = vmul.f32 %v2730, 1.442695
    %v2745 = vpow.pop %v2744
    %v2746 = vmul.f32 %v2731, 1.442695
    %v2747 = vpow.pop %v2746
    %v2748 = vsel %vm1151, %v2733, 0.0
    %2749 = vadd.xlane.f32.xlu0 %v2748
    %v2750 = vpop.xlane.xlu0 %2749
    %v2751 = vsel %vm1151, %v2735, 0.0
    %2752 = vadd.xlane.f32.xlu0 %v2751
    %v2753 = vpop.xlane.xlu0 %2752
    %v2754 = vsel %vm1151, %v2737, 0.0
    %2755 = vadd.xlane.f32.xlu0 %v2754
    %v2756 = vpop.xlane.xlu0 %2755
    %v2757 = vsel %vm1151, %v2739, 0.0
    %2758 = vadd.xlane.f32.xlu0 %v2757
    %v2759 = vpop.xlane.xlu0 %2758
    %v2760 = vsel %vm1151, %v2741, 0.0
    %2761 = vadd.xlane.f32.xlu0 %v2760
    %v2762 = vpop.xlane.xlu0 %2761
    %v2763 = vsel %vm1151, %v2743, 0.0
    %2764 = vadd.xlane.f32.xlu0 %v2763
    %v2765 = vpop.xlane.xlu0 %2764
    %v2766 = vsel %vm1151, %v2745, 0.0
    %2767 = vadd.xlane.f32.xlu0 %v2766
    %v2768 = vpop.xlane.xlu0 %2767
    %v2769 = vsel %vm1151, %v2747, 0.0
    %2770 = vadd.xlane.f32.xlu0 %v2769
    %v2771 = vpop.xlane.xlu0 %2770
    %v2772 = vrcp.pop %v2750
    %v2773 = vrcp.pop %v2753
    %v2774 = vrcp.pop %v2756
    %v2775 = vrcp.pop %v2759
    %v2776 = vrcp.pop %v2762
    %v2777 = vrcp.pop %v2765
    %v2778 = vrcp.pop %v2768
    %v2779 = vrcp.pop %v2771
    %v2780 = vmul.f32 %v2733, %v2772
    %v2781 = vmul.f32 %v2735, %v2773
    %v2782 = vmul.f32 %v2737, %v2774
    %v2783 = vmul.f32 %v2739, %v2775
    %v2784 = vmul.f32 %v2741, %v2776
    %v2785 = vmul.f32 %v2743, %v2777
    %v2786 = vmul.f32 %v2745, %v2778
    %v2787 = vmul.f32 %v2747, %v2779
    %v2804 = vunpack.c.l.b16 %v2494
    %v2805 = vunpack.c.l.b16 %v2495
    %v2806 = vunpack.c.l.b16 %v2496
    %v2807 = vunpack.c.l.b16 %v2497
    %v2808 = vunpack.c.l.b16 %v2498
    %v2809 = vunpack.c.l.b16 %v2499
    %v2810 = vunpack.c.l.b16 %v2500
    %v2811 = vunpack.c.l.b16 %v2501
    %v2812 = vunpack.c.l.b16 %v2502
    %v2813 = vunpack.c.l.b16 %v2503
    %v2814 = vunpack.c.l.b16 %v2504
    %v2815 = vunpack.c.l.b16 %v2505
    %v2816 = vunpack.c.l.b16 %v2506
    %v2817 = vunpack.c.l.b16 %v2507
    %v2818 = vunpack.c.l.b16 %v2508
    %v2819 = vunpack.c.l.b16 %v2509
    %v2820 = vpack.c.b16 %v2805, %v2804
    %v2821 = vpack.c.b16 %v2807, %v2806
    %v2822 = vpack.c.b16 %v2809, %v2808
    %v2823 = vpack.c.b16 %v2811, %v2810
    %v2824 = vpack.c.b16 %v2813, %v2812
    %v2825 = vpack.c.b16 %v2815, %v2814
    %v2826 = vpack.c.b16 %v2817, %v2816
    %v2827 = vpack.c.b16 %v2819, %v2818
    %2836 = vmatprep.subr.bf16.mxu0 0
    %2837 = vmatpush1.bf16.msra.mxu0 %v2820
    %2838 = vmatprep.subr.bf16.mxu0 0
    %2839 = vmatpush1.bf16.msra.mxu0 %v2821
    %2840 = vmatprep.subr.bf16.mxu0 0
    %2841 = vmatpush1.bf16.msra.mxu0 %v2822
    %2842 = vmatprep.subr.bf16.mxu0 0
    %2843 = vmatpush1.bf16.msra.mxu0 %v2823
    %2844 = vmatprep.subr.bf16.mxu0 0
    %2845 = vmatpush1.bf16.msra.mxu0 %v2824
    %2846 = vmatprep.subr.bf16.mxu0 0
    %2847 = vmatpush1.bf16.msra.mxu0 %v2825
    %2848 = vmatprep.subr.bf16.mxu0 0
    %2849 = vmatpush1.bf16.msra.mxu0 %v2826
    %2850 = vmatprep.subr.bf16.mxu0 0
    %2851 = vmatpush1.bf16.msra.mxu0 %v2827
    %2852 = vmatprep.subr.bf16.mxu0 0
    %2853 = vmatpush1.bf16.msra.mxu0 0
    %2854 = vmatprep.subr.bf16.mxu0 0
    %2855 = vmatpush1.bf16.msra.mxu0 0
    %2856 = vmatprep.subr.bf16.mxu0 0
    %2857 = vmatpush1.bf16.msra.mxu0 0
    %2858 = vmatprep.subr.bf16.mxu0 0
    %2859 = vmatpush1.bf16.msra.mxu0 0
    %2860 = vmatprep.subr.bf16.mxu0 0
    %2861 = vmatpush1.bf16.msra.mxu0 0
    %2862 = vmatprep.subr.bf16.mxu0 0
    %2863 = vmatpush1.bf16.msra.mxu0 0
    %2864 = vmatprep.subr.bf16.mxu0 0
    %2865 = vmatpush1.bf16.msra.mxu0 0
    %2866 = vmatprep.subr.bf16.mxu0 0
    %2867 = vmatpush1.bf16.msra.mxu0 0
    %2868 = vmatprep.mubr.bf16.mxu0 0
    %2869 = vmatmul.mubr.bf16.gmra.mrb[0].mxu0 %v913
    %v2870 = vpop.f32.mrb[0].mxu0
    %v2871 = vadd.f32 0.0, %v2870
    %v2872 = vpop.f32.mrb[0].mxu0
    %v2873 = vpop.f32.mrb[0].mxu0
    %v2874 = vadd.f32 0.0, %v2873
    %v2875 = vpop.f32.mrb[0].mxu0
    %2876 = vmatprep.mubr.bf16.mxu0 0
    %2877 = vmatmul.mubr.bf16.gmra.mrb[0].mxu0 %v914
    %v2878 = vpop.f32.mrb[0].mxu0
    %v2879 = vadd.f32 0.0, %v2878
    %v2880 = vpop.f32.mrb[0].mxu0
    %v2881 = vpop.f32.mrb[0].mxu0
    %v2882 = vadd.f32 0.0, %v2881
    %v2883 = vpop.f32.mrb[0].mxu0
    %2884 = vmatprep.mubr.bf16.mxu0 0
    %2885 = vmatmul.mubr.bf16.gmra.mrb[0].mxu0 %v915
    %v2886 = vpop.f32.mrb[0].mxu0
    %v2887 = vadd.f32 0.0, %v2886
    %v2888 = vpop.f32.mrb[0].mxu0
    %v2889 = vpop.f32.mrb[0].mxu0
    %v2890 = vadd.f32 0.0, %v2889
    %v2891 = vpop.f32.mrb[0].mxu0
    %2892 = vmatprep.mubr.bf16.mxu0 0
    %2893 = vmatmul.mubr.bf16.gmra.mrb[0].mxu0 %v916
    %v2894 = vpop.f32.mrb[0].mxu0
    %v2895 = vadd.f32 0.0, %v2894
    %v2896 = vpop.f32.mrb[0].mxu0
    %v2897 = vpop.f32.mrb[0].mxu0
    %v2898 = vadd.f32 0.0, %v2897
    %v2899 = vpop.f32.mrb[0].mxu0
    %2900 = vdwg.mxu0
    %v2901 = vpack.c.bf16 %v2781, %v2780
    %v2902 = vpack.c.bf16 %v2783, %v2782
    %v2903 = vpack.c.bf16 %v2785, %v2784
    %v2904 = vpack.c.bf16 %v2787, %v2786
    %v2905 = vpack.c.bf16 %v2874, %v2871
    %v2906 = vpack.c.bf16 %v2882, %v2879
    %v2907 = vpack.c.bf16 %v2890, %v2887
    %v2908 = vpack.c.bf16 %v2898, %v2895
    %v2910 = vsel %vm1151, %v2901, 0
    %v2913 = vsel %vm1151, %v2902, 0
    %v2916 = vsel %vm1151, %v2903, 0
    %v2919 = vsel %vm1151, %v2904, 0
    %2921 = vmatprep.subr.bf16.mxu0 0
    %2922 = vmatpush1.bf16.msra.mxu0 %v2905
    %2923 = vmatprep.subr.bf16.mxu0 0
    %2924 = vmatpush1.bf16.msra.mxu0 %v2906
    %2925 = vmatprep.subr.bf16.mxu0 0
    %2926 = vmatpush1.bf16.msra.mxu0 %v2907
    %2927 = vmatprep.subr.bf16.mxu0 0
    %2928 = vmatpush1.bf16.msra.mxu0 %v2908
    %2929 = vmatprep.subr.bf16.mxu0 0
    %2930 = vmatpush1.bf16.msra.mxu0 0
    %2931 = vmatprep.subr.bf16.mxu0 0
    %2932 = vmatpush1.bf16.msra.mxu0 0
    %2933 = vmatprep.subr.bf16.mxu0 0
    %2934 = vmatpush1.bf16.msra.mxu0 0
    %2935 = vmatprep.subr.bf16.mxu0 0
    %2936 = vmatpush1.bf16.msra.mxu0 0
    %2937 = vmatprep.subr.bf16.mxu0 0
    %2938 = vmatpush1.bf16.msra.mxu0 0
    %2939 = vmatprep.subr.bf16.mxu0 0
    %2940 = vmatpush1.bf16.msra.mxu0 0
    %2941 = vmatprep.subr.bf16.mxu0 0
    %2942 = vmatpush1.bf16.msra.mxu0 0
    %2943 = vmatprep.subr.bf16.mxu0 0
    %2944 = vmatpush1.bf16.msra.mxu0 0
    %2945 = vmatprep.subr.bf16.mxu0 0
    %2946 = vmatpush1.bf16.msra.mxu0 0
    %2947 = vmatprep.subr.bf16.mxu0 0
    %2948 = vmatpush1.bf16.msra.mxu0 0
    %2949 = vmatprep.subr.bf16.mxu0 0
    %2950 = vmatpush1.bf16.msra.mxu0 0
    %2951 = vmatprep.subr.bf16.mxu0 0
    %2952 = vmatpush1.bf16.msra.mxu0 0
    %2953 = vmatprep.mubr.bf16.mxu0 0
    %2954 = vmatmul.mubr.bf16.gmra.mrb[0].mxu0 %v2910
    %v2955 = vpop.f32.mrb[0].mxu0
    %v2956 = vadd.f32 0.0, %v2955
    %v2957 = vpop.f32.mrb[0].mxu0
    %v2958 = vpop.f32.mrb[0].mxu0
    %v2959 = vadd.f32 0.0, %v2958
    %v2960 = vpop.f32.mrb[0].mxu0
    %2961 = vmatprep.mubr.bf16.mxu0 0
    %2962 = vmatmul.mubr.bf16.gmra.mrb[0].mxu0 %v2913
    %v2963 = vpop.f32.mrb[0].mxu0
    %v2964 = vadd.f32 0.0, %v2963
    %v2965 = vpop.f32.mrb[0].mxu0
    %v2966 = vpop.f32.mrb[0].mxu0
    %v2967 = vadd.f32 0.0, %v2966
    %v2968 = vpop.f32.mrb[0].mxu0
    %2969 = vmatprep.mubr.bf16.mxu0 0
    %2970 = vmatmul.mubr.bf16.gmra.mrb[0].mxu0 %v2916
    %v2971 = vpop.f32.mrb[0].mxu0
    %v2972 = vadd.f32 0.0, %v2971
    %v2973 = vpop.f32.mrb[0].mxu0
    %v2974 = vpop.f32.mrb[0].mxu0
    %v2975 = vadd.f32 0.0, %v2974
    %v2976 = vpop.f32.mrb[0].mxu0
    %2977 = vmatprep.mubr.bf16.mxu0 0
    %2978 = vmatmul.mubr.bf16.gmra.mrb[0].mxu0 %v2919
    %v2979 = vpop.f32.mrb[0].mxu0
    %v2980 = vadd.f32 0.0, %v2979
    %v2981 = vpop.f32.mrb[0].mxu0
    %v2982 = vpop.f32.mrb[0].mxu0
    %v2983 = vadd.f32 0.0, %v2982
    %v2984 = vpop.f32.mrb[0].mxu0
    %2985 = vdwg.mxu0
    %v2986 = vadd.f32 %v2470, %v2956
    %v2987 = vadd.f32 %v2471, %v2959
    %v2988 = vadd.f32 %v2472, %v2964
    %v2989 = vadd.f32 %v2473, %v2967
    %v2990 = vadd.f32 %v2474, %v2972
    %v2991 = vadd.f32 %v2475, %v2975
    %v2992 = vadd.f32 %v2476, %v2980
    %v2993 = vadd.f32 %v2477, %v2983
    %2994 = vadd.xlane.f32.xlu0 %v2986
    %v2995 = vpop.xlane.xlu0 %2994
    %2996 = vadd.xlane.f32.xlu0 %v2987
    %v2997 = vpop.xlane.xlu0 %2996
    %2998 = vadd.xlane.f32.xlu0 %v2988
    %v2999 = vpop.xlane.xlu0 %2998
    %3000 = vadd.xlane.f32.xlu0 %v2989
    %v3001 = vpop.xlane.xlu0 %3000
    %3002 = vadd.xlane.f32.xlu0 %v2990
    %v3003 = vpop.xlane.xlu0 %3002
    %3004 = vadd.xlane.f32.xlu0 %v2991
    %v3005 = vpop.xlane.xlu0 %3004
    %3006 = vadd.xlane.f32.xlu0 %v2992
    %v3007 = vpop.xlane.xlu0 %3006
    %3008 = vadd.xlane.f32.xlu0 %v2993
    %v3009 = vpop.xlane.xlu0 %3008
    %v3010 = vmul.f32 %v2995, 0.03125
    %v3011 = vmul.f32 %v2997, 0.03125
    %v3012 = vmul.f32 %v2999, 0.03125
    %v3013 = vmul.f32 %v3001, 0.03125
    %v3014 = vmul.f32 %v3003, 0.03125
    %v3015 = vmul.f32 %v3005, 0.03125
    %v3016 = vmul.f32 %v3007, 0.03125
    %v3017 = vmul.f32 %v3009, 0.03125
    %v3018 = vmul.f32 %v2986, %v2986
    %v3019 = vmul.f32 %v2987, %v2987
    %v3020 = vmul.f32 %v2988, %v2988
    %v3021 = vmul.f32 %v2989, %v2989
    %v3022 = vmul.f32 %v2990, %v2990
    %v3023 = vmul.f32 %v2991, %v2991
    %v3024 = vmul.f32 %v2992, %v2992
    %v3025 = vmul.f32 %v2993, %v2993
    %3026 = vadd.xlane.f32.xlu0 %v3018
    %v3027 = vpop.xlane.xlu0 %3026
    %3028 = vadd.xlane.f32.xlu0 %v3019
    %v3029 = vpop.xlane.xlu0 %3028
    %3030 = vadd.xlane.f32.xlu0 %v3020
    %v3031 = vpop.xlane.xlu0 %3030
    %3032 = vadd.xlane.f32.xlu0 %v3021
    %v3033 = vpop.xlane.xlu0 %3032
    %3034 = vadd.xlane.f32.xlu0 %v3022
    %v3035 = vpop.xlane.xlu0 %3034
    %3036 = vadd.xlane.f32.xlu0 %v3023
    %v3037 = vpop.xlane.xlu0 %3036
    %3038 = vadd.xlane.f32.xlu0 %v3024
    %v3039 = vpop.xlane.xlu0 %3038
    %3040 = vadd.xlane.f32.xlu0 %v3025
    %v3041 = vpop.xlane.xlu0 %3040
    %v3042 = vmul.f32 %v3027, 0.03125
    %v3043 = vmul.f32 %v3029, 0.03125
    %v3044 = vmul.f32 %v3031, 0.03125
    %v3045 = vmul.f32 %v3033, 0.03125
    %v3046 = vmul.f32 %v3035, 0.03125
    %v3047 = vmul.f32 %v3037, 0.03125
    %v3048 = vmul.f32 %v3039, 0.03125
    %v3049 = vmul.f32 %v3041, 0.03125
    %v3050 = vmul.f32 %v3010, %v3010
    %v3051 = vmul.f32 %v3011, %v3011
    %v3052 = vmul.f32 %v3012, %v3012
    %v3053 = vmul.f32 %v3013, %v3013
    %v3054 = vmul.f32 %v3014, %v3014
    %v3055 = vmul.f32 %v3015, %v3015
    %v3056 = vmul.f32 %v3016, %v3016
    %v3057 = vmul.f32 %v3017, %v3017
    %v3058 = vsub.f32 %v3042, %v3050
    %v3059 = vsub.f32 %v3043, %v3051
    %v3060 = vsub.f32 %v3044, %v3052
    %v3061 = vsub.f32 %v3045, %v3053
    %v3062 = vsub.f32 %v3046, %v3054
    %v3063 = vsub.f32 %v3047, %v3055
    %v3064 = vsub.f32 %v3048, %v3056
    %v3065 = vsub.f32 %v3049, %v3057
    %v3066 = vsub.f32 %v2986, %v3010
    %v3067 = vsub.f32 %v2987, %v3011
    %v3068 = vsub.f32 %v2988, %v3012
    %v3069 = vsub.f32 %v2989, %v3013
    %v3070 = vsub.f32 %v2990, %v3014
    %v3071 = vsub.f32 %v2991, %v3015
    %v3072 = vsub.f32 %v2992, %v3016
    %v3073 = vsub.f32 %v2993, %v3017
    %v3074 = vadd.f32 %v3058, 1e-06
    %v3075 = vadd.f32 %v3059, 1e-06
    %v3076 = vadd.f32 %v3060, 1e-06
    %v3077 = vadd.f32 %v3061, 1e-06
    %v3078 = vadd.f32 %v3062, 1e-06
    %v3079 = vadd.f32 %v3063, 1e-06
    %v3080 = vadd.f32 %v3064, 1e-06
    %v3081 = vadd.f32 %v3065, 1e-06
    %v3082 = vrsqrt.pop %v3074
    %v3083 = vrsqrt.pop %v3075
    %v3084 = vrsqrt.pop %v3076
    %v3085 = vrsqrt.pop %v3077
    %v3086 = vrsqrt.pop %v3078
    %v3087 = vrsqrt.pop %v3079
    %v3088 = vrsqrt.pop %v3080
    %v3089 = vrsqrt.pop %v3081
    %v3090 = vmul.f32 %v3066, %v3082
    %v3091 = vmul.f32 %v3067, %v3083
    %v3092 = vmul.f32 %v3068, %v3084
    %v3093 = vmul.f32 %v3069, %v3085
    %v3094 = vmul.f32 %v3070, %v3086
    %v3095 = vmul.f32 %v3071, %v3087
    %v3096 = vmul.f32 %v3072, %v3088
    %v3097 = vmul.f32 %v3073, %v3089
    %v3098 = vlaneseq
    %v3099 = vshrl.u32 %v3098, 7
    %v3100 = vsub.s32 3, %v3099
    %v3101 = vrot.slane %v784, %v3100
    %v3102 = vmul.f32 %v3090, %v3101
    %v3103 = vmul.f32 %v3091, %v3101
    %v3104 = vmul.f32 %v3092, %v3101
    %v3105 = vmul.f32 %v3093, %v3101
    %v3106 = vmul.f32 %v3094, %v3101
    %v3107 = vmul.f32 %v3095, %v3101
    %v3108 = vmul.f32 %v3096, %v3101
    %v3109 = vmul.f32 %v3097, %v3101
    %v3110 = vlaneseq
    %v3111 = vshrl.u32 %v3110, 7
    %v3112 = vsub.s32 4, %v3111
    %v3113 = vrot.slane %v784, %v3112
    %v3114 = vadd.f32 %v3102, %v3113
    %v3115 = vadd.f32 %v3103, %v3113
    %v3116 = vadd.f32 %v3104, %v3113
    %v3117 = vadd.f32 %v3105, %v3113
    %v3118 = vadd.f32 %v3106, %v3113
    %v3119 = vadd.f32 %v3107, %v3113
    %v3120 = vadd.f32 %v3108, %v3113
    %v3121 = vadd.f32 %v3109, %v3113
    %v3122 = vpack.c.bf16 %v3115, %v3114
    %v3123 = vpack.c.bf16 %v3117, %v3116
    %v3124 = vpack.c.bf16 %v3119, %v3118
    %v3125 = vpack.c.bf16 %v3121, %v3120
    %v3126 = vld [vmem:[%s2 + $0x20] sm:$0xf]
    %v3127 = vld [vmem:[%s2 + $0x48] sm:$0xf]
    %v3128 = vld [vmem:[%s2 + $0x70] sm:$0xf]
    %v3129 = vld [vmem:[%s2 + $0x98] sm:$0xf]
    %v3130 = vld [vmem:[%s2 + $0xc0] sm:$0xf]
    %v3131 = vld [vmem:[%s2 + $0xe8] sm:$0xf]
    %v3132 = vld [vmem:[%s2 + $0x110] sm:$0xf]
    %v3133 = vld [vmem:[%s2 + $0x138] sm:$0xf]
    %v3134 = vld [vmem:[%s2 + $0x160] sm:$0xf]
    %v3135 = vld [vmem:[%s2 + $0x188] sm:$0xf]
    %v3136 = vld [vmem:[%s2 + $0x1b0] sm:$0xf]
    %v3137 = vld [vmem:[%s2 + $0x1d8] sm:$0xf]
    %v3138 = vld [vmem:[%s2 + $0x200] sm:$0xf]
    %v3139 = vld [vmem:[%s2 + $0x228] sm:$0xf]
    %v3140 = vld [vmem:[%s2 + $0x250] sm:$0xf]
    %v3141 = vld [vmem:[%s2 + $0x278] sm:$0xf]
    %v3142 = vlaneseq
    %v3143 = vshrl.u32 %v3142, 7
    %v3144 = vsub.s32 5, %v3143
    %v3145 = vrot.slane %v784, %v3144
    %v3162 = vunpack.c.l.b16 %v3126
    %v3163 = vunpack.c.l.b16 %v3127
    %v3164 = vunpack.c.l.b16 %v3128
    %v3165 = vunpack.c.l.b16 %v3129
    %v3166 = vunpack.c.l.b16 %v3130
    %v3167 = vunpack.c.l.b16 %v3131
    %v3168 = vunpack.c.l.b16 %v3132
    %v3169 = vunpack.c.l.b16 %v3133
    %v3170 = vunpack.c.l.b16 %v3134
    %v3171 = vunpack.c.l.b16 %v3135
    %v3172 = vunpack.c.l.b16 %v3136
    %v3173 = vunpack.c.l.b16 %v3137
    %v3174 = vunpack.c.l.b16 %v3138
    %v3175 = vunpack.c.l.b16 %v3139
    %v3176 = vunpack.c.l.b16 %v3140
    %v3177 = vunpack.c.l.b16 %v3141
    %v3178 = vpack.c.b16 %v3163, %v3162
    %v3179 = vpack.c.b16 %v3165, %v3164
    %v3180 = vpack.c.b16 %v3167, %v3166
    %v3181 = vpack.c.b16 %v3169, %v3168
    %v3182 = vpack.c.b16 %v3171, %v3170
    %v3183 = vpack.c.b16 %v3173, %v3172
    %v3184 = vpack.c.b16 %v3175, %v3174
    %v3185 = vpack.c.b16 %v3177, %v3176
    %3194 = vmatprep.subr.bf16.mxu0 0
    %3195 = vmatpush1.bf16.msra.mxu0 %v3178
    %3196 = vmatprep.subr.bf16.mxu0 0
    %3197 = vmatpush1.bf16.msra.mxu0 %v3179
    %3198 = vmatprep.subr.bf16.mxu0 0
    %3199 = vmatpush1.bf16.msra.mxu0 %v3180
    %3200 = vmatprep.subr.bf16.mxu0 0
    %3201 = vmatpush1.bf16.msra.mxu0 %v3181
    %3202 = vmatprep.subr.bf16.mxu0 0
    %3203 = vmatpush1.bf16.msra.mxu0 %v3182
    %3204 = vmatprep.subr.bf16.mxu0 0
    %3205 = vmatpush1.bf16.msra.mxu0 %v3183
    %3206 = vmatprep.subr.bf16.mxu0 0
    %3207 = vmatpush1.bf16.msra.mxu0 %v3184
    %3208 = vmatprep.subr.bf16.mxu0 0
    %3209 = vmatpush1.bf16.msra.mxu0 %v3185
    %3210 = vmatprep.subr.bf16.mxu0 0
    %3211 = vmatpush1.bf16.msra.mxu0 0
    %3212 = vmatprep.subr.bf16.mxu0 0
    %3213 = vmatpush1.bf16.msra.mxu0 0
    %3214 = vmatprep.subr.bf16.mxu0 0
    %3215 = vmatpush1.bf16.msra.mxu0 0
    %3216 = vmatprep.subr.bf16.mxu0 0
    %3217 = vmatpush1.bf16.msra.mxu0 0
    %3218 = vmatprep.subr.bf16.mxu0 0
    %3219 = vmatpush1.bf16.msra.mxu0 0
    %3220 = vmatprep.subr.bf16.mxu0 0
    %3221 = vmatpush1.bf16.msra.mxu0 0
    %3222 = vmatprep.subr.bf16.mxu0 0
    %3223 = vmatpush1.bf16.msra.mxu0 0
    %3224 = vmatprep.subr.bf16.mxu0 0
    %3225 = vmatpush1.bf16.msra.mxu0 0
    %3226 = vmatprep.mubr.bf16.mxu0 0
    %3227 = vmatmul.mubr.bf16.gmra.mrb[0].mxu0 %v3122
    %v3228 = vpop.f32.mrb[0].mxu0
    %v3229 = vadd.f32 %v3145, %v3228
    %v3230 = vpop.f32.mrb[0].mxu0
    %v3231 = vpop.f32.mrb[0].mxu0
    %v3232 = vadd.f32 %v3145, %v3231
    %v3233 = vpop.f32.mrb[0].mxu0
    %3234 = vmatprep.mubr.bf16.mxu0 0
    %3235 = vmatmul.mubr.bf16.gmra.mrb[0].mxu0 %v3123
    %v3236 = vpop.f32.mrb[0].mxu0
    %v3237 = vadd.f32 %v3145, %v3236
    %v3238 = vpop.f32.mrb[0].mxu0
    %v3239 = vpop.f32.mrb[0].mxu0
    %v3240 = vadd.f32 %v3145, %v3239
    %v3241 = vpop.f32.mrb[0].mxu0
    %3242 = vmatprep.mubr.bf16.mxu0 0
    %3243 = vmatmul.mubr.bf16.gmra.mrb[0].mxu0 %v3124
    %v3244 = vpop.f32.mrb[0].mxu0
    %v3245 = vadd.f32 %v3145, %v3244
    %v3246 = vpop.f32.mrb[0].mxu0
    %v3247 = vpop.f32.mrb[0].mxu0
    %v3248 = vadd.f32 %v3145, %v3247
    %v3249 = vpop.f32.mrb[0].mxu0
    %3250 = vmatprep.mubr.bf16.mxu0 0
    %3251 = vmatmul.mubr.bf16.gmra.mrb[0].mxu0 %v3125
    %v3252 = vpop.f32.mrb[0].mxu0
    %v3253 = vadd.f32 %v3145, %v3252
    %v3254 = vpop.f32.mrb[0].mxu0
    %v3255 = vpop.f32.mrb[0].mxu0
    %v3256 = vadd.f32 %v3145, %v3255
    %v3257 = vpop.f32.mrb[0].mxu0
    %3258 = vdwg.mxu0
    %v3259 = vmul.f32 %v3229, %v3229
    %v3260 = vmul.f32 %v3232, %v3232
    %v3261 = vmul.f32 %v3237, %v3237
    %v3262 = vmul.f32 %v3240, %v3240
    %v3263 = vmul.f32 %v3245, %v3245
    %v3264 = vmul.f32 %v3248, %v3248
    %v3265 = vmul.f32 %v3253, %v3253
    %v3266 = vmul.f32 %v3256, %v3256
    %v3267 = vmul.f32 %v3229, %v3259
    %v3268 = vmul.f32 %v3232, %v3260
    %v3269 = vmul.f32 %v3237, %v3261
    %v3270 = vmul.f32 %v3240, %v3262
    %v3271 = vmul.f32 %v3245, %v3263
    %v3272 = vmul.f32 %v3248, %v3264
    %v3273 = vmul.f32 %v3253, %v3265
    %v3274 = vmul.f32 %v3256, %v3266
    %v3275 = vmul.f32 %v3267, 0.044715
    %v3276 = vmul.f32 %v3268, 0.044715
    %v3277 = vmul.f32 %v3269, 0.044715
    %v3278 = vmul.f32 %v3270, 0.044715
    %v3279 = vmul.f32 %v3271, 0.044715
    %v3280 = vmul.f32 %v3272, 0.044715
    %v3281 = vmul.f32 %v3273, 0.044715
    %v3282 = vmul.f32 %v3274, 0.044715
    %v3283 = vadd.f32 %v3229, %v3275
    %v3284 = vadd.f32 %v3232, %v3276
    %v3285 = vadd.f32 %v3237, %v3277
    %v3286 = vadd.f32 %v3240, %v3278
    %v3287 = vadd.f32 %v3245, %v3279
    %v3288 = vadd.f32 %v3248, %v3280
    %v3289 = vadd.f32 %v3253, %v3281
    %v3290 = vadd.f32 %v3256, %v3282
    %v3291 = vmul.f32 %v3283, 0.7978846
    %v3292 = vmul.f32 %v3284, 0.7978846
    %v3293 = vmul.f32 %v3285, 0.7978846
    %v3294 = vmul.f32 %v3286, 0.7978846
    %v3295 = vmul.f32 %v3287, 0.7978846
    %v3296 = vmul.f32 %v3288, 0.7978846
    %v3297 = vmul.f32 %v3289, 0.7978846
    %v3298 = vmul.f32 %v3290, 0.7978846
    %v3299 = vtanh.pop %v3291
    %v3300 = vtanh.pop %v3292
    %v3301 = vtanh.pop %v3293
    %v3302 = vtanh.pop %v3294
    %v3303 = vtanh.pop %v3295
    %v3304 = vtanh.pop %v3296
    %v3305 = vtanh.pop %v3297
    %v3306 = vtanh.pop %v3298
    %v3307 = vadd.f32 %v3299, 1.0
    %v3308 = vadd.f32 %v3300, 1.0
    %v3309 = vadd.f32 %v3301, 1.0
    %v3310 = vadd.f32 %v3302, 1.0
    %v3311 = vadd.f32 %v3303, 1.0
    %v3312 = vadd.f32 %v3304, 1.0
    %v3313 = vadd.f32 %v3305, 1.0
    %v3314 = vadd.f32 %v3306, 1.0
    %v3315 = vmul.f32 %v3307, 0.5
    %v3316 = vmul.f32 %v3308, 0.5
    %v3317 = vmul.f32 %v3309, 0.5
    %v3318 = vmul.f32 %v3310, 0.5
    %v3319 = vmul.f32 %v3311, 0.5
    %v3320 = vmul.f32 %v3312, 0.5
    %v3321 = vmul.f32 %v3313, 0.5
    %v3322 = vmul.f32 %v3314, 0.5
    %v3323 = vmul.f32 %v3229, %v3315
    %v3324 = vmul.f32 %v3232, %v3316
    %v3325 = vmul.f32 %v3237, %v3317
    %v3326 = vmul.f32 %v3240, %v3318
    %v3327 = vmul.f32 %v3245, %v3319
    %v3328 = vmul.f32 %v3248, %v3320
    %v3329 = vmul.f32 %v3253, %v3321
    %v3330 = vmul.f32 %v3256, %v3322
    %v3331 = vpack.c.bf16 %v3324, %v3323
    %v3332 = vpack.c.bf16 %v3326, %v3325
    %v3333 = vpack.c.bf16 %v3328, %v3327
    %v3334 = vpack.c.bf16 %v3330, %v3329
    %v3335 = vld [vmem:[%s2 + $0x24] sm:$0xf]
    %v3336 = vld [vmem:[%s2 + $0x4c] sm:$0xf]
    %v3337 = vld [vmem:[%s2 + $0x74] sm:$0xf]
    %v3338 = vld [vmem:[%s2 + $0x9c] sm:$0xf]
    %v3339 = vld [vmem:[%s2 + $0xc4] sm:$0xf]
    %v3340 = vld [vmem:[%s2 + $0xec] sm:$0xf]
    %v3341 = vld [vmem:[%s2 + $0x114] sm:$0xf]
    %v3342 = vld [vmem:[%s2 + $0x13c] sm:$0xf]
    %v3343 = vld [vmem:[%s2 + $0x164] sm:$0xf]
    %v3344 = vld [vmem:[%s2 + $0x18c] sm:$0xf]
    %v3345 = vld [vmem:[%s2 + $0x1b4] sm:$0xf]
    %v3346 = vld [vmem:[%s2 + $0x1dc] sm:$0xf]
    %v3347 = vld [vmem:[%s2 + $0x204] sm:$0xf]
    %v3348 = vld [vmem:[%s2 + $0x22c] sm:$0xf]
    %v3349 = vld [vmem:[%s2 + $0x254] sm:$0xf]
    %v3350 = vld [vmem:[%s2 + $0x27c] sm:$0xf]
    %v3367 = vunpack.c.l.b16 %v3335
    %v3368 = vunpack.c.l.b16 %v3336
    %v3369 = vunpack.c.l.b16 %v3337
    %v3370 = vunpack.c.l.b16 %v3338
    %v3371 = vunpack.c.l.b16 %v3339
    %v3372 = vunpack.c.l.b16 %v3340
    %v3373 = vunpack.c.l.b16 %v3341
    %v3374 = vunpack.c.l.b16 %v3342
    %v3375 = vunpack.c.l.b16 %v3343
    %v3376 = vunpack.c.l.b16 %v3344
    %v3377 = vunpack.c.l.b16 %v3345
    %v3378 = vunpack.c.l.b16 %v3346
    %v3379 = vunpack.c.l.b16 %v3347
    %v3380 = vunpack.c.l.b16 %v3348
    %v3381 = vunpack.c.l.b16 %v3349
    %v3382 = vunpack.c.l.b16 %v3350
    %v3383 = vpack.c.b16 %v3368, %v3367
    %v3384 = vpack.c.b16 %v3370, %v3369
    %v3385 = vpack.c.b16 %v3372, %v3371
    %v3386 = vpack.c.b16 %v3374, %v3373
    %v3387 = vpack.c.b16 %v3376, %v3375
    %v3388 = vpack.c.b16 %v3378, %v3377
    %v3389 = vpack.c.b16 %v3380, %v3379
    %v3390 = vpack.c.b16 %v3382, %v3381
    %3399 = vmatprep.subr.bf16.mxu0 0
    %3400 = vmatpush1.bf16.msra.mxu0 %v3383
    %3401 = vmatprep.subr.bf16.mxu0 0
    %3402 = vmatpush1.bf16.msra.mxu0 %v3384
    %3403 = vmatprep.subr.bf16.mxu0 0
    %3404 = vmatpush1.bf16.msra.mxu0 %v3385
    %3405 = vmatprep.subr.bf16.mxu0 0
    %3406 = vmatpush1.bf16.msra.mxu0 %v3386
    %3407 = vmatprep.subr.bf16.mxu0 0
    %3408 = vmatpush1.bf16.msra.mxu0 %v3387
    %3409 = vmatprep.subr.bf16.mxu0 0
    %3410 = vmatpush1.bf16.msra.mxu0 %v3388
    %3411 = vmatprep.subr.bf16.mxu0 0
    %3412 = vmatpush1.bf16.msra.mxu0 %v3389
    %3413 = vmatprep.subr.bf16.mxu0 0
    %3414 = vmatpush1.bf16.msra.mxu0 %v3390
    %3415 = vmatprep.subr.bf16.mxu0 0
    %3416 = vmatpush1.bf16.msra.mxu0 0
    %3417 = vmatprep.subr.bf16.mxu0 0
    %3418 = vmatpush1.bf16.msra.mxu0 0
    %3419 = vmatprep.subr.bf16.mxu0 0
    %3420 = vmatpush1.bf16.msra.mxu0 0
    %3421 = vmatprep.subr.bf16.mxu0 0
    %3422 = vmatpush1.bf16.msra.mxu0 0
    %3423 = vmatprep.subr.bf16.mxu0 0
    %3424 = vmatpush1.bf16.msra.mxu0 0
    %3425 = vmatprep.subr.bf16.mxu0 0
    %3426 = vmatpush1.bf16.msra.mxu0 0
    %3427 = vmatprep.subr.bf16.mxu0 0
    %3428 = vmatpush1.bf16.msra.mxu0 0
    %3429 = vmatprep.subr.bf16.mxu0 0
    %3430 = vmatpush1.bf16.msra.mxu0 0
    %3431 = vmatprep.mubr.bf16.mxu0 0
    %3432 = vmatmul.mubr.bf16.gmra.mrb[0].mxu0 %v3331
    %v3433 = vpop.f32.mrb[0].mxu0
    %v3434 = vadd.f32 0.0, %v3433
    %v3435 = vpop.f32.mrb[0].mxu0
    %v3436 = vpop.f32.mrb[0].mxu0
    %v3437 = vadd.f32 0.0, %v3436
    %v3438 = vpop.f32.mrb[0].mxu0
    %3439 = vmatprep.mubr.bf16.mxu0 0
    %3440 = vmatmul.mubr.bf16.gmra.mrb[0].mxu0 %v3332
    %v3441 = vpop.f32.mrb[0].mxu0
    %v3442 = vadd.f32 0.0, %v3441
    %v3443 = vpop.f32.mrb[0].mxu0
    %v3444 = vpop.f32.mrb[0].mxu0
    %v3445 = vadd.f32 0.0, %v3444
    %v3446 = vpop.f32.mrb[0].mxu0
    %3447 = vmatprep.mubr.bf16.mxu0 0
    %3448 = vmatmul.mubr.bf16.gmra.mrb[0].mxu0 %v3333
    %v3449 = vpop.f32.mrb[0].mxu0
    %v3450 = vadd.f32 0.0, %v3449
    %v3451 = vpop.f32.mrb[0].mxu0
    %v3452 = vpop.f32.mrb[0].mxu0
    %v3453 = vadd.f32 0.0, %v3452
    %v3454 = vpop.f32.mrb[0].mxu0
    %3455 = vmatprep.mubr.bf16.mxu0 0
    %3456 = vmatmul.mubr.bf16.gmra.mrb[0].mxu0 %v3334
    %v3457 = vpop.f32.mrb[0].mxu0
    %v3458 = vadd.f32 0.0, %v3457
    %v3459 = vpop.f32.mrb[0].mxu0
    %v3460 = vpop.f32.mrb[0].mxu0
    %v3461 = vadd.f32 0.0, %v3460
    %v3462 = vpop.f32.mrb[0].mxu0
    %3463 = vdwg.mxu0
    %v3464 = vadd.f32 %v2986, %v3434
    %v3465 = vadd.f32 %v2987, %v3437
    %v3466 = vadd.f32 %v2988, %v3442
    %v3467 = vadd.f32 %v2989, %v3445
    %v3468 = vadd.f32 %v2990, %v3450
    %v3469 = vadd.f32 %v2991, %v3453
    %v3470 = vadd.f32 %v2992, %v3458
    %v3471 = vadd.f32 %v2993, %v3461
    %v3472 = vlaneseq
    %v3473 = vshrl.u32 %v3472, 7
    %v3474 = vsub.s32 6, %v3473
    %v3475 = vrot.slane %v784, %v3474
    %v3476 = vadd.f32 %v3464, %v3475
    %v3477 = vadd.f32 %v3465, %v3475
    %v3478 = vadd.f32 %v3466, %v3475
    %v3479 = vadd.f32 %v3467, %v3475
    %v3480 = vadd.f32 %v3468, %v3475
    %v3481 = vadd.f32 %v3469, %v3475
    %v3482 = vadd.f32 %v3470, %v3475
    %v3483 = vadd.f32 %v3471, %v3475
    %v3484 = vld [vmem:[%s3 + $0x58] sm:$0xff]
    %3485 = vadd.xlane.f32.xlu0 %v3476
    %v3486 = vpop.xlane.xlu0 %3485
    %3487 = vadd.xlane.f32.xlu0 %v3477
    %v3488 = vpop.xlane.xlu0 %3487
    %3489 = vadd.xlane.f32.xlu0 %v3478
    %v3490 = vpop.xlane.xlu0 %3489
    %3491 = vadd.xlane.f32.xlu0 %v3479
    %v3492 = vpop.xlane.xlu0 %3491
    %3493 = vadd.xlane.f32.xlu0 %v3480
    %v3494 = vpop.xlane.xlu0 %3493
    %3495 = vadd.xlane.f32.xlu0 %v3481
    %v3496 = vpop.xlane.xlu0 %3495
    %3497 = vadd.xlane.f32.xlu0 %v3482
    %v3498 = vpop.xlane.xlu0 %3497
    %3499 = vadd.xlane.f32.xlu0 %v3483
    %v3500 = vpop.xlane.xlu0 %3499
    %v3501 = vmul.f32 %v3486, 0.03125
    %v3502 = vmul.f32 %v3488, 0.03125
    %v3503 = vmul.f32 %v3490, 0.03125
    %v3504 = vmul.f32 %v3492, 0.03125
    %v3505 = vmul.f32 %v3494, 0.03125
    %v3506 = vmul.f32 %v3496, 0.03125
    %v3507 = vmul.f32 %v3498, 0.03125
    %v3508 = vmul.f32 %v3500, 0.03125
    %v3509 = vmul.f32 %v3476, %v3476
    %v3510 = vmul.f32 %v3477, %v3477
    %v3511 = vmul.f32 %v3478, %v3478
    %v3512 = vmul.f32 %v3479, %v3479
    %v3513 = vmul.f32 %v3480, %v3480
    %v3514 = vmul.f32 %v3481, %v3481
    %v3515 = vmul.f32 %v3482, %v3482
    %v3516 = vmul.f32 %v3483, %v3483
    %3517 = vadd.xlane.f32.xlu0 %v3509
    %v3518 = vpop.xlane.xlu0 %3517
    %3519 = vadd.xlane.f32.xlu0 %v3510
    %v3520 = vpop.xlane.xlu0 %3519
    %3521 = vadd.xlane.f32.xlu0 %v3511
    %v3522 = vpop.xlane.xlu0 %3521
    %3523 = vadd.xlane.f32.xlu0 %v3512
    %v3524 = vpop.xlane.xlu0 %3523
    %3525 = vadd.xlane.f32.xlu0 %v3513
    %v3526 = vpop.xlane.xlu0 %3525
    %3527 = vadd.xlane.f32.xlu0 %v3514
    %v3528 = vpop.xlane.xlu0 %3527
    %3529 = vadd.xlane.f32.xlu0 %v3515
    %v3530 = vpop.xlane.xlu0 %3529
    %3531 = vadd.xlane.f32.xlu0 %v3516
    %v3532 = vpop.xlane.xlu0 %3531
    %v3533 = vmul.f32 %v3518, 0.03125
    %v3534 = vmul.f32 %v3520, 0.03125
    %v3535 = vmul.f32 %v3522, 0.03125
    %v3536 = vmul.f32 %v3524, 0.03125
    %v3537 = vmul.f32 %v3526, 0.03125
    %v3538 = vmul.f32 %v3528, 0.03125
    %v3539 = vmul.f32 %v3530, 0.03125
    %v3540 = vmul.f32 %v3532, 0.03125
    %v3541 = vmul.f32 %v3501, %v3501
    %v3542 = vmul.f32 %v3502, %v3502
    %v3543 = vmul.f32 %v3503, %v3503
    %v3544 = vmul.f32 %v3504, %v3504
    %v3545 = vmul.f32 %v3505, %v3505
    %v3546 = vmul.f32 %v3506, %v3506
    %v3547 = vmul.f32 %v3507, %v3507
    %v3548 = vmul.f32 %v3508, %v3508
    %v3549 = vsub.f32 %v3533, %v3541
    %v3550 = vsub.f32 %v3534, %v3542
    %v3551 = vsub.f32 %v3535, %v3543
    %v3552 = vsub.f32 %v3536, %v3544
    %v3553 = vsub.f32 %v3537, %v3545
    %v3554 = vsub.f32 %v3538, %v3546
    %v3555 = vsub.f32 %v3539, %v3547
    %v3556 = vsub.f32 %v3540, %v3548
    %v3557 = vsub.f32 %v3476, %v3501
    %v3558 = vsub.f32 %v3477, %v3502
    %v3559 = vsub.f32 %v3478, %v3503
    %v3560 = vsub.f32 %v3479, %v3504
    %v3561 = vsub.f32 %v3480, %v3505
    %v3562 = vsub.f32 %v3481, %v3506
    %v3563 = vsub.f32 %v3482, %v3507
    %v3564 = vsub.f32 %v3483, %v3508
    %v3565 = vadd.f32 %v3549, 1e-06
    %v3566 = vadd.f32 %v3550, 1e-06
    %v3567 = vadd.f32 %v3551, 1e-06
    %v3568 = vadd.f32 %v3552, 1e-06
    %v3569 = vadd.f32 %v3553, 1e-06
    %v3570 = vadd.f32 %v3554, 1e-06
    %v3571 = vadd.f32 %v3555, 1e-06
    %v3572 = vadd.f32 %v3556, 1e-06
    %v3573 = vrsqrt.pop %v3565
    %v3574 = vrsqrt.pop %v3566
    %v3575 = vrsqrt.pop %v3567
    %v3576 = vrsqrt.pop %v3568
    %v3577 = vrsqrt.pop %v3569
    %v3578 = vrsqrt.pop %v3570
    %v3579 = vrsqrt.pop %v3571
    %v3580 = vrsqrt.pop %v3572
    %v3581 = vmul.f32 %v3557, %v3573
    %v3582 = vmul.f32 %v3558, %v3574
    %v3583 = vmul.f32 %v3559, %v3575
    %v3584 = vmul.f32 %v3560, %v3576
    %v3585 = vmul.f32 %v3561, %v3577
    %v3586 = vmul.f32 %v3562, %v3578
    %v3587 = vmul.f32 %v3563, %v3579
    %v3588 = vmul.f32 %v3564, %v3580
    %v3589 = vlaneseq
    %v3590 = vshrl.u32 %v3589, 7
    %v3591 = vsub.s32 0, %v3590
    %v3592 = vrot.slane %v3484, %v3591
    %v3593 = vmul.f32 %v3581, %v3592
    %v3594 = vmul.f32 %v3582, %v3592
    %v3595 = vmul.f32 %v3583, %v3592
    %v3596 = vmul.f32 %v3584, %v3592
    %v3597 = vmul.f32 %v3585, %v3592
    %v3598 = vmul.f32 %v3586, %v3592
    %v3599 = vmul.f32 %v3587, %v3592
    %v3600 = vmul.f32 %v3588, %v3592
    %v3601 = vlaneseq
    %v3602 = vshrl.u32 %v3601, 7
    %v3603 = vsub.s32 1, %v3602
    %v3604 = vrot.slane %v3484, %v3603
    %v3605 = vadd.f32 %v3593, %v3604
    %v3606 = vadd.f32 %v3594, %v3604
    %v3607 = vadd.f32 %v3595, %v3604
    %v3608 = vadd.f32 %v3596, %v3604
    %v3609 = vadd.f32 %v3597, %v3604
    %v3610 = vadd.f32 %v3598, %v3604
    %v3611 = vadd.f32 %v3599, %v3604
    %v3612 = vadd.f32 %v3600, %v3604
    %v3613 = vpack.c.bf16 %v3606, %v3605
    %v3614 = vpack.c.bf16 %v3608, %v3607
    %v3615 = vpack.c.bf16 %v3610, %v3609
    %v3616 = vpack.c.bf16 %v3612, %v3611
    %v3617 = vlaneseq
    %v3618 = vshrl.u32 %v3617, 7
    %v3619 = vsub.s32 2, %v3618
    %v3620 = vrot.slane %v3484, %v3619
    %v3621 = vadd.f32 %v3476, %v3620
    %v3622 = vadd.f32 %v3477, %v3620
    %v3623 = vadd.f32 %v3478, %v3620
    %v3624 = vadd.f32 %v3479, %v3620
    %v3625 = vadd.f32 %v3480, %v3620
    %v3626 = vadd.f32 %v3481, %v3620
    %v3627 = vadd.f32 %v3482, %v3620
    %v3628 = vadd.f32 %v3483, %v3620
    %v3629 = vld [vmem:[%s2 + $0x280] sm:$0xf]
    %v3630 = vld [vmem:[%s2 + $0x2a8] sm:$0xf]
    %v3631 = vld [vmem:[%s2 + $0x2d0] sm:$0xf]
    %v3632 = vld [vmem:[%s2 + $0x2f8] sm:$0xf]
    %v3633 = vld [vmem:[%s2 + $0x320] sm:$0xf]
    %v3634 = vld [vmem:[%s2 + $0x348] sm:$0xf]
    %v3635 = vld [vmem:[%s2 + $0x370] sm:$0xf]
    %v3636 = vld [vmem:[%s2 + $0x398] sm:$0xf]
    %v3637 = vld [vmem:[%s2 + $0x3c0] sm:$0xf]
    %v3638 = vld [vmem:[%s2 + $0x3e8] sm:$0xf]
    %v3639 = vld [vmem:[%s2 + $0x410] sm:$0xf]
    %v3640 = vld [vmem:[%s2 + $0x438] sm:$0xf]
    %v3641 = vld [vmem:[%s2 + $0x460] sm:$0xf]
    %v3642 = vld [vmem:[%s2 + $0x488] sm:$0xf]
    %v3643 = vld [vmem:[%s2 + $0x4b0] sm:$0xf]
    %v3644 = vld [vmem:[%s2 + $0x4d8] sm:$0xf]
    %v3645 = vld [vmem:[%s2 + $0x290] sm:$0xf]
    %v3646 = vld [vmem:[%s2 + $0x2b8] sm:$0xf]
    %v3647 = vld [vmem:[%s2 + $0x2e0] sm:$0xf]
    %v3648 = vld [vmem:[%s2 + $0x308] sm:$0xf]
    %v3649 = vld [vmem:[%s2 + $0x330] sm:$0xf]
    %v3650 = vld [vmem:[%s2 + $0x358] sm:$0xf]
    %v3651 = vld [vmem:[%s2 + $0x380] sm:$0xf]
    %v3652 = vld [vmem:[%s2 + $0x3a8] sm:$0xf]
    %v3653 = vld [vmem:[%s2 + $0x3d0] sm:$0xf]
    %v3654 = vld [vmem:[%s2 + $0x3f8] sm:$0xf]
    %v3655 = vld [vmem:[%s2 + $0x420] sm:$0xf]
    %v3656 = vld [vmem:[%s2 + $0x448] sm:$0xf]
    %v3657 = vld [vmem:[%s2 + $0x470] sm:$0xf]
    %v3658 = vld [vmem:[%s2 + $0x498] sm:$0xf]
    %v3659 = vld [vmem:[%s2 + $0x4c0] sm:$0xf]
    %v3660 = vld [vmem:[%s2 + $0x4e8] sm:$0xf]
    %v3677 = vunpack.c.l.b16 %v3629
    %v3678 = vunpack.c.l.b16 %v3630
    %v3679 = vunpack.c.l.b16 %v3631
    %v3680 = vunpack.c.l.b16 %v3632
    %v3681 = vunpack.c.l.b16 %v3633
    %v3682 = vunpack.c.l.b16 %v3634
    %v3683 = vunpack.c.l.b16 %v3635
    %v3684 = vunpack.c.l.b16 %v3636
    %v3685 = vunpack.c.l.b16 %v3637
    %v3686 = vunpack.c.l.b16 %v3638
    %v3687 = vunpack.c.l.b16 %v3639
    %v3688 = vunpack.c.l.b16 %v3640
    %v3689 = vunpack.c.l.b16 %v3641
    %v3690 = vunpack.c.l.b16 %v3642
    %v3691 = vunpack.c.l.b16 %v3643
    %v3692 = vunpack.c.l.b16 %v3644
    %v3693 = vpack.c.b16 %v3678, %v3677
    %v3694 = vpack.c.b16 %v3680, %v3679
    %v3695 = vpack.c.b16 %v3682, %v3681
    %v3696 = vpack.c.b16 %v3684, %v3683
    %v3697 = vpack.c.b16 %v3686, %v3685
    %v3698 = vpack.c.b16 %v3688, %v3687
    %v3699 = vpack.c.b16 %v3690, %v3689
    %v3700 = vpack.c.b16 %v3692, %v3691
    %3709 = vmatprep.subr.bf16.mxu0 0
    %3710 = vmatpush1.bf16.msra.mxu0 %v3693
    %3711 = vmatprep.subr.bf16.mxu0 0
    %3712 = vmatpush1.bf16.msra.mxu0 %v3694
    %3713 = vmatprep.subr.bf16.mxu0 0
    %3714 = vmatpush1.bf16.msra.mxu0 %v3695
    %3715 = vmatprep.subr.bf16.mxu0 0
    %3716 = vmatpush1.bf16.msra.mxu0 %v3696
    %3717 = vmatprep.subr.bf16.mxu0 0
    %3718 = vmatpush1.bf16.msra.mxu0 %v3697
    %3719 = vmatprep.subr.bf16.mxu0 0
    %3720 = vmatpush1.bf16.msra.mxu0 %v3698
    %3721 = vmatprep.subr.bf16.mxu0 0
    %3722 = vmatpush1.bf16.msra.mxu0 %v3699
    %3723 = vmatprep.subr.bf16.mxu0 0
    %3724 = vmatpush1.bf16.msra.mxu0 %v3700
    %3725 = vmatprep.subr.bf16.mxu0 0
    %3726 = vmatpush1.bf16.msra.mxu0 0
    %3727 = vmatprep.subr.bf16.mxu0 0
    %3728 = vmatpush1.bf16.msra.mxu0 0
    %3729 = vmatprep.subr.bf16.mxu0 0
    %3730 = vmatpush1.bf16.msra.mxu0 0
    %3731 = vmatprep.subr.bf16.mxu0 0
    %3732 = vmatpush1.bf16.msra.mxu0 0
    %3733 = vmatprep.subr.bf16.mxu0 0
    %3734 = vmatpush1.bf16.msra.mxu0 0
    %3735 = vmatprep.subr.bf16.mxu0 0
    %3736 = vmatpush1.bf16.msra.mxu0 0
    %3737 = vmatprep.subr.bf16.mxu0 0
    %3738 = vmatpush1.bf16.msra.mxu0 0
    %3739 = vmatprep.subr.bf16.mxu0 0
    %3740 = vmatpush1.bf16.msra.mxu0 0
    %3741 = vmatprep.mubr.bf16.mxu0 0
    %3742 = vmatmul.mubr.bf16.gmra.mrb[0].mxu0 %v3613
    %v3743 = vpop.f32.mrb[0].mxu0
    %v3744 = vadd.f32 0.0, %v3743
    %v3745 = vpop.f32.mrb[0].mxu0
    %v3746 = vpop.f32.mrb[0].mxu0
    %v3747 = vadd.f32 0.0, %v3746
    %v3748 = vpop.f32.mrb[0].mxu0
    %3749 = vmatprep.mubr.bf16.mxu0 0
    %3750 = vmatmul.mubr.bf16.gmra.mrb[0].mxu0 %v3614
    %v3751 = vpop.f32.mrb[0].mxu0
    %v3752 = vadd.f32 0.0, %v3751
    %v3753 = vpop.f32.mrb[0].mxu0
    %v3754 = vpop.f32.mrb[0].mxu0
    %v3755 = vadd.f32 0.0, %v3754
    %v3756 = vpop.f32.mrb[0].mxu0
    %3757 = vmatprep.mubr.bf16.mxu0 0
    %3758 = vmatmul.mubr.bf16.gmra.mrb[0].mxu0 %v3615
    %v3759 = vpop.f32.mrb[0].mxu0
    %v3760 = vadd.f32 0.0, %v3759
    %v3761 = vpop.f32.mrb[0].mxu0
    %v3762 = vpop.f32.mrb[0].mxu0
    %v3763 = vadd.f32 0.0, %v3762
    %v3764 = vpop.f32.mrb[0].mxu0
    %3765 = vmatprep.mubr.bf16.mxu0 0
    %3766 = vmatmul.mubr.bf16.gmra.mrb[0].mxu0 %v3616
    %v3767 = vpop.f32.mrb[0].mxu0
    %v3768 = vadd.f32 0.0, %v3767
    %v3769 = vpop.f32.mrb[0].mxu0
    %v3770 = vpop.f32.mrb[0].mxu0
    %v3771 = vadd.f32 0.0, %v3770
    %v3772 = vpop.f32.mrb[0].mxu0
    %3773 = vdwg.mxu0
    %v3774 = vpack.c.bf16 %v3747, %v3744
    %v3775 = vpack.c.bf16 %v3755, %v3752
    %v3776 = vpack.c.bf16 %v3763, %v3760
    %v3777 = vpack.c.bf16 %v3771, %v3768
    %3778 = vmatprep.subr.bf16.mxu0 0
    %3779 = vmatpush1.bf16.xpose.msra.mxu0 %v3613
    %3780 = vmatprep.subr.bf16.mxu0 0
    %3781 = vmatpush1.bf16.xpose.msra.mxu0 %v3614
    %3782 = vmatprep.subr.bf16.mxu0 0
    %3783 = vmatpush1.bf16.xpose.msra.mxu0 %v3615
    %3784 = vmatprep.subr.bf16.mxu0 0
    %3785 = vmatpush1.bf16.xpose.msra.mxu0 %v3616
    %3786 = vmatprep.subr.bf16.mxu0 0
    %3787 = vmatpush1.bf16.xpose.msra.mxu0 0
    %3788 = vmatprep.subr.bf16.mxu0 0
    %3789 = vmatpush1.bf16.xpose.msra.mxu0 0
    %3790 = vmatprep.subr.bf16.mxu0 0
    %3791 = vmatpush1.bf16.xpose.msra.mxu0 0
    %3792 = vmatprep.subr.bf16.mxu0 0
    %3793 = vmatpush1.bf16.xpose.msra.mxu0 0
    %3794 = vmatprep.subr.bf16.mxu0 0
    %3795 = vmatpush1.bf16.xpose.msra.mxu0 0
    %3796 = vmatprep.subr.bf16.mxu0 0
    %3797 = vmatpush1.bf16.xpose.msra.mxu0 0
    %3798 = vmatprep.subr.bf16.mxu0 0
    %3799 = vmatpush1.bf16.xpose.msra.mxu0 0
    %3800 = vmatprep.subr.bf16.mxu0 0
    %3801 = vmatpush1.bf16.xpose.msra.mxu0 0
    %3802 = vmatprep.subr.bf16.mxu0 0
    %3803 = vmatpush1.bf16.xpose.msra.mxu0 0
    %3804 = vmatprep.subr.bf16.mxu0 0
    %3805 = vmatpush1.bf16.xpose.msra.mxu0 0
    %3806 = vmatprep.subr.bf16.mxu0 0
    %3807 = vmatpush1.bf16.xpose.msra.mxu0 0
    %3808 = vmatprep.subr.bf16.mxu0 0
    %3809 = vmatpush1.bf16.xpose.msra.mxu0 0
    %3810 = vmatprep.mubr.bf16.mxu0 0
    %3811 = vmatmul.mubr.bf16.gmra.mrb[0].mxu0 %v3774
    %v3812 = vpop.f32.mrb[0].mxu0
    %v3813 = vadd.f32 0.0, %v3812
    %v3814 = vpop.f32.mrb[0].mxu0
    %v3815 = vpop.f32.mrb[0].mxu0
    %v3816 = vadd.f32 0.0, %v3815
    %v3817 = vpop.f32.mrb[0].mxu0
    %3818 = vmatprep.mubr.bf16.mxu0 0
    %3819 = vmatmul.mubr.bf16.gmra.mrb[0].mxu0 %v3775
    %v3820 = vpop.f32.mrb[0].mxu0
    %v3821 = vadd.f32 0.0, %v3820
    %v3822 = vpop.f32.mrb[0].mxu0
    %v3823 = vpop.f32.mrb[0].mxu0
    %v3824 = vadd.f32 0.0, %v3823
    %v3825 = vpop.f32.mrb[0].mxu0
    %3826 = vmatprep.mubr.bf16.mxu0 0
    %3827 = vmatmul.mubr.bf16.gmra.mrb[0].mxu0 %v3776
    %v3828 = vpop.f32.mrb[0].mxu0
    %v3829 = vadd.f32 0.0, %v3828
    %v3830 = vpop.f32.mrb[0].mxu0
    %v3831 = vpop.f32.mrb[0].mxu0
    %v3832 = vadd.f32 0.0, %v3831
    %v3833 = vpop.f32.mrb[0].mxu0
    %3834 = vmatprep.mubr.bf16.mxu0 0
    %3835 = vmatmul.mubr.bf16.gmra.mrb[0].mxu0 %v3777
    %v3836 = vpop.f32.mrb[0].mxu0
    %v3837 = vadd.f32 0.0, %v3836
    %v3838 = vpop.f32.mrb[0].mxu0
    %v3839 = vpop.f32.mrb[0].mxu0
    %v3840 = vadd.f32 0.0, %v3839
    %v3841 = vpop.f32.mrb[0].mxu0
    %3842 = vdwg.mxu0
    %v3843 = vsel %vm49, %v3813, -1e+09
    %v3844 = vsel %vm50, %v3816, -1e+09
    %v3845 = vsel %vm51, %v3821, -1e+09
    %v3846 = vsel %vm52, %v3824, -1e+09
    %v3847 = vsel %vm53, %v3829, -1e+09
    %v3848 = vsel %vm54, %v3832, -1e+09
    %v3849 = vsel %vm55, %v3837, -1e+09
    %v3850 = vsel %vm56, %v3840, -1e+09
    %v3851 = vsel %vm1151, %v3843, -inf
    %3852 = vmax.xlane.f32.xlu0 %v3851
    %v3853 = vpop.xlane.xlu0 %3852
    %v3854 = vsel %vm1151, %v3844, -inf
    %3855 = vmax.xlane.f32.xlu0 %v3854
    %v3856 = vpop.xlane.xlu0 %3855
    %v3857 = vsel %vm1151, %v3845, -inf
    %3858 = vmax.xlane.f32.xlu0 %v3857
    %v3859 = vpop.xlane.xlu0 %3858
    %v3860 = vsel %vm1151, %v3846, -inf
    %3861 = vmax.xlane.f32.xlu0 %v3860
    %v3862 = vpop.xlane.xlu0 %3861
    %v3863 = vsel %vm1151, %v3847, -inf
    %3864 = vmax.xlane.f32.xlu0 %v3863
    %v3865 = vpop.xlane.xlu0 %3864
    %v3866 = vsel %vm1151, %v3848, -inf
    %3867 = vmax.xlane.f32.xlu0 %v3866
    %v3868 = vpop.xlane.xlu0 %3867
    %v3869 = vsel %vm1151, %v3849, -inf
    %3870 = vmax.xlane.f32.xlu0 %v3869
    %v3871 = vpop.xlane.xlu0 %3870
    %v3872 = vsel %vm1151, %v3850, -inf
    %3873 = vmax.xlane.f32.xlu0 %v3872
    %v3874 = vpop.xlane.xlu0 %3873
    %v3875 = vsub.f32 %v3843, %v3853
    %v3876 = vsub.f32 %v3844, %v3856
    %v3877 = vsub.f32 %v3845, %v3859
    %v3878 = vsub.f32 %v3846, %v3862
    %v3879 = vsub.f32 %v3847, %v3865
    %v3880 = vsub.f32 %v3848, %v3868
    %v3881 = vsub.f32 %v3849, %v3871
    %v3882 = vsub.f32 %v3850, %v3874
    %v3883 = vmul.f32 %v3875, 1.442695
    %v3884 = vpow.pop %v3883
    %v3885 = vmul.f32 %v3876, 1.442695
    %v3886 = vpow.pop %v3885
    %v3887 = vmul.f32 %v3877, 1.442695
    %v3888 = vpow.pop %v3887
    %v3889 = vmul.f32 %v3878, 1.442695
    %v3890 = vpow.pop %v3889
    %v3891 = vmul.f32 %v3879, 1.442695
    %v3892 = vpow.pop %v3891
    %v3893 = vmul.f32 %v3880, 1.442695
    %v3894 = vpow.pop %v3893
    %v3895 = vmul.f32 %v3881, 1.442695
    %v3896 = vpow.pop %v3895
    %v3897 = vmul.f32 %v3882, 1.442695
    %v3898 = vpow.pop %v3897
    %v3899 = vsel %vm1151, %v3884, 0.0
    %3900 = vadd.xlane.f32.xlu0 %v3899
    %v3901 = vpop.xlane.xlu0 %3900
    %v3902 = vsel %vm1151, %v3886, 0.0
    %3903 = vadd.xlane.f32.xlu0 %v3902
    %v3904 = vpop.xlane.xlu0 %3903
    %v3905 = vsel %vm1151, %v3888, 0.0
    %3906 = vadd.xlane.f32.xlu0 %v3905
    %v3907 = vpop.xlane.xlu0 %3906
    %v3908 = vsel %vm1151, %v3890, 0.0
    %3909 = vadd.xlane.f32.xlu0 %v3908
    %v3910 = vpop.xlane.xlu0 %3909
    %v3911 = vsel %vm1151, %v3892, 0.0
    %3912 = vadd.xlane.f32.xlu0 %v3911
    %v3913 = vpop.xlane.xlu0 %3912
    %v3914 = vsel %vm1151, %v3894, 0.0
    %3915 = vadd.xlane.f32.xlu0 %v3914
    %v3916 = vpop.xlane.xlu0 %3915
    %v3917 = vsel %vm1151, %v3896, 0.0
    %3918 = vadd.xlane.f32.xlu0 %v3917
    %v3919 = vpop.xlane.xlu0 %3918
    %v3920 = vsel %vm1151, %v3898, 0.0
    %3921 = vadd.xlane.f32.xlu0 %v3920
    %v3922 = vpop.xlane.xlu0 %3921
    %v3923 = vrcp.pop %v3901
    %v3924 = vrcp.pop %v3904
    %v3925 = vrcp.pop %v3907
    %v3926 = vrcp.pop %v3910
    %v3927 = vrcp.pop %v3913
    %v3928 = vrcp.pop %v3916
    %v3929 = vrcp.pop %v3919
    %v3930 = vrcp.pop %v3922
    %v3931 = vmul.f32 %v3884, %v3923
    %v3932 = vmul.f32 %v3886, %v3924
    %v3933 = vmul.f32 %v3888, %v3925
    %v3934 = vmul.f32 %v3890, %v3926
    %v3935 = vmul.f32 %v3892, %v3927
    %v3936 = vmul.f32 %v3894, %v3928
    %v3937 = vmul.f32 %v3896, %v3929
    %v3938 = vmul.f32 %v3898, %v3930
    %v3955 = vunpack.c.l.b16 %v3645
    %v3956 = vunpack.c.l.b16 %v3646
    %v3957 = vunpack.c.l.b16 %v3647
    %v3958 = vunpack.c.l.b16 %v3648
    %v3959 = vunpack.c.l.b16 %v3649
    %v3960 = vunpack.c.l.b16 %v3650
    %v3961 = vunpack.c.l.b16 %v3651
    %v3962 = vunpack.c.l.b16 %v3652
    %v3963 = vunpack.c.l.b16 %v3653
    %v3964 = vunpack.c.l.b16 %v3654
    %v3965 = vunpack.c.l.b16 %v3655
    %v3966 = vunpack.c.l.b16 %v3656
    %v3967 = vunpack.c.l.b16 %v3657
    %v3968 = vunpack.c.l.b16 %v3658
    %v3969 = vunpack.c.l.b16 %v3659
    %v3970 = vunpack.c.l.b16 %v3660
    %v3971 = vpack.c.b16 %v3956, %v3955
    %v3972 = vpack.c.b16 %v3958, %v3957
    %v3973 = vpack.c.b16 %v3960, %v3959
    %v3974 = vpack.c.b16 %v3962, %v3961
    %v3975 = vpack.c.b16 %v3964, %v3963
    %v3976 = vpack.c.b16 %v3966, %v3965
    %v3977 = vpack.c.b16 %v3968, %v3967
    %v3978 = vpack.c.b16 %v3970, %v3969
    %3987 = vmatprep.subr.bf16.mxu0 0
    %3988 = vmatpush1.bf16.msra.mxu0 %v3971
    %3989 = vmatprep.subr.bf16.mxu0 0
    %3990 = vmatpush1.bf16.msra.mxu0 %v3972
    %3991 = vmatprep.subr.bf16.mxu0 0
    %3992 = vmatpush1.bf16.msra.mxu0 %v3973
    %3993 = vmatprep.subr.bf16.mxu0 0
    %3994 = vmatpush1.bf16.msra.mxu0 %v3974
    %3995 = vmatprep.subr.bf16.mxu0 0
    %3996 = vmatpush1.bf16.msra.mxu0 %v3975
    %3997 = vmatprep.subr.bf16.mxu0 0
    %3998 = vmatpush1.bf16.msra.mxu0 %v3976
    %3999 = vmatprep.subr.bf16.mxu0 0
    %4000 = vmatpush1.bf16.msra.mxu0 %v3977
    %4001 = vmatprep.subr.bf16.mxu0 0
    %4002 = vmatpush1.bf16.msra.mxu0 %v3978
    %4003 = vmatprep.subr.bf16.mxu0 0
    %4004 = vmatpush1.bf16.msra.mxu0 0
    %4005 = vmatprep.subr.bf16.mxu0 0
    %4006 = vmatpush1.bf16.msra.mxu0 0
    %4007 = vmatprep.subr.bf16.mxu0 0
    %4008 = vmatpush1.bf16.msra.mxu0 0
    %4009 = vmatprep.subr.bf16.mxu0 0
    %4010 = vmatpush1.bf16.msra.mxu0 0
    %4011 = vmatprep.subr.bf16.mxu0 0
    %4012 = vmatpush1.bf16.msra.mxu0 0
    %4013 = vmatprep.subr.bf16.mxu0 0
    %4014 = vmatpush1.bf16.msra.mxu0 0
    %4015 = vmatprep.subr.bf16.mxu0 0
    %4016 = vmatpush1.bf16.msra.mxu0 0
    %4017 = vmatprep.subr.bf16.mxu0 0
    %4018 = vmatpush1.bf16.msra.mxu0 0
    %4019 = vmatprep.mubr.bf16.mxu0 0
    %4020 = vmatmul.mubr.bf16.gmra.mrb[0].mxu0 %v3613
    %v4021 = vpop.f32.mrb[0].mxu0
    %v4022 = vadd.f32 0.0, %v4021
    %v4023 = vpop.f32.mrb[0].mxu0
    %v4024 = vpop.f32.mrb[0].mxu0
    %v4025 = vadd.f32 0.0, %v4024
    %v4026 = vpop.f32.mrb[0].mxu0
    %4027 = vmatprep.mubr.bf16.mxu0 0
    %4028 = vmatmul.mubr.bf16.gmra.mrb[0].mxu0 %v3614
    %v4029 = vpop.f32.mrb[0].mxu0
    %v4030 = vadd.f32 0.0, %v4029
    %v4031 = vpop.f32.mrb[0].mxu0
    %v4032 = vpop.f32.mrb[0].mxu0
    %v4033 = vadd.f32 0.0, %v4032
    %v4034 = vpop.f32.mrb[0].mxu0
    %4035 = vmatprep.mubr.bf16.mxu0 0
    %4036 = vmatmul.mubr.bf16.gmra.mrb[0].mxu0 %v3615
    %v4037 = vpop.f32.mrb[0].mxu0
    %v4038 = vadd.f32 0.0, %v4037
    %v4039 = vpop.f32.mrb[0].mxu0
    %v4040 = vpop.f32.mrb[0].mxu0
    %v4041 = vadd.f32 0.0, %v4040
    %v4042 = vpop.f32.mrb[0].mxu0
    %4043 = vmatprep.mubr.bf16.mxu0 0
    %4044 = vmatmul.mubr.bf16.gmra.mrb[0].mxu0 %v3616
    %v4045 = vpop.f32.mrb[0].mxu0
    %v4046 = vadd.f32 0.0, %v4045
    %v4047 = vpop.f32.mrb[0].mxu0
    %v4048 = vpop.f32.mrb[0].mxu0
    %v4049 = vadd.f32 0.0, %v4048
    %v4050 = vpop.f32.mrb[0].mxu0
    %4051 = vdwg.mxu0
    %v4052 = vpack.c.bf16 %v3932, %v3931
    %v4053 = vpack.c.bf16 %v3934, %v3933
    %v4054 = vpack.c.bf16 %v3936, %v3935
    %v4055 = vpack.c.bf16 %v3938, %v3937
    %v4056 = vpack.c.bf16 %v4025, %v4022
    %v4057 = vpack.c.bf16 %v4033, %v4030
    %v4058 = vpack.c.bf16 %v4041, %v4038
    %v4059 = vpack.c.bf16 %v4049, %v4046
    %v4061 = vsel %vm1151, %v4052, 0
    %v4064 = vsel %vm1151, %v4053, 0
    %v4067 = vsel %vm1151, %v4054, 0
    %v4070 = vsel %vm1151, %v4055, 0
    %4072 = vmatprep.subr.bf16.mxu0 0
    %4073 = vmatpush1.bf16.msra.mxu0 %v4056
    %4074 = vmatprep.subr.bf16.mxu0 0
    %4075 = vmatpush1.bf16.msra.mxu0 %v4057
    %4076 = vmatprep.subr.bf16.mxu0 0
    %4077 = vmatpush1.bf16.msra.mxu0 %v4058
    %4078 = vmatprep.subr.bf16.mxu0 0
    %4079 = vmatpush1.bf16.msra.mxu0 %v4059
    %4080 = vmatprep.subr.bf16.mxu0 0
    %4081 = vmatpush1.bf16.msra.mxu0 0
    %4082 = vmatprep.subr.bf16.mxu0 0
    %4083 = vmatpush1.bf16.msra.mxu0 0
    %4084 = vmatprep.subr.bf16.mxu0 0
    %4085 = vmatpush1.bf16.msra.mxu0 0
    %4086 = vmatprep.subr.bf16.mxu0 0
    %4087 = vmatpush1.bf16.msra.mxu0 0
    %4088 = vmatprep.subr.bf16.mxu0 0
    %4089 = vmatpush1.bf16.msra.mxu0 0
    %4090 = vmatprep.subr.bf16.mxu0 0
    %4091 = vmatpush1.bf16.msra.mxu0 0
    %4092 = vmatprep.subr.bf16.mxu0 0
    %4093 = vmatpush1.bf16.msra.mxu0 0
    %4094 = vmatprep.subr.bf16.mxu0 0
    %4095 = vmatpush1.bf16.msra.mxu0 0
    %4096 = vmatprep.subr.bf16.mxu0 0
    %4097 = vmatpush1.bf16.msra.mxu0 0
    %4098 = vmatprep.subr.bf16.mxu0 0
    %4099 = vmatpush1.bf16.msra.mxu0 0
    %4100 = vmatprep.subr.bf16.mxu0 0
    %4101 = vmatpush1.bf16.msra.mxu0 0
    %4102 = vmatprep.subr.bf16.mxu0 0
    %4103 = vmatpush1.bf16.msra.mxu0 0
    %4104 = vmatprep.mubr.bf16.mxu0 0
    %4105 = vmatmul.mubr.bf16.gmra.mrb[0].mxu0 %v4061
    %v4106 = vpop.f32.mrb[0].mxu0
    %v4107 = vadd.f32 0.0, %v4106
    %v4108 = vpop.f32.mrb[0].mxu0
    %v4109 = vpop.f32.mrb[0].mxu0
    %v4110 = vadd.f32 0.0, %v4109
    %v4111 = vpop.f32.mrb[0].mxu0
    %4112 = vmatprep.mubr.bf16.mxu0 0
    %4113 = vmatmul.mubr.bf16.gmra.mrb[0].mxu0 %v4064
    %v4114 = vpop.f32.mrb[0].mxu0
    %v4115 = vadd.f32 0.0, %v4114
    %v4116 = vpop.f32.mrb[0].mxu0
    %v4117 = vpop.f32.mrb[0].mxu0
    %v4118 = vadd.f32 0.0, %v4117
    %v4119 = vpop.f32.mrb[0].mxu0
    %4120 = vmatprep.mubr.bf16.mxu0 0
    %4121 = vmatmul.mubr.bf16.gmra.mrb[0].mxu0 %v4067
    %v4122 = vpop.f32.mrb[0].mxu0
    %v4123 = vadd.f32 0.0, %v4122
    %v4124 = vpop.f32.mrb[0].mxu0
    %v4125 = vpop.f32.mrb[0].mxu0
    %v4126 = vadd.f32 0.0, %v4125
    %v4127 = vpop.f32.mrb[0].mxu0
    %4128 = vmatprep.mubr.bf16.mxu0 0
    %4129 = vmatmul.mubr.bf16.gmra.mrb[0].mxu0 %v4070
    %v4130 = vpop.f32.mrb[0].mxu0
    %v4131 = vadd.f32 0.0, %v4130
    %v4132 = vpop.f32.mrb[0].mxu0
    %v4133 = vpop.f32.mrb[0].mxu0
    %v4134 = vadd.f32 0.0, %v4133
    %v4135 = vpop.f32.mrb[0].mxu0
    %4136 = vdwg.mxu0
    %v4137 = vadd.f32 %v3621, %v4107
    %v4138 = vadd.f32 %v3622, %v4110
    %v4139 = vadd.f32 %v3623, %v4115
    %v4140 = vadd.f32 %v3624, %v4118
    %v4141 = vadd.f32 %v3625, %v4123
    %v4142 = vadd.f32 %v3626, %v4126
    %v4143 = vadd.f32 %v3627, %v4131
    %v4144 = vadd.f32 %v3628, %v4134
    %v4145 = vld [vmem:[%s2 + $0x284] sm:$0xf]
    %v4146 = vld [vmem:[%s2 + $0x2ac] sm:$0xf]
    %v4147 = vld [vmem:[%s2 + $0x2d4] sm:$0xf]
    %v4148 = vld [vmem:[%s2 + $0x2fc] sm:$0xf]
    %v4149 = vld [vmem:[%s2 + $0x324] sm:$0xf]
    %v4150 = vld [vmem:[%s2 + $0x34c] sm:$0xf]
    %v4151 = vld [vmem:[%s2 + $0x374] sm:$0xf]
    %v4152 = vld [vmem:[%s2 + $0x39c] sm:$0xf]
    %v4153 = vld [vmem:[%s2 + $0x3c4] sm:$0xf]
    %v4154 = vld [vmem:[%s2 + $0x3ec] sm:$0xf]
    %v4155 = vld [vmem:[%s2 + $0x414] sm:$0xf]
    %v4156 = vld [vmem:[%s2 + $0x43c] sm:$0xf]
    %v4157 = vld [vmem:[%s2 + $0x464] sm:$0xf]
    %v4158 = vld [vmem:[%s2 + $0x48c] sm:$0xf]
    %v4159 = vld [vmem:[%s2 + $0x4b4] sm:$0xf]
    %v4160 = vld [vmem:[%s2 + $0x4dc] sm:$0xf]
    %v4161 = vld [vmem:[%s2 + $0x294] sm:$0xf]
    %v4162 = vld [vmem:[%s2 + $0x2bc] sm:$0xf]
    %v4163 = vld [vmem:[%s2 + $0x2e4] sm:$0xf]
    %v4164 = vld [vmem:[%s2 + $0x30c] sm:$0xf]
    %v4165 = vld [vmem:[%s2 + $0x334] sm:$0xf]
    %v4166 = vld [vmem:[%s2 + $0x35c] sm:$0xf]
    %v4167 = vld [vmem:[%s2 + $0x384] sm:$0xf]
    %v4168 = vld [vmem:[%s2 + $0x3ac] sm:$0xf]
    %v4169 = vld [vmem:[%s2 + $0x3d4] sm:$0xf]
    %v4170 = vld [vmem:[%s2 + $0x3fc] sm:$0xf]
    %v4171 = vld [vmem:[%s2 + $0x424] sm:$0xf]
    %v4172 = vld [vmem:[%s2 + $0x44c] sm:$0xf]
    %v4173 = vld [vmem:[%s2 + $0x474] sm:$0xf]
    %v4174 = vld [vmem:[%s2 + $0x49c] sm:$0xf]
    %v4175 = vld [vmem:[%s2 + $0x4c4] sm:$0xf]
    %v4176 = vld [vmem:[%s2 + $0x4ec] sm:$0xf]
    %v4193 = vunpack.c.l.b16 %v4145
    %v4194 = vunpack.c.l.b16 %v4146
    %v4195 = vunpack.c.l.b16 %v4147
    %v4196 = vunpack.c.l.b16 %v4148
    %v4197 = vunpack.c.l.b16 %v4149
    %v4198 = vunpack.c.l.b16 %v4150
    %v4199 = vunpack.c.l.b16 %v4151
    %v4200 = vunpack.c.l.b16 %v4152
    %v4201 = vunpack.c.l.b16 %v4153
    %v4202 = vunpack.c.l.b16 %v4154
    %v4203 = vunpack.c.l.b16 %v4155
    %v4204 = vunpack.c.l.b16 %v4156
    %v4205 = vunpack.c.l.b16 %v4157
    %v4206 = vunpack.c.l.b16 %v4158
    %v4207 = vunpack.c.l.b16 %v4159
    %v4208 = vunpack.c.l.b16 %v4160
    %v4209 = vpack.c.b16 %v4194, %v4193
    %v4210 = vpack.c.b16 %v4196, %v4195
    %v4211 = vpack.c.b16 %v4198, %v4197
    %v4212 = vpack.c.b16 %v4200, %v4199
    %v4213 = vpack.c.b16 %v4202, %v4201
    %v4214 = vpack.c.b16 %v4204, %v4203
    %v4215 = vpack.c.b16 %v4206, %v4205
    %v4216 = vpack.c.b16 %v4208, %v4207
    %4225 = vmatprep.subr.bf16.mxu0 0
    %4226 = vmatpush1.bf16.msra.mxu0 %v4209
    %4227 = vmatprep.subr.bf16.mxu0 0
    %4228 = vmatpush1.bf16.msra.mxu0 %v4210
    %4229 = vmatprep.subr.bf16.mxu0 0
    %4230 = vmatpush1.bf16.msra.mxu0 %v4211
    %4231 = vmatprep.subr.bf16.mxu0 0
    %4232 = vmatpush1.bf16.msra.mxu0 %v4212
    %4233 = vmatprep.subr.bf16.mxu0 0
    %4234 = vmatpush1.bf16.msra.mxu0 %v4213
    %4235 = vmatprep.subr.bf16.mxu0 0
    %4236 = vmatpush1.bf16.msra.mxu0 %v4214
    %4237 = vmatprep.subr.bf16.mxu0 0
    %4238 = vmatpush1.bf16.msra.mxu0 %v4215
    %4239 = vmatprep.subr.bf16.mxu0 0
    %4240 = vmatpush1.bf16.msra.mxu0 %v4216
    %4241 = vmatprep.subr.bf16.mxu0 0
    %4242 = vmatpush1.bf16.msra.mxu0 0
    %4243 = vmatprep.subr.bf16.mxu0 0
    %4244 = vmatpush1.bf16.msra.mxu0 0
    %4245 = vmatprep.subr.bf16.mxu0 0
    %4246 = vmatpush1.bf16.msra.mxu0 0
    %4247 = vmatprep.subr.bf16.mxu0 0
    %4248 = vmatpush1.bf16.msra.mxu0 0
    %4249 = vmatprep.subr.bf16.mxu0 0
    %4250 = vmatpush1.bf16.msra.mxu0 0
    %4251 = vmatprep.subr.bf16.mxu0 0
    %4252 = vmatpush1.bf16.msra.mxu0 0
    %4253 = vmatprep.subr.bf16.mxu0 0
    %4254 = vmatpush1.bf16.msra.mxu0 0
    %4255 = vmatprep.subr.bf16.mxu0 0
    %4256 = vmatpush1.bf16.msra.mxu0 0
    %4257 = vmatprep.mubr.bf16.mxu0 0
    %4258 = vmatmul.mubr.bf16.gmra.mrb[0].mxu0 %v3613
    %v4259 = vpop.f32.mrb[0].mxu0
    %v4260 = vadd.f32 0.0, %v4259
    %v4261 = vpop.f32.mrb[0].mxu0
    %v4262 = vpop.f32.mrb[0].mxu0
    %v4263 = vadd.f32 0.0, %v4262
    %v4264 = vpop.f32.mrb[0].mxu0
    %4265 = vmatprep.mubr.bf16.mxu0 0
    %4266 = vmatmul.mubr.bf16.gmra.mrb[0].mxu0 %v3614
    %v4267 = vpop.f32.mrb[0].mxu0
    %v4268 = vadd.f32 0.0, %v4267
    %v4269 = vpop.f32.mrb[0].mxu0
    %v4270 = vpop.f32.mrb[0].mxu0
    %v4271 = vadd.f32 0.0, %v4270
    %v4272 = vpop.f32.mrb[0].mxu0
    %4273 = vmatprep.mubr.bf16.mxu0 0
    %4274 = vmatmul.mubr.bf16.gmra.mrb[0].mxu0 %v3615
    %v4275 = vpop.f32.mrb[0].mxu0
    %v4276 = vadd.f32 0.0, %v4275
    %v4277 = vpop.f32.mrb[0].mxu0
    %v4278 = vpop.f32.mrb[0].mxu0
    %v4279 = vadd.f32 0.0, %v4278
    %v4280 = vpop.f32.mrb[0].mxu0
    %4281 = vmatprep.mubr.bf16.mxu0 0
    %4282 = vmatmul.mubr.bf16.gmra.mrb[0].mxu0 %v3616
    %v4283 = vpop.f32.mrb[0].mxu0
    %v4284 = vadd.f32 0.0, %v4283
    %v4285 = vpop.f32.mrb[0].mxu0
    %v4286 = vpop.f32.mrb[0].mxu0
    %v4287 = vadd.f32 0.0, %v4286
    %v4288 = vpop.f32.mrb[0].mxu0
    %4289 = vdwg.mxu0
    %v4290 = vpack.c.bf16 %v4263, %v4260
    %v4291 = vpack.c.bf16 %v4271, %v4268
    %v4292 = vpack.c.bf16 %v4279, %v4276
    %v4293 = vpack.c.bf16 %v4287, %v4284
    %4294 = vmatprep.subr.bf16.mxu0 0
    %4295 = vmatpush1.bf16.xpose.msra.mxu0 %v3613
    %4296 = vmatprep.subr.bf16.mxu0 0
    %4297 = vmatpush1.bf16.xpose.msra.mxu0 %v3614
    %4298 = vmatprep.subr.bf16.mxu0 0
    %4299 = vmatpush1.bf16.xpose.msra.mxu0 %v3615
    %4300 = vmatprep.subr.bf16.mxu0 0
    %4301 = vmatpush1.bf16.xpose.msra.mxu0 %v3616
    %4302 = vmatprep.subr.bf16.mxu0 0
    %4303 = vmatpush1.bf16.xpose.msra.mxu0 0
    %4304 = vmatprep.subr.bf16.mxu0 0
    %4305 = vmatpush1.bf16.xpose.msra.mxu0 0
    %4306 = vmatprep.subr.bf16.mxu0 0
    %4307 = vmatpush1.bf16.xpose.msra.mxu0 0
    %4308 = vmatprep.subr.bf16.mxu0 0
    %4309 = vmatpush1.bf16.xpose.msra.mxu0 0
    %4310 = vmatprep.subr.bf16.mxu0 0
    %4311 = vmatpush1.bf16.xpose.msra.mxu0 0
    %4312 = vmatprep.subr.bf16.mxu0 0
    %4313 = vmatpush1.bf16.xpose.msra.mxu0 0
    %4314 = vmatprep.subr.bf16.mxu0 0
    %4315 = vmatpush1.bf16.xpose.msra.mxu0 0
    %4316 = vmatprep.subr.bf16.mxu0 0
    %4317 = vmatpush1.bf16.xpose.msra.mxu0 0
    %4318 = vmatprep.subr.bf16.mxu0 0
    %4319 = vmatpush1.bf16.xpose.msra.mxu0 0
    %4320 = vmatprep.subr.bf16.mxu0 0
    %4321 = vmatpush1.bf16.xpose.msra.mxu0 0
    %4322 = vmatprep.subr.bf16.mxu0 0
    %4323 = vmatpush1.bf16.xpose.msra.mxu0 0
    %4324 = vmatprep.subr.bf16.mxu0 0
    %4325 = vmatpush1.bf16.xpose.msra.mxu0 0
    %4326 = vmatprep.mubr.bf16.mxu0 0
    %4327 = vmatmul.mubr.bf16.gmra.mrb[0].mxu0 %v4290
    %v4328 = vpop.f32.mrb[0].mxu0
    %v4329 = vadd.f32 0.0, %v4328
    %v4330 = vpop.f32.mrb[0].mxu0
    %v4331 = vpop.f32.mrb[0].mxu0
    %v4332 = vadd.f32 0.0, %v4331
    %v4333 = vpop.f32.mrb[0].mxu0
    %4334 = vmatprep.mubr.bf16.mxu0 0
    %4335 = vmatmul.mubr.bf16.gmra.mrb[0].mxu0 %v4291
    %v4336 = vpop.f32.mrb[0].mxu0
    %v4337 = vadd.f32 0.0, %v4336
    %v4338 = vpop.f32.mrb[0].mxu0
    %v4339 = vpop.f32.mrb[0].mxu0
    %v4340 = vadd.f32 0.0, %v4339
    %v4341 = vpop.f32.mrb[0].mxu0
    %4342 = vmatprep.mubr.bf16.mxu0 0
    %4343 = vmatmul.mubr.bf16.gmra.mrb[0].mxu0 %v4292
    %v4344 = vpop.f32.mrb[0].mxu0
    %v4345 = vadd.f32 0.0, %v4344
    %v4346 = vpop.f32.mrb[0].mxu0
    %v4347 = vpop.f32.mrb[0].mxu0
    %v4348 = vadd.f32 0.0, %v4347
    %v4349 = vpop.f32.mrb[0].mxu0
    %4350 = vmatprep.mubr.bf16.mxu0 0
    %4351 = vmatmul.mubr.bf16.gmra.mrb[0].mxu0 %v4293
    %v4352 = vpop.f32.mrb[0].mxu0
    %v4353 = vadd.f32 0.0, %v4352
    %v4354 = vpop.f32.mrb[0].mxu0
    %v4355 = vpop.f32.mrb[0].mxu0
    %v4356 = vadd.f32 0.0, %v4355
    %v4357 = vpop.f32.mrb[0].mxu0
    %4358 = vdwg.mxu0
    %v4359 = vsel %vm49, %v4329, -1e+09
    %v4360 = vsel %vm50, %v4332, -1e+09
    %v4361 = vsel %vm51, %v4337, -1e+09
    %v4362 = vsel %vm52, %v4340, -1e+09
    %v4363 = vsel %vm53, %v4345, -1e+09
    %v4364 = vsel %vm54, %v4348, -1e+09
    %v4365 = vsel %vm55, %v4353, -1e+09
    %v4366 = vsel %vm56, %v4356, -1e+09
    %v4367 = vsel %vm1151, %v4359, -inf
    %4368 = vmax.xlane.f32.xlu0 %v4367
    %v4369 = vpop.xlane.xlu0 %4368
    %v4370 = vsel %vm1151, %v4360, -inf
    %4371 = vmax.xlane.f32.xlu0 %v4370
    %v4372 = vpop.xlane.xlu0 %4371
    %v4373 = vsel %vm1151, %v4361, -inf
    %4374 = vmax.xlane.f32.xlu0 %v4373
    %v4375 = vpop.xlane.xlu0 %4374
    %v4376 = vsel %vm1151, %v4362, -inf
    %4377 = vmax.xlane.f32.xlu0 %v4376
    %v4378 = vpop.xlane.xlu0 %4377
    %v4379 = vsel %vm1151, %v4363, -inf
    %4380 = vmax.xlane.f32.xlu0 %v4379
    %v4381 = vpop.xlane.xlu0 %4380
    %v4382 = vsel %vm1151, %v4364, -inf
    %4383 = vmax.xlane.f32.xlu0 %v4382
    %v4384 = vpop.xlane.xlu0 %4383
    %v4385 = vsel %vm1151, %v4365, -inf
    %4386 = vmax.xlane.f32.xlu0 %v4385
    %v4387 = vpop.xlane.xlu0 %4386
    %v4388 = vsel %vm1151, %v4366, -inf
    %4389 = vmax.xlane.f32.xlu0 %v4388
    %v4390 = vpop.xlane.xlu0 %4389
    %v4391 = vsub.f32 %v4359, %v4369
    %v4392 = vsub.f32 %v4360, %v4372
    %v4393 = vsub.f32 %v4361, %v4375
    %v4394 = vsub.f32 %v4362, %v4378
    %v4395 = vsub.f32 %v4363, %v4381
    %v4396 = vsub.f32 %v4364, %v4384
    %v4397 = vsub.f32 %v4365, %v4387
    %v4398 = vsub.f32 %v4366, %v4390
    %v4399 = vmul.f32 %v4391, 1.442695
    %v4400 = vpow.pop %v4399
    %v4401 = vmul.f32 %v4392, 1.442695
    %v4402 = vpow.pop %v4401
    %v4403 = vmul.f32 %v4393, 1.442695
    %v4404 = vpow.pop %v4403
    %v4405 = vmul.f32 %v4394, 1.442695
    %v4406 = vpow.pop %v4405
    %v4407 = vmul.f32 %v4395, 1.442695
    %v4408 = vpow.pop %v4407
    %v4409 = vmul.f32 %v4396, 1.442695
    %v4410 = vpow.pop %v4409
    %v4411 = vmul.f32 %v4397, 1.442695
    %v4412 = vpow.pop %v4411
    %v4413 = vmul.f32 %v4398, 1.442695
    %v4414 = vpow.pop %v4413
    %v4415 = vsel %vm1151, %v4400, 0.0
    %4416 = vadd.xlane.f32.xlu0 %v4415
    %v4417 = vpop.xlane.xlu0 %4416
    %v4418 = vsel %vm1151, %v4402, 0.0
    %4419 = vadd.xlane.f32.xlu0 %v4418
    %v4420 = vpop.xlane.xlu0 %4419
    %v4421 = vsel %vm1151, %v4404, 0.0
    %4422 = vadd.xlane.f32.xlu0 %v4421
    %v4423 = vpop.xlane.xlu0 %4422
    %v4424 = vsel %vm1151, %v4406, 0.0
    %4425 = vadd.xlane.f32.xlu0 %v4424
    %v4426 = vpop.xlane.xlu0 %4425
    %v4427 = vsel %vm1151, %v4408, 0.0
    %4428 = vadd.xlane.f32.xlu0 %v4427
    %v4429 = vpop.xlane.xlu0 %4428
    %v4430 = vsel %vm1151, %v4410, 0.0
    %4431 = vadd.xlane.f32.xlu0 %v4430
    %v4432 = vpop.xlane.xlu0 %4431
    %v4433 = vsel %vm1151, %v4412, 0.0
    %4434 = vadd.xlane.f32.xlu0 %v4433
    %v4435 = vpop.xlane.xlu0 %4434
    %v4436 = vsel %vm1151, %v4414, 0.0
    %4437 = vadd.xlane.f32.xlu0 %v4436
    %v4438 = vpop.xlane.xlu0 %4437
    %v4439 = vrcp.pop %v4417
    %v4440 = vrcp.pop %v4420
    %v4441 = vrcp.pop %v4423
    %v4442 = vrcp.pop %v4426
    %v4443 = vrcp.pop %v4429
    %v4444 = vrcp.pop %v4432
    %v4445 = vrcp.pop %v4435
    %v4446 = vrcp.pop %v4438
    %v4447 = vmul.f32 %v4400, %v4439
    %v4448 = vmul.f32 %v4402, %v4440
    %v4449 = vmul.f32 %v4404, %v4441
    %v4450 = vmul.f32 %v4406, %v4442
    %v4451 = vmul.f32 %v4408, %v4443
    %v4452 = vmul.f32 %v4410, %v4444
    %v4453 = vmul.f32 %v4412, %v4445
    %v4454 = vmul.f32 %v4414, %v4446
    %v4471 = vunpack.c.l.b16 %v4161
    %v4472 = vunpack.c.l.b16 %v4162
    %v4473 = vunpack.c.l.b16 %v4163
    %v4474 = vunpack.c.l.b16 %v4164
    %v4475 = vunpack.c.l.b16 %v4165
    %v4476 = vunpack.c.l.b16 %v4166
    %v4477 = vunpack.c.l.b16 %v4167
    %v4478 = vunpack.c.l.b16 %v4168
    %v4479 = vunpack.c.l.b16 %v4169
    %v4480 = vunpack.c.l.b16 %v4170
    %v4481 = vunpack.c.l.b16 %v4171
    %v4482 = vunpack.c.l.b16 %v4172
    %v4483 = vunpack.c.l.b16 %v4173
    %v4484 = vunpack.c.l.b16 %v4174
    %v4485 = vunpack.c.l.b16 %v4175
    %v4486 = vunpack.c.l.b16 %v4176
    %v4487 = vpack.c.b16 %v4472, %v4471
    %v4488 = vpack.c.b16 %v4474, %v4473
    %v4489 = vpack.c.b16 %v4476, %v4475
    %v4490 = vpack.c.b16 %v4478, %v4477
    %v4491 = vpack.c.b16 %v4480, %v4479
    %v4492 = vpack.c.b16 %v4482, %v4481
    %v4493 = vpack.c.b16 %v4484, %v4483
    %v4494 = vpack.c.b16 %v4486, %v4485
    %4503 = vmatprep.subr.bf16.mxu0 0
    %4504 = vmatpush1.bf16.msra.mxu0 %v4487
    %4505 = vmatprep.subr.bf16.mxu0 0
    %4506 = vmatpush1.bf16.msra.mxu0 %v4488
    %4507 = vmatprep.subr.bf16.mxu0 0
    %4508 = vmatpush1.bf16.msra.mxu0 %v4489
    %4509 = vmatprep.subr.bf16.mxu0 0
    %4510 = vmatpush1.bf16.msra.mxu0 %v4490
    %4511 = vmatprep.subr.bf16.mxu0 0
    %4512 = vmatpush1.bf16.msra.mxu0 %v4491
    %4513 = vmatprep.subr.bf16.mxu0 0
    %4514 = vmatpush1.bf16.msra.mxu0 %v4492
    %4515 = vmatprep.subr.bf16.mxu0 0
    %4516 = vmatpush1.bf16.msra.mxu0 %v4493
    %4517 = vmatprep.subr.bf16.mxu0 0
    %4518 = vmatpush1.bf16.msra.mxu0 %v4494
    %4519 = vmatprep.subr.bf16.mxu0 0
    %4520 = vmatpush1.bf16.msra.mxu0 0
    %4521 = vmatprep.subr.bf16.mxu0 0
    %4522 = vmatpush1.bf16.msra.mxu0 0
    %4523 = vmatprep.subr.bf16.mxu0 0
    %4524 = vmatpush1.bf16.msra.mxu0 0
    %4525 = vmatprep.subr.bf16.mxu0 0
    %4526 = vmatpush1.bf16.msra.mxu0 0
    %4527 = vmatprep.subr.bf16.mxu0 0
    %4528 = vmatpush1.bf16.msra.mxu0 0
    %4529 = vmatprep.subr.bf16.mxu0 0
    %4530 = vmatpush1.bf16.msra.mxu0 0
    %4531 = vmatprep.subr.bf16.mxu0 0
    %4532 = vmatpush1.bf16.msra.mxu0 0
    %4533 = vmatprep.subr.bf16.mxu0 0
    %4534 = vmatpush1.bf16.msra.mxu0 0
    %4535 = vmatprep.mubr.bf16.mxu0 0
    %4536 = vmatmul.mubr.bf16.gmra.mrb[0].mxu0 %v3613
    %v4537 = vpop.f32.mrb[0].mxu0
    %v4538 = vadd.f32 0.0, %v4537
    %v4539 = vpop.f32.mrb[0].mxu0
    %v4540 = vpop.f32.mrb[0].mxu0
    %v4541 = vadd.f32 0.0, %v4540
    %v4542 = vpop.f32.mrb[0].mxu0
    %4543 = vmatprep.mubr.bf16.mxu0 0
    %4544 = vmatmul.mubr.bf16.gmra.mrb[0].mxu0 %v3614
    %v4545 = vpop.f32.mrb[0].mxu0
    %v4546 = vadd.f32 0.0, %v4545
    %v4547 = vpop.f32.mrb[0].mxu0
    %v4548 = vpop.f32.mrb[0].mxu0
    %v4549 = vadd.f32 0.0, %v4548
    %v4550 = vpop.f32.mrb[0].mxu0
    %4551 = vmatprep.mubr.bf16.mxu0 0
    %4552 = vmatmul.mubr.bf16.gmra.mrb[0].mxu0 %v3615
    %v4553 = vpop.f32.mrb[0].mxu0
    %v4554 = vadd.f32 0.0, %v4553
    %v4555 = vpop.f32.mrb[0].mxu0
    %v4556 = vpop.f32.mrb[0].mxu0
    %v4557 = vadd.f32 0.0, %v4556
    %v4558 = vpop.f32.mrb[0].mxu0
    %4559 = vmatprep.mubr.bf16.mxu0 0
    %4560 = vmatmul.mubr.bf16.gmra.mrb[0].mxu0 %v3616
    %v4561 = vpop.f32.mrb[0].mxu0
    %v4562 = vadd.f32 0.0, %v4561
    %v4563 = vpop.f32.mrb[0].mxu0
    %v4564 = vpop.f32.mrb[0].mxu0
    %v4565 = vadd.f32 0.0, %v4564
    %v4566 = vpop.f32.mrb[0].mxu0
    %4567 = vdwg.mxu0
    %v4568 = vpack.c.bf16 %v4448, %v4447
    %v4569 = vpack.c.bf16 %v4450, %v4449
    %v4570 = vpack.c.bf16 %v4452, %v4451
    %v4571 = vpack.c.bf16 %v4454, %v4453
    %v4572 = vpack.c.bf16 %v4541, %v4538
    %v4573 = vpack.c.bf16 %v4549, %v4546
    %v4574 = vpack.c.bf16 %v4557, %v4554
    %v4575 = vpack.c.bf16 %v4565, %v4562
    %v4577 = vsel %vm1151, %v4568, 0
    %v4580 = vsel %vm1151, %v4569, 0
    %v4583 = vsel %vm1151, %v4570, 0
    %v4586 = vsel %vm1151, %v4571, 0
    %4588 = vmatprep.subr.bf16.mxu0 0
    %4589 = vmatpush1.bf16.msra.mxu0 %v4572
    %4590 = vmatprep.subr.bf16.mxu0 0
    %4591 = vmatpush1.bf16.msra.mxu0 %v4573
    %4592 = vmatprep.subr.bf16.mxu0 0
    %4593 = vmatpush1.bf16.msra.mxu0 %v4574
    %4594 = vmatprep.subr.bf16.mxu0 0
    %4595 = vmatpush1.bf16.msra.mxu0 %v4575
    %4596 = vmatprep.subr.bf16.mxu0 0
    %4597 = vmatpush1.bf16.msra.mxu0 0
    %4598 = vmatprep.subr.bf16.mxu0 0
    %4599 = vmatpush1.bf16.msra.mxu0 0
    %4600 = vmatprep.subr.bf16.mxu0 0
    %4601 = vmatpush1.bf16.msra.mxu0 0
    %4602 = vmatprep.subr.bf16.mxu0 0
    %4603 = vmatpush1.bf16.msra.mxu0 0
    %4604 = vmatprep.subr.bf16.mxu0 0
    %4605 = vmatpush1.bf16.msra.mxu0 0
    %4606 = vmatprep.subr.bf16.mxu0 0
    %4607 = vmatpush1.bf16.msra.mxu0 0
    %4608 = vmatprep.subr.bf16.mxu0 0
    %4609 = vmatpush1.bf16.msra.mxu0 0
    %4610 = vmatprep.subr.bf16.mxu0 0
    %4611 = vmatpush1.bf16.msra.mxu0 0
    %4612 = vmatprep.subr.bf16.mxu0 0
    %4613 = vmatpush1.bf16.msra.mxu0 0
    %4614 = vmatprep.subr.bf16.mxu0 0
    %4615 = vmatpush1.bf16.msra.mxu0 0
    %4616 = vmatprep.subr.bf16.mxu0 0
    %4617 = vmatpush1.bf16.msra.mxu0 0
    %4618 = vmatprep.subr.bf16.mxu0 0
    %4619 = vmatpush1.bf16.msra.mxu0 0
    %4620 = vmatprep.mubr.bf16.mxu0 0
    %4621 = vmatmul.mubr.bf16.gmra.mrb[0].mxu0 %v4577
    %v4622 = vpop.f32.mrb[0].mxu0
    %v4623 = vadd.f32 0.0, %v4622
    %v4624 = vpop.f32.mrb[0].mxu0
    %v4625 = vpop.f32.mrb[0].mxu0
    %v4626 = vadd.f32 0.0, %v4625
    %v4627 = vpop.f32.mrb[0].mxu0
    %4628 = vmatprep.mubr.bf16.mxu0 0
    %4629 = vmatmul.mubr.bf16.gmra.mrb[0].mxu0 %v4580
    %v4630 = vpop.f32.mrb[0].mxu0
    %v4631 = vadd.f32 0.0, %v4630
    %v4632 = vpop.f32.mrb[0].mxu0
    %v4633 = vpop.f32.mrb[0].mxu0
    %v4634 = vadd.f32 0.0, %v4633
    %v4635 = vpop.f32.mrb[0].mxu0
    %4636 = vmatprep.mubr.bf16.mxu0 0
    %4637 = vmatmul.mubr.bf16.gmra.mrb[0].mxu0 %v4583
    %v4638 = vpop.f32.mrb[0].mxu0
    %v4639 = vadd.f32 0.0, %v4638
    %v4640 = vpop.f32.mrb[0].mxu0
    %v4641 = vpop.f32.mrb[0].mxu0
    %v4642 = vadd.f32 0.0, %v4641
    %v4643 = vpop.f32.mrb[0].mxu0
    %4644 = vmatprep.mubr.bf16.mxu0 0
    %4645 = vmatmul.mubr.bf16.gmra.mrb[0].mxu0 %v4586
    %v4646 = vpop.f32.mrb[0].mxu0
    %v4647 = vadd.f32 0.0, %v4646
    %v4648 = vpop.f32.mrb[0].mxu0
    %v4649 = vpop.f32.mrb[0].mxu0
    %v4650 = vadd.f32 0.0, %v4649
    %v4651 = vpop.f32.mrb[0].mxu0
    %4652 = vdwg.mxu0
    %v4653 = vadd.f32 %v4137, %v4623
    %v4654 = vadd.f32 %v4138, %v4626
    %v4655 = vadd.f32 %v4139, %v4631
    %v4656 = vadd.f32 %v4140, %v4634
    %v4657 = vadd.f32 %v4141, %v4639
    %v4658 = vadd.f32 %v4142, %v4642
    %v4659 = vadd.f32 %v4143, %v4647
    %v4660 = vadd.f32 %v4144, %v4650
    %v4661 = vld [vmem:[%s2 + $0x288] sm:$0xf]
    %v4662 = vld [vmem:[%s2 + $0x2b0] sm:$0xf]
    %v4663 = vld [vmem:[%s2 + $0x2d8] sm:$0xf]
    %v4664 = vld [vmem:[%s2 + $0x300] sm:$0xf]
    %v4665 = vld [vmem:[%s2 + $0x328] sm:$0xf]
    %v4666 = vld [vmem:[%s2 + $0x350] sm:$0xf]
    %v4667 = vld [vmem:[%s2 + $0x378] sm:$0xf]
    %v4668 = vld [vmem:[%s2 + $0x3a0] sm:$0xf]
    %v4669 = vld [vmem:[%s2 + $0x3c8] sm:$0xf]
    %v4670 = vld [vmem:[%s2 + $0x3f0] sm:$0xf]
    %v4671 = vld [vmem:[%s2 + $0x418] sm:$0xf]
    %v4672 = vld [vmem:[%s2 + $0x440] sm:$0xf]
    %v4673 = vld [vmem:[%s2 + $0x468] sm:$0xf]
    %v4674 = vld [vmem:[%s2 + $0x490] sm:$0xf]
    %v4675 = vld [vmem:[%s2 + $0x4b8] sm:$0xf]
    %v4676 = vld [vmem:[%s2 + $0x4e0] sm:$0xf]
    %v4677 = vld [vmem:[%s2 + $0x298] sm:$0xf]
    %v4678 = vld [vmem:[%s2 + $0x2c0] sm:$0xf]
    %v4679 = vld [vmem:[%s2 + $0x2e8] sm:$0xf]
    %v4680 = vld [vmem:[%s2 + $0x310] sm:$0xf]
    %v4681 = vld [vmem:[%s2 + $0x338] sm:$0xf]
    %v4682 = vld [vmem:[%s2 + $0x360] sm:$0xf]
    %v4683 = vld [vmem:[%s2 + $0x388] sm:$0xf]
    %v4684 = vld [vmem:[%s2 + $0x3b0] sm:$0xf]
    %v4685 = vld [vmem:[%s2 + $0x3d8] sm:$0xf]
    %v4686 = vld [vmem:[%s2 + $0x400] sm:$0xf]
    %v4687 = vld [vmem:[%s2 + $0x428] sm:$0xf]
    %v4688 = vld [vmem:[%s2 + $0x450] sm:$0xf]
    %v4689 = vld [vmem:[%s2 + $0x478] sm:$0xf]
    %v4690 = vld [vmem:[%s2 + $0x4a0] sm:$0xf]
    %v4691 = vld [vmem:[%s2 + $0x4c8] sm:$0xf]
    %v4692 = vld [vmem:[%s2 + $0x4f0] sm:$0xf]
    %v4709 = vunpack.c.l.b16 %v4661
    %v4710 = vunpack.c.l.b16 %v4662
    %v4711 = vunpack.c.l.b16 %v4663
    %v4712 = vunpack.c.l.b16 %v4664
    %v4713 = vunpack.c.l.b16 %v4665
    %v4714 = vunpack.c.l.b16 %v4666
    %v4715 = vunpack.c.l.b16 %v4667
    %v4716 = vunpack.c.l.b16 %v4668
    %v4717 = vunpack.c.l.b16 %v4669
    %v4718 = vunpack.c.l.b16 %v4670
    %v4719 = vunpack.c.l.b16 %v4671
    %v4720 = vunpack.c.l.b16 %v4672
    %v4721 = vunpack.c.l.b16 %v4673
    %v4722 = vunpack.c.l.b16 %v4674
    %v4723 = vunpack.c.l.b16 %v4675
    %v4724 = vunpack.c.l.b16 %v4676
    %v4725 = vpack.c.b16 %v4710, %v4709
    %v4726 = vpack.c.b16 %v4712, %v4711
    %v4727 = vpack.c.b16 %v4714, %v4713
    %v4728 = vpack.c.b16 %v4716, %v4715
    %v4729 = vpack.c.b16 %v4718, %v4717
    %v4730 = vpack.c.b16 %v4720, %v4719
    %v4731 = vpack.c.b16 %v4722, %v4721
    %v4732 = vpack.c.b16 %v4724, %v4723
    %4741 = vmatprep.subr.bf16.mxu0 0
    %4742 = vmatpush1.bf16.msra.mxu0 %v4725
    %4743 = vmatprep.subr.bf16.mxu0 0
    %4744 = vmatpush1.bf16.msra.mxu0 %v4726
    %4745 = vmatprep.subr.bf16.mxu0 0
    %4746 = vmatpush1.bf16.msra.mxu0 %v4727
    %4747 = vmatprep.subr.bf16.mxu0 0
    %4748 = vmatpush1.bf16.msra.mxu0 %v4728
    %4749 = vmatprep.subr.bf16.mxu0 0
    %4750 = vmatpush1.bf16.msra.mxu0 %v4729
    %4751 = vmatprep.subr.bf16.mxu0 0
    %4752 = vmatpush1.bf16.msra.mxu0 %v4730
    %4753 = vmatprep.subr.bf16.mxu0 0
    %4754 = vmatpush1.bf16.msra.mxu0 %v4731
    %4755 = vmatprep.subr.bf16.mxu0 0
    %4756 = vmatpush1.bf16.msra.mxu0 %v4732
    %4757 = vmatprep.subr.bf16.mxu0 0
    %4758 = vmatpush1.bf16.msra.mxu0 0
    %4759 = vmatprep.subr.bf16.mxu0 0
    %4760 = vmatpush1.bf16.msra.mxu0 0
    %4761 = vmatprep.subr.bf16.mxu0 0
    %4762 = vmatpush1.bf16.msra.mxu0 0
    %4763 = vmatprep.subr.bf16.mxu0 0
    %4764 = vmatpush1.bf16.msra.mxu0 0
    %4765 = vmatprep.subr.bf16.mxu0 0
    %4766 = vmatpush1.bf16.msra.mxu0 0
    %4767 = vmatprep.subr.bf16.mxu0 0
    %4768 = vmatpush1.bf16.msra.mxu0 0
    %4769 = vmatprep.subr.bf16.mxu0 0
    %4770 = vmatpush1.bf16.msra.mxu0 0
    %4771 = vmatprep.subr.bf16.mxu0 0
    %4772 = vmatpush1.bf16.msra.mxu0 0
    %4773 = vmatprep.mubr.bf16.mxu0 0
    %4774 = vmatmul.mubr.bf16.gmra.mrb[0].mxu0 %v3613
    %v4775 = vpop.f32.mrb[0].mxu0
    %v4776 = vadd.f32 0.0, %v4775
    %v4777 = vpop.f32.mrb[0].mxu0
    %v4778 = vpop.f32.mrb[0].mxu0
    %v4779 = vadd.f32 0.0, %v4778
    %v4780 = vpop.f32.mrb[0].mxu0
    %4781 = vmatprep.mubr.bf16.mxu0 0
    %4782 = vmatmul.mubr.bf16.gmra.mrb[0].mxu0 %v3614
    %v4783 = vpop.f32.mrb[0].mxu0
    %v4784 = vadd.f32 0.0, %v4783
    %v4785 = vpop.f32.mrb[0].mxu0
    %v4786 = vpop.f32.mrb[0].mxu0
    %v4787 = vadd.f32 0.0, %v4786
    %v4788 = vpop.f32.mrb[0].mxu0
    %4789 = vmatprep.mubr.bf16.mxu0 0
    %4790 = vmatmul.mubr.bf16.gmra.mrb[0].mxu0 %v3615
    %v4791 = vpop.f32.mrb[0].mxu0
    %v4792 = vadd.f32 0.0, %v4791
    %v4793 = vpop.f32.mrb[0].mxu0
    %v4794 = vpop.f32.mrb[0].mxu0
    %v4795 = vadd.f32 0.0, %v4794
    %v4796 = vpop.f32.mrb[0].mxu0
    %4797 = vmatprep.mubr.bf16.mxu0 0
    %4798 = vmatmul.mubr.bf16.gmra.mrb[0].mxu0 %v3616
    %v4799 = vpop.f32.mrb[0].mxu0
    %v4800 = vadd.f32 0.0, %v4799
    %v4801 = vpop.f32.mrb[0].mxu0
    %v4802 = vpop.f32.mrb[0].mxu0
    %v4803 = vadd.f32 0.0, %v4802
    %v4804 = vpop.f32.mrb[0].mxu0
    %4805 = vdwg.mxu0
    %v4806 = vpack.c.bf16 %v4779, %v4776
    %v4807 = vpack.c.bf16 %v4787, %v4784
    %v4808 = vpack.c.bf16 %v4795, %v4792
    %v4809 = vpack.c.bf16 %v4803, %v4800
    %4810 = vmatprep.subr.bf16.mxu0 0
    %4811 = vmatpush1.bf16.xpose.msra.mxu0 %v3613
    %4812 = vmatprep.subr.bf16.mxu0 0
    %4813 = vmatpush1.bf16.xpose.msra.mxu0 %v3614
    %4814 = vmatprep.subr.bf16.mxu0 0
    %4815 = vmatpush1.bf16.xpose.msra.mxu0 %v3615
    %4816 = vmatprep.subr.bf16.mxu0 0
    %4817 = vmatpush1.bf16.xpose.msra.mxu0 %v3616
    %4818 = vmatprep.subr.bf16.mxu0 0
    %4819 = vmatpush1.bf16.xpose.msra.mxu0 0
    %4820 = vmatprep.subr.bf16.mxu0 0
    %4821 = vmatpush1.bf16.xpose.msra.mxu0 0
    %4822 = vmatprep.subr.bf16.mxu0 0
    %4823 = vmatpush1.bf16.xpose.msra.mxu0 0
    %4824 = vmatprep.subr.bf16.mxu0 0
    %4825 = vmatpush1.bf16.xpose.msra.mxu0 0
    %4826 = vmatprep.subr.bf16.mxu0 0
    %4827 = vmatpush1.bf16.xpose.msra.mxu0 0
    %4828 = vmatprep.subr.bf16.mxu0 0
    %4829 = vmatpush1.bf16.xpose.msra.mxu0 0
    %4830 = vmatprep.subr.bf16.mxu0 0
    %4831 = vmatpush1.bf16.xpose.msra.mxu0 0
    %4832 = vmatprep.subr.bf16.mxu0 0
    %4833 = vmatpush1.bf16.xpose.msra.mxu0 0
    %4834 = vmatprep.subr.bf16.mxu0 0
    %4835 = vmatpush1.bf16.xpose.msra.mxu0 0
    %4836 = vmatprep.subr.bf16.mxu0 0
    %4837 = vmatpush1.bf16.xpose.msra.mxu0 0
    %4838 = vmatprep.subr.bf16.mxu0 0
    %4839 = vmatpush1.bf16.xpose.msra.mxu0 0
    %4840 = vmatprep.subr.bf16.mxu0 0
    %4841 = vmatpush1.bf16.xpose.msra.mxu0 0
    %4842 = vmatprep.mubr.bf16.mxu0 0
    %4843 = vmatmul.mubr.bf16.gmra.mrb[0].mxu0 %v4806
    %v4844 = vpop.f32.mrb[0].mxu0
    %v4845 = vadd.f32 0.0, %v4844
    %v4846 = vpop.f32.mrb[0].mxu0
    %v4847 = vpop.f32.mrb[0].mxu0
    %v4848 = vadd.f32 0.0, %v4847
    %v4849 = vpop.f32.mrb[0].mxu0
    %4850 = vmatprep.mubr.bf16.mxu0 0
    %4851 = vmatmul.mubr.bf16.gmra.mrb[0].mxu0 %v4807
    %v4852 = vpop.f32.mrb[0].mxu0
    %v4853 = vadd.f32 0.0, %v4852
    %v4854 = vpop.f32.mrb[0].mxu0
    %v4855 = vpop.f32.mrb[0].mxu0
    %v4856 = vadd.f32 0.0, %v4855
    %v4857 = vpop.f32.mrb[0].mxu0
    %4858 = vmatprep.mubr.bf16.mxu0 0
    %4859 = vmatmul.mubr.bf16.gmra.mrb[0].mxu0 %v4808
    %v4860 = vpop.f32.mrb[0].mxu0
    %v4861 = vadd.f32 0.0, %v4860
    %v4862 = vpop.f32.mrb[0].mxu0
    %v4863 = vpop.f32.mrb[0].mxu0
    %v4864 = vadd.f32 0.0, %v4863
    %v4865 = vpop.f32.mrb[0].mxu0
    %4866 = vmatprep.mubr.bf16.mxu0 0
    %4867 = vmatmul.mubr.bf16.gmra.mrb[0].mxu0 %v4809
    %v4868 = vpop.f32.mrb[0].mxu0
    %v4869 = vadd.f32 0.0, %v4868
    %v4870 = vpop.f32.mrb[0].mxu0
    %v4871 = vpop.f32.mrb[0].mxu0
    %v4872 = vadd.f32 0.0, %v4871
    %v4873 = vpop.f32.mrb[0].mxu0
    %4874 = vdwg.mxu0
    %v4875 = vsel %vm49, %v4845, -1e+09
    %v4876 = vsel %vm50, %v4848, -1e+09
    %v4877 = vsel %vm51, %v4853, -1e+09
    %v4878 = vsel %vm52, %v4856, -1e+09
    %v4879 = vsel %vm53, %v4861, -1e+09
    %v4880 = vsel %vm54, %v4864, -1e+09
    %v4881 = vsel %vm55, %v4869, -1e+09
    %v4882 = vsel %vm56, %v4872, -1e+09
    %v4883 = vsel %vm1151, %v4875, -inf
    %4884 = vmax.xlane.f32.xlu0 %v4883
    %v4885 = vpop.xlane.xlu0 %4884
    %v4886 = vsel %vm1151, %v4876, -inf
    %4887 = vmax.xlane.f32.xlu0 %v4886
    %v4888 = vpop.xlane.xlu0 %4887
    %v4889 = vsel %vm1151, %v4877, -inf
    %4890 = vmax.xlane.f32.xlu0 %v4889
    %v4891 = vpop.xlane.xlu0 %4890
    %v4892 = vsel %vm1151, %v4878, -inf
    %4893 = vmax.xlane.f32.xlu0 %v4892
    %v4894 = vpop.xlane.xlu0 %4893
    %v4895 = vsel %vm1151, %v4879, -inf
    %4896 = vmax.xlane.f32.xlu0 %v4895
    %v4897 = vpop.xlane.xlu0 %4896
    %v4898 = vsel %vm1151, %v4880, -inf
    %4899 = vmax.xlane.f32.xlu0 %v4898
    %v4900 = vpop.xlane.xlu0 %4899
    %v4901 = vsel %vm1151, %v4881, -inf
    %4902 = vmax.xlane.f32.xlu0 %v4901
    %v4903 = vpop.xlane.xlu0 %4902
    %v4904 = vsel %vm1151, %v4882, -inf
    %4905 = vmax.xlane.f32.xlu0 %v4904
    %v4906 = vpop.xlane.xlu0 %4905
    %v4907 = vsub.f32 %v4875, %v4885
    %v4908 = vsub.f32 %v4876, %v4888
    %v4909 = vsub.f32 %v4877, %v4891
    %v4910 = vsub.f32 %v4878, %v4894
    %v4911 = vsub.f32 %v4879, %v4897
    %v4912 = vsub.f32 %v4880, %v4900
    %v4913 = vsub.f32 %v4881, %v4903
    %v4914 = vsub.f32 %v4882, %v4906
    %v4915 = vmul.f32 %v4907, 1.442695
    %v4916 = vpow.pop %v4915
    %v4917 = vmul.f32 %v4908, 1.442695
    %v4918 = vpow.pop %v4917
    %v4919 = vmul.f32 %v4909, 1.442695
    %v4920 = vpow.pop %v4919
    %v4921 = vmul.f32 %v4910, 1.442695
    %v4922 = vpow.pop %v4921
    %v4923 = vmul.f32 %v4911, 1.442695
    %v4924 = vpow.pop %v4923
    %v4925 = vmul.f32 %v4912, 1.442695
    %v4926 = vpow.pop %v4925
    %v4927 = vmul.f32 %v4913, 1.442695
    %v4928 = vpow.pop %v4927
    %v4929 = vmul.f32 %v4914, 1.442695
    %v4930 = vpow.pop %v4929
    %v4931 = vsel %vm1151, %v4916, 0.0
    %4932 = vadd.xlane.f32.xlu0 %v4931
    %v4933 = vpop.xlane.xlu0 %4932
    %v4934 = vsel %vm1151, %v4918, 0.0
    %4935 = vadd.xlane.f32.xlu0 %v4934
    %v4936 = vpop.xlane.xlu0 %4935
    %v4937 = vsel %vm1151, %v4920, 0.0
    %4938 = vadd.xlane.f32.xlu0 %v4937
    %v4939 = vpop.xlane.xlu0 %4938
    %v4940 = vsel %vm1151, %v4922, 0.0
    %4941 = vadd.xlane.f32.xlu0 %v4940
    %v4942 = vpop.xlane.xlu0 %4941
    %v4943 = vsel %vm1151, %v4924, 0.0
    %4944 = vadd.xlane.f32.xlu0 %v4943
    %v4945 = vpop.xlane.xlu0 %4944
    %v4946 = vsel %vm1151, %v4926, 0.0
    %4947 = vadd.xlane.f32.xlu0 %v4946
    %v4948 = vpop.xlane.xlu0 %4947
    %v4949 = vsel %vm1151, %v4928, 0.0
    %4950 = vadd.xlane.f32.xlu0 %v4949
    %v4951 = vpop.xlane.xlu0 %4950
    %v4952 = vsel %vm1151, %v4930, 0.0
    %4953 = vadd.xlane.f32.xlu0 %v4952
    %v4954 = vpop.xlane.xlu0 %4953
    %v4955 = vrcp.pop %v4933
    %v4956 = vrcp.pop %v4936
    %v4957 = vrcp.pop %v4939
    %v4958 = vrcp.pop %v4942
    %v4959 = vrcp.pop %v4945
    %v4960 = vrcp.pop %v4948
    %v4961 = vrcp.pop %v4951
    %v4962 = vrcp.pop %v4954
    %v4963 = vmul.f32 %v4916, %v4955
    %v4964 = vmul.f32 %v4918, %v4956
    %v4965 = vmul.f32 %v4920, %v4957
    %v4966 = vmul.f32 %v4922, %v4958
    %v4967 = vmul.f32 %v4924, %v4959
    %v4968 = vmul.f32 %v4926, %v4960
    %v4969 = vmul.f32 %v4928, %v4961
    %v4970 = vmul.f32 %v4930, %v4962
    %v4987 = vunpack.c.l.b16 %v4677
    %v4988 = vunpack.c.l.b16 %v4678
    %v4989 = vunpack.c.l.b16 %v4679
    %v4990 = vunpack.c.l.b16 %v4680
    %v4991 = vunpack.c.l.b16 %v4681
    %v4992 = vunpack.c.l.b16 %v4682
    %v4993 = vunpack.c.l.b16 %v4683
    %v4994 = vunpack.c.l.b16 %v4684
    %v4995 = vunpack.c.l.b16 %v4685
    %v4996 = vunpack.c.l.b16 %v4686
    %v4997 = vunpack.c.l.b16 %v4687
    %v4998 = vunpack.c.l.b16 %v4688
    %v4999 = vunpack.c.l.b16 %v4689
    %v5000 = vunpack.c.l.b16 %v4690
    %v5001 = vunpack.c.l.b16 %v4691
    %v5002 = vunpack.c.l.b16 %v4692
    %v5003 = vpack.c.b16 %v4988, %v4987
    %v5004 = vpack.c.b16 %v4990, %v4989
    %v5005 = vpack.c.b16 %v4992, %v4991
    %v5006 = vpack.c.b16 %v4994, %v4993
    %v5007 = vpack.c.b16 %v4996, %v4995
    %v5008 = vpack.c.b16 %v4998, %v4997
    %v5009 = vpack.c.b16 %v5000, %v4999
    %v5010 = vpack.c.b16 %v5002, %v5001
    %5019 = vmatprep.subr.bf16.mxu0 0
    %5020 = vmatpush1.bf16.msra.mxu0 %v5003
    %5021 = vmatprep.subr.bf16.mxu0 0
    %5022 = vmatpush1.bf16.msra.mxu0 %v5004
    %5023 = vmatprep.subr.bf16.mxu0 0
    %5024 = vmatpush1.bf16.msra.mxu0 %v5005
    %5025 = vmatprep.subr.bf16.mxu0 0
    %5026 = vmatpush1.bf16.msra.mxu0 %v5006
    %5027 = vmatprep.subr.bf16.mxu0 0
    %5028 = vmatpush1.bf16.msra.mxu0 %v5007
    %5029 = vmatprep.subr.bf16.mxu0 0
    %5030 = vmatpush1.bf16.msra.mxu0 %v5008
    %5031 = vmatprep.subr.bf16.mxu0 0
    %5032 = vmatpush1.bf16.msra.mxu0 %v5009
    %5033 = vmatprep.subr.bf16.mxu0 0
    %5034 = vmatpush1.bf16.msra.mxu0 %v5010
    %5035 = vmatprep.subr.bf16.mxu0 0
    %5036 = vmatpush1.bf16.msra.mxu0 0
    %5037 = vmatprep.subr.bf16.mxu0 0
    %5038 = vmatpush1.bf16.msra.mxu0 0
    %5039 = vmatprep.subr.bf16.mxu0 0
    %5040 = vmatpush1.bf16.msra.mxu0 0
    %5041 = vmatprep.subr.bf16.mxu0 0
    %5042 = vmatpush1.bf16.msra.mxu0 0
    %5043 = vmatprep.subr.bf16.mxu0 0
    %5044 = vmatpush1.bf16.msra.mxu0 0
    %5045 = vmatprep.subr.bf16.mxu0 0
    %5046 = vmatpush1.bf16.msra.mxu0 0
    %5047 = vmatprep.subr.bf16.mxu0 0
    %5048 = vmatpush1.bf16.msra.mxu0 0
    %5049 = vmatprep.subr.bf16.mxu0 0
    %5050 = vmatpush1.bf16.msra.mxu0 0
    %5051 = vmatprep.mubr.bf16.mxu0 0
    %5052 = vmatmul.mubr.bf16.gmra.mrb[0].mxu0 %v3613
    %v5053 = vpop.f32.mrb[0].mxu0
    %v5054 = vadd.f32 0.0, %v5053
    %v5055 = vpop.f32.mrb[0].mxu0
    %v5056 = vpop.f32.mrb[0].mxu0
    %v5057 = vadd.f32 0.0, %v5056
    %v5058 = vpop.f32.mrb[0].mxu0
    %5059 = vmatprep.mubr.bf16.mxu0 0
    %5060 = vmatmul.mubr.bf16.gmra.mrb[0].mxu0 %v3614
    %v5061 = vpop.f32.mrb[0].mxu0
    %v5062 = vadd.f32 0.0, %v5061
    %v5063 = vpop.f32.mrb[0].mxu0
    %v5064 = vpop.f32.mrb[0].mxu0
    %v5065 = vadd.f32 0.0, %v5064
    %v5066 = vpop.f32.mrb[0].mxu0
    %5067 = vmatprep.mubr.bf16.mxu0 0
    %5068 = vmatmul.mubr.bf16.gmra.mrb[0].mxu0 %v3615
    %v5069 = vpop.f32.mrb[0].mxu0
    %v5070 = vadd.f32 0.0, %v5069
    %v5071 = vpop.f32.mrb[0].mxu0
    %v5072 = vpop.f32.mrb[0].mxu0
    %v5073 = vadd.f32 0.0, %v5072
    %v5074 = vpop.f32.mrb[0].mxu0
    %5075 = vmatprep.mubr.bf16.mxu0 0
    %5076 = vmatmul.mubr.bf16.gmra.mrb[0].mxu0 %v3616
    %v5077 = vpop.f32.mrb[0].mxu0
    %v5078 = vadd.f32 0.0, %v5077
    %v5079 = vpop.f32.mrb[0].mxu0
    %v5080 = vpop.f32.mrb[0].mxu0
    %v5081 = vadd.f32 0.0, %v5080
    %v5082 = vpop.f32.mrb[0].mxu0
    %5083 = vdwg.mxu0
    %v5084 = vpack.c.bf16 %v4964, %v4963
    %v5085 = vpack.c.bf16 %v4966, %v4965
    %v5086 = vpack.c.bf16 %v4968, %v4967
    %v5087 = vpack.c.bf16 %v4970, %v4969
    %v5088 = vpack.c.bf16 %v5057, %v5054
    %v5089 = vpack.c.bf16 %v5065, %v5062
    %v5090 = vpack.c.bf16 %v5073, %v5070
    %v5091 = vpack.c.bf16 %v5081, %v5078
    %v5093 = vsel %vm1151, %v5084, 0
    %v5096 = vsel %vm1151, %v5085, 0
    %v5099 = vsel %vm1151, %v5086, 0
    %v5102 = vsel %vm1151, %v5087, 0
    %5104 = vmatprep.subr.bf16.mxu0 0
    %5105 = vmatpush1.bf16.msra.mxu0 %v5088
    %5106 = vmatprep.subr.bf16.mxu0 0
    %5107 = vmatpush1.bf16.msra.mxu0 %v5089
    %5108 = vmatprep.subr.bf16.mxu0 0
    %5109 = vmatpush1.bf16.msra.mxu0 %v5090
    %5110 = vmatprep.subr.bf16.mxu0 0
    %5111 = vmatpush1.bf16.msra.mxu0 %v5091
    %5112 = vmatprep.subr.bf16.mxu0 0
    %5113 = vmatpush1.bf16.msra.mxu0 0
    %5114 = vmatprep.subr.bf16.mxu0 0
    %5115 = vmatpush1.bf16.msra.mxu0 0
    %5116 = vmatprep.subr.bf16.mxu0 0
    %5117 = vmatpush1.bf16.msra.mxu0 0
    %5118 = vmatprep.subr.bf16.mxu0 0
    %5119 = vmatpush1.bf16.msra.mxu0 0
    %5120 = vmatprep.subr.bf16.mxu0 0
    %5121 = vmatpush1.bf16.msra.mxu0 0
    %5122 = vmatprep.subr.bf16.mxu0 0
    %5123 = vmatpush1.bf16.msra.mxu0 0
    %5124 = vmatprep.subr.bf16.mxu0 0
    %5125 = vmatpush1.bf16.msra.mxu0 0
    %5126 = vmatprep.subr.bf16.mxu0 0
    %5127 = vmatpush1.bf16.msra.mxu0 0
    %5128 = vmatprep.subr.bf16.mxu0 0
    %5129 = vmatpush1.bf16.msra.mxu0 0
    %5130 = vmatprep.subr.bf16.mxu0 0
    %5131 = vmatpush1.bf16.msra.mxu0 0
    %5132 = vmatprep.subr.bf16.mxu0 0
    %5133 = vmatpush1.bf16.msra.mxu0 0
    %5134 = vmatprep.subr.bf16.mxu0 0
    %5135 = vmatpush1.bf16.msra.mxu0 0
    %5136 = vmatprep.mubr.bf16.mxu0 0
    %5137 = vmatmul.mubr.bf16.gmra.mrb[0].mxu0 %v5093
    %v5138 = vpop.f32.mrb[0].mxu0
    %v5139 = vadd.f32 0.0, %v5138
    %v5140 = vpop.f32.mrb[0].mxu0
    %v5141 = vpop.f32.mrb[0].mxu0
    %v5142 = vadd.f32 0.0, %v5141
    %v5143 = vpop.f32.mrb[0].mxu0
    %5144 = vmatprep.mubr.bf16.mxu0 0
    %5145 = vmatmul.mubr.bf16.gmra.mrb[0].mxu0 %v5096
    %v5146 = vpop.f32.mrb[0].mxu0
    %v5147 = vadd.f32 0.0, %v5146
    %v5148 = vpop.f32.mrb[0].mxu0
    %v5149 = vpop.f32.mrb[0].mxu0
    %v5150 = vadd.f32 0.0, %v5149
    %v5151 = vpop.f32.mrb[0].mxu0
    %5152 = vmatprep.mubr.bf16.mxu0 0
    %5153 = vmatmul.mubr.bf16.gmra.mrb[0].mxu0 %v5099
    %v5154 = vpop.f32.mrb[0].mxu0
    %v5155 = vadd.f32 0.0, %v5154
    %v5156 = vpop.f32.mrb[0].mxu0
    %v5157 = vpop.f32.mrb[0].mxu0
    %v5158 = vadd.f32 0.0, %v5157
    %v5159 = vpop.f32.mrb[0].mxu0
    %5160 = vmatprep.mubr.bf16.mxu0 0
    %5161 = vmatmul.mubr.bf16.gmra.mrb[0].mxu0 %v5102
    %v5162 = vpop.f32.mrb[0].mxu0
    %v5163 = vadd.f32 0.0, %v5162
    %v5164 = vpop.f32.mrb[0].mxu0
    %v5165 = vpop.f32.mrb[0].mxu0
    %v5166 = vadd.f32 0.0, %v5165
    %v5167 = vpop.f32.mrb[0].mxu0
    %5168 = vdwg.mxu0
    %v5169 = vadd.f32 %v4653, %v5139
    %v5170 = vadd.f32 %v4654, %v5142
    %v5171 = vadd.f32 %v4655, %v5147
    %v5172 = vadd.f32 %v4656, %v5150
    %v5173 = vadd.f32 %v4657, %v5155
    %v5174 = vadd.f32 %v4658, %v5158
    %v5175 = vadd.f32 %v4659, %v5163
    %v5176 = vadd.f32 %v4660, %v5166
    %v5177 = vld [vmem:[%s2 + $0x28c] sm:$0xf]
    %v5178 = vld [vmem:[%s2 + $0x2b4] sm:$0xf]
    %v5179 = vld [vmem:[%s2 + $0x2dc] sm:$0xf]
    %v5180 = vld [vmem:[%s2 + $0x304] sm:$0xf]
    %v5181 = vld [vmem:[%s2 + $0x32c] sm:$0xf]
    %v5182 = vld [vmem:[%s2 + $0x354] sm:$0xf]
    %v5183 = vld [vmem:[%s2 + $0x37c] sm:$0xf]
    %v5184 = vld [vmem:[%s2 + $0x3a4] sm:$0xf]
    %v5185 = vld [vmem:[%s2 + $0x3cc] sm:$0xf]
    %v5186 = vld [vmem:[%s2 + $0x3f4] sm:$0xf]
    %v5187 = vld [vmem:[%s2 + $0x41c] sm:$0xf]
    %v5188 = vld [vmem:[%s2 + $0x444] sm:$0xf]
    %v5189 = vld [vmem:[%s2 + $0x46c] sm:$0xf]
    %v5190 = vld [vmem:[%s2 + $0x494] sm:$0xf]
    %v5191 = vld [vmem:[%s2 + $0x4bc] sm:$0xf]
    %v5192 = vld [vmem:[%s2 + $0x4e4] sm:$0xf]
    %v5193 = vld [vmem:[%s2 + $0x29c] sm:$0xf]
    %v5194 = vld [vmem:[%s2 + $0x2c4] sm:$0xf]
    %v5195 = vld [vmem:[%s2 + $0x2ec] sm:$0xf]
    %v5196 = vld [vmem:[%s2 + $0x314] sm:$0xf]
    %v5197 = vld [vmem:[%s2 + $0x33c] sm:$0xf]
    %v5198 = vld [vmem:[%s2 + $0x364] sm:$0xf]
    %v5199 = vld [vmem:[%s2 + $0x38c] sm:$0xf]
    %v5200 = vld [vmem:[%s2 + $0x3b4] sm:$0xf]
    %v5201 = vld [vmem:[%s2 + $0x3dc] sm:$0xf]
    %v5202 = vld [vmem:[%s2 + $0x404] sm:$0xf]
    %v5203 = vld [vmem:[%s2 + $0x42c] sm:$0xf]
    %v5204 = vld [vmem:[%s2 + $0x454] sm:$0xf]
    %v5205 = vld [vmem:[%s2 + $0x47c] sm:$0xf]
    %v5206 = vld [vmem:[%s2 + $0x4a4] sm:$0xf]
    %v5207 = vld [vmem:[%s2 + $0x4cc] sm:$0xf]
    %v5208 = vld [vmem:[%s2 + $0x4f4] sm:$0xf]
    %v5225 = vunpack.c.l.b16 %v5177
    %v5226 = vunpack.c.l.b16 %v5178
    %v5227 = vunpack.c.l.b16 %v5179
    %v5228 = vunpack.c.l.b16 %v5180
    %v5229 = vunpack.c.l.b16 %v5181
    %v5230 = vunpack.c.l.b16 %v5182
    %v5231 = vunpack.c.l.b16 %v5183
    %v5232 = vunpack.c.l.b16 %v5184
    %v5233 = vunpack.c.l.b16 %v5185
    %v5234 = vunpack.c.l.b16 %v5186
    %v5235 = vunpack.c.l.b16 %v5187
    %v5236 = vunpack.c.l.b16 %v5188
    %v5237 = vunpack.c.l.b16 %v5189
    %v5238 = vunpack.c.l.b16 %v5190
    %v5239 = vunpack.c.l.b16 %v5191
    %v5240 = vunpack.c.l.b16 %v5192
    %v5241 = vpack.c.b16 %v5226, %v5225
    %v5242 = vpack.c.b16 %v5228, %v5227
    %v5243 = vpack.c.b16 %v5230, %v5229
    %v5244 = vpack.c.b16 %v5232, %v5231
    %v5245 = vpack.c.b16 %v5234, %v5233
    %v5246 = vpack.c.b16 %v5236, %v5235
    %v5247 = vpack.c.b16 %v5238, %v5237
    %v5248 = vpack.c.b16 %v5240, %v5239
    %5257 = vmatprep.subr.bf16.mxu0 0
    %5258 = vmatpush1.bf16.msra.mxu0 %v5241
    %5259 = vmatprep.subr.bf16.mxu0 0
    %5260 = vmatpush1.bf16.msra.mxu0 %v5242
    %5261 = vmatprep.subr.bf16.mxu0 0
    %5262 = vmatpush1.bf16.msra.mxu0 %v5243
    %5263 = vmatprep.subr.bf16.mxu0 0
    %5264 = vmatpush1.bf16.msra.mxu0 %v5244
    %5265 = vmatprep.subr.bf16.mxu0 0
    %5266 = vmatpush1.bf16.msra.mxu0 %v5245
    %5267 = vmatprep.subr.bf16.mxu0 0
    %5268 = vmatpush1.bf16.msra.mxu0 %v5246
    %5269 = vmatprep.subr.bf16.mxu0 0
    %5270 = vmatpush1.bf16.msra.mxu0 %v5247
    %5271 = vmatprep.subr.bf16.mxu0 0
    %5272 = vmatpush1.bf16.msra.mxu0 %v5248
    %5273 = vmatprep.subr.bf16.mxu0 0
    %5274 = vmatpush1.bf16.msra.mxu0 0
    %5275 = vmatprep.subr.bf16.mxu0 0
    %5276 = vmatpush1.bf16.msra.mxu0 0
    %5277 = vmatprep.subr.bf16.mxu0 0
    %5278 = vmatpush1.bf16.msra.mxu0 0
    %5279 = vmatprep.subr.bf16.mxu0 0
    %5280 = vmatpush1.bf16.msra.mxu0 0
    %5281 = vmatprep.subr.bf16.mxu0 0
    %5282 = vmatpush1.bf16.msra.mxu0 0
    %5283 = vmatprep.subr.bf16.mxu0 0
    %5284 = vmatpush1.bf16.msra.mxu0 0
    %5285 = vmatprep.subr.bf16.mxu0 0
    %5286 = vmatpush1.bf16.msra.mxu0 0
    %5287 = vmatprep.subr.bf16.mxu0 0
    %5288 = vmatpush1.bf16.msra.mxu0 0
    %5289 = vmatprep.mubr.bf16.mxu0 0
    %5290 = vmatmul.mubr.bf16.gmra.mrb[0].mxu0 %v3613
    %v5291 = vpop.f32.mrb[0].mxu0
    %v5292 = vadd.f32 0.0, %v5291
    %v5293 = vpop.f32.mrb[0].mxu0
    %v5294 = vpop.f32.mrb[0].mxu0
    %v5295 = vadd.f32 0.0, %v5294
    %v5296 = vpop.f32.mrb[0].mxu0
    %5297 = vmatprep.mubr.bf16.mxu0 0
    %5298 = vmatmul.mubr.bf16.gmra.mrb[0].mxu0 %v3614
    %v5299 = vpop.f32.mrb[0].mxu0
    %v5300 = vadd.f32 0.0, %v5299
    %v5301 = vpop.f32.mrb[0].mxu0
    %v5302 = vpop.f32.mrb[0].mxu0
    %v5303 = vadd.f32 0.0, %v5302
    %v5304 = vpop.f32.mrb[0].mxu0
    %5305 = vmatprep.mubr.bf16.mxu0 0
    %5306 = vmatmul.mubr.bf16.gmra.mrb[0].mxu0 %v3615
    %v5307 = vpop.f32.mrb[0].mxu0
    %v5308 = vadd.f32 0.0, %v5307
    %v5309 = vpop.f32.mrb[0].mxu0
    %v5310 = vpop.f32.mrb[0].mxu0
    %v5311 = vadd.f32 0.0, %v5310
    %v5312 = vpop.f32.mrb[0].mxu0
    %5313 = vmatprep.mubr.bf16.mxu0 0
    %5314 = vmatmul.mubr.bf16.gmra.mrb[0].mxu0 %v3616
    %v5315 = vpop.f32.mrb[0].mxu0
    %v5316 = vadd.f32 0.0, %v5315
    %v5317 = vpop.f32.mrb[0].mxu0
    %v5318 = vpop.f32.mrb[0].mxu0
    %v5319 = vadd.f32 0.0, %v5318
    %v5320 = vpop.f32.mrb[0].mxu0
    %5321 = vdwg.mxu0
    %v5322 = vpack.c.bf16 %v5295, %v5292
    %v5323 = vpack.c.bf16 %v5303, %v5300
    %v5324 = vpack.c.bf16 %v5311, %v5308
    %v5325 = vpack.c.bf16 %v5319, %v5316
    %5326 = vmatprep.subr.bf16.mxu0 0
    %5327 = vmatpush1.bf16.xpose.msra.mxu0 %v3613
    %5328 = vmatprep.subr.bf16.mxu0 0
    %5329 = vmatpush1.bf16.xpose.msra.mxu0 %v3614
    %5330 = vmatprep.subr.bf16.mxu0 0
    %5331 = vmatpush1.bf16.xpose.msra.mxu0 %v3615
    %5332 = vmatprep.subr.bf16.mxu0 0
    %5333 = vmatpush1.bf16.xpose.msra.mxu0 %v3616
    %5334 = vmatprep.subr.bf16.mxu0 0
    %5335 = vmatpush1.bf16.xpose.msra.mxu0 0
    %5336 = vmatprep.subr.bf16.mxu0 0
    %5337 = vmatpush1.bf16.xpose.msra.mxu0 0
    %5338 = vmatprep.subr.bf16.mxu0 0
    %5339 = vmatpush1.bf16.xpose.msra.mxu0 0
    %5340 = vmatprep.subr.bf16.mxu0 0
    %5341 = vmatpush1.bf16.xpose.msra.mxu0 0
    %5342 = vmatprep.subr.bf16.mxu0 0
    %5343 = vmatpush1.bf16.xpose.msra.mxu0 0
    %5344 = vmatprep.subr.bf16.mxu0 0
    %5345 = vmatpush1.bf16.xpose.msra.mxu0 0
    %5346 = vmatprep.subr.bf16.mxu0 0
    %5347 = vmatpush1.bf16.xpose.msra.mxu0 0
    %5348 = vmatprep.subr.bf16.mxu0 0
    %5349 = vmatpush1.bf16.xpose.msra.mxu0 0
    %5350 = vmatprep.subr.bf16.mxu0 0
    %5351 = vmatpush1.bf16.xpose.msra.mxu0 0
    %5352 = vmatprep.subr.bf16.mxu0 0
    %5353 = vmatpush1.bf16.xpose.msra.mxu0 0
    %5354 = vmatprep.subr.bf16.mxu0 0
    %5355 = vmatpush1.bf16.xpose.msra.mxu0 0
    %5356 = vmatprep.subr.bf16.mxu0 0
    %5357 = vmatpush1.bf16.xpose.msra.mxu0 0
    %5358 = vmatprep.mubr.bf16.mxu0 0
    %5359 = vmatmul.mubr.bf16.gmra.mrb[0].mxu0 %v5322
    %v5360 = vpop.f32.mrb[0].mxu0
    %v5361 = vadd.f32 0.0, %v5360
    %v5362 = vpop.f32.mrb[0].mxu0
    %v5363 = vpop.f32.mrb[0].mxu0
    %v5364 = vadd.f32 0.0, %v5363
    %v5365 = vpop.f32.mrb[0].mxu0
    %5366 = vmatprep.mubr.bf16.mxu0 0
    %5367 = vmatmul.mubr.bf16.gmra.mrb[0].mxu0 %v5323
    %v5368 = vpop.f32.mrb[0].mxu0
    %v5369 = vadd.f32 0.0, %v5368
    %v5370 = vpop.f32.mrb[0].mxu0
    %v5371 = vpop.f32.mrb[0].mxu0
    %v5372 = vadd.f32 0.0, %v5371
    %v5373 = vpop.f32.mrb[0].mxu0
    %5374 = vmatprep.mubr.bf16.mxu0 0
    %5375 = vmatmul.mubr.bf16.gmra.mrb[0].mxu0 %v5324
    %v5376 = vpop.f32.mrb[0].mxu0
    %v5377 = vadd.f32 0.0, %v5376
    %v5378 = vpop.f32.mrb[0].mxu0
    %v5379 = vpop.f32.mrb[0].mxu0
    %v5380 = vadd.f32 0.0, %v5379
    %v5381 = vpop.f32.mrb[0].mxu0
    %5382 = vmatprep.mubr.bf16.mxu0 0
    %5383 = vmatmul.mubr.bf16.gmra.mrb[0].mxu0 %v5325
    %v5384 = vpop.f32.mrb[0].mxu0
    %v5385 = vadd.f32 0.0, %v5384
    %v5386 = vpop.f32.mrb[0].mxu0
    %v5387 = vpop.f32.mrb[0].mxu0
    %v5388 = vadd.f32 0.0, %v5387
    %v5389 = vpop.f32.mrb[0].mxu0
    %5390 = vdwg.mxu0
    %v5391 = vsel %vm49, %v5361, -1e+09
    %v5392 = vsel %vm50, %v5364, -1e+09
    %v5393 = vsel %vm51, %v5369, -1e+09
    %v5394 = vsel %vm52, %v5372, -1e+09
    %v5395 = vsel %vm53, %v5377, -1e+09
    %v5396 = vsel %vm54, %v5380, -1e+09
    %v5397 = vsel %vm55, %v5385, -1e+09
    %v5398 = vsel %vm56, %v5388, -1e+09
    %v5399 = vsel %vm1151, %v5391, -inf
    %5400 = vmax.xlane.f32.xlu0 %v5399
    %v5401 = vpop.xlane.xlu0 %5400
    %v5402 = vsel %vm1151, %v5392, -inf
    %5403 = vmax.xlane.f32.xlu0 %v5402
    %v5404 = vpop.xlane.xlu0 %5403
    %v5405 = vsel %vm1151, %v5393, -inf
    %5406 = vmax.xlane.f32.xlu0 %v5405
    %v5407 = vpop.xlane.xlu0 %5406
    %v5408 = vsel %vm1151, %v5394, -inf
    %5409 = vmax.xlane.f32.xlu0 %v5408
    %v5410 = vpop.xlane.xlu0 %5409
    %v5411 = vsel %vm1151, %v5395, -inf
    %5412 = vmax.xlane.f32.xlu0 %v5411
    %v5413 = vpop.xlane.xlu0 %5412
    %v5414 = vsel %vm1151, %v5396, -inf
    %5415 = vmax.xlane.f32.xlu0 %v5414
    %v5416 = vpop.xlane.xlu0 %5415
    %v5417 = vsel %vm1151, %v5397, -inf
    %5418 = vmax.xlane.f32.xlu0 %v5417
    %v5419 = vpop.xlane.xlu0 %5418
    %v5420 = vsel %vm1151, %v5398, -inf
    %5421 = vmax.xlane.f32.xlu0 %v5420
    %v5422 = vpop.xlane.xlu0 %5421
    %v5423 = vsub.f32 %v5391, %v5401
    %v5424 = vsub.f32 %v5392, %v5404
    %v5425 = vsub.f32 %v5393, %v5407
    %v5426 = vsub.f32 %v5394, %v5410
    %v5427 = vsub.f32 %v5395, %v5413
    %v5428 = vsub.f32 %v5396, %v5416
    %v5429 = vsub.f32 %v5397, %v5419
    %v5430 = vsub.f32 %v5398, %v5422
    %v5431 = vmul.f32 %v5423, 1.442695
    %v5432 = vpow.pop %v5431
    %v5433 = vmul.f32 %v5424, 1.442695
    %v5434 = vpow.pop %v5433
    %v5435 = vmul.f32 %v5425, 1.442695
    %v5436 = vpow.pop %v5435
    %v5437 = vmul.f32 %v5426, 1.442695
    %v5438 = vpow.pop %v5437
    %v5439 = vmul.f32 %v5427, 1.442695
    %v5440 = vpow.pop %v5439
    %v5441 = vmul.f32 %v5428, 1.442695
    %v5442 = vpow.pop %v5441
    %v5443 = vmul.f32 %v5429, 1.442695
    %v5444 = vpow.pop %v5443
    %v5445 = vmul.f32 %v5430, 1.442695
    %v5446 = vpow.pop %v5445
    %v5447 = vsel %vm1151, %v5432, 0.0
    %5448 = vadd.xlane.f32.xlu0 %v5447
    %v5449 = vpop.xlane.xlu0 %5448
    %v5450 = vsel %vm1151, %v5434, 0.0
    %5451 = vadd.xlane.f32.xlu0 %v5450
    %v5452 = vpop.xlane.xlu0 %5451
    %v5453 = vsel %vm1151, %v5436, 0.0
    %5454 = vadd.xlane.f32.xlu0 %v5453
    %v5455 = vpop.xlane.xlu0 %5454
    %v5456 = vsel %vm1151, %v5438, 0.0
    %5457 = vadd.xlane.f32.xlu0 %v5456
    %v5458 = vpop.xlane.xlu0 %5457
    %v5459 = vsel %vm1151, %v5440, 0.0
    %5460 = vadd.xlane.f32.xlu0 %v5459
    %v5461 = vpop.xlane.xlu0 %5460
    %v5462 = vsel %vm1151, %v5442, 0.0
    %5463 = vadd.xlane.f32.xlu0 %v5462
    %v5464 = vpop.xlane.xlu0 %5463
    %v5465 = vsel %vm1151, %v5444, 0.0
    %5466 = vadd.xlane.f32.xlu0 %v5465
    %v5467 = vpop.xlane.xlu0 %5466
    %v5468 = vsel %vm1151, %v5446, 0.0
    %5469 = vadd.xlane.f32.xlu0 %v5468
    %v5470 = vpop.xlane.xlu0 %5469
    %v5471 = vrcp.pop %v5449
    %v5472 = vrcp.pop %v5452
    %v5473 = vrcp.pop %v5455
    %v5474 = vrcp.pop %v5458
    %v5475 = vrcp.pop %v5461
    %v5476 = vrcp.pop %v5464
    %v5477 = vrcp.pop %v5467
    %v5478 = vrcp.pop %v5470
    %v5479 = vmul.f32 %v5432, %v5471
    %v5480 = vmul.f32 %v5434, %v5472
    %v5481 = vmul.f32 %v5436, %v5473
    %v5482 = vmul.f32 %v5438, %v5474
    %v5483 = vmul.f32 %v5440, %v5475
    %v5484 = vmul.f32 %v5442, %v5476
    %v5485 = vmul.f32 %v5444, %v5477
    %v5486 = vmul.f32 %v5446, %v5478
    %v5503 = vunpack.c.l.b16 %v5193
    %v5504 = vunpack.c.l.b16 %v5194
    %v5505 = vunpack.c.l.b16 %v5195
    %v5506 = vunpack.c.l.b16 %v5196
    %v5507 = vunpack.c.l.b16 %v5197
    %v5508 = vunpack.c.l.b16 %v5198
    %v5509 = vunpack.c.l.b16 %v5199
    %v5510 = vunpack.c.l.b16 %v5200
    %v5511 = vunpack.c.l.b16 %v5201
    %v5512 = vunpack.c.l.b16 %v5202
    %v5513 = vunpack.c.l.b16 %v5203
    %v5514 = vunpack.c.l.b16 %v5204
    %v5515 = vunpack.c.l.b16 %v5205
    %v5516 = vunpack.c.l.b16 %v5206
    %v5517 = vunpack.c.l.b16 %v5207
    %v5518 = vunpack.c.l.b16 %v5208
    %v5519 = vpack.c.b16 %v5504, %v5503
    %v5520 = vpack.c.b16 %v5506, %v5505
    %v5521 = vpack.c.b16 %v5508, %v5507
    %v5522 = vpack.c.b16 %v5510, %v5509
    %v5523 = vpack.c.b16 %v5512, %v5511
    %v5524 = vpack.c.b16 %v5514, %v5513
    %v5525 = vpack.c.b16 %v5516, %v5515
    %v5526 = vpack.c.b16 %v5518, %v5517
    %5535 = vmatprep.subr.bf16.mxu0 0
    %5536 = vmatpush1.bf16.msra.mxu0 %v5519
    %5537 = vmatprep.subr.bf16.mxu0 0
    %5538 = vmatpush1.bf16.msra.mxu0 %v5520
    %5539 = vmatprep.subr.bf16.mxu0 0
    %5540 = vmatpush1.bf16.msra.mxu0 %v5521
    %5541 = vmatprep.subr.bf16.mxu0 0
    %5542 = vmatpush1.bf16.msra.mxu0 %v5522
    %5543 = vmatprep.subr.bf16.mxu0 0
    %5544 = vmatpush1.bf16.msra.mxu0 %v5523
    %5545 = vmatprep.subr.bf16.mxu0 0
    %5546 = vmatpush1.bf16.msra.mxu0 %v5524
    %5547 = vmatprep.subr.bf16.mxu0 0
    %5548 = vmatpush1.bf16.msra.mxu0 %v5525
    %5549 = vmatprep.subr.bf16.mxu0 0
    %5550 = vmatpush1.bf16.msra.mxu0 %v5526
    %5551 = vmatprep.subr.bf16.mxu0 0
    %5552 = vmatpush1.bf16.msra.mxu0 0
    %5553 = vmatprep.subr.bf16.mxu0 0
    %5554 = vmatpush1.bf16.msra.mxu0 0
    %5555 = vmatprep.subr.bf16.mxu0 0
    %5556 = vmatpush1.bf16.msra.mxu0 0
    %5557 = vmatprep.subr.bf16.mxu0 0
    %5558 = vmatpush1.bf16.msra.mxu0 0
    %5559 = vmatprep.subr.bf16.mxu0 0
    %5560 = vmatpush1.bf16.msra.mxu0 0
    %5561 = vmatprep.subr.bf16.mxu0 0
    %5562 = vmatpush1.bf16.msra.mxu0 0
    %5563 = vmatprep.subr.bf16.mxu0 0
    %5564 = vmatpush1.bf16.msra.mxu0 0
    %5565 = vmatprep.subr.bf16.mxu0 0
    %5566 = vmatpush1.bf16.msra.mxu0 0
    %5567 = vmatprep.mubr.bf16.mxu0 0
    %5568 = vmatmul.mubr.bf16.gmra.mrb[0].mxu0 %v3613
    %v5569 = vpop.f32.mrb[0].mxu0
    %v5570 = vadd.f32 0.0, %v5569
    %v5571 = vpop.f32.mrb[0].mxu0
    %v5572 = vpop.f32.mrb[0].mxu0
    %v5573 = vadd.f32 0.0, %v5572
    %v5574 = vpop.f32.mrb[0].mxu0
    %5575 = vmatprep.mubr.bf16.mxu0 0
    %5576 = vmatmul.mubr.bf16.gmra.mrb[0].mxu0 %v3614
    %v5577 = vpop.f32.mrb[0].mxu0
    %v5578 = vadd.f32 0.0, %v5577
    %v5579 = vpop.f32.mrb[0].mxu0
    %v5580 = vpop.f32.mrb[0].mxu0
    %v5581 = vadd.f32 0.0, %v5580
    %v5582 = vpop.f32.mrb[0].mxu0
    %5583 = vmatprep.mubr.bf16.mxu0 0
    %5584 = vmatmul.mubr.bf16.gmra.mrb[0].mxu0 %v3615
    %v5585 = vpop.f32.mrb[0].mxu0
    %v5586 = vadd.f32 0.0, %v5585
    %v5587 = vpop.f32.mrb[0].mxu0
    %v5588 = vpop.f32.mrb[0].mxu0
    %v5589 = vadd.f32 0.0, %v5588
    %v5590 = vpop.f32.mrb[0].mxu0
    %5591 = vmatprep.mubr.bf16.mxu0 0
    %5592 = vmatmul.mubr.bf16.gmra.mrb[0].mxu0 %v3616
    %v5593 = vpop.f32.mrb[0].mxu0
    %v5594 = vadd.f32 0.0, %v5593
    %v5595 = vpop.f32.mrb[0].mxu0
    %v5596 = vpop.f32.mrb[0].mxu0
    %v5597 = vadd.f32 0.0, %v5596
    %v5598 = vpop.f32.mrb[0].mxu0
    %5599 = vdwg.mxu0
    %v5600 = vpack.c.bf16 %v5480, %v5479
    %v5601 = vpack.c.bf16 %v5482, %v5481
    %v5602 = vpack.c.bf16 %v5484, %v5483
    %v5603 = vpack.c.bf16 %v5486, %v5485
    %v5604 = vpack.c.bf16 %v5573, %v5570
    %v5605 = vpack.c.bf16 %v5581, %v5578
    %v5606 = vpack.c.bf16 %v5589, %v5586
    %v5607 = vpack.c.bf16 %v5597, %v5594
    %v5609 = vsel %vm1151, %v5600, 0
    %v5612 = vsel %vm1151, %v5601, 0
    %v5615 = vsel %vm1151, %v5602, 0
    %v5618 = vsel %vm1151, %v5603, 0
    %5620 = vmatprep.subr.bf16.mxu0 0
    %5621 = vmatpush1.bf16.msra.mxu0 %v5604
    %5622 = vmatprep.subr.bf16.mxu0 0
    %5623 = vmatpush1.bf16.msra.mxu0 %v5605
    %5624 = vmatprep.subr.bf16.mxu0 0
    %5625 = vmatpush1.bf16.msra.mxu0 %v5606
    %5626 = vmatprep.subr.bf16.mxu0 0
    %5627 = vmatpush1.bf16.msra.mxu0 %v5607
    %5628 = vmatprep.subr.bf16.mxu0 0
    %5629 = vmatpush1.bf16.msra.mxu0 0
    %5630 = vmatprep.subr.bf16.mxu0 0
    %5631 = vmatpush1.bf16.msra.mxu0 0
    %5632 = vmatprep.subr.bf16.mxu0 0
    %5633 = vmatpush1.bf16.msra.mxu0 0
    %5634 = vmatprep.subr.bf16.mxu0 0
    %5635 = vmatpush1.bf16.msra.mxu0 0
    %5636 = vmatprep.subr.bf16.mxu0 0
    %5637 = vmatpush1.bf16.msra.mxu0 0
    %5638 = vmatprep.subr.bf16.mxu0 0
    %5639 = vmatpush1.bf16.msra.mxu0 0
    %5640 = vmatprep.subr.bf16.mxu0 0
    %5641 = vmatpush1.bf16.msra.mxu0 0
    %5642 = vmatprep.subr.bf16.mxu0 0
    %5643 = vmatpush1.bf16.msra.mxu0 0
    %5644 = vmatprep.subr.bf16.mxu0 0
    %5645 = vmatpush1.bf16.msra.mxu0 0
    %5646 = vmatprep.subr.bf16.mxu0 0
    %5647 = vmatpush1.bf16.msra.mxu0 0
    %5648 = vmatprep.subr.bf16.mxu0 0
    %5649 = vmatpush1.bf16.msra.mxu0 0
    %5650 = vmatprep.subr.bf16.mxu0 0
    %5651 = vmatpush1.bf16.msra.mxu0 0
    %5652 = vmatprep.mubr.bf16.mxu0 0
    %5653 = vmatmul.mubr.bf16.gmra.mrb[0].mxu0 %v5609
    %v5654 = vpop.f32.mrb[0].mxu0
    %v5655 = vadd.f32 0.0, %v5654
    %v5656 = vpop.f32.mrb[0].mxu0
    %v5657 = vpop.f32.mrb[0].mxu0
    %v5658 = vadd.f32 0.0, %v5657
    %v5659 = vpop.f32.mrb[0].mxu0
    %5660 = vmatprep.mubr.bf16.mxu0 0
    %5661 = vmatmul.mubr.bf16.gmra.mrb[0].mxu0 %v5612
    %v5662 = vpop.f32.mrb[0].mxu0
    %v5663 = vadd.f32 0.0, %v5662
    %v5664 = vpop.f32.mrb[0].mxu0
    %v5665 = vpop.f32.mrb[0].mxu0
    %v5666 = vadd.f32 0.0, %v5665
    %v5667 = vpop.f32.mrb[0].mxu0
    %5668 = vmatprep.mubr.bf16.mxu0 0
    %5669 = vmatmul.mubr.bf16.gmra.mrb[0].mxu0 %v5615
    %v5670 = vpop.f32.mrb[0].mxu0
    %v5671 = vadd.f32 0.0, %v5670
    %v5672 = vpop.f32.mrb[0].mxu0
    %v5673 = vpop.f32.mrb[0].mxu0
    %v5674 = vadd.f32 0.0, %v5673
    %v5675 = vpop.f32.mrb[0].mxu0
    %5676 = vmatprep.mubr.bf16.mxu0 0
    %5677 = vmatmul.mubr.bf16.gmra.mrb[0].mxu0 %v5618
    %v5678 = vpop.f32.mrb[0].mxu0
    %v5679 = vadd.f32 0.0, %v5678
    %v5680 = vpop.f32.mrb[0].mxu0
    %v5681 = vpop.f32.mrb[0].mxu0
    %v5682 = vadd.f32 0.0, %v5681
    %v5683 = vpop.f32.mrb[0].mxu0
    %5684 = vdwg.mxu0
    %v5685 = vadd.f32 %v5169, %v5655
    %v5686 = vadd.f32 %v5170, %v5658
    %v5687 = vadd.f32 %v5171, %v5663
    %v5688 = vadd.f32 %v5172, %v5666
    %v5689 = vadd.f32 %v5173, %v5671
    %v5690 = vadd.f32 %v5174, %v5674
    %v5691 = vadd.f32 %v5175, %v5679
    %v5692 = vadd.f32 %v5176, %v5682
    %5693 = vadd.xlane.f32.xlu0 %v5685
    %v5694 = vpop.xlane.xlu0 %5693
    %5695 = vadd.xlane.f32.xlu0 %v5686
    %v5696 = vpop.xlane.xlu0 %5695
    %5697 = vadd.xlane.f32.xlu0 %v5687
    %v5698 = vpop.xlane.xlu0 %5697
    %5699 = vadd.xlane.f32.xlu0 %v5688
    %v5700 = vpop.xlane.xlu0 %5699
    %5701 = vadd.xlane.f32.xlu0 %v5689
    %v5702 = vpop.xlane.xlu0 %5701
    %5703 = vadd.xlane.f32.xlu0 %v5690
    %v5704 = vpop.xlane.xlu0 %5703
    %5705 = vadd.xlane.f32.xlu0 %v5691
    %v5706 = vpop.xlane.xlu0 %5705
    %5707 = vadd.xlane.f32.xlu0 %v5692
    %v5708 = vpop.xlane.xlu0 %5707
    %v5709 = vmul.f32 %v5694, 0.03125
    %v5710 = vmul.f32 %v5696, 0.03125
    %v5711 = vmul.f32 %v5698, 0.03125
    %v5712 = vmul.f32 %v5700, 0.03125
    %v5713 = vmul.f32 %v5702, 0.03125
    %v5714 = vmul.f32 %v5704, 0.03125
    %v5715 = vmul.f32 %v5706, 0.03125
    %v5716 = vmul.f32 %v5708, 0.03125
    %v5717 = vmul.f32 %v5685, %v5685
    %v5718 = vmul.f32 %v5686, %v5686
    %v5719 = vmul.f32 %v5687, %v5687
    %v5720 = vmul.f32 %v5688, %v5688
    %v5721 = vmul.f32 %v5689, %v5689
    %v5722 = vmul.f32 %v5690, %v5690
    %v5723 = vmul.f32 %v5691, %v5691
    %v5724 = vmul.f32 %v5692, %v5692
    %5725 = vadd.xlane.f32.xlu0 %v5717
    %v5726 = vpop.xlane.xlu0 %5725
    %5727 = vadd.xlane.f32.xlu0 %v5718
    %v5728 = vpop.xlane.xlu0 %5727
    %5729 = vadd.xlane.f32.xlu0 %v5719
    %v5730 = vpop.xlane.xlu0 %5729
    %5731 = vadd.xlane.f32.xlu0 %v5720
    %v5732 = vpop.xlane.xlu0 %5731
    %5733 = vadd.xlane.f32.xlu0 %v5721
    %v5734 = vpop.xlane.xlu0 %5733
    %5735 = vadd.xlane.f32.xlu0 %v5722
    %v5736 = vpop.xlane.xlu0 %5735
    %5737 = vadd.xlane.f32.xlu0 %v5723
    %v5738 = vpop.xlane.xlu0 %5737
    %5739 = vadd.xlane.f32.xlu0 %v5724
    %v5740 = vpop.xlane.xlu0 %5739
    %v5741 = vmul.f32 %v5726, 0.03125
    %v5742 = vmul.f32 %v5728, 0.03125
    %v5743 = vmul.f32 %v5730, 0.03125
    %v5744 = vmul.f32 %v5732, 0.03125
    %v5745 = vmul.f32 %v5734, 0.03125
    %v5746 = vmul.f32 %v5736, 0.03125
    %v5747 = vmul.f32 %v5738, 0.03125
    %v5748 = vmul.f32 %v5740, 0.03125
    %v5749 = vmul.f32 %v5709, %v5709
    %v5750 = vmul.f32 %v5710, %v5710
    %v5751 = vmul.f32 %v5711, %v5711
    %v5752 = vmul.f32 %v5712, %v5712
    %v5753 = vmul.f32 %v5713, %v5713
    %v5754 = vmul.f32 %v5714, %v5714
    %v5755 = vmul.f32 %v5715, %v5715
    %v5756 = vmul.f32 %v5716, %v5716
    %v5757 = vsub.f32 %v5741, %v5749
    %v5758 = vsub.f32 %v5742, %v5750
    %v5759 = vsub.f32 %v5743, %v5751
    %v5760 = vsub.f32 %v5744, %v5752
    %v5761 = vsub.f32 %v5745, %v5753
    %v5762 = vsub.f32 %v5746, %v5754
    %v5763 = vsub.f32 %v5747, %v5755
    %v5764 = vsub.f32 %v5748, %v5756
    %v5765 = vsub.f32 %v5685, %v5709
    %v5766 = vsub.f32 %v5686, %v5710
    %v5767 = vsub.f32 %v5687, %v5711
    %v5768 = vsub.f32 %v5688, %v5712
    %v5769 = vsub.f32 %v5689, %v5713
    %v5770 = vsub.f32 %v5690, %v5714
    %v5771 = vsub.f32 %v5691, %v5715
    %v5772 = vsub.f32 %v5692, %v5716
    %v5773 = vadd.f32 %v5757, 1e-06
    %v5774 = vadd.f32 %v5758, 1e-06
    %v5775 = vadd.f32 %v5759, 1e-06
    %v5776 = vadd.f32 %v5760, 1e-06
    %v5777 = vadd.f32 %v5761, 1e-06
    %v5778 = vadd.f32 %v5762, 1e-06
    %v5779 = vadd.f32 %v5763, 1e-06
    %v5780 = vadd.f32 %v5764, 1e-06
    %v5781 = vrsqrt.pop %v5773
    %v5782 = vrsqrt.pop %v5774
    %v5783 = vrsqrt.pop %v5775
    %v5784 = vrsqrt.pop %v5776
    %v5785 = vrsqrt.pop %v5777
    %v5786 = vrsqrt.pop %v5778
    %v5787 = vrsqrt.pop %v5779
    %v5788 = vrsqrt.pop %v5780
    %v5789 = vmul.f32 %v5765, %v5781
    %v5790 = vmul.f32 %v5766, %v5782
    %v5791 = vmul.f32 %v5767, %v5783
    %v5792 = vmul.f32 %v5768, %v5784
    %v5793 = vmul.f32 %v5769, %v5785
    %v5794 = vmul.f32 %v5770, %v5786
    %v5795 = vmul.f32 %v5771, %v5787
    %v5796 = vmul.f32 %v5772, %v5788
    %v5797 = vlaneseq
    %v5798 = vshrl.u32 %v5797, 7
    %v5799 = vsub.s32 3, %v5798
    %v5800 = vrot.slane %v3484, %v5799
    %v5801 = vmul.f32 %v5789, %v5800
    %v5802 = vmul.f32 %v5790, %v5800
    %v5803 = vmul.f32 %v5791, %v5800
    %v5804 = vmul.f32 %v5792, %v5800
    %v5805 = vmul.f32 %v5793, %v5800
    %v5806 = vmul.f32 %v5794, %v5800
    %v5807 = vmul.f32 %v5795, %v5800
    %v5808 = vmul.f32 %v5796, %v5800
    %v5809 = vlaneseq
    %v5810 = vshrl.u32 %v5809, 7
    %v5811 = vsub.s32 4, %v5810
    %v5812 = vrot.slane %v3484, %v5811
    %v5813 = vadd.f32 %v5801, %v5812
    %v5814 = vadd.f32 %v5802, %v5812
    %v5815 = vadd.f32 %v5803, %v5812
    %v5816 = vadd.f32 %v5804, %v5812
    %v5817 = vadd.f32 %v5805, %v5812
    %v5818 = vadd.f32 %v5806, %v5812
    %v5819 = vadd.f32 %v5807, %v5812
    %v5820 = vadd.f32 %v5808, %v5812
    %v5821 = vpack.c.bf16 %v5814, %v5813
    %v5822 = vpack.c.bf16 %v5816, %v5815
    %v5823 = vpack.c.bf16 %v5818, %v5817
    %v5824 = vpack.c.bf16 %v5820, %v5819
    %v5825 = vld [vmem:[%s2 + $0x2a0] sm:$0xf]
    %v5826 = vld [vmem:[%s2 + $0x2c8] sm:$0xf]
    %v5827 = vld [vmem:[%s2 + $0x2f0] sm:$0xf]
    %v5828 = vld [vmem:[%s2 + $0x318] sm:$0xf]
    %v5829 = vld [vmem:[%s2 + $0x340] sm:$0xf]
    %v5830 = vld [vmem:[%s2 + $0x368] sm:$0xf]
    %v5831 = vld [vmem:[%s2 + $0x390] sm:$0xf]
    %v5832 = vld [vmem:[%s2 + $0x3b8] sm:$0xf]
    %v5833 = vld [vmem:[%s2 + $0x3e0] sm:$0xf]
    %v5834 = vld [vmem:[%s2 + $0x408] sm:$0xf]
    %v5835 = vld [vmem:[%s2 + $0x430] sm:$0xf]
    %v5836 = vld [vmem:[%s2 + $0x458] sm:$0xf]
    %v5837 = vld [vmem:[%s2 + $0x480] sm:$0xf]
    %v5838 = vld [vmem:[%s2 + $0x4a8] sm:$0xf]
    %v5839 = vld [vmem:[%s2 + $0x4d0] sm:$0xf]
    %v5840 = vld [vmem:[%s2 + $0x4f8] sm:$0xf]
    %v5841 = vlaneseq
    %v5842 = vshrl.u32 %v5841, 7
    %v5843 = vsub.s32 5, %v5842
    %v5844 = vrot.slane %v3484, %v5843
    %v5861 = vunpack.c.l.b16 %v5825
    %v5862 = vunpack.c.l.b16 %v5826
    %v5863 = vunpack.c.l.b16 %v5827
    %v5864 = vunpack.c.l.b16 %v5828
    %v5865 = vunpack.c.l.b16 %v5829
    %v5866 = vunpack.c.l.b16 %v5830
    %v5867 = vunpack.c.l.b16 %v5831
    %v5868 = vunpack.c.l.b16 %v5832
    %v5869 = vunpack.c.l.b16 %v5833
    %v5870 = vunpack.c.l.b16 %v5834
    %v5871 = vunpack.c.l.b16 %v5835
    %v5872 = vunpack.c.l.b16 %v5836
    %v5873 = vunpack.c.l.b16 %v5837
    %v5874 = vunpack.c.l.b16 %v5838
    %v5875 = vunpack.c.l.b16 %v5839
    %v5876 = vunpack.c.l.b16 %v5840
    %v5877 = vpack.c.b16 %v5862, %v5861
    %v5878 = vpack.c.b16 %v5864, %v5863
    %v5879 = vpack.c.b16 %v5866, %v5865
    %v5880 = vpack.c.b16 %v5868, %v5867
    %v5881 = vpack.c.b16 %v5870, %v5869
    %v5882 = vpack.c.b16 %v5872, %v5871
    %v5883 = vpack.c.b16 %v5874, %v5873
    %v5884 = vpack.c.b16 %v5876, %v5875
    %5893 = vmatprep.subr.bf16.mxu0 0
    %5894 = vmatpush1.bf16.msra.mxu0 %v5877
    %5895 = vmatprep.subr.bf16.mxu0 0
    %5896 = vmatpush1.bf16.msra.mxu0 %v5878
    %5897 = vmatprep.subr.bf16.mxu0 0
    %5898 = vmatpush1.bf16.msra.mxu0 %v5879
    %5899 = vmatprep.subr.bf16.mxu0 0
    %5900 = vmatpush1.bf16.msra.mxu0 %v5880
    %5901 = vmatprep.subr.bf16.mxu0 0
    %5902 = vmatpush1.bf16.msra.mxu0 %v5881
    %5903 = vmatprep.subr.bf16.mxu0 0
    %5904 = vmatpush1.bf16.msra.mxu0 %v5882
    %5905 = vmatprep.subr.bf16.mxu0 0
    %5906 = vmatpush1.bf16.msra.mxu0 %v5883
    %5907 = vmatprep.subr.bf16.mxu0 0
    %5908 = vmatpush1.bf16.msra.mxu0 %v5884
    %5909 = vmatprep.subr.bf16.mxu0 0
    %5910 = vmatpush1.bf16.msra.mxu0 0
    %5911 = vmatprep.subr.bf16.mxu0 0
    %5912 = vmatpush1.bf16.msra.mxu0 0
    %5913 = vmatprep.subr.bf16.mxu0 0
    %5914 = vmatpush1.bf16.msra.mxu0 0
    %5915 = vmatprep.subr.bf16.mxu0 0
    %5916 = vmatpush1.bf16.msra.mxu0 0
    %5917 = vmatprep.subr.bf16.mxu0 0
    %5918 = vmatpush1.bf16.msra.mxu0 0
    %5919 = vmatprep.subr.bf16.mxu0 0
    %5920 = vmatpush1.bf16.msra.mxu0 0
    %5921 = vmatprep.subr.bf16.mxu0 0
    %5922 = vmatpush1.bf16.msra.mxu0 0
    %5923 = vmatprep.subr.bf16.mxu0 0
    %5924 = vmatpush1.bf16.msra.mxu0 0
    %5925 = vmatprep.mubr.bf16.mxu0 0
    %5926 = vmatmul.mubr.bf16.gmra.mrb[0].mxu0 %v5821
    %v5927 = vpop.f32.mrb[0].mxu0
    %v5928 = vadd.f32 %v5844, %v5927
    %v5929 = vpop.f32.mrb[0].mxu0
    %v5930 = vpop.f32.mrb[0].mxu0
    %v5931 = vadd.f32 %v5844, %v5930
    %v5932 = vpop.f32.mrb[0].mxu0
    %5933 = vmatprep.mubr.bf16.mxu0 0
    %5934 = vmatmul.mubr.bf16.gmra.mrb[0].mxu0 %v5822
    %v5935 = vpop.f32.mrb[0].mxu0
    %v5936 = vadd.f32 %v5844, %v5935
    %v5937 = vpop.f32.mrb[0].mxu0
    %v5938 = vpop.f32.mrb[0].mxu0
    %v5939 = vadd.f32 %v5844, %v5938
    %v5940 = vpop.f32.mrb[0].mxu0
    %5941 = vmatprep.mubr.bf16.mxu0 0
    %5942 = vmatmul.mubr.bf16.gmra.mrb[0].mxu0 %v5823
    %v5943 = vpop.f32.mrb[0].mxu0
    %v5944 = vadd.f32 %v5844, %v5943
    %v5945 = vpop.f32.mrb[0].mxu0
    %v5946 = vpop.f32.mrb[0].mxu0
    %v5947 = vadd.f32 %v5844, %v5946
    %v5948 = vpop.f32.mrb[0].mxu0
    %5949 = vmatprep.mubr.bf16.mxu0 0
    %5950 = vmatmul.mubr.bf16.gmra.mrb[0].mxu0 %v5824
    %v5951 = vpop.f32.mrb[0].mxu0
    %v5952 = vadd.f32 %v5844, %v5951
    %v5953 = vpop.f32.mrb[0].mxu0
    %v5954 = vpop.f32.mrb[0].mxu0
    %v5955 = vadd.f32 %v5844, %v5954
    %v5956 = vpop.f32.mrb[0].mxu0
    %5957 = vdwg.mxu0
    %v5958 = vmul.f32 %v5928, %v5928
    %v5959 = vmul.f32 %v5931, %v5931
    %v5960 = vmul.f32 %v5936, %v5936
    %v5961 = vmul.f32 %v5939, %v5939
    %v5962 = vmul.f32 %v5944, %v5944
    %v5963 = vmul.f32 %v5947, %v5947
    %v5964 = vmul.f32 %v5952, %v5952
    %v5965 = vmul.f32 %v5955, %v5955
    %v5966 = vmul.f32 %v5928, %v5958
    %v5967 = vmul.f32 %v5931, %v5959
    %v5968 = vmul.f32 %v5936, %v5960
    %v5969 = vmul.f32 %v5939, %v5961
    %v5970 = vmul.f32 %v5944, %v5962
    %v5971 = vmul.f32 %v5947, %v5963
    %v5972 = vmul.f32 %v5952, %v5964
    %v5973 = vmul.f32 %v5955, %v5965
    %v5974 = vmul.f32 %v5966, 0.044715
    %v5975 = vmul.f32 %v5967, 0.044715
    %v5976 = vmul.f32 %v5968, 0.044715
    %v5977 = vmul.f32 %v5969, 0.044715
    %v5978 = vmul.f32 %v5970, 0.044715
    %v5979 = vmul.f32 %v5971, 0.044715
    %v5980 = vmul.f32 %v5972, 0.044715
    %v5981 = vmul.f32 %v5973, 0.044715
    %v5982 = vadd.f32 %v5928, %v5974
    %v5983 = vadd.f32 %v5931, %v5975
    %v5984 = vadd.f32 %v5936, %v5976
    %v5985 = vadd.f32 %v5939, %v5977
    %v5986 = vadd.f32 %v5944, %v5978
    %v5987 = vadd.f32 %v5947, %v5979
    %v5988 = vadd.f32 %v5952, %v5980
    %v5989 = vadd.f32 %v5955, %v5981
    %v5990 = vmul.f32 %v5982, 0.7978846
    %v5991 = vmul.f32 %v5983, 0.7978846
    %v5992 = vmul.f32 %v5984, 0.7978846
    %v5993 = vmul.f32 %v5985, 0.7978846
    %v5994 = vmul.f32 %v5986, 0.7978846
    %v5995 = vmul.f32 %v5987, 0.7978846
    %v5996 = vmul.f32 %v5988, 0.7978846
    %v5997 = vmul.f32 %v5989, 0.7978846
    %v5998 = vtanh.pop %v5990
    %v5999 = vtanh.pop %v5991
    %v6000 = vtanh.pop %v5992
    %v6001 = vtanh.pop %v5993
    %v6002 = vtanh.pop %v5994
    %v6003 = vtanh.pop %v5995
    %v6004 = vtanh.pop %v5996
    %v6005 = vtanh.pop %v5997
    %v6006 = vadd.f32 %v5998, 1.0
    %v6007 = vadd.f32 %v5999, 1.0
    %v6008 = vadd.f32 %v6000, 1.0
    %v6009 = vadd.f32 %v6001, 1.0
    %v6010 = vadd.f32 %v6002, 1.0
    %v6011 = vadd.f32 %v6003, 1.0
    %v6012 = vadd.f32 %v6004, 1.0
    %v6013 = vadd.f32 %v6005, 1.0
    %v6014 = vmul.f32 %v6006, 0.5
    %v6015 = vmul.f32 %v6007, 0.5
    %v6016 = vmul.f32 %v6008, 0.5
    %v6017 = vmul.f32 %v6009, 0.5
    %v6018 = vmul.f32 %v6010, 0.5
    %v6019 = vmul.f32 %v6011, 0.5
    %v6020 = vmul.f32 %v6012, 0.5
    %v6021 = vmul.f32 %v6013, 0.5
    %v6022 = vmul.f32 %v5928, %v6014
    %v6023 = vmul.f32 %v5931, %v6015
    %v6024 = vmul.f32 %v5936, %v6016
    %v6025 = vmul.f32 %v5939, %v6017
    %v6026 = vmul.f32 %v5944, %v6018
    %v6027 = vmul.f32 %v5947, %v6019
    %v6028 = vmul.f32 %v5952, %v6020
    %v6029 = vmul.f32 %v5955, %v6021
    %v6030 = vpack.c.bf16 %v6023, %v6022
    %v6031 = vpack.c.bf16 %v6025, %v6024
    %v6032 = vpack.c.bf16 %v6027, %v6026
    %v6033 = vpack.c.bf16 %v6029, %v6028
    %v6034 = vld [vmem:[%s2 + $0x2a4] sm:$0xf]
    %v6035 = vld [vmem:[%s2 + $0x2cc] sm:$0xf]
    %v6036 = vld [vmem:[%s2 + $0x2f4] sm:$0xf]
    %v6037 = vld [vmem:[%s2 + $0x31c] sm:$0xf]
    %v6038 = vld [vmem:[%s2 + $0x344] sm:$0xf]
    %v6039 = vld [vmem:[%s2 + $0x36c] sm:$0xf]
    %v6040 = vld [vmem:[%s2 + $0x394] sm:$0xf]
    %v6041 = vld [vmem:[%s2 + $0x3bc] sm:$0xf]
    %v6042 = vld [vmem:[%s2 + $0x3e4] sm:$0xf]
    %v6043 = vld [vmem:[%s2 + $0x40c] sm:$0xf]
    %v6044 = vld [vmem:[%s2 + $0x434] sm:$0xf]
    %v6045 = vld [vmem:[%s2 + $0x45c] sm:$0xf]
    %v6046 = vld [vmem:[%s2 + $0x484] sm:$0xf]
    %v6047 = vld [vmem:[%s2 + $0x4ac] sm:$0xf]
    %v6048 = vld [vmem:[%s2 + $0x4d4] sm:$0xf]
    %v6049 = vld [vmem:[%s2 + $0x4fc] sm:$0xf]
    %v6066 = vunpack.c.l.b16 %v6034
    %v6067 = vunpack.c.l.b16 %v6035
    %v6068 = vunpack.c.l.b16 %v6036
    %v6069 = vunpack.c.l.b16 %v6037
    %v6070 = vunpack.c.l.b16 %v6038
    %v6071 = vunpack.c.l.b16 %v6039
    %v6072 = vunpack.c.l.b16 %v6040
    %v6073 = vunpack.c.l.b16 %v6041
    %v6074 = vunpack.c.l.b16 %v6042
    %v6075 = vunpack.c.l.b16 %v6043
    %v6076 = vunpack.c.l.b16 %v6044
    %v6077 = vunpack.c.l.b16 %v6045
    %v6078 = vunpack.c.l.b16 %v6046
    %v6079 = vunpack.c.l.b16 %v6047
    %v6080 = vunpack.c.l.b16 %v6048
    %v6081 = vunpack.c.l.b16 %v6049
    %v6082 = vpack.c.b16 %v6067, %v6066
    %v6083 = vpack.c.b16 %v6069, %v6068
    %v6084 = vpack.c.b16 %v6071, %v6070
    %v6085 = vpack.c.b16 %v6073, %v6072
    %v6086 = vpack.c.b16 %v6075, %v6074
    %v6087 = vpack.c.b16 %v6077, %v6076
    %v6088 = vpack.c.b16 %v6079, %v6078
    %v6089 = vpack.c.b16 %v6081, %v6080
    %6098 = vmatprep.subr.bf16.mxu0 0
    %6099 = vmatpush1.bf16.msra.mxu0 %v6082
    %6100 = vmatprep.subr.bf16.mxu0 0
    %6101 = vmatpush1.bf16.msra.mxu0 %v6083
    %6102 = vmatprep.subr.bf16.mxu0 0
    %6103 = vmatpush1.bf16.msra.mxu0 %v6084
    %6104 = vmatprep.subr.bf16.mxu0 0
    %6105 = vmatpush1.bf16.msra.mxu0 %v6085
    %6106 = vmatprep.subr.bf16.mxu0 0
    %6107 = vmatpush1.bf16.msra.mxu0 %v6086
    %6108 = vmatprep.subr.bf16.mxu0 0
    %6109 = vmatpush1.bf16.msra.mxu0 %v6087
    %6110 = vmatprep.subr.bf16.mxu0 0
    %6111 = vmatpush1.bf16.msra.mxu0 %v6088
    %6112 = vmatprep.subr.bf16.mxu0 0
    %6113 = vmatpush1.bf16.msra.mxu0 %v6089
    %6114 = vmatprep.subr.bf16.mxu0 0
    %6115 = vmatpush1.bf16.msra.mxu0 0
    %6116 = vmatprep.subr.bf16.mxu0 0
    %6117 = vmatpush1.bf16.msra.mxu0 0
    %6118 = vmatprep.subr.bf16.mxu0 0
    %6119 = vmatpush1.bf16.msra.mxu0 0
    %6120 = vmatprep.subr.bf16.mxu0 0
    %6121 = vmatpush1.bf16.msra.mxu0 0
    %6122 = vmatprep.subr.bf16.mxu0 0
    %6123 = vmatpush1.bf16.msra.mxu0 0
    %6124 = vmatprep.subr.bf16.mxu0 0
    %6125 = vmatpush1.bf16.msra.mxu0 0
    %6126 = vmatprep.subr.bf16.mxu0 0
    %6127 = vmatpush1.bf16.msra.mxu0 0
    %6128 = vmatprep.subr.bf16.mxu0 0
    %6129 = vmatpush1.bf16.msra.mxu0 0
    %6130 = vmatprep.mubr.bf16.mxu0 0
    %6131 = vmatmul.mubr.bf16.gmra.mrb[0].mxu0 %v6030
    %v6132 = vpop.f32.mrb[0].mxu0
    %v6133 = vadd.f32 0.0, %v6132
    %v6134 = vpop.f32.mrb[0].mxu0
    %v6135 = vpop.f32.mrb[0].mxu0
    %v6136 = vpop.f32.mrb[0].mxu0
    %6137 = vmatprep.mubr.bf16.mxu0 0
    %6138 = vmatmul.mubr.bf16.gmra.mrb[0].mxu0 %v6031
    %v6139 = vpop.f32.mrb[0].mxu0
    %v6140 = vpop.f32.mrb[0].mxu0
    %v6141 = vpop.f32.mrb[0].mxu0
    %v6142 = vpop.f32.mrb[0].mxu0
    %6143 = vmatprep.mubr.bf16.mxu0 0
    %6144 = vmatmul.mubr.bf16.gmra.mrb[0].mxu0 %v6032
    %v6145 = vpop.f32.mrb[0].mxu0
    %v6146 = vadd.f32 0.0, %v6145
    %v6147 = vpop.f32.mrb[0].mxu0
    %v6148 = vpop.f32.mrb[0].mxu0
    %v6149 = vpop.f32.mrb[0].mxu0
    %6150 = vmatprep.mubr.bf16.mxu0 0
    %6151 = vmatmul.mubr.bf16.gmra.mrb[0].mxu0 %v6033
    %v6152 = vpop.f32.mrb[0].mxu0
    %v6153 = vpop.f32.mrb[0].mxu0
    %v6154 = vpop.f32.mrb[0].mxu0
    %v6155 = vpop.f32.mrb[0].mxu0
    %6156 = vdwg.mxu0
    %v6157 = vadd.f32 %v5685, %v6133
    %v6158 = vadd.f32 %v5689, %v6146
    %v6159 = vlaneseq
    %v6160 = vshrl.u32 %v6159, 7
    %v6161 = vsub.s32 6, %v6160
    %v6162 = vrot.slane %v3484, %v6161
    %v6163 = vadd.f32 %v6157, %v6162
    %v6164 = vadd.f32 %v6158, %v6162
    %v6166 = vrot.slane %v6164, 7
    %vm6168 = vcmask 1040384
    %v6169 = vsel %vm6168, %v6163, %v6166
    %v6170 = vld [vmem:[%s3 + $0x48] sm:$0x1]
    %v6171 = vld [vmem:[%s3 + $0x49] sm:$0x1]
    %vm6172 = vcmask 1041408
    %v6173 = vsel %vm6172, %v6169, 0.0
    %6174 = vadd.xlane.f32.xlu0 %v6173
    %v6175 = vpop.xlane.xlu0 %6174
    %v6176 = vmul.f32 %v6175, 0.03125
    %v6177 = vmul.f32 %v6169, %v6169
    %v6178 = vsel %vm6172, %v6177, 0.0
    %6179 = vadd.xlane.f32.xlu0 %v6178
    %v6180 = vpop.xlane.xlu0 %6179
    %v6181 = vmul.f32 %v6180, 0.03125
    %v6182 = vmul.f32 %v6176, %v6176
    %v6183 = vsub.f32 %v6181, %v6182
    %v6184 = vsub.f32 %v6169, %v6176
    %v6185 = vadd.f32 %v6183, 1e-06
    %v6186 = vrsqrt.pop %v6185
    %v6187 = vmul.f32 %v6184, %v6186
    %v6188 = vlaneseq
    %v6189 = vshrl.u32 %v6188, 7
    %v6190 = vsub.s32 0, %v6189
    %v6191 = vrot.slane %v6170, %v6190
    %v6192 = vmul.f32 %v6187, %v6191
    %v6193 = vlaneseq
    %v6194 = vshrl.u32 %v6193, 7
    %v6195 = vsub.s32 0, %v6194
    %v6196 = vrot.slane %v6171, %v6195
    %v6197 = vadd.f32 %v6192, %v6196
    %v6198 = vpack.c.bf16 %v6197, %v6197
    %v6199 = vld [vmem:[%s2 + $0x500] sm:$0xf]
    %v6200 = vld [vmem:[%s2 + $0x528] sm:$0xf]
    %v6201 = vld [vmem:[%s2 + $0x550] sm:$0xf]
    %v6202 = vld [vmem:[%s2 + $0x578] sm:$0xf]
    %v6203 = vld [vmem:[%s2 + $0x5a0] sm:$0xf]
    %v6204 = vld [vmem:[%s2 + $0x5c8] sm:$0xf]
    %v6205 = vld [vmem:[%s2 + $0x5f0] sm:$0xf]
    %v6206 = vld [vmem:[%s2 + $0x618] sm:$0xf]
    %v6207 = vld [vmem:[%s2 + $0x640] sm:$0xf]
    %v6208 = vld [vmem:[%s2 + $0x668] sm:$0xf]
    %v6209 = vld [vmem:[%s2 + $0x690] sm:$0xf]
    %v6210 = vld [vmem:[%s2 + $0x6b8] sm:$0xf]
    %v6211 = vld [vmem:[%s2 + $0x6e0] sm:$0xf]
    %v6212 = vld [vmem:[%s2 + $0x708] sm:$0xf]
    %v6213 = vld [vmem:[%s2 + $0x730] sm:$0xf]
    %v6214 = vld [vmem:[%s2 + $0x758] sm:$0xf]
    %v6215 = vld [vmem:[%s3 + $0x4a] sm:$0x1]
    %v6216 = vlaneseq
    %v6217 = vshrl.u32 %v6216, 7
    %v6218 = vsub.s32 0, %v6217
    %v6219 = vrot.slane %v6215, %v6218
    %v6236 = vunpack.c.l.b16 %v6199
    %v6237 = vunpack.c.l.b16 %v6200
    %v6238 = vunpack.c.l.b16 %v6201
    %v6239 = vunpack.c.l.b16 %v6202
    %v6240 = vunpack.c.l.b16 %v6203
    %v6241 = vunpack.c.l.b16 %v6204
    %v6242 = vunpack.c.l.b16 %v6205
    %v6243 = vunpack.c.l.b16 %v6206
    %v6244 = vunpack.c.l.b16 %v6207
    %v6245 = vunpack.c.l.b16 %v6208
    %v6246 = vunpack.c.l.b16 %v6209
    %v6247 = vunpack.c.l.b16 %v6210
    %v6248 = vunpack.c.l.b16 %v6211
    %v6249 = vunpack.c.l.b16 %v6212
    %v6250 = vunpack.c.l.b16 %v6213
    %v6251 = vunpack.c.l.b16 %v6214
    %v6252 = vpack.c.b16 %v6237, %v6236
    %v6253 = vpack.c.b16 %v6239, %v6238
    %v6254 = vpack.c.b16 %v6241, %v6240
    %v6255 = vpack.c.b16 %v6243, %v6242
    %v6256 = vpack.c.b16 %v6245, %v6244
    %v6257 = vpack.c.b16 %v6247, %v6246
    %v6258 = vpack.c.b16 %v6249, %v6248
    %v6259 = vpack.c.b16 %v6251, %v6250
    %6268 = vmatprep.subr.bf16.mxu0 0
    %6269 = vmatpush1.bf16.msra.mxu0 %v6252
    %6270 = vmatprep.subr.bf16.mxu0 0
    %6271 = vmatpush1.bf16.msra.mxu0 %v6253
    %6272 = vmatprep.subr.bf16.mxu0 0
    %6273 = vmatpush1.bf16.msra.mxu0 %v6254
    %6274 = vmatprep.subr.bf16.mxu0 0
    %6275 = vmatpush1.bf16.msra.mxu0 %v6255
    %6276 = vmatprep.subr.bf16.mxu0 0
    %6277 = vmatpush1.bf16.msra.mxu0 %v6256
    %6278 = vmatprep.subr.bf16.mxu0 0
    %6279 = vmatpush1.bf16.msra.mxu0 %v6257
    %6280 = vmatprep.subr.bf16.mxu0 0
    %6281 = vmatpush1.bf16.msra.mxu0 %v6258
    %6282 = vmatprep.subr.bf16.mxu0 0
    %6283 = vmatpush1.bf16.msra.mxu0 %v6259
    %6284 = vmatprep.subr.bf16.mxu0 0
    %6285 = vmatpush1.bf16.msra.mxu0 0
    %6286 = vmatprep.subr.bf16.mxu0 0
    %6287 = vmatpush1.bf16.msra.mxu0 0
    %6288 = vmatprep.subr.bf16.mxu0 0
    %6289 = vmatpush1.bf16.msra.mxu0 0
    %6290 = vmatprep.subr.bf16.mxu0 0
    %6291 = vmatpush1.bf16.msra.mxu0 0
    %6292 = vmatprep.subr.bf16.mxu0 0
    %6293 = vmatpush1.bf16.msra.mxu0 0
    %6294 = vmatprep.subr.bf16.mxu0 0
    %6295 = vmatpush1.bf16.msra.mxu0 0
    %6296 = vmatprep.subr.bf16.mxu0 0
    %6297 = vmatpush1.bf16.msra.mxu0 0
    %6298 = vmatprep.subr.bf16.mxu0 0
    %6299 = vmatpush1.bf16.msra.mxu0 0
    %6300 = vmatprep.mubr.bf16.mxu0 0
    %6301 = vmatmul.mubr.bf16.gmra.mrb[0].mxu0 %v6198
    %v6302 = vpop.f32.mrb[0].mxu0
    %v6303 = vadd.f32 %v6219, %v6302
    %v6304 = vpop.f32.mrb[0].mxu0
    %v6305 = vpop.f32.mrb[0].mxu0
    %v6306 = vpop.f32.mrb[0].mxu0
    %6307 = vdwg.mxu0
    %6308 = vst [vmem:[#allocation2] sm:$0x3] %v6303
    // Predicated region
    $region18: #{forward.1} parent=1 // pred_check
      _
    $region19: #{forward.1} parent=1 // pred_check_branch
      %6310 = sbr.rel (0) target = $region21
    $region20: #{forward.1} parent=1 // pred_region
      %s6312 = ssub.s32 32, 32
      %6313 = vsyncadd [#allocation3], %s6312
      %s6315 = sshll.u32 [#allocation2], 4
      %s6316 = int_to_ptr.vmem [resolvable:$true] %s6315
      %6318 = dma.vmem_to_hbm [thread:$0]  %s6316, 32, %s4, [#allocation3]
    $region21: #{forward.1} parent=1 // pred_fallthru
      _
    // Predicated region
    $region22: #{forward.1} parent=1 // pred_check
      _
    $region23: #{forward.1} parent=1 // pred_check_branch
      %6320 = sbr.rel (0) target = $region25
    $region24: #{forward.1} parent=1 // pred_region
      %6321 = dma.done [#allocation3], 32
    $region25: #{forward.1} parent=1 // pred_fallthru
      _
    %6322 = vsyncpa [#allocation3], 1

</llo_original>
